<compile_context>
chip_gen: v7x
topology: tpu7x:2x2x1
jax: 0.10.0
libtpu: 0.0.40
codegen_flags: <defaults>
</compile_context>

<pallas_src>
import functools

import jax
import jax.numpy as jnp
import numpy as np
from jax.experimental import pallas as pl
from jax.experimental.pallas import tpu as pltpu


def _fused_kernel(x_ref, w1_ref, b1_ref, w2_ref, b2_ref, w3_ref, b3_ref,
                  o_ref,
                  xpad_ref, a1_ref, a2_ref, p1_ref, p2_ref, p3_ref,
                  *, H, W):
    """One image per grid step; everything between input and conv3 output stays in VMEM.

    x_ref  : (1, H, W, 3)            input tile (f32)
    w*_ref : (K*K*Cin, Cout) bf16    im2col-reshaped weights
    b*_ref : (1, Cout) f32           biases
    o_ref  : (1, H, W, 12)           conv3+tanh output (only HBM write)
    xpad_ref/a1_ref/a2_ref           zero-padded activation scratch (f32)
    p1/p2/p3_ref                     im2col patch scratch (f32)
    """
    HW = H * W

    def im2col(src_ref, K, Cin, p_ref):
        # Build the (H*W, K*K*Cin) im2col matrix in VMEM, one shifted window
        # per kernel tap; column layout matches w.reshape(K*K*Cin, Cout).
        for kh in range(K):
            for kw in range(K):
                col = (kh * K + kw) * Cin
                win = src_ref[kh:kh + H, kw:kw + W, :]           # (H, W, Cin)
                p_ref[:, col:col + Cin] = win.reshape(HW, Cin)

    def conv_tanh(src_ref, K, Cin, p_ref, w_ref, b_ref):
        im2col(src_ref, K, Cin, p_ref)
        acc = jnp.dot(p_ref[...].astype(jnp.bfloat16),           # single MXU matmul
                      w_ref[...],
                      preferred_element_type=jnp.float32)
        return jnp.tanh(acc + b_ref[...])                        # f32 bias + tanh

    # Stage 0: zero-pad the input image into VMEM (pad=2 for the k5 conv).
    xpad_ref[...] = jnp.zeros_like(xpad_ref)
    xpad_ref[2:2 + H, 2:2 + W, :] = x_ref[0]

    # Stage 1: conv 3->64, k5, pad2, tanh  -> padded VMEM scratch for stage 2.
    a1_ref[...] = jnp.zeros_like(a1_ref)
    y1 = conv_tanh(xpad_ref, 5, 3, p1_ref, w1_ref, b1_ref)       # (HW, 64)
    a1_ref[1:1 + H, 1:1 + W, :] = y1.reshape(H, W, 64)

    # Stage 2: conv 64->32, k3, pad1, tanh -> padded VMEM scratch for stage 3.
    a2_ref[...] = jnp.zeros_like(a2_ref)
    y2 = conv_tanh(a1_ref, 3, 64, p2_ref, w2_ref, b2_ref)        # (HW, 32)
    a2_ref[1:1 + H, 1:1 + W, :] = y2.reshape(H, W, 32)

    # Stage 3: conv 32->12, k3, pad1, tanh -> the only HBM write of the kernel.
    y3 = conv_tanh(a2_ref, 3, 32, p3_ref, w3_ref, b3_ref)        # (HW, 12)
    o_ref[0] = y3.reshape(H, W, 12).astype(o_ref.dtype)


def pixel_shuffle_nchw(x, r):
    """torch.nn.PixelShuffle(r) on NCHW: (N, C*r^2, H, W) -> (N, C, H*r, W*r)."""
    N, C, H, W = x.shape
    Co = C // (r * r)
    x = x.reshape(N, Co, r, r, H, W)
    x = x.transpose(0, 1, 4, 2, 5, 3)
    return x.reshape(N, Co, H * r, W * r)


def fused_conv_stack(x_nhwc, params):
    """x_nhwc: (N, H, W, 3) f32 -> (N, H, W, 12) f32 via one fused Pallas kernel."""
    (w1, b1), (w2, b2), (w3, b3) = params
    N, H, W, Cin = x_nhwc.shape

    # im2col weight layout: (K, K, Cin, Cout) -> (K*K*Cin, Cout); bf16 for the MXU.
    w1m = w1.reshape(5 * 5 * 3, 64).astype(jnp.bfloat16)     # (75, 64)
    w2m = w2.reshape(3 * 3 * 64, 32).astype(jnp.bfloat16)    # (576, 32)
    w3m = w3.reshape(3 * 3 * 32, 12).astype(jnp.bfloat16)    # (288, 12)
    b1r = b1.reshape(1, 64).astype(jnp.float32)
    b2r = b2.reshape(1, 32).astype(jnp.float32)
    b3r = b3.reshape(1, 12).astype(jnp.float32)

    kernel = functools.partial(_fused_kernel, H=H, W=W)

    flops = 2 * N * H * W * (75 * 64 + 576 * 32 + 288 * 12)
    transcendentals = N * H * W * (64 + 32 + 12)
    bytes_accessed = (x_nhwc.size * 4 + N * H * W * 12 * 4
                      + (w1m.size + w2m.size + w3m.size) * 2
                      + (b1r.size + b2r.size + b3r.size) * 4)

    return pl.pallas_call(
        kernel,
        out_shape=jax.ShapeDtypeStruct((N, H, W, 12), jnp.float32),
        grid=(N,),
        in_specs=[
            pl.BlockSpec((1, H, W, Cin), lambda n: (n, 0, 0, 0)),
            pl.BlockSpec((75, 64), lambda n: (0, 0)),
            pl.BlockSpec((1, 64), lambda n: (0, 0)),
            pl.BlockSpec((576, 32), lambda n: (0, 0)),
            pl.BlockSpec((1, 32), lambda n: (0, 0)),
            pl.BlockSpec((288, 12), lambda n: (0, 0)),
            pl.BlockSpec((1, 12), lambda n: (0, 0)),
        ],
        out_specs=pl.BlockSpec((1, H, W, 12), lambda n: (n, 0, 0, 0)),
        scratch_shapes=[
            pltpu.VMEM((H + 4, W + 4, 3), jnp.float32),    # padded input
            pltpu.VMEM((H + 2, W + 2, 64), jnp.float32),   # padded conv1 act
            pltpu.VMEM((H + 2, W + 2, 32), jnp.float32),   # padded conv2 act
            pltpu.VMEM((H * W, 75), jnp.float32),          # conv1 im2col
            pltpu.VMEM((H * W, 576), jnp.float32),         # conv2 im2col
            pltpu.VMEM((H * W, 288), jnp.float32),         # conv3 im2col
        ],
        compiler_params=pltpu.CompilerParams(
            dimension_semantics=("parallel",),             # v7x: batch across 2 TCs
            vmem_limit_bytes=32 * 1024 * 1024,
        ),
        cost_estimate=pl.CostEstimate(
            flops=flops,
            transcendentals=transcendentals,
            bytes_accessed=bytes_accessed,
        ),
    )(x_nhwc, w1m, b1r, w2m, b2r, w3m, b3r)


def init_params(key):
    """Deterministic synthetic parameters with the module's shapes.

    PyTorch conv weight shape (Cout, Cin, K, K) is stored here as (K, K, Cin, Cout).
    """
    ks = jax.random.split(key, 6)

    def conv_init(kw, kb, K, cin, cout):
        fan_in = cin * K * K
        bound = 1.0 / np.sqrt(fan_in)
        w = jax.random.uniform(kw, (K, K, cin, cout), jnp.float32, -bound, bound)
        b = jax.random.uniform(kb, (cout,), jnp.float32, -bound, bound)
        return w, b

    w1, b1 = conv_init(ks[0], ks[1], 5, 3, 64)
    w2, b2 = conv_init(ks[2], ks[3], 3, 64, 32)
    w3, b3 = conv_init(ks[4], ks[5], 3, 32, 12)
    return (w1, b1), (w2, b2), (w3, b3)


@jax.jit
def pixel_shuffle_model(x_nchw, params):
    # NCHW <-> NHWC edges + PixelShuffle are trivial data movement (~12 KiB)
    # left to XLA; all conv+tanh compute happens in the single fused kernel.
    x = jnp.transpose(x_nchw, (0, 2, 3, 1))            # NCHW -> NHWC
    y = fused_conv_stack(x, params)                    # (N, H, W, 12)
    y = jnp.transpose(y, (0, 3, 1, 2))                 # NHWC -> NCHW
    return pixel_shuffle_nchw(y, 2)                    # (N, 3, 2H, 2W)


def _reference(x_nchw, params):
    """Pure-JAX f32 reference (lax conv) for a sanity check."""
    x = x_nchw
    for (w, b), pad in zip(params, (2, 1, 1)):
        w_oihw = jnp.transpose(w, (3, 2, 0, 1))        # (K,K,Cin,Cout) -> (Cout,Cin,K,K)
        x = jax.lax.conv_general_dilated(
            x, w_oihw, window_strides=(1, 1),
            padding=((pad, pad), (pad, pad)),
            dimension_numbers=("NCHW", "OIHW", "NCHW"))
        x = jnp.tanh(x + b.reshape(1, -1, 1, 1))
    return pixel_shuffle_nchw(x, 2)


if __name__ == "__main__":
    key = jax.random.PRNGKey(0)
    k_params, k_x = jax.random.split(key)

    params = init_params(k_params)
    x = jax.random.normal(k_x, (2, 3, 16, 16), dtype=jnp.float32)   # NCHW, like PyTorch

    out = pixel_shuffle_model(x, params)
    out = jax.block_until_ready(out)

    assert out.shape == (2, 3, 32, 32), out.shape

    ref = jax.block_until_ready(_reference(x, params))
    np.testing.assert_allclose(np.asarray(out), np.asarray(ref), atol=2e-2, rtol=2e-2)

    print("KERNEL_OK")
</pallas_src>

<mosaic_0001>
module attributes {stable_mosaic.version = 11 : i64} {
  func.func @_fused_kernel(%arg0: i32, %arg1: memref<1x16x16x3xf32, #tpu.memory_space<vmem>>, %arg2: memref<75x64xbf16, #tpu.memory_space<vmem>>, %arg3: memref<1x64xf32, #tpu.memory_space<vmem>>, %arg4: memref<576x32xbf16, #tpu.memory_space<vmem>>, %arg5: memref<1x32xf32, #tpu.memory_space<vmem>>, %arg6: memref<288x12xbf16, #tpu.memory_space<vmem>>, %arg7: memref<1x12xf32, #tpu.memory_space<vmem>>, %arg8: memref<1x16x16x12xf32, #tpu.memory_space<vmem>>, %arg9: memref<20x20x3xf32, #tpu.memory_space<vmem>>, %arg10: memref<18x18x64xf32, #tpu.memory_space<vmem>>, %arg11: memref<18x18x32xf32, #tpu.memory_space<vmem>>, %arg12: memref<256x75xf32, #tpu.memory_space<vmem>>, %arg13: memref<256x576xf32, #tpu.memory_space<vmem>>, %arg14: memref<256x288xf32, #tpu.memory_space<vmem>>) attributes {dimension_semantics = [#tpu.dimension_semantics<parallel>], iteration_bounds = array<i64: 2>, scalar_prefetch = 0 : i64, scratch_operands = 6 : i64, tpu.core_type = #tpu.core_type<tc>, window_params = [{transform_indices = @transform_0, window_bounds = array<i64: 1, 16, 16, 3>}, {pipeline_mode = #tpu.pipeline_mode<synchronous>, transform_indices = @transform_1, window_bounds = array<i64: 75, 64>}, {pipeline_mode = #tpu.pipeline_mode<synchronous>, transform_indices = @transform_2, window_bounds = array<i64: 1, 64>}, {pipeline_mode = #tpu.pipeline_mode<synchronous>, transform_indices = @transform_3, window_bounds = array<i64: 576, 32>}, {pipeline_mode = #tpu.pipeline_mode<synchronous>, transform_indices = @transform_4, window_bounds = array<i64: 1, 32>}, {pipeline_mode = #tpu.pipeline_mode<synchronous>, transform_indices = @transform_5, window_bounds = array<i64: 288, 12>}, {pipeline_mode = #tpu.pipeline_mode<synchronous>, transform_indices = @transform_6, window_bounds = array<i64: 1, 12>}, {transform_indices = @transform_7, window_bounds = array<i64: 1, 16, 16, 12>}]} {
    %cst = arith.constant 0.000000e+00 : f32
    %0 = vector.broadcast %cst : f32 to vector<20x20x3xf32>
    %c0 = arith.constant 0 : index
    %c0_0 = arith.constant 0 : index
    %c0_1 = arith.constant 0 : index
    %1 = vector.load %arg9[%c0, %c0_0, %c0_1] : memref<20x20x3xf32, #tpu.memory_space<vmem>>, vector<20x20x3xf32>
    tpu.vector_store %arg9[%c0, %c0_0, %c0_1], %0 {strides = array<i32>} : memref<20x20x3xf32, #tpu.memory_space<vmem>>, vector<20x20x3xf32>,
    %c0_2 = arith.constant 0 : index
    %c0_3 = arith.constant 0 : index
    %c0_4 = arith.constant 0 : index
    %c0_5 = arith.constant 0 : index
    %2 = vector.load %arg1[%c0_2, %c0_3, %c0_4, %c0_5] : memref<1x16x16x3xf32, #tpu.memory_space<vmem>>, vector<1x16x16x3xf32>
    %3 = vector.shape_cast %2 : vector<1x16x16x3xf32> to vector<16x16x3xf32>
    %c2 = arith.constant 2 : index
    %c2_6 = arith.constant 2 : index
    %c0_7 = arith.constant 0 : index
    %4 = vector.load %arg9[%c2, %c2_6, %c0_7] : memref<20x20x3xf32, #tpu.memory_space<vmem>>, vector<16x16x3xf32>
    tpu.vector_store %arg9[%c2, %c2_6, %c0_7], %3 {strides = array<i32>} : memref<20x20x3xf32, #tpu.memory_space<vmem>>, vector<16x16x3xf32>,
    %cst_8 = arith.constant 0.000000e+00 : f32
    %5 = vector.broadcast %cst_8 : f32 to vector<18x18x64xf32>
    %c0_9 = arith.constant 0 : index
    %c0_10 = arith.constant 0 : index
    %c0_11 = arith.constant 0 : index
    %6 = vector.load %arg10[%c0_9, %c0_10, %c0_11] : memref<18x18x64xf32, #tpu.memory_space<vmem>>, vector<18x18x64xf32>
    tpu.vector_store %arg10[%c0_9, %c0_10, %c0_11], %5 {strides = array<i32>} : memref<18x18x64xf32, #tpu.memory_space<vmem>>, vector<18x18x64xf32>,
    %c0_12 = arith.constant 0 : index
    %c0_13 = arith.constant 0 : index
    %c0_14 = arith.constant 0 : index
    %7 = vector.load %arg9[%c0_12, %c0_13, %c0_14] : memref<20x20x3xf32, #tpu.memory_space<vmem>>, vector<16x16x3xf32>
    %8 = vector.shape_cast %7 : vector<16x16x3xf32> to vector<256x3xf32>
    %c0_15 = arith.constant 0 : index
    %c0_16 = arith.constant 0 : index
    %9 = vector.load %arg12[%c0_15, %c0_16] : memref<256x75xf32, #tpu.memory_space<vmem>>, vector<256x3xf32>
    tpu.vector_store %arg12[%c0_15, %c0_16], %8 {strides = array<i32>} : memref<256x75xf32, #tpu.memory_space<vmem>>, vector<256x3xf32>,
    %c0_17 = arith.constant 0 : index
    %c1 = arith.constant 1 : index
    %c0_18 = arith.constant 0 : index
    %10 = vector.load %arg9[%c0_17, %c1, %c0_18] : memref<20x20x3xf32, #tpu.memory_space<vmem>>, vector<16x16x3xf32>
    %11 = vector.shape_cast %10 : vector<16x16x3xf32> to vector<256x3xf32>
    %c0_19 = arith.constant 0 : index
    %c3 = arith.constant 3 : index
    %12 = vector.load %arg12[%c0_19, %c3] : memref<256x75xf32, #tpu.memory_space<vmem>>, vector<256x3xf32>
    tpu.vector_store %arg12[%c0_19, %c3], %11 {strides = array<i32>} : memref<256x75xf32, #tpu.memory_space<vmem>>, vector<256x3xf32>,
    %c0_20 = arith.constant 0 : index
    %c2_21 = arith.constant 2 : index
    %c0_22 = arith.constant 0 : index
    %13 = vector.load %arg9[%c0_20, %c2_21, %c0_22] : memref<20x20x3xf32, #tpu.memory_space<vmem>>, vector<16x16x3xf32>
    %14 = vector.shape_cast %13 : vector<16x16x3xf32> to vector<256x3xf32>
    %c0_23 = arith.constant 0 : index
    %c6 = arith.constant 6 : index
    %15 = vector.load %arg12[%c0_23, %c6] : memref<256x75xf32, #tpu.memory_space<vmem>>, vector<256x3xf32>
    tpu.vector_store %arg12[%c0_23, %c6], %14 {strides = array<i32>} : memref<256x75xf32, #tpu.memory_space<vmem>>, vector<256x3xf32>,
    %c0_24 = arith.constant 0 : index
    %c3_25 = arith.constant 3 : index
    %c0_26 = arith.constant 0 : index
    %16 = vector.load %arg9[%c0_24, %c3_25, %c0_26] : memref<20x20x3xf32, #tpu.memory_space<vmem>>, vector<16x16x3xf32>
    %17 = vector.shape_cast %16 : vector<16x16x3xf32> to vector<256x3xf32>
    %c0_27 = arith.constant 0 : index
    %c9 = arith.constant 9 : index
    %18 = vector.load %arg12[%c0_27, %c9] : memref<256x75xf32, #tpu.memory_space<vmem>>, vector<256x3xf32>
    tpu.vector_store %arg12[%c0_27, %c9], %17 {strides = array<i32>} : memref<256x75xf32, #tpu.memory_space<vmem>>, vector<256x3xf32>,
    %c0_28 = arith.constant 0 : index
    %c4 = arith.constant 4 : index
    %c0_29 = arith.constant 0 : index
    %19 = vector.load %arg9[%c0_28, %c4, %c0_29] : memref<20x20x3xf32, #tpu.memory_space<vmem>>, vector<16x16x3xf32>
    %20 = vector.shape_cast %19 : vector<16x16x3xf32> to vector<256x3xf32>
    %c0_30 = arith.constant 0 : index
    %c12 = arith.constant 12 : index
    %21 = vector.load %arg12[%c0_30, %c12] : memref<256x75xf32, #tpu.memory_space<vmem>>, vector<256x3xf32>
    tpu.vector_store %arg12[%c0_30, %c12], %20 {strides = array<i32>} : memref<256x75xf32, #tpu.memory_space<vmem>>, vector<256x3xf32>,
    %c1_31 = arith.constant 1 : index
    %c0_32 = arith.constant 0 : index
    %c0_33 = arith.constant 0 : index
    %22 = vector.load %arg9[%c1_31, %c0_32, %c0_33] : memref<20x20x3xf32, #tpu.memory_space<vmem>>, vector<16x16x3xf32>
    %23 = vector.shape_cast %22 : vector<16x16x3xf32> to vector<256x3xf32>
    %c0_34 = arith.constant 0 : index
    %c15 = arith.constant 15 : index
    %24 = vector.load %arg12[%c0_34, %c15] : memref<256x75xf32, #tpu.memory_space<vmem>>, vector<256x3xf32>
    tpu.vector_store %arg12[%c0_34, %c15], %23 {strides = array<i32>} : memref<256x75xf32, #tpu.memory_space<vmem>>, vector<256x3xf32>,
    %c1_35 = arith.constant 1 : index
    %c1_36 = arith.constant 1 : index
    %c0_37 = arith.constant 0 : index
    %25 = vector.load %arg9[%c1_35, %c1_36, %c0_37] : memref<20x20x3xf32, #tpu.memory_space<vmem>>, vector<16x16x3xf32>
    %26 = vector.shape_cast %25 : vector<16x16x3xf32> to vector<256x3xf32>
    %c0_38 = arith.constant 0 : index
    %c18 = arith.constant 18 : index
    %27 = vector.load %arg12[%c0_38, %c18] : memref<256x75xf32, #tpu.memory_space<vmem>>, vector<256x3xf32>
    tpu.vector_store %arg12[%c0_38, %c18], %26 {strides = array<i32>} : memref<256x75xf32, #tpu.memory_space<vmem>>, vector<256x3xf32>,
    %c1_39 = arith.constant 1 : index
    %c2_40 = arith.constant 2 : index
    %c0_41 = arith.constant 0 : index
    %28 = vector.load %arg9[%c1_39, %c2_40, %c0_41] : memref<20x20x3xf32, #tpu.memory_space<vmem>>, vector<16x16x3xf32>
    %29 = vector.shape_cast %28 : vector<16x16x3xf32> to vector<256x3xf32>
    %c0_42 = arith.constant 0 : index
    %c21 = arith.constant 21 : index
    %30 = vector.load %arg12[%c0_42, %c21] : memref<256x75xf32, #tpu.memory_space<vmem>>, vector<256x3xf32>
    tpu.vector_store %arg12[%c0_42, %c21], %29 {strides = array<i32>} : memref<256x75xf32, #tpu.memory_space<vmem>>, vector<256x3xf32>,
    %c1_43 = arith.constant 1 : index
    %c3_44 = arith.constant 3 : index
    %c0_45 = arith.constant 0 : index
    %31 = vector.load %arg9[%c1_43, %c3_44, %c0_45] : memref<20x20x3xf32, #tpu.memory_space<vmem>>, vector<16x16x3xf32>
    %32 = vector.shape_cast %31 : vector<16x16x3xf32> to vector<256x3xf32>
    %c0_46 = arith.constant 0 : index
    %c24 = arith.constant 24 : index
    %33 = vector.load %arg12[%c0_46, %c24] : memref<256x75xf32, #tpu.memory_space<vmem>>, vector<256x3xf32>
    tpu.vector_store %arg12[%c0_46, %c24], %32 {strides = array<i32>} : memref<256x75xf32, #tpu.memory_space<vmem>>, vector<256x3xf32>,
    %c1_47 = arith.constant 1 : index
    %c4_48 = arith.constant 4 : index
    %c0_49 = arith.constant 0 : index
    %34 = vector.load %arg9[%c1_47, %c4_48, %c0_49] : memref<20x20x3xf32, #tpu.memory_space<vmem>>, vector<16x16x3xf32>
    %35 = vector.shape_cast %34 : vector<16x16x3xf32> to vector<256x3xf32>
    %c0_50 = arith.constant 0 : index
    %c27 = arith.constant 27 : index
    %36 = vector.load %arg12[%c0_50, %c27] : memref<256x75xf32, #tpu.memory_space<vmem>>, vector<256x3xf32>
    tpu.vector_store %arg12[%c0_50, %c27], %35 {strides = array<i32>} : memref<256x75xf32, #tpu.memory_space<vmem>>, vector<256x3xf32>,
    %c2_51 = arith.constant 2 : index
    %c0_52 = arith.constant 0 : index
    %c0_53 = arith.constant 0 : index
    %37 = vector.load %arg9[%c2_51, %c0_52, %c0_53] : memref<20x20x3xf32, #tpu.memory_space<vmem>>, vector<16x16x3xf32>
    %38 = vector.shape_cast %37 : vector<16x16x3xf32> to vector<256x3xf32>
    %c0_54 = arith.constant 0 : index
    %c30 = arith.constant 30 : index
    %39 = vector.load %arg12[%c0_54, %c30] : memref<256x75xf32, #tpu.memory_space<vmem>>, vector<256x3xf32>
    tpu.vector_store %arg12[%c0_54, %c30], %38 {strides = array<i32>} : memref<256x75xf32, #tpu.memory_space<vmem>>, vector<256x3xf32>,
    %c2_55 = arith.constant 2 : index
    %c1_56 = arith.constant 1 : index
    %c0_57 = arith.constant 0 : index
    %40 = vector.load %arg9[%c2_55, %c1_56, %c0_57] : memref<20x20x3xf32, #tpu.memory_space<vmem>>, vector<16x16x3xf32>
    %41 = vector.shape_cast %40 : vector<16x16x3xf32> to vector<256x3xf32>
    %c0_58 = arith.constant 0 : index
    %c33 = arith.constant 33 : index
    %42 = vector.load %arg12[%c0_58, %c33] : memref<256x75xf32, #tpu.memory_space<vmem>>, vector<256x3xf32>
    tpu.vector_store %arg12[%c0_58, %c33], %41 {strides = array<i32>} : memref<256x75xf32, #tpu.memory_space<vmem>>, vector<256x3xf32>,
    %c2_59 = arith.constant 2 : index
    %c2_60 = arith.constant 2 : index
    %c0_61 = arith.constant 0 : index
    %43 = vector.load %arg9[%c2_59, %c2_60, %c0_61] : memref<20x20x3xf32, #tpu.memory_space<vmem>>, vector<16x16x3xf32>
    %44 = vector.shape_cast %43 : vector<16x16x3xf32> to vector<256x3xf32>
    %c0_62 = arith.constant 0 : index
    %c36 = arith.constant 36 : index
    %45 = vector.load %arg12[%c0_62, %c36] : memref<256x75xf32, #tpu.memory_space<vmem>>, vector<256x3xf32>
    tpu.vector_store %arg12[%c0_62, %c36], %44 {strides = array<i32>} : memref<256x75xf32, #tpu.memory_space<vmem>>, vector<256x3xf32>,
    %c2_63 = arith.constant 2 : index
    %c3_64 = arith.constant 3 : index
    %c0_65 = arith.constant 0 : index
    %46 = vector.load %arg9[%c2_63, %c3_64, %c0_65] : memref<20x20x3xf32, #tpu.memory_space<vmem>>, vector<16x16x3xf32>
    %47 = vector.shape_cast %46 : vector<16x16x3xf32> to vector<256x3xf32>
    %c0_66 = arith.constant 0 : index
    %c39 = arith.constant 39 : index
    %48 = vector.load %arg12[%c0_66, %c39] : memref<256x75xf32, #tpu.memory_space<vmem>>, vector<256x3xf32>
    tpu.vector_store %arg12[%c0_66, %c39], %47 {strides = array<i32>} : memref<256x75xf32, #tpu.memory_space<vmem>>, vector<256x3xf32>,
    %c2_67 = arith.constant 2 : index
    %c4_68 = arith.constant 4 : index
    %c0_69 = arith.constant 0 : index
    %49 = vector.load %arg9[%c2_67, %c4_68, %c0_69] : memref<20x20x3xf32, #tpu.memory_space<vmem>>, vector<16x16x3xf32>
    %50 = vector.shape_cast %49 : vector<16x16x3xf32> to vector<256x3xf32>
    %c0_70 = arith.constant 0 : index
    %c42 = arith.constant 42 : index
    %51 = vector.load %arg12[%c0_70, %c42] : memref<256x75xf32, #tpu.memory_space<vmem>>, vector<256x3xf32>
    tpu.vector_store %arg12[%c0_70, %c42], %50 {strides = array<i32>} : memref<256x75xf32, #tpu.memory_space<vmem>>, vector<256x3xf32>,
    %c3_71 = arith.constant 3 : index
    %c0_72 = arith.constant 0 : index
    %c0_73 = arith.constant 0 : index
    %52 = vector.load %arg9[%c3_71, %c0_72, %c0_73] : memref<20x20x3xf32, #tpu.memory_space<vmem>>, vector<16x16x3xf32>
    %53 = vector.shape_cast %52 : vector<16x16x3xf32> to vector<256x3xf32>
    %c0_74 = arith.constant 0 : index
    %c45 = arith.constant 45 : index
    %54 = vector.load %arg12[%c0_74, %c45] : memref<256x75xf32, #tpu.memory_space<vmem>>, vector<256x3xf32>
    tpu.vector_store %arg12[%c0_74, %c45], %53 {strides = array<i32>} : memref<256x75xf32, #tpu.memory_space<vmem>>, vector<256x3xf32>,
    %c3_75 = arith.constant 3 : index
    %c1_76 = arith.constant 1 : index
    %c0_77 = arith.constant 0 : index
    %55 = vector.load %arg9[%c3_75, %c1_76, %c0_77] : memref<20x20x3xf32, #tpu.memory_space<vmem>>, vector<16x16x3xf32>
    %56 = vector.shape_cast %55 : vector<16x16x3xf32> to vector<256x3xf32>
    %c0_78 = arith.constant 0 : index
    %c48 = arith.constant 48 : index
    %57 = vector.load %arg12[%c0_78, %c48] : memref<256x75xf32, #tpu.memory_space<vmem>>, vector<256x3xf32>
    tpu.vector_store %arg12[%c0_78, %c48], %56 {strides = array<i32>} : memref<256x75xf32, #tpu.memory_space<vmem>>, vector<256x3xf32>,
    %c3_79 = arith.constant 3 : index
    %c2_80 = arith.constant 2 : index
    %c0_81 = arith.constant 0 : index
    %58 = vector.load %arg9[%c3_79, %c2_80, %c0_81] : memref<20x20x3xf32, #tpu.memory_space<vmem>>, vector<16x16x3xf32>
    %59 = vector.shape_cast %58 : vector<16x16x3xf32> to vector<256x3xf32>
    %c0_82 = arith.constant 0 : index
    %c51 = arith.constant 51 : index
    %60 = vector.load %arg12[%c0_82, %c51] : memref<256x75xf32, #tpu.memory_space<vmem>>, vector<256x3xf32>
    tpu.vector_store %arg12[%c0_82, %c51], %59 {strides = array<i32>} : memref<256x75xf32, #tpu.memory_space<vmem>>, vector<256x3xf32>,
    %c3_83 = arith.constant 3 : index
    %c3_84 = arith.constant 3 : index
    %c0_85 = arith.constant 0 : index
    %61 = vector.load %arg9[%c3_83, %c3_84, %c0_85] : memref<20x20x3xf32, #tpu.memory_space<vmem>>, vector<16x16x3xf32>
    %62 = vector.shape_cast %61 : vector<16x16x3xf32> to vector<256x3xf32>
    %c0_86 = arith.constant 0 : index
    %c54 = arith.constant 54 : index
    %63 = vector.load %arg12[%c0_86, %c54] : memref<256x75xf32, #tpu.memory_space<vmem>>, vector<256x3xf32>
    tpu.vector_store %arg12[%c0_86, %c54], %62 {strides = array<i32>} : memref<256x75xf32, #tpu.memory_space<vmem>>, vector<256x3xf32>,
    %c3_87 = arith.constant 3 : index
    %c4_88 = arith.constant 4 : index
    %c0_89 = arith.constant 0 : index
    %64 = vector.load %arg9[%c3_87, %c4_88, %c0_89] : memref<20x20x3xf32, #tpu.memory_space<vmem>>, vector<16x16x3xf32>
    %65 = vector.shape_cast %64 : vector<16x16x3xf32> to vector<256x3xf32>
    %c0_90 = arith.constant 0 : index
    %c57 = arith.constant 57 : index
    %66 = vector.load %arg12[%c0_90, %c57] : memref<256x75xf32, #tpu.memory_space<vmem>>, vector<256x3xf32>
    tpu.vector_store %arg12[%c0_90, %c57], %65 {strides = array<i32>} : memref<256x75xf32, #tpu.memory_space<vmem>>, vector<256x3xf32>,
    %c4_91 = arith.constant 4 : index
    %c0_92 = arith.constant 0 : index
    %c0_93 = arith.constant 0 : index
    %67 = vector.load %arg9[%c4_91, %c0_92, %c0_93] : memref<20x20x3xf32, #tpu.memory_space<vmem>>, vector<16x16x3xf32>
    %68 = vector.shape_cast %67 : vector<16x16x3xf32> to vector<256x3xf32>
    %c0_94 = arith.constant 0 : index
    %c60 = arith.constant 60 : index
    %69 = vector.load %arg12[%c0_94, %c60] : memref<256x75xf32, #tpu.memory_space<vmem>>, vector<256x3xf32>
    tpu.vector_store %arg12[%c0_94, %c60], %68 {strides = array<i32>} : memref<256x75xf32, #tpu.memory_space<vmem>>, vector<256x3xf32>,
    %c4_95 = arith.constant 4 : index
    %c1_96 = arith.constant 1 : index
    %c0_97 = arith.constant 0 : index
    %70 = vector.load %arg9[%c4_95, %c1_96, %c0_97] : memref<20x20x3xf32, #tpu.memory_space<vmem>>, vector<16x16x3xf32>
    %71 = vector.shape_cast %70 : vector<16x16x3xf32> to vector<256x3xf32>
    %c0_98 = arith.constant 0 : index
    %c63 = arith.constant 63 : index
    %72 = vector.load %arg12[%c0_98, %c63] : memref<256x75xf32, #tpu.memory_space<vmem>>, vector<256x3xf32>
    tpu.vector_store %arg12[%c0_98, %c63], %71 {strides = array<i32>} : memref<256x75xf32, #tpu.memory_space<vmem>>, vector<256x3xf32>,
    %c4_99 = arith.constant 4 : index
    %c2_100 = arith.constant 2 : index
    %c0_101 = arith.constant 0 : index
    %73 = vector.load %arg9[%c4_99, %c2_100, %c0_101] : memref<20x20x3xf32, #tpu.memory_space<vmem>>, vector<16x16x3xf32>
    %74 = vector.shape_cast %73 : vector<16x16x3xf32> to vector<256x3xf32>
    %c0_102 = arith.constant 0 : index
    %c66 = arith.constant 66 : index
    %75 = vector.load %arg12[%c0_102, %c66] : memref<256x75xf32, #tpu.memory_space<vmem>>, vector<256x3xf32>
    tpu.vector_store %arg12[%c0_102, %c66], %74 {strides = array<i32>} : memref<256x75xf32, #tpu.memory_space<vmem>>, vector<256x3xf32>,
    %c4_103 = arith.constant 4 : index
    %c3_104 = arith.constant 3 : index
    %c0_105 = arith.constant 0 : index
    %76 = vector.load %arg9[%c4_103, %c3_104, %c0_105] : memref<20x20x3xf32, #tpu.memory_space<vmem>>, vector<16x16x3xf32>
    %77 = vector.shape_cast %76 : vector<16x16x3xf32> to vector<256x3xf32>
    %c0_106 = arith.constant 0 : index
    %c69 = arith.constant 69 : index
    %78 = vector.load %arg12[%c0_106, %c69] : memref<256x75xf32, #tpu.memory_space<vmem>>, vector<256x3xf32>
    tpu.vector_store %arg12[%c0_106, %c69], %77 {strides = array<i32>} : memref<256x75xf32, #tpu.memory_space<vmem>>, vector<256x3xf32>,
    %c4_107 = arith.constant 4 : index
    %c4_108 = arith.constant 4 : index
    %c0_109 = arith.constant 0 : index
    %79 = vector.load %arg9[%c4_107, %c4_108, %c0_109] : memref<20x20x3xf32, #tpu.memory_space<vmem>>, vector<16x16x3xf32>
    %80 = vector.shape_cast %79 : vector<16x16x3xf32> to vector<256x3xf32>
    %c0_110 = arith.constant 0 : index
    %c72 = arith.constant 72 : index
    %81 = vector.load %arg12[%c0_110, %c72] : memref<256x75xf32, #tpu.memory_space<vmem>>, vector<256x3xf32>
    tpu.vector_store %arg12[%c0_110, %c72], %80 {strides = array<i32>} : memref<256x75xf32, #tpu.memory_space<vmem>>, vector<256x3xf32>,
    %c0_111 = arith.constant 0 : index
    %c0_112 = arith.constant 0 : index
    %82 = vector.load %arg12[%c0_111, %c0_112] : memref<256x75xf32, #tpu.memory_space<vmem>>, vector<256x75xf32>
    %83 = arith.truncf %82 : vector<256x75xf32> to vector<256x75xbf16>
    %c0_113 = arith.constant 0 : index
    %c0_114 = arith.constant 0 : index
    %84 = vector.load %arg2[%c0_113, %c0_114] : memref<75x64xbf16, #tpu.memory_space<vmem>>, vector<75x64xbf16>
    %cst_115 = arith.constant dense<0.000000e+00> : vector<256x64xf32>
    %85 = tpu.matmul %83, %84, %cst_115 {dimension_numbers = #tpu.dot_dimension_numbers<[1], [0], [0], [1], [0, 0, 1, 1], [], []>} : vector<256x75xbf16>, vector<75x64xbf16>, vector<256x64xf32> -> vector<256x64xf32>
    %c0_116 = arith.constant 0 : index
    %c0_117 = arith.constant 0 : index
    %86 = vector.load %arg3[%c0_116, %c0_117] : memref<1x64xf32, #tpu.memory_space<vmem>>, vector<1x64xf32>
    %87 = vector.broadcast %86 : vector<1x64xf32> to vector<256x64xf32>
    %88 = arith.addf %85, %87 : vector<256x64xf32>
    %89 = math.tanh %88 : vector<256x64xf32>
    %90 = vector.shape_cast %89 : vector<256x64xf32> to vector<16x16x64xf32>
    %c1_118 = arith.constant 1 : index
    %c1_119 = arith.constant 1 : index
    %c0_120 = arith.constant 0 : index
    %91 = vector.load %arg10[%c1_118, %c1_119, %c0_120] : memref<18x18x64xf32, #tpu.memory_space<vmem>>, vector<16x16x64xf32>
    tpu.vector_store %arg10[%c1_118, %c1_119, %c0_120], %90 {strides = array<i32>} : memref<18x18x64xf32, #tpu.memory_space<vmem>>, vector<16x16x64xf32>,
    %cst_121 = arith.constant 0.000000e+00 : f32
    %92 = vector.broadcast %cst_121 : f32 to vector<18x18x32xf32>
    %c0_122 = arith.constant 0 : index
    %c0_123 = arith.constant 0 : index
    %c0_124 = arith.constant 0 : index
    %93 = vector.load %arg11[%c0_122, %c0_123, %c0_124] : memref<18x18x32xf32, #tpu.memory_space<vmem>>, vector<18x18x32xf32>
    tpu.vector_store %arg11[%c0_122, %c0_123, %c0_124], %92 {strides = array<i32>} : memref<18x18x32xf32, #tpu.memory_space<vmem>>, vector<18x18x32xf32>,
    %c0_125 = arith.constant 0 : index
    %c0_126 = arith.constant 0 : index
    %c0_127 = arith.constant 0 : index
    %94 = vector.load %arg10[%c0_125, %c0_126, %c0_127] : memref<18x18x64xf32, #tpu.memory_space<vmem>>, vector<16x16x64xf32>
    %95 = vector.shape_cast %94 : vector<16x16x64xf32> to vector<256x64xf32>
    %c0_128 = arith.constant 0 : index
    %c0_129 = arith.constant 0 : index
    %96 = vector.load %arg13[%c0_128, %c0_129] : memref<256x576xf32, #tpu.memory_space<vmem>>, vector<256x64xf32>
    tpu.vector_store %arg13[%c0_128, %c0_129], %95 {strides = array<i32>} : memref<256x576xf32, #tpu.memory_space<vmem>>, vector<256x64xf32>,
    %c0_130 = arith.constant 0 : index
    %c1_131 = arith.constant 1 : index
    %c0_132 = arith.constant 0 : index
    %97 = vector.load %arg10[%c0_130, %c1_131, %c0_132] : memref<18x18x64xf32, #tpu.memory_space<vmem>>, vector<16x16x64xf32>
    %98 = vector.shape_cast %97 : vector<16x16x64xf32> to vector<256x64xf32>
    %c0_133 = arith.constant 0 : index
    %c64 = arith.constant 64 : index
    %99 = vector.load %arg13[%c0_133, %c64] : memref<256x576xf32, #tpu.memory_space<vmem>>, vector<256x64xf32>
    tpu.vector_store %arg13[%c0_133, %c64], %98 {strides = array<i32>} : memref<256x576xf32, #tpu.memory_space<vmem>>, vector<256x64xf32>,
    %c0_134 = arith.constant 0 : index
    %c2_135 = arith.constant 2 : index
    %c0_136 = arith.constant 0 : index
    %100 = vector.load %arg10[%c0_134, %c2_135, %c0_136] : memref<18x18x64xf32, #tpu.memory_space<vmem>>, vector<16x16x64xf32>
    %101 = vector.shape_cast %100 : vector<16x16x64xf32> to vector<256x64xf32>
    %c0_137 = arith.constant 0 : index
    %c128 = arith.constant 128 : index
    %102 = vector.load %arg13[%c0_137, %c128] : memref<256x576xf32, #tpu.memory_space<vmem>>, vector<256x64xf32>
    tpu.vector_store %arg13[%c0_137, %c128], %101 {strides = array<i32>} : memref<256x576xf32, #tpu.memory_space<vmem>>, vector<256x64xf32>,
    %c1_138 = arith.constant 1 : index
    %c0_139 = arith.constant 0 : index
    %c0_140 = arith.constant 0 : index
    %103 = vector.load %arg10[%c1_138, %c0_139, %c0_140] : memref<18x18x64xf32, #tpu.memory_space<vmem>>, vector<16x16x64xf32>
    %104 = vector.shape_cast %103 : vector<16x16x64xf32> to vector<256x64xf32>
    %c0_141 = arith.constant 0 : index
    %c192 = arith.constant 192 : index
    %105 = vector.load %arg13[%c0_141, %c192] : memref<256x576xf32, #tpu.memory_space<vmem>>, vector<256x64xf32>
    tpu.vector_store %arg13[%c0_141, %c192], %104 {strides = array<i32>} : memref<256x576xf32, #tpu.memory_space<vmem>>, vector<256x64xf32>,
    %c1_142 = arith.constant 1 : index
    %c1_143 = arith.constant 1 : index
    %c0_144 = arith.constant 0 : index
    %106 = vector.load %arg10[%c1_142, %c1_143, %c0_144] : memref<18x18x64xf32, #tpu.memory_space<vmem>>, vector<16x16x64xf32>
    %107 = vector.shape_cast %106 : vector<16x16x64xf32> to vector<256x64xf32>
    %c0_145 = arith.constant 0 : index
    %c256 = arith.constant 256 : index
    %108 = vector.load %arg13[%c0_145, %c256] : memref<256x576xf32, #tpu.memory_space<vmem>>, vector<256x64xf32>
    tpu.vector_store %arg13[%c0_145, %c256], %107 {strides = array<i32>} : memref<256x576xf32, #tpu.memory_space<vmem>>, vector<256x64xf32>,
    %c1_146 = arith.constant 1 : index
    %c2_147 = arith.constant 2 : index
    %c0_148 = arith.constant 0 : index
    %109 = vector.load %arg10[%c1_146, %c2_147, %c0_148] : memref<18x18x64xf32, #tpu.memory_space<vmem>>, vector<16x16x64xf32>
    %110 = vector.shape_cast %109 : vector<16x16x64xf32> to vector<256x64xf32>
    %c0_149 = arith.constant 0 : index
    %c320 = arith.constant 320 : index
    %111 = vector.load %arg13[%c0_149, %c320] : memref<256x576xf32, #tpu.memory_space<vmem>>, vector<256x64xf32>
    tpu.vector_store %arg13[%c0_149, %c320], %110 {strides = array<i32>} : memref<256x576xf32, #tpu.memory_space<vmem>>, vector<256x64xf32>,
    %c2_150 = arith.constant 2 : index
    %c0_151 = arith.constant 0 : index
    %c0_152 = arith.constant 0 : index
    %112 = vector.load %arg10[%c2_150, %c0_151, %c0_152] : memref<18x18x64xf32, #tpu.memory_space<vmem>>, vector<16x16x64xf32>
    %113 = vector.shape_cast %112 : vector<16x16x64xf32> to vector<256x64xf32>
    %c0_153 = arith.constant 0 : index
    %c384 = arith.constant 384 : index
    %114 = vector.load %arg13[%c0_153, %c384] : memref<256x576xf32, #tpu.memory_space<vmem>>, vector<256x64xf32>
    tpu.vector_store %arg13[%c0_153, %c384], %113 {strides = array<i32>} : memref<256x576xf32, #tpu.memory_space<vmem>>, vector<256x64xf32>,
    %c2_154 = arith.constant 2 : index
    %c1_155 = arith.constant 1 : index
    %c0_156 = arith.constant 0 : index
    %115 = vector.load %arg10[%c2_154, %c1_155, %c0_156] : memref<18x18x64xf32, #tpu.memory_space<vmem>>, vector<16x16x64xf32>
    %116 = vector.shape_cast %115 : vector<16x16x64xf32> to vector<256x64xf32>
    %c0_157 = arith.constant 0 : index
    %c448 = arith.constant 448 : index
    %117 = vector.load %arg13[%c0_157, %c448] : memref<256x576xf32, #tpu.memory_space<vmem>>, vector<256x64xf32>
    tpu.vector_store %arg13[%c0_157, %c448], %116 {strides = array<i32>} : memref<256x576xf32, #tpu.memory_space<vmem>>, vector<256x64xf32>,
    %c2_158 = arith.constant 2 : index
    %c2_159 = arith.constant 2 : index
    %c0_160 = arith.constant 0 : index
    %118 = vector.load %arg10[%c2_158, %c2_159, %c0_160] : memref<18x18x64xf32, #tpu.memory_space<vmem>>, vector<16x16x64xf32>
    %119 = vector.shape_cast %118 : vector<16x16x64xf32> to vector<256x64xf32>
    %c0_161 = arith.constant 0 : index
    %c512 = arith.constant 512 : index
    %120 = vector.load %arg13[%c0_161, %c512] : memref<256x576xf32, #tpu.memory_space<vmem>>, vector<256x64xf32>
    tpu.vector_store %arg13[%c0_161, %c512], %119 {strides = array<i32>} : memref<256x576xf32, #tpu.memory_space<vmem>>, vector<256x64xf32>,
    %c0_162 = arith.constant 0 : index
    %c0_163 = arith.constant 0 : index
    %121 = vector.load %arg13[%c0_162, %c0_163] : memref<256x576xf32, #tpu.memory_space<vmem>>, vector<256x576xf32>
    %122 = arith.truncf %121 : vector<256x576xf32> to vector<256x576xbf16>
    %c0_164 = arith.constant 0 : index
    %c0_165 = arith.constant 0 : index
    %123 = vector.load %arg4[%c0_164, %c0_165] : memref<576x32xbf16, #tpu.memory_space<vmem>>, vector<576x32xbf16>
    %cst_166 = arith.constant dense<0.000000e+00> : vector<256x32xf32>
    %124 = tpu.matmul %122, %123, %cst_166 {dimension_numbers = #tpu.dot_dimension_numbers<[1], [0], [0], [1], [0, 0, 1, 1], [], []>} : vector<256x576xbf16>, vector<576x32xbf16>, vector<256x32xf32> -> vector<256x32xf32>
    %c0_167 = arith.constant 0 : index
    %c0_168 = arith.constant 0 : index
    %125 = vector.load %arg5[%c0_167, %c0_168] : memref<1x32xf32, #tpu.memory_space<vmem>>, vector<1x32xf32>
    %126 = vector.broadcast %125 : vector<1x32xf32> to vector<256x32xf32>
    %127 = arith.addf %124, %126 : vector<256x32xf32>
    %128 = math.tanh %127 : vector<256x32xf32>
    %129 = vector.shape_cast %128 : vector<256x32xf32> to vector<16x16x32xf32>
    %c1_169 = arith.constant 1 : index
    %c1_170 = arith.constant 1 : index
    %c0_171 = arith.constant 0 : index
    %130 = vector.load %arg11[%c1_169, %c1_170, %c0_171] : memref<18x18x32xf32, #tpu.memory_space<vmem>>, vector<16x16x32xf32>
    tpu.vector_store %arg11[%c1_169, %c1_170, %c0_171], %129 {strides = array<i32>} : memref<18x18x32xf32, #tpu.memory_space<vmem>>, vector<16x16x32xf32>,
    %c0_172 = arith.constant 0 : index
    %c0_173 = arith.constant 0 : index
    %c0_174 = arith.constant 0 : index
    %131 = vector.load %arg11[%c0_172, %c0_173, %c0_174] : memref<18x18x32xf32, #tpu.memory_space<vmem>>, vector<16x16x32xf32>
    %132 = vector.shape_cast %131 : vector<16x16x32xf32> to vector<256x32xf32>
    %c0_175 = arith.constant 0 : index
    %c0_176 = arith.constant 0 : index
    %133 = vector.load %arg14[%c0_175, %c0_176] : memref<256x288xf32, #tpu.memory_space<vmem>>, vector<256x32xf32>
    tpu.vector_store %arg14[%c0_175, %c0_176], %132 {strides = array<i32>} : memref<256x288xf32, #tpu.memory_space<vmem>>, vector<256x32xf32>,
    %c0_177 = arith.constant 0 : index
    %c1_178 = arith.constant 1 : index
    %c0_179 = arith.constant 0 : index
    %134 = vector.load %arg11[%c0_177, %c1_178, %c0_179] : memref<18x18x32xf32, #tpu.memory_space<vmem>>, vector<16x16x32xf32>
    %135 = vector.shape_cast %134 : vector<16x16x32xf32> to vector<256x32xf32>
    %c0_180 = arith.constant 0 : index
    %c32 = arith.constant 32 : index
    %136 = vector.load %arg14[%c0_180, %c32] : memref<256x288xf32, #tpu.memory_space<vmem>>, vector<256x32xf32>
    tpu.vector_store %arg14[%c0_180, %c32], %135 {strides = array<i32>} : memref<256x288xf32, #tpu.memory_space<vmem>>, vector<256x32xf32>,
    %c0_181 = arith.constant 0 : index
    %c2_182 = arith.constant 2 : index
    %c0_183 = arith.constant 0 : index
    %137 = vector.load %arg11[%c0_181, %c2_182, %c0_183] : memref<18x18x32xf32, #tpu.memory_space<vmem>>, vector<16x16x32xf32>
    %138 = vector.shape_cast %137 : vector<16x16x32xf32> to vector<256x32xf32>
    %c0_184 = arith.constant 0 : index
    %c64_185 = arith.constant 64 : index
    %139 = vector.load %arg14[%c0_184, %c64_185] : memref<256x288xf32, #tpu.memory_space<vmem>>, vector<256x32xf32>
    tpu.vector_store %arg14[%c0_184, %c64_185], %138 {strides = array<i32>} : memref<256x288xf32, #tpu.memory_space<vmem>>, vector<256x32xf32>,
    %c1_186 = arith.constant 1 : index
    %c0_187 = arith.constant 0 : index
    %c0_188 = arith.constant 0 : index
    %140 = vector.load %arg11[%c1_186, %c0_187, %c0_188] : memref<18x18x32xf32, #tpu.memory_space<vmem>>, vector<16x16x32xf32>
    %141 = vector.shape_cast %140 : vector<16x16x32xf32> to vector<256x32xf32>
    %c0_189 = arith.constant 0 : index
    %c96 = arith.constant 96 : index
    %142 = vector.load %arg14[%c0_189, %c96] : memref<256x288xf32, #tpu.memory_space<vmem>>, vector<256x32xf32>
    tpu.vector_store %arg14[%c0_189, %c96], %141 {strides = array<i32>} : memref<256x288xf32, #tpu.memory_space<vmem>>, vector<256x32xf32>,
    %c1_190 = arith.constant 1 : index
    %c1_191 = arith.constant 1 : index
    %c0_192 = arith.constant 0 : index
    %143 = vector.load %arg11[%c1_190, %c1_191, %c0_192] : memref<18x18x32xf32, #tpu.memory_space<vmem>>, vector<16x16x32xf32>
    %144 = vector.shape_cast %143 : vector<16x16x32xf32> to vector<256x32xf32>
    %c0_193 = arith.constant 0 : index
    %c128_194 = arith.constant 128 : index
    %145 = vector.load %arg14[%c0_193, %c128_194] : memref<256x288xf32, #tpu.memory_space<vmem>>, vector<256x32xf32>
    tpu.vector_store %arg14[%c0_193, %c128_194], %144 {strides = array<i32>} : memref<256x288xf32, #tpu.memory_space<vmem>>, vector<256x32xf32>,
    %c1_195 = arith.constant 1 : index
    %c2_196 = arith.constant 2 : index
    %c0_197 = arith.constant 0 : index
    %146 = vector.load %arg11[%c1_195, %c2_196, %c0_197] : memref<18x18x32xf32, #tpu.memory_space<vmem>>, vector<16x16x32xf32>
    %147 = vector.shape_cast %146 : vector<16x16x32xf32> to vector<256x32xf32>
    %c0_198 = arith.constant 0 : index
    %c160 = arith.constant 160 : index
    %148 = vector.load %arg14[%c0_198, %c160] : memref<256x288xf32, #tpu.memory_space<vmem>>, vector<256x32xf32>
    tpu.vector_store %arg14[%c0_198, %c160], %147 {strides = array<i32>} : memref<256x288xf32, #tpu.memory_space<vmem>>, vector<256x32xf32>,
    %c2_199 = arith.constant 2 : index
    %c0_200 = arith.constant 0 : index
    %c0_201 = arith.constant 0 : index
    %149 = vector.load %arg11[%c2_199, %c0_200, %c0_201] : memref<18x18x32xf32, #tpu.memory_space<vmem>>, vector<16x16x32xf32>
    %150 = vector.shape_cast %149 : vector<16x16x32xf32> to vector<256x32xf32>
    %c0_202 = arith.constant 0 : index
    %c192_203 = arith.constant 192 : index
    %151 = vector.load %arg14[%c0_202, %c192_203] : memref<256x288xf32, #tpu.memory_space<vmem>>, vector<256x32xf32>
    tpu.vector_store %arg14[%c0_202, %c192_203], %150 {strides = array<i32>} : memref<256x288xf32, #tpu.memory_space<vmem>>, vector<256x32xf32>,
    %c2_204 = arith.constant 2 : index
    %c1_205 = arith.constant 1 : index
    %c0_206 = arith.constant 0 : index
    %152 = vector.load %arg11[%c2_204, %c1_205, %c0_206] : memref<18x18x32xf32, #tpu.memory_space<vmem>>, vector<16x16x32xf32>
    %153 = vector.shape_cast %152 : vector<16x16x32xf32> to vector<256x32xf32>
    %c0_207 = arith.constant 0 : index
    %c224 = arith.constant 224 : index
    %154 = vector.load %arg14[%c0_207, %c224] : memref<256x288xf32, #tpu.memory_space<vmem>>, vector<256x32xf32>
    tpu.vector_store %arg14[%c0_207, %c224], %153 {strides = array<i32>} : memref<256x288xf32, #tpu.memory_space<vmem>>, vector<256x32xf32>,
    %c2_208 = arith.constant 2 : index
    %c2_209 = arith.constant 2 : index
    %c0_210 = arith.constant 0 : index
    %155 = vector.load %arg11[%c2_208, %c2_209, %c0_210] : memref<18x18x32xf32, #tpu.memory_space<vmem>>, vector<16x16x32xf32>
    %156 = vector.shape_cast %155 : vector<16x16x32xf32> to vector<256x32xf32>
    %c0_211 = arith.constant 0 : index
    %c256_212 = arith.constant 256 : index
    %157 = vector.load %arg14[%c0_211, %c256_212] : memref<256x288xf32, #tpu.memory_space<vmem>>, vector<256x32xf32>
    tpu.vector_store %arg14[%c0_211, %c256_212], %156 {strides = array<i32>} : memref<256x288xf32, #tpu.memory_space<vmem>>, vector<256x32xf32>,
    %c0_213 = arith.constant 0 : index
    %c0_214 = arith.constant 0 : index
    %158 = vector.load %arg14[%c0_213, %c0_214] : memref<256x288xf32, #tpu.memory_space<vmem>>, vector<256x288xf32>
    %159 = arith.truncf %158 : vector<256x288xf32> to vector<256x288xbf16>
    %c0_215 = arith.constant 0 : index
    %c0_216 = arith.constant 0 : index
    %160 = vector.load %arg6[%c0_215, %c0_216] : memref<288x12xbf16, #tpu.memory_space<vmem>>, vector<288x12xbf16>
    %cst_217 = arith.constant dense<0.000000e+00> : vector<256x12xf32>
    %161 = tpu.matmul %159, %160, %cst_217 {dimension_numbers = #tpu.dot_dimension_numbers<[1], [0], [0], [1], [0, 0, 1, 1], [], []>} : vector<256x288xbf16>, vector<288x12xbf16>, vector<256x12xf32> -> vector<256x12xf32>
    %c0_218 = arith.constant 0 : index
    %c0_219 = arith.constant 0 : index
    %162 = vector.load %arg7[%c0_218, %c0_219] : memref<1x12xf32, #tpu.memory_space<vmem>>, vector<1x12xf32>
    %163 = vector.broadcast %162 : vector<1x12xf32> to vector<256x12xf32>
    %164 = arith.addf %161, %163 : vector<256x12xf32>
    %165 = math.tanh %164 : vector<256x12xf32>
    %166 = vector.shape_cast %165 : vector<256x12xf32> to vector<16x16x12xf32>
    %c0_220 = arith.constant 0 : index
    %c0_221 = arith.constant 0 : index
    %c0_222 = arith.constant 0 : index
    %c0_223 = arith.constant 0 : index
    %167 = vector.load %arg8[%c0_220, %c0_221, %c0_222, %c0_223] : memref<1x16x16x12xf32, #tpu.memory_space<vmem>>, vector<1x16x16x12xf32>
    %168 = vector.shape_cast %167 : vector<1x16x16x12xf32> to vector<16x16x12xf32>
    %169 = vector.shape_cast %166 : vector<16x16x12xf32> to vector<1x16x16x12xf32>
    tpu.vector_store %arg8[%c0_220, %c0_221, %c0_222, %c0_223], %169 {strides = array<i32>} : memref<1x16x16x12xf32, #tpu.memory_space<vmem>>, vector<1x16x16x12xf32>,
    return
  }
  func.func @transform_0(%arg0: i32) -> (i32, i32, i32, i32) {
    %c0_i32 = arith.constant 0 : i32
    %c0_i32_0 = arith.constant 0 : i32
    %c0_i32_1 = arith.constant 0 : i32
    %c0_i32_2 = arith.constant 0 : i32
    return %arg0, %c0_i32, %c0_i32_0, %c0_i32_1 : i32, i32, i32, i32
  }
  func.func @transform_1(%arg0: i32) -> (i32, i32) {
    %c0_i32 = arith.constant 0 : i32
    %c0_i32_0 = arith.constant 0 : i32
    %c0_i32_1 = arith.constant 0 : i32
    return %c0_i32, %c0_i32_0 : i32, i32
  }
  func.func @transform_2(%arg0: i32) -> (i32, i32) {
    %c0_i32 = arith.constant 0 : i32
    %c0_i32_0 = arith.constant 0 : i32
    %c0_i32_1 = arith.constant 0 : i32
    return %c0_i32, %c0_i32_0 : i32, i32
  }
  func.func @transform_3(%arg0: i32) -> (i32, i32) {
    %c0_i32 = arith.constant 0 : i32
    %c0_i32_0 = arith.constant 0 : i32
    %c0_i32_1 = arith.constant 0 : i32
    return %c0_i32, %c0_i32_0 : i32, i32
  }
  func.func @transform_4(%arg0: i32) -> (i32, i32) {
    %c0_i32 = arith.constant 0 : i32
    %c0_i32_0 = arith.constant 0 : i32
    %c0_i32_1 = arith.constant 0 : i32
    return %c0_i32, %c0_i32_0 : i32, i32
  }
  func.func @transform_5(%arg0: i32) -> (i32, i32) {
    %c0_i32 = arith.constant 0 : i32
    %c0_i32_0 = arith.constant 0 : i32
    %c0_i32_1 = arith.constant 0 : i32
    return %c0_i32, %c0_i32_0 : i32, i32
  }
  func.func @transform_6(%arg0: i32) -> (i32, i32) {
    %c0_i32 = arith.constant 0 : i32
    %c0_i32_0 = arith.constant 0 : i32
    %c0_i32_1 = arith.constant 0 : i32
    return %c0_i32, %c0_i32_0 : i32, i32
  }
  func.func @transform_7(%arg0: i32) -> (i32, i32, i32, i32) {
    %c0_i32 = arith.constant 0 : i32
    %c0_i32_0 = arith.constant 0 : i32
    %c0_i32_1 = arith.constant 0 : i32
    %c0_i32_2 = arith.constant 0 : i32
    return %arg0, %c0_i32, %c0_i32_0, %c0_i32_1 : i32, i32, i32, i32
  }
}

</mosaic_0001>

<llo_original>
// kernel: pixel_shuffle_model.1
$region0: #{pixel_shuffle_model.1}
  #allocation0 [shape = 'u32[]', space=smem, size = 0x4, offset = 0x4, fixed_abs, tag = 'smem constant byte address 0x4 - core index']
  #allocation1 [shape = 'u32[144,128]{1,0:T(1,128)}', space=vmem, size = 0x12000, scoped, tag = 'internal scratch']
  #allocation2 [shape = 'f32[20,20,3]{2,1,0:T(8,128)}', space=vmem, size = 0x3c000, scoped, tag = 'scratch operand']
  #allocation3 [shape = 'f32[18,18,64]{2,1,0:T(8,128)}', space=vmem, size = 0x36000, scoped, tag = 'scratch operand']
  #allocation4 [shape = 'f32[18,18,32]{2,1,0:T(8,128)}', space=vmem, size = 0x36000, scoped, tag = 'scratch operand']
  #allocation5 [shape = 'f32[256,75]{1,0:T(8,128)}', space=vmem, size = 0x20000, scoped, tag = 'scratch operand']
  #allocation6 [shape = 'f32[256,576]{1,0:T(8,128)}', space=vmem, size = 0xa0000, scoped, tag = 'scratch operand']
  #allocation7 [shape = 'f32[256,288]{1,0:T(8,128)}', space=vmem, size = 0x60000, scoped, tag = 'scratch operand']
  %s0 = inlined_call_operand.vmem [shape: f32[2,16,16,3], index: 0, kind: input, shape index: {}]
  %s1 = inlined_call_operand.vmem [shape: bf16[75,64], index: 1, kind: input, shape index: {}]
  %s2 = inlined_call_operand.hbm [shape: f32[1,64], index: 2, kind: input, shape index: {}]
  %s3 = inlined_call_operand.vmem [shape: bf16[576,32], index: 3, kind: input, shape index: {}]
  %s4 = inlined_call_operand.hbm [shape: f32[1,32], index: 4, kind: input, shape index: {}]
  %s5 = inlined_call_operand.vmem [shape: bf16[288,12], index: 5, kind: input, shape index: {}]
  %s6 = inlined_call_operand.hbm [shape: f32[1,12], index: 6, kind: input, shape index: {}]
  %s7 = inlined_call_operand.vmem [shape: f32[2,16,16,12], index: 7, kind: output, shape index: {}]
  %s8 = sld [smem:[#allocation0]]
  $region73: #{pixel_shuffle_model.1} parent=0
    _
  %s10 = ssub.s32 1, %s8
  %s11 = scalar_select 0, %s10, %s8
  $region1: #{pixel_shuffle_model.1} parent=0
    #allocation8 [shape = 'u8[512]{0}', space=vmem, size = 0x400, scoped, tag = 'input window, operand 2, single buffered']
    #allocation9 [shape = 's32[2]{0}', space=sflag, size = 0x8, scoped, tag = 'scoped memory for pixel_shuffle_model.1']
    #allocation10 [shape = 'u8[512]{0}', space=vmem, size = 0x400, scoped, tag = 'input window, operand 4, single buffered']
    #allocation11 [shape = 's32[1]{0}', space=sflag, size = 0x4, scoped, tag = 'scoped memory for pixel_shuffle_model.1']
    #allocation12 [shape = 'u8[512]{0}', space=vmem, size = 0x400, scoped, tag = 'input window, operand 6, single buffered']
    %12 = vsyncpa [#allocation9], 0
    %13 = vsyncpa [#allocation11], 0
    loop: start=0, step=1, limit=4
    $region2: #{pixel_shuffle_model.1} parent=1 // loop_pre_header
      _
    $region3: #{pixel_shuffle_model.1} parent=1 // loop_header
      %s15 = sphi 0, %s19
      %p16 = scmp.ge.s32.totalorder %s15, 4
      %s25 = sphi 0, %s27
      %s28 = sphi 0, %s25
      %s29 = sphi 0, %s28
      %s45 = sphi 0, %s29
      %s49 = sphi 0, %s49
      %s51 = sphi 0, %s49
      %s52 = sphi 0, %s51
      %s66 = sphi 0, %s52
      %s70 = sphi 0, %s70
      %s72 = sphi 0, %s70
      %s73 = sphi 0, %s72
      %s87 = sphi 0, %s73
      %s91 = sphi 0, %s91
      %s93 = sphi 0, %s91
      %s94 = sphi 0, %s93
      %s108 = sphi 0, %s94
      %s112 = sphi 0, %s112
      %s114 = sphi 0, %s112
      %s115 = sphi 0, %s114
      %s129 = sphi 0, %s115
      %s133 = sphi 0, %s133
      %s135 = sphi 0, %s133
      %s136 = sphi 0, %s135
      %s150 = sphi 0, %s136
      %s154 = sphi 0, %s154
      %s156 = sphi 0, %s154
      %s157 = sphi 0, %s156
      %s171 = sphi 0, %s157
      %s177 = sphi 0, %s179
      %s180 = sphi 0, %s177
      %s181 = sphi 0, %s180
      %s197 = sphi 0, %s181
    $region4: #{pixel_shuffle_model.1} parent=1 // loop_header_branch
      %18 = sbr.rel (%p16) target = $region8
    $region5: #{pixel_shuffle_model.1} parent=1 // loop_body
      %s20 = ssub.s32 %s15, 1
      %s21 = ssub.s32 %s15, 2
      %s22 = sadd.s32 %s15, 1
      %s23 = ssub.s32 %s15, %s22
      %p24 = scmp.eq.s32.totalorder %s23, 0
      %s26 = sadd.s32 %s25, 1
      %s27 = scalar_select %p24, %s25, %s26
      %p30 = pneg %p24
      %p31 = scmp.eq.s32.totalorder %s15, 1
      %p32 = por %p30, %p31
      %p33 = scmp.ne.s32.totalorder %s25, %s28
      %p34 = scmp.eq.s32.totalorder %s15, 0
      %p35 = por %p33, %p34
      %p36 = scmp.ne.s32.totalorder %s25, %s28
      %p37 = scmp.eq.s32.totalorder %s20, 1
      %p38 = por %p36, %p37
      %p39 = scmp.ne.s32.totalorder %s28, %s29
      %p40 = scmp.eq.s32.totalorder %s20, 0
      %p41 = por %p39, %p40
      %p42 = scmp.ne.s32.totalorder %s28, %s29
      %p43 = scmp.eq.s32.totalorder %s21, 1
      %p44 = por %p42, %p43
      %p46 = scmp.ne.s32.totalorder %s29, %s45
      %p47 = scmp.eq.s32.totalorder %s21, 0
      %p48 = por %p46, %p47
      %s50 = sadd.s32 %s49, 1
      %p53 = scmp.eq.s32.totalorder %s15, 1
      %p54 = scmp.ne.s32.totalorder %s49, %s51
      %p55 = scmp.eq.s32.totalorder %s15, 0
      %p56 = por %p54, %p55
      %p57 = scmp.ne.s32.totalorder %s49, %s51
      %p58 = scmp.eq.s32.totalorder %s20, 1
      %p59 = por %p57, %p58
      %p60 = scmp.ne.s32.totalorder %s51, %s52
      %p61 = scmp.eq.s32.totalorder %s20, 0
      %p62 = por %p60, %p61
      %p63 = scmp.ne.s32.totalorder %s51, %s52
      %p64 = scmp.eq.s32.totalorder %s21, 1
      %p65 = por %p63, %p64
      %p67 = scmp.ne.s32.totalorder %s52, %s66
      %p68 = scmp.eq.s32.totalorder %s21, 0
      %p69 = por %p67, %p68
      %s71 = sadd.s32 %s70, 1
      %p74 = scmp.eq.s32.totalorder %s15, 1
      %p75 = scmp.ne.s32.totalorder %s70, %s72
      %p76 = scmp.eq.s32.totalorder %s15, 0
      %p77 = por %p75, %p76
      %p78 = scmp.ne.s32.totalorder %s70, %s72
      %p79 = scmp.eq.s32.totalorder %s20, 1
      %p80 = por %p78, %p79
      %p81 = scmp.ne.s32.totalorder %s72, %s73
      %p82 = scmp.eq.s32.totalorder %s20, 0
      %p83 = por %p81, %p82
      %p84 = scmp.ne.s32.totalorder %s72, %s73
      %p85 = scmp.eq.s32.totalorder %s21, 1
      %p86 = por %p84, %p85
      %p88 = scmp.ne.s32.totalorder %s73, %s87
      %p89 = scmp.eq.s32.totalorder %s21, 0
      %p90 = por %p88, %p89
      %s92 = sadd.s32 %s91, 1
      %p95 = scmp.eq.s32.totalorder %s15, 1
      %p96 = scmp.ne.s32.totalorder %s91, %s93
      %p97 = scmp.eq.s32.totalorder %s15, 0
      %p98 = por %p96, %p97
      %p99 = scmp.ne.s32.totalorder %s91, %s93
      %p100 = scmp.eq.s32.totalorder %s20, 1
      %p101 = por %p99, %p100
      %p102 = scmp.ne.s32.totalorder %s93, %s94
      %p103 = scmp.eq.s32.totalorder %s20, 0
      %p104 = por %p102, %p103
      %p105 = scmp.ne.s32.totalorder %s93, %s94
      %p106 = scmp.eq.s32.totalorder %s21, 1
      %p107 = por %p105, %p106
      %p109 = scmp.ne.s32.totalorder %s94, %s108
      %p110 = scmp.eq.s32.totalorder %s21, 0
      %p111 = por %p109, %p110
      %s113 = sadd.s32 %s112, 1
      %p116 = scmp.eq.s32.totalorder %s15, 1
      %p117 = scmp.ne.s32.totalorder %s112, %s114
      %p118 = scmp.eq.s32.totalorder %s15, 0
      %p119 = por %p117, %p118
      %p120 = scmp.ne.s32.totalorder %s112, %s114
      %p121 = scmp.eq.s32.totalorder %s20, 1
      %p122 = por %p120, %p121
      %p123 = scmp.ne.s32.totalorder %s114, %s115
      %p124 = scmp.eq.s32.totalorder %s20, 0
      %p125 = por %p123, %p124
      %p126 = scmp.ne.s32.totalorder %s114, %s115
      %p127 = scmp.eq.s32.totalorder %s21, 1
      %p128 = por %p126, %p127
      %p130 = scmp.ne.s32.totalorder %s115, %s129
      %p131 = scmp.eq.s32.totalorder %s21, 0
      %p132 = por %p130, %p131
      %s134 = sadd.s32 %s133, 1
      %p137 = scmp.eq.s32.totalorder %s15, 1
      %p138 = scmp.ne.s32.totalorder %s133, %s135
      %p139 = scmp.eq.s32.totalorder %s15, 0
      %p140 = por %p138, %p139
      %p141 = scmp.ne.s32.totalorder %s133, %s135
      %p142 = scmp.eq.s32.totalorder %s20, 1
      %p143 = por %p141, %p142
      %p144 = scmp.ne.s32.totalorder %s135, %s136
      %p145 = scmp.eq.s32.totalorder %s20, 0
      %p146 = por %p144, %p145
      %p147 = scmp.ne.s32.totalorder %s135, %s136
      %p148 = scmp.eq.s32.totalorder %s21, 1
      %p149 = por %p147, %p148
      %p151 = scmp.ne.s32.totalorder %s136, %s150
      %p152 = scmp.eq.s32.totalorder %s21, 0
      %p153 = por %p151, %p152
      %s155 = sadd.s32 %s154, 1
      %p158 = scmp.eq.s32.totalorder %s15, 1
      %p159 = scmp.ne.s32.totalorder %s154, %s156
      %p160 = scmp.eq.s32.totalorder %s15, 0
      %p161 = por %p159, %p160
      %p162 = scmp.ne.s32.totalorder %s154, %s156
      %p163 = scmp.eq.s32.totalorder %s20, 1
      %p164 = por %p162, %p163
      %p165 = scmp.ne.s32.totalorder %s156, %s157
      %p166 = scmp.eq.s32.totalorder %s20, 0
      %p167 = por %p165, %p166
      %p168 = scmp.ne.s32.totalorder %s156, %s157
      %p169 = scmp.eq.s32.totalorder %s21, 1
      %p170 = por %p168, %p169
      %p172 = scmp.ne.s32.totalorder %s157, %s171
      %p173 = scmp.eq.s32.totalorder %s21, 0
      %p174 = por %p172, %p173
      %s175 = ssub.s32 %s15, %s22
      %p176 = scmp.eq.s32.totalorder %s175, 0
      %s178 = sadd.s32 %s177, 1
      %s179 = scalar_select %p176, %s177, %s178
      %p182 = pneg %p176
      %p183 = scmp.eq.s32.totalorder %s15, 1
      %p184 = por %p182, %p183
      %p185 = scmp.ne.s32.totalorder %s177, %s180
      %p186 = scmp.eq.s32.totalorder %s15, 0
      %p187 = por %p185, %p186
      %p188 = scmp.ne.s32.totalorder %s177, %s180
      %p189 = scmp.eq.s32.totalorder %s20, 1
      %p190 = por %p188, %p189
      %p191 = scmp.ne.s32.totalorder %s180, %s181
      %p192 = scmp.eq.s32.totalorder %s20, 0
      %p193 = por %p191, %p192
      %p194 = scmp.ne.s32.totalorder %s180, %s181
      %p195 = scmp.eq.s32.totalorder %s21, 1
      %p196 = por %p194, %p195
      %p198 = scmp.ne.s32.totalorder %s181, %s197
      %p199 = scmp.eq.s32.totalorder %s21, 0
      %p200 = por %p198, %p199
      %p201 = scmp.le.s32.totalorder 1, %s15
      %p202 = scmp.lt.s32.totalorder %s15, 3
      %p203 = pnand %p201, %p202
      %p204 = pneg %p203
      // Predicated region
      $region9: #{pixel_shuffle_model.1} parent=5 // pred_check
        _
      $region10: #{pixel_shuffle_model.1} parent=5 // pred_check_branch
        %206 = sbr.rel (%p203) target = $region12
      $region11: #{pixel_shuffle_model.1} parent=5 // pred_region
        %s207 = ssub.s32 %s15, 1
        // Predicated region
        $region13: #{pixel_shuffle_model.1} parent=11 // pred_check
          %p208 = pneg %p62
        $region14: #{pixel_shuffle_model.1} parent=11 // pred_check_branch
          %210 = sbr.rel (%p208) target = $region16
        $region15: #{pixel_shuffle_model.1} parent=11 // pred_region
          _
        $region16: #{pixel_shuffle_model.1} parent=11 // pred_fallthru
          _
        // Predicated region
        $region17: #{pixel_shuffle_model.1} parent=11 // pred_check
          %p211 = pneg %p83
        $region18: #{pixel_shuffle_model.1} parent=11 // pred_check_branch
          %213 = sbr.rel (%p211) target = $region20
        $region19: #{pixel_shuffle_model.1} parent=11 // pred_region
          %s215 = ssub.s32 16, 16
          %216 = vsyncadd [#allocation9], %s215
          %s218 = sshll.u32 [#allocation8], 4
          %s219 = int_to_ptr.vmem [resolvable:$true] %s218
          %221 = dma.hbm_to_vmem [thread:$0]  %s2, 16, %s219, [#allocation9]
        $region20: #{pixel_shuffle_model.1} parent=11 // pred_fallthru
          _
        // Predicated region
        $region21: #{pixel_shuffle_model.1} parent=11 // pred_check
          %p222 = pneg %p104
        $region22: #{pixel_shuffle_model.1} parent=11 // pred_check_branch
          %224 = sbr.rel (%p222) target = $region24
        $region23: #{pixel_shuffle_model.1} parent=11 // pred_region
          _
        $region24: #{pixel_shuffle_model.1} parent=11 // pred_fallthru
          _
        // Predicated region
        $region25: #{pixel_shuffle_model.1} parent=11 // pred_check
          %p225 = pneg %p125
        $region26: #{pixel_shuffle_model.1} parent=11 // pred_check_branch
          %227 = sbr.rel (%p225) target = $region28
        $region27: #{pixel_shuffle_model.1} parent=11 // pred_region
          %s229 = ssub.s32 16, 16
          %230 = vsyncadd [#allocation11], %s229
          %s232 = sshll.u32 [#allocation10], 4
          %s233 = int_to_ptr.vmem [resolvable:$true] %s232
          %235 = dma.hbm_to_vmem [thread:$0]  %s4, 16, %s233, [#allocation11]
        $region28: #{pixel_shuffle_model.1} parent=11 // pred_fallthru
          _
        // Predicated region
        $region29: #{pixel_shuffle_model.1} parent=11 // pred_check
          %p236 = pneg %p146
        $region30: #{pixel_shuffle_model.1} parent=11 // pred_check_branch
          %238 = sbr.rel (%p236) target = $region32
        $region31: #{pixel_shuffle_model.1} parent=11 // pred_region
          _
        $region32: #{pixel_shuffle_model.1} parent=11 // pred_fallthru
          _
        // Predicated region
        $region33: #{pixel_shuffle_model.1} parent=11 // pred_check
          %p239 = pneg %p167
        $region34: #{pixel_shuffle_model.1} parent=11 // pred_check_branch
          %241 = sbr.rel (%p239) target = $region36
        $region35: #{pixel_shuffle_model.1} parent=11 // pred_region
          %s243 = ssub.s32 16, 16
          %244 = vsyncadd [#allocation11], %s243
          %s246 = sshll.u32 [#allocation12], 4
          %s247 = int_to_ptr.vmem [resolvable:$true] %s246
          %249 = dma.hbm_to_vmem [thread:$0]  %s6, 16, %s247, [#allocation11]
        $region36: #{pixel_shuffle_model.1} parent=11 // pred_fallthru
          _
      $region12: #{pixel_shuffle_model.1} parent=5 // pred_fallthru
        _
      %p250 = scmp.lt.s32.totalorder %s15, 2
      // Predicated region
      $region37: #{pixel_shuffle_model.1} parent=5 // pred_check
        %p251 = pneg %p250
      $region38: #{pixel_shuffle_model.1} parent=5 // pred_check_branch
        %253 = sbr.rel (%p251) target = $region40
      $region39: #{pixel_shuffle_model.1} parent=5 // pred_region
        // Predicated region
        $region41: #{pixel_shuffle_model.1} parent=39 // pred_check
          %p254 = pneg %p35
        $region42: #{pixel_shuffle_model.1} parent=39 // pred_check_branch
          %256 = sbr.rel (%p254) target = $region44
        $region43: #{pixel_shuffle_model.1} parent=39 // pred_region
          %p257 = scmp.lt.s32.totalorder %s15, 1
          %s258 = scalar_select %p257, %s15, 1
          %s259 = smul.addr %s258, 32
          %s260 = smul.addr %s259, 8
          %s261 = scalar_lea.vmem %s0, %s260
        $region44: #{pixel_shuffle_model.1} parent=39 // pred_fallthru
          _
      $region40: #{pixel_shuffle_model.1} parent=5 // pred_fallthru
        _
      %p262 = scmp.le.s32.totalorder 1, %s15
      %p263 = scmp.lt.s32.totalorder %s15, 3
      %p264 = pnand %p262, %p263
      %p265 = pneg %p264
      // Predicated region
      $region45: #{pixel_shuffle_model.1} parent=5 // pred_check
        _
      $region46: #{pixel_shuffle_model.1} parent=5 // pred_check_branch
        %267 = sbr.rel (%p264) target = $region48
      $region47: #{pixel_shuffle_model.1} parent=5 // pred_region
        %s268 = ssub.s32 %s15, 1
        // Predicated region
        $region49: #{pixel_shuffle_model.1} parent=47 // pred_check
          %p269 = pneg %p83
        $region50: #{pixel_shuffle_model.1} parent=47 // pred_check_branch
          %271 = sbr.rel (%p269) target = $region52
        $region51: #{pixel_shuffle_model.1} parent=47 // pred_region
          %272 = dma.done [#allocation9], 16
        $region52: #{pixel_shuffle_model.1} parent=47 // pred_fallthru
          _
        // Predicated region
        $region53: #{pixel_shuffle_model.1} parent=47 // pred_check
          %p273 = pneg %p125
        $region54: #{pixel_shuffle_model.1} parent=47 // pred_check_branch
          %275 = sbr.rel (%p273) target = $region56
        $region55: #{pixel_shuffle_model.1} parent=47 // pred_region
          %276 = dma.done [#allocation11], 16
        $region56: #{pixel_shuffle_model.1} parent=47 // pred_fallthru
          _
        // Predicated region
        $region57: #{pixel_shuffle_model.1} parent=47 // pred_check
          %p277 = pneg %p167
        $region58: #{pixel_shuffle_model.1} parent=47 // pred_check_branch
          %279 = sbr.rel (%p277) target = $region60
        $region59: #{pixel_shuffle_model.1} parent=47 // pred_region
          %280 = dma.done [#allocation11], 16
        $region60: #{pixel_shuffle_model.1} parent=47 // pred_fallthru
          _
        %p281 = scmp.lt.s32.totalorder %s20, 1
        %s282 = scalar_select %p281, %s20, 1
        %s283 = smul.addr %s282, 32
        %s284 = smul.addr %s283, 8
        %s285 = scalar_lea.vmem %s0, %s284
        %p286 = pneg %p41
        %p287 = pneg %p38
        %p288 = pneg %p62
        %p289 = pneg %p59
        %p290 = pneg %p83
        %p291 = pneg %p80
        %p292 = pneg %p104
        %p293 = pneg %p101
        %p294 = pneg %p125
        %p295 = pneg %p122
        %p296 = pneg %p146
        %p297 = pneg %p143
        %p298 = pneg %p167
        %p299 = pneg %p164
        %p300 = pneg %p193
        %p301 = pneg %p190
        %p302 = scmp.lt.s32.totalorder %s20, 1
        %s303 = scalar_select %p302, %s20, 1
        %s304 = smul.addr %s303, 32
        %s305 = smul.addr %s304, 8
        %s306 = scalar_lea.vmem %s7, %s305
        %p307 = scmp.lt.s32.totalorder %s20, 1
        %s308 = scalar_select %p307, %s20, 1
        %s309 = smul.addr %s308, 32
        %s310 = smul.addr %s309, 8
        %s311 = scalar_lea.vmem %s0, %s310
        %p312 = scmp.lt.s32.totalorder %s20, 1
        %s313 = scalar_select %p312, %s20, 1
        %s314 = smul.addr %s313, 32
        %s315 = smul.addr %s314, 8
        %s316 = scalar_lea.vmem %s7, %s315
        %vm318 = vcmask 23552
        %319 = vst.msk [vmem:[#allocation2] sm:$0xff] %vm318, 0.0
        %320 = vst.msk [vmem:[#allocation2 + $0x8] sm:$0xff] %vm318, 0.0
        %vm321 = vcmask 19456
        %322 = vst.msk [vmem:[#allocation2 + $0x10] sm:$0xf] %vm321, 0.0
        %323 = vst.msk [vmem:[#allocation2 + $0x18] sm:$0xff] %vm318, 0.0
        %324 = vst.msk [vmem:[#allocation2 + $0x20] sm:$0xff] %vm318, 0.0
        %325 = vst.msk [vmem:[#allocation2 + $0x28] sm:$0xf] %vm321, 0.0
        %326 = vst.msk [vmem:[#allocation2 + $0x30] sm:$0xff] %vm318, 0.0
        %327 = vst.msk [vmem:[#allocation2 + $0x38] sm:$0xff] %vm318, 0.0
        %328 = vst.msk [vmem:[#allocation2 + $0x40] sm:$0xf] %vm321, 0.0
        %329 = vst.msk [vmem:[#allocation2 + $0x48] sm:$0xff] %vm318, 0.0
        %330 = vst.msk [vmem:[#allocation2 + $0x50] sm:$0xff] %vm318, 0.0
        %331 = vst.msk [vmem:[#allocation2 + $0x58] sm:$0xf] %vm321, 0.0
        %332 = vst.msk [vmem:[#allocation2 + $0x60] sm:$0xff] %vm318, 0.0
        %333 = vst.msk [vmem:[#allocation2 + $0x68] sm:$0xff] %vm318, 0.0
        %334 = vst.msk [vmem:[#allocation2 + $0x70] sm:$0xf] %vm321, 0.0
        %335 = vst.msk [vmem:[#allocation2 + $0x78] sm:$0xff] %vm318, 0.0
        %336 = vst.msk [vmem:[#allocation2 + $0x80] sm:$0xff] %vm318, 0.0
        %337 = vst.msk [vmem:[#allocation2 + $0x88] sm:$0xf] %vm321, 0.0
        %338 = vst.msk [vmem:[#allocation2 + $0x90] sm:$0xff] %vm318, 0.0
        %339 = vst.msk [vmem:[#allocation2 + $0x98] sm:$0xff] %vm318, 0.0
        %340 = vst.msk [vmem:[#allocation2 + $0xa0] sm:$0xf] %vm321, 0.0
        %341 = vst.msk [vmem:[#allocation2 + $0xa8] sm:$0xff] %vm318, 0.0
        %342 = vst.msk [vmem:[#allocation2 + $0xb0] sm:$0xff] %vm318, 0.0
        %343 = vst.msk [vmem:[#allocation2 + $0xb8] sm:$0xf] %vm321, 0.0
        %344 = vst.msk [vmem:[#allocation2 + $0xc0] sm:$0xff] %vm318, 0.0
        %345 = vst.msk [vmem:[#allocation2 + $0xc8] sm:$0xff] %vm318, 0.0
        %346 = vst.msk [vmem:[#allocation2 + $0xd0] sm:$0xf] %vm321, 0.0
        %347 = vst.msk [vmem:[#allocation2 + $0xd8] sm:$0xff] %vm318, 0.0
        %348 = vst.msk [vmem:[#allocation2 + $0xe0] sm:$0xff] %vm318, 0.0
        %349 = vst.msk [vmem:[#allocation2 + $0xe8] sm:$0xf] %vm321, 0.0
        %350 = vst.msk [vmem:[#allocation2 + $0xf0] sm:$0xff] %vm318, 0.0
        %351 = vst.msk [vmem:[#allocation2 + $0xf8] sm:$0xff] %vm318, 0.0
        %352 = vst.msk [vmem:[#allocation2 + $0x100] sm:$0xf] %vm321, 0.0
        %353 = vst.msk [vmem:[#allocation2 + $0x108] sm:$0xff] %vm318, 0.0
        %354 = vst.msk [vmem:[#allocation2 + $0x110] sm:$0xff] %vm318, 0.0
        %355 = vst.msk [vmem:[#allocation2 + $0x118] sm:$0xf] %vm321, 0.0
        %356 = vst.msk [vmem:[#allocation2 + $0x120] sm:$0xff] %vm318, 0.0
        %357 = vst.msk [vmem:[#allocation2 + $0x128] sm:$0xff] %vm318, 0.0
        %358 = vst.msk [vmem:[#allocation2 + $0x130] sm:$0xf] %vm321, 0.0
        %359 = vst.msk [vmem:[#allocation2 + $0x138] sm:$0xff] %vm318, 0.0
        %360 = vst.msk [vmem:[#allocation2 + $0x140] sm:$0xff] %vm318, 0.0
        %361 = vst.msk [vmem:[#allocation2 + $0x148] sm:$0xf] %vm321, 0.0
        %362 = vst.msk [vmem:[#allocation2 + $0x150] sm:$0xff] %vm318, 0.0
        %363 = vst.msk [vmem:[#allocation2 + $0x158] sm:$0xff] %vm318, 0.0
        %364 = vst.msk [vmem:[#allocation2 + $0x160] sm:$0xf] %vm321, 0.0
        %365 = vst.msk [vmem:[#allocation2 + $0x168] sm:$0xff] %vm318, 0.0
        %366 = vst.msk [vmem:[#allocation2 + $0x170] sm:$0xff] %vm318, 0.0
        %367 = vst.msk [vmem:[#allocation2 + $0x178] sm:$0xf] %vm321, 0.0
        %368 = vst.msk [vmem:[#allocation2 + $0x180] sm:$0xff] %vm318, 0.0
        %369 = vst.msk [vmem:[#allocation2 + $0x188] sm:$0xff] %vm318, 0.0
        %370 = vst.msk [vmem:[#allocation2 + $0x190] sm:$0xf] %vm321, 0.0
        %371 = vst.msk [vmem:[#allocation2 + $0x198] sm:$0xff] %vm318, 0.0
        %372 = vst.msk [vmem:[#allocation2 + $0x1a0] sm:$0xff] %vm318, 0.0
        %373 = vst.msk [vmem:[#allocation2 + $0x1a8] sm:$0xf] %vm321, 0.0
        %374 = vst.msk [vmem:[#allocation2 + $0x1b0] sm:$0xff] %vm318, 0.0
        %375 = vst.msk [vmem:[#allocation2 + $0x1b8] sm:$0xff] %vm318, 0.0
        %376 = vst.msk [vmem:[#allocation2 + $0x1c0] sm:$0xf] %vm321, 0.0
        %377 = vst.msk [vmem:[#allocation2 + $0x1c8] sm:$0xff] %vm318, 0.0
        %378 = vst.msk [vmem:[#allocation2 + $0x1d0] sm:$0xff] %vm318, 0.0
        %379 = vst.msk [vmem:[#allocation2 + $0x1d8] sm:$0xf] %vm321, 0.0
        %v380 = vld [vmem:[%s311] sm:$0xff]
        %v381 = vld [vmem:[%s311 + $0x8] sm:$0xff]
        %v382 = vld [vmem:[%s311 + $0x10] sm:$0xff]
        %v383 = vld [vmem:[%s311 + $0x18] sm:$0xff]
        %v384 = vld [vmem:[%s311 + $0x20] sm:$0xff]
        %v385 = vld [vmem:[%s311 + $0x28] sm:$0xff]
        %v386 = vld [vmem:[%s311 + $0x30] sm:$0xff]
        %v387 = vld [vmem:[%s311 + $0x38] sm:$0xff]
        %v388 = vld [vmem:[%s311 + $0x40] sm:$0xff]
        %v389 = vld [vmem:[%s311 + $0x48] sm:$0xff]
        %v390 = vld [vmem:[%s311 + $0x50] sm:$0xff]
        %v391 = vld [vmem:[%s311 + $0x58] sm:$0xff]
        %v392 = vld [vmem:[%s311 + $0x60] sm:$0xff]
        %v393 = vld [vmem:[%s311 + $0x68] sm:$0xff]
        %v394 = vld [vmem:[%s311 + $0x70] sm:$0xff]
        %v395 = vld [vmem:[%s311 + $0x78] sm:$0xff]
        %v396 = vld [vmem:[%s311 + $0x80] sm:$0xff]
        %v397 = vld [vmem:[%s311 + $0x88] sm:$0xff]
        %v398 = vld [vmem:[%s311 + $0x90] sm:$0xff]
        %v399 = vld [vmem:[%s311 + $0x98] sm:$0xff]
        %v400 = vld [vmem:[%s311 + $0xa0] sm:$0xff]
        %v401 = vld [vmem:[%s311 + $0xa8] sm:$0xff]
        %v402 = vld [vmem:[%s311 + $0xb0] sm:$0xff]
        %v403 = vld [vmem:[%s311 + $0xb8] sm:$0xff]
        %v404 = vld [vmem:[%s311 + $0xc0] sm:$0xff]
        %v405 = vld [vmem:[%s311 + $0xc8] sm:$0xff]
        %v406 = vld [vmem:[%s311 + $0xd0] sm:$0xff]
        %v407 = vld [vmem:[%s311 + $0xd8] sm:$0xff]
        %v408 = vld [vmem:[%s311 + $0xe0] sm:$0xff]
        %v409 = vld [vmem:[%s311 + $0xe8] sm:$0xff]
        %v410 = vld [vmem:[%s311 + $0xf0] sm:$0xff]
        %v411 = vld [vmem:[%s311 + $0xf8] sm:$0xff]
        %s412 = scalar_lea.vmem [#allocation2], 48
        %413 = vst.msk [vmem:[%s412 + $0x2] sm:$0xff] %vm318, %v380
        %414 = vst.msk [vmem:[%s412 + $0xa] sm:$0xff] %vm318, %v381
        %415 = vst.msk [vmem:[%s412 + $0x1a] sm:$0xff] %vm318, %v382
        %416 = vst.msk [vmem:[%s412 + $0x22] sm:$0xff] %vm318, %v383
        %417 = vst.msk [vmem:[%s412 + $0x32] sm:$0xff] %vm318, %v384
        %418 = vst.msk [vmem:[%s412 + $0x3a] sm:$0xff] %vm318, %v385
        %419 = vst.msk [vmem:[%s412 + $0x4a] sm:$0xff] %vm318, %v386
        %420 = vst.msk [vmem:[%s412 + $0x52] sm:$0xff] %vm318, %v387
        %421 = vst.msk [vmem:[%s412 + $0x62] sm:$0xff] %vm318, %v388
        %422 = vst.msk [vmem:[%s412 + $0x6a] sm:$0xff] %vm318, %v389
        %423 = vst.msk [vmem:[%s412 + $0x7a] sm:$0xff] %vm318, %v390
        %424 = vst.msk [vmem:[%s412 + $0x82] sm:$0xff] %vm318, %v391
        %425 = vst.msk [vmem:[%s412 + $0x92] sm:$0xff] %vm318, %v392
        %426 = vst.msk [vmem:[%s412 + $0x9a] sm:$0xff] %vm318, %v393
        %427 = vst.msk [vmem:[%s412 + $0xaa] sm:$0xff] %vm318, %v394
        %428 = vst.msk [vmem:[%s412 + $0xb2] sm:$0xff] %vm318, %v395
        %429 = vst.msk [vmem:[%s412 + $0xc2] sm:$0xff] %vm318, %v396
        %430 = vst.msk [vmem:[%s412 + $0xca] sm:$0xff] %vm318, %v397
        %431 = vst.msk [vmem:[%s412 + $0xda] sm:$0xff] %vm318, %v398
        %432 = vst.msk [vmem:[%s412 + $0xe2] sm:$0xff] %vm318, %v399
        %433 = vst.msk [vmem:[%s412 + $0xf2] sm:$0xff] %vm318, %v400
        %434 = vst.msk [vmem:[%s412 + $0xfa] sm:$0xff] %vm318, %v401
        %435 = vst.msk [vmem:[%s412 + $0x10a] sm:$0xff] %vm318, %v402
        %436 = vst.msk [vmem:[%s412 + $0x112] sm:$0xff] %vm318, %v403
        %437 = vst.msk [vmem:[%s412 + $0x122] sm:$0xff] %vm318, %v404
        %438 = vst.msk [vmem:[%s412 + $0x12a] sm:$0xff] %vm318, %v405
        %439 = vst.msk [vmem:[%s412 + $0x13a] sm:$0xff] %vm318, %v406
        %440 = vst.msk [vmem:[%s412 + $0x142] sm:$0xff] %vm318, %v407
        %441 = vst.msk [vmem:[%s412 + $0x152] sm:$0xff] %vm318, %v408
        %442 = vst.msk [vmem:[%s412 + $0x15a] sm:$0xff] %vm318, %v409
        %443 = vst.msk [vmem:[%s412 + $0x16a] sm:$0xff] %vm318, %v410
        %444 = vst.msk [vmem:[%s412 + $0x172] sm:$0xff] %vm318, %v411
        %vm445 = vcmask 523264
        %446 = vst.msk [vmem:[#allocation3] sm:$0xff] %vm445, 0.0
        %447 = vst.msk [vmem:[#allocation3 + $0x8] sm:$0xff] %vm445, 0.0
        %vm448 = vcmask 517120
        %449 = vst.msk [vmem:[#allocation3 + $0x10] sm:$0x3] %vm448, 0.0
        %450 = vst.msk [vmem:[#allocation3 + $0x18] sm:$0xff] %vm445, 0.0
        %451 = vst.msk [vmem:[#allocation3 + $0x20] sm:$0xff] %vm445, 0.0
        %452 = vst.msk [vmem:[#allocation3 + $0x28] sm:$0x3] %vm448, 0.0
        %453 = vst.msk [vmem:[#allocation3 + $0x30] sm:$0xff] %vm445, 0.0
        %454 = vst.msk [vmem:[#allocation3 + $0x38] sm:$0xff] %vm445, 0.0
        %455 = vst.msk [vmem:[#allocation3 + $0x40] sm:$0x3] %vm448, 0.0
        %456 = vst.msk [vmem:[#allocation3 + $0x48] sm:$0xff] %vm445, 0.0
        %457 = vst.msk [vmem:[#allocation3 + $0x50] sm:$0xff] %vm445, 0.0
        %458 = vst.msk [vmem:[#allocation3 + $0x58] sm:$0x3] %vm448, 0.0
        %459 = vst.msk [vmem:[#allocation3 + $0x60] sm:$0xff] %vm445, 0.0
        %460 = vst.msk [vmem:[#allocation3 + $0x68] sm:$0xff] %vm445, 0.0
        %461 = vst.msk [vmem:[#allocation3 + $0x70] sm:$0x3] %vm448, 0.0
        %462 = vst.msk [vmem:[#allocation3 + $0x78] sm:$0xff] %vm445, 0.0
        %463 = vst.msk [vmem:[#allocation3 + $0x80] sm:$0xff] %vm445, 0.0
        %464 = vst.msk [vmem:[#allocation3 + $0x88] sm:$0x3] %vm448, 0.0
        %465 = vst.msk [vmem:[#allocation3 + $0x90] sm:$0xff] %vm445, 0.0
        %466 = vst.msk [vmem:[#allocation3 + $0x98] sm:$0xff] %vm445, 0.0
        %467 = vst.msk [vmem:[#allocation3 + $0xa0] sm:$0x3] %vm448, 0.0
        %468 = vst.msk [vmem:[#allocation3 + $0xa8] sm:$0xff] %vm445, 0.0
        %469 = vst.msk [vmem:[#allocation3 + $0xb0] sm:$0xff] %vm445, 0.0
        %470 = vst.msk [vmem:[#allocation3 + $0xb8] sm:$0x3] %vm448, 0.0
        %471 = vst.msk [vmem:[#allocation3 + $0xc0] sm:$0xff] %vm445, 0.0
        %472 = vst.msk [vmem:[#allocation3 + $0xc8] sm:$0xff] %vm445, 0.0
        %473 = vst.msk [vmem:[#allocation3 + $0xd0] sm:$0x3] %vm448, 0.0
        %474 = vst.msk [vmem:[#allocation3 + $0xd8] sm:$0xff] %vm445, 0.0
        %475 = vst.msk [vmem:[#allocation3 + $0xe0] sm:$0xff] %vm445, 0.0
        %476 = vst.msk [vmem:[#allocation3 + $0xe8] sm:$0x3] %vm448, 0.0
        %477 = vst.msk [vmem:[#allocation3 + $0xf0] sm:$0xff] %vm445, 0.0
        %478 = vst.msk [vmem:[#allocation3 + $0xf8] sm:$0xff] %vm445, 0.0
        %479 = vst.msk [vmem:[#allocation3 + $0x100] sm:$0x3] %vm448, 0.0
        %480 = vst.msk [vmem:[#allocation3 + $0x108] sm:$0xff] %vm445, 0.0
        %481 = vst.msk [vmem:[#allocation3 + $0x110] sm:$0xff] %vm445, 0.0
        %482 = vst.msk [vmem:[#allocation3 + $0x118] sm:$0x3] %vm448, 0.0
        %483 = vst.msk [vmem:[#allocation3 + $0x120] sm:$0xff] %vm445, 0.0
        %484 = vst.msk [vmem:[#allocation3 + $0x128] sm:$0xff] %vm445, 0.0
        %485 = vst.msk [vmem:[#allocation3 + $0x130] sm:$0x3] %vm448, 0.0
        %486 = vst.msk [vmem:[#allocation3 + $0x138] sm:$0xff] %vm445, 0.0
        %487 = vst.msk [vmem:[#allocation3 + $0x140] sm:$0xff] %vm445, 0.0
        %488 = vst.msk [vmem:[#allocation3 + $0x148] sm:$0x3] %vm448, 0.0
        %489 = vst.msk [vmem:[#allocation3 + $0x150] sm:$0xff] %vm445, 0.0
        %490 = vst.msk [vmem:[#allocation3 + $0x158] sm:$0xff] %vm445, 0.0
        %491 = vst.msk [vmem:[#allocation3 + $0x160] sm:$0x3] %vm448, 0.0
        %492 = vst.msk [vmem:[#allocation3 + $0x168] sm:$0xff] %vm445, 0.0
        %493 = vst.msk [vmem:[#allocation3 + $0x170] sm:$0xff] %vm445, 0.0
        %494 = vst.msk [vmem:[#allocation3 + $0x178] sm:$0x3] %vm448, 0.0
        %495 = vst.msk [vmem:[#allocation3 + $0x180] sm:$0xff] %vm445, 0.0
        %496 = vst.msk [vmem:[#allocation3 + $0x188] sm:$0xff] %vm445, 0.0
        %497 = vst.msk [vmem:[#allocation3 + $0x190] sm:$0x3] %vm448, 0.0
        %498 = vst.msk [vmem:[#allocation3 + $0x198] sm:$0xff] %vm445, 0.0
        %499 = vst.msk [vmem:[#allocation3 + $0x1a0] sm:$0xff] %vm445, 0.0
        %500 = vst.msk [vmem:[#allocation3 + $0x1a8] sm:$0x3] %vm448, 0.0
        %v501 = vld [vmem:[#allocation2] sm:$0xff]
        %v502 = vld [vmem:[#allocation2 + $0x8] sm:$0xff]
        %v503 = vld [vmem:[#allocation2 + $0x18] sm:$0xff]
        %v504 = vld [vmem:[#allocation2 + $0x20] sm:$0xff]
        %v505 = vld [vmem:[#allocation2 + $0x30] sm:$0xff]
        %v506 = vld [vmem:[#allocation2 + $0x38] sm:$0xff]
        %v507 = vld [vmem:[#allocation2 + $0x48] sm:$0xff]
        %v508 = vld [vmem:[#allocation2 + $0x50] sm:$0xff]
        %v509 = vld [vmem:[#allocation2 + $0x60] sm:$0xff]
        %v510 = vld [vmem:[#allocation2 + $0x68] sm:$0xff]
        %v511 = vld [vmem:[#allocation2 + $0x78] sm:$0xff]
        %v512 = vld [vmem:[#allocation2 + $0x80] sm:$0xff]
        %v513 = vld [vmem:[#allocation2 + $0x90] sm:$0xff]
        %v514 = vld [vmem:[#allocation2 + $0x98] sm:$0xff]
        %v515 = vld [vmem:[#allocation2 + $0xa8] sm:$0xff]
        %v516 = vld [vmem:[#allocation2 + $0xb0] sm:$0xff]
        %v517 = vld [vmem:[#allocation2 + $0xc0] sm:$0xff]
        %v518 = vld [vmem:[#allocation2 + $0xc8] sm:$0xff]
        %v519 = vld [vmem:[#allocation2 + $0xd8] sm:$0xff]
        %v520 = vld [vmem:[#allocation2 + $0xe0] sm:$0xff]
        %v521 = vld [vmem:[#allocation2 + $0xf0] sm:$0xff]
        %v522 = vld [vmem:[#allocation2 + $0xf8] sm:$0xff]
        %v523 = vld [vmem:[#allocation2 + $0x108] sm:$0xff]
        %v524 = vld [vmem:[#allocation2 + $0x110] sm:$0xff]
        %v525 = vld [vmem:[#allocation2 + $0x120] sm:$0xff]
        %v526 = vld [vmem:[#allocation2 + $0x128] sm:$0xff]
        %v527 = vld [vmem:[#allocation2 + $0x138] sm:$0xff]
        %v528 = vld [vmem:[#allocation2 + $0x140] sm:$0xff]
        %v529 = vld [vmem:[#allocation2 + $0x150] sm:$0xff]
        %v530 = vld [vmem:[#allocation2 + $0x158] sm:$0xff]
        %v531 = vld [vmem:[#allocation2 + $0x168] sm:$0xff]
        %v532 = vld [vmem:[#allocation2 + $0x170] sm:$0xff]
        %533 = vst.msk [vmem:[#allocation5] sm:$0xff] %vm318, %v501
        %534 = vst.msk [vmem:[#allocation5 + $0x8] sm:$0xff] %vm318, %v502
        %535 = vst.msk [vmem:[#allocation5 + $0x10] sm:$0xff] %vm318, %v503
        %536 = vst.msk [vmem:[#allocation5 + $0x18] sm:$0xff] %vm318, %v504
        %537 = vst.msk [vmem:[#allocation5 + $0x20] sm:$0xff] %vm318, %v505
        %538 = vst.msk [vmem:[#allocation5 + $0x28] sm:$0xff] %vm318, %v506
        %539 = vst.msk [vmem:[#allocation5 + $0x30] sm:$0xff] %vm318, %v507
        %540 = vst.msk [vmem:[#allocation5 + $0x38] sm:$0xff] %vm318, %v508
        %541 = vst.msk [vmem:[#allocation5 + $0x40] sm:$0xff] %vm318, %v509
        %542 = vst.msk [vmem:[#allocation5 + $0x48] sm:$0xff] %vm318, %v510
        %543 = vst.msk [vmem:[#allocation5 + $0x50] sm:$0xff] %vm318, %v511
        %544 = vst.msk [vmem:[#allocation5 + $0x58] sm:$0xff] %vm318, %v512
        %545 = vst.msk [vmem:[#allocation5 + $0x60] sm:$0xff] %vm318, %v513
        %546 = vst.msk [vmem:[#allocation5 + $0x68] sm:$0xff] %vm318, %v514
        %547 = vst.msk [vmem:[#allocation5 + $0x70] sm:$0xff] %vm318, %v515
        %548 = vst.msk [vmem:[#allocation5 + $0x78] sm:$0xff] %vm318, %v516
        %549 = vst.msk [vmem:[#allocation5 + $0x80] sm:$0xff] %vm318, %v517
        %550 = vst.msk [vmem:[#allocation5 + $0x88] sm:$0xff] %vm318, %v518
        %551 = vst.msk [vmem:[#allocation5 + $0x90] sm:$0xff] %vm318, %v519
        %552 = vst.msk [vmem:[#allocation5 + $0x98] sm:$0xff] %vm318, %v520
        %553 = vst.msk [vmem:[#allocation5 + $0xa0] sm:$0xff] %vm318, %v521
        %554 = vst.msk [vmem:[#allocation5 + $0xa8] sm:$0xff] %vm318, %v522
        %555 = vst.msk [vmem:[#allocation5 + $0xb0] sm:$0xff] %vm318, %v523
        %556 = vst.msk [vmem:[#allocation5 + $0xb8] sm:$0xff] %vm318, %v524
        %557 = vst.msk [vmem:[#allocation5 + $0xc0] sm:$0xff] %vm318, %v525
        %558 = vst.msk [vmem:[#allocation5 + $0xc8] sm:$0xff] %vm318, %v526
        %559 = vst.msk [vmem:[#allocation5 + $0xd0] sm:$0xff] %vm318, %v527
        %560 = vst.msk [vmem:[#allocation5 + $0xd8] sm:$0xff] %vm318, %v528
        %561 = vst.msk [vmem:[#allocation5 + $0xe0] sm:$0xff] %vm318, %v529
        %562 = vst.msk [vmem:[#allocation5 + $0xe8] sm:$0xff] %vm318, %v530
        %563 = vst.msk [vmem:[#allocation5 + $0xf0] sm:$0xff] %vm318, %v531
        %564 = vst.msk [vmem:[#allocation5 + $0xf8] sm:$0xff] %vm318, %v532
        %v565 = vld [vmem:[#allocation2 + $0x1] sm:$0xff]
        %v566 = vld [vmem:[#allocation2 + $0x9] sm:$0xff]
        %v567 = vld [vmem:[#allocation2 + $0x19] sm:$0xff]
        %v568 = vld [vmem:[#allocation2 + $0x21] sm:$0xff]
        %v569 = vld [vmem:[#allocation2 + $0x31] sm:$0xff]
        %v570 = vld [vmem:[#allocation2 + $0x39] sm:$0xff]
        %v571 = vld [vmem:[#allocation2 + $0x49] sm:$0xff]
        %v572 = vld [vmem:[#allocation2 + $0x51] sm:$0xff]
        %v573 = vld [vmem:[#allocation2 + $0x61] sm:$0xff]
        %v574 = vld [vmem:[#allocation2 + $0x69] sm:$0xff]
        %v575 = vld [vmem:[#allocation2 + $0x79] sm:$0xff]
        %v576 = vld [vmem:[#allocation2 + $0x81] sm:$0xff]
        %v577 = vld [vmem:[#allocation2 + $0x91] sm:$0xff]
        %v578 = vld [vmem:[#allocation2 + $0x99] sm:$0xff]
        %v579 = vld [vmem:[#allocation2 + $0xa9] sm:$0xff]
        %v580 = vld [vmem:[#allocation2 + $0xb1] sm:$0xff]
        %v581 = vld [vmem:[#allocation2 + $0xc1] sm:$0xff]
        %v582 = vld [vmem:[#allocation2 + $0xc9] sm:$0xff]
        %v583 = vld [vmem:[#allocation2 + $0xd9] sm:$0xff]
        %v584 = vld [vmem:[#allocation2 + $0xe1] sm:$0xff]
        %v585 = vld [vmem:[#allocation2 + $0xf1] sm:$0xff]
        %v586 = vld [vmem:[#allocation2 + $0xf9] sm:$0xff]
        %v587 = vld [vmem:[#allocation2 + $0x109] sm:$0xff]
        %v588 = vld [vmem:[#allocation2 + $0x111] sm:$0xff]
        %v589 = vld [vmem:[#allocation2 + $0x121] sm:$0xff]
        %v590 = vld [vmem:[#allocation2 + $0x129] sm:$0xff]
        %v591 = vld [vmem:[#allocation2 + $0x139] sm:$0xff]
        %v592 = vld [vmem:[#allocation2 + $0x141] sm:$0xff]
        %v593 = vld [vmem:[#allocation2 + $0x151] sm:$0xff]
        %v594 = vld [vmem:[#allocation2 + $0x159] sm:$0xff]
        %v595 = vld [vmem:[#allocation2 + $0x169] sm:$0xff]
        %v596 = vld [vmem:[#allocation2 + $0x171] sm:$0xff]
        %629 = vrot.lane.b32.xlu0 %v565, 3
        %v630 = vpop.permute.xlu0 %629
        %631 = vrot.lane.b32.xlu0 %v566, 3
        %v632 = vpop.permute.xlu0 %631
        %633 = vrot.lane.b32.xlu0 %v567, 3
        %v634 = vpop.permute.xlu0 %633
        %635 = vrot.lane.b32.xlu0 %v568, 3
        %v636 = vpop.permute.xlu0 %635
        %637 = vrot.lane.b32.xlu0 %v569, 3
        %v638 = vpop.permute.xlu0 %637
        %639 = vrot.lane.b32.xlu0 %v570, 3
        %v640 = vpop.permute.xlu0 %639
        %641 = vrot.lane.b32.xlu0 %v571, 3
        %v642 = vpop.permute.xlu0 %641
        %643 = vrot.lane.b32.xlu0 %v572, 3
        %v644 = vpop.permute.xlu0 %643
        %645 = vrot.lane.b32.xlu0 %v573, 3
        %v646 = vpop.permute.xlu0 %645
        %647 = vrot.lane.b32.xlu0 %v574, 3
        %v648 = vpop.permute.xlu0 %647
        %649 = vrot.lane.b32.xlu0 %v575, 3
        %v650 = vpop.permute.xlu0 %649
        %651 = vrot.lane.b32.xlu0 %v576, 3
        %v652 = vpop.permute.xlu0 %651
        %653 = vrot.lane.b32.xlu0 %v577, 3
        %v654 = vpop.permute.xlu0 %653
        %655 = vrot.lane.b32.xlu0 %v578, 3
        %v656 = vpop.permute.xlu0 %655
        %657 = vrot.lane.b32.xlu0 %v579, 3
        %v658 = vpop.permute.xlu0 %657
        %659 = vrot.lane.b32.xlu0 %v580, 3
        %v660 = vpop.permute.xlu0 %659
        %661 = vrot.lane.b32.xlu0 %v581, 3
        %v662 = vpop.permute.xlu0 %661
        %663 = vrot.lane.b32.xlu0 %v582, 3
        %v664 = vpop.permute.xlu0 %663
        %665 = vrot.lane.b32.xlu0 %v583, 3
        %v666 = vpop.permute.xlu0 %665
        %667 = vrot.lane.b32.xlu0 %v584, 3
        %v668 = vpop.permute.xlu0 %667
        %669 = vrot.lane.b32.xlu0 %v585, 3
        %v670 = vpop.permute.xlu0 %669
        %671 = vrot.lane.b32.xlu0 %v586, 3
        %v672 = vpop.permute.xlu0 %671
        %673 = vrot.lane.b32.xlu0 %v587, 3
        %v674 = vpop.permute.xlu0 %673
        %675 = vrot.lane.b32.xlu0 %v588, 3
        %v676 = vpop.permute.xlu0 %675
        %677 = vrot.lane.b32.xlu0 %v589, 3
        %v678 = vpop.permute.xlu0 %677
        %679 = vrot.lane.b32.xlu0 %v590, 3
        %v680 = vpop.permute.xlu0 %679
        %681 = vrot.lane.b32.xlu0 %v591, 3
        %v682 = vpop.permute.xlu0 %681
        %683 = vrot.lane.b32.xlu0 %v592, 3
        %v684 = vpop.permute.xlu0 %683
        %685 = vrot.lane.b32.xlu0 %v593, 3
        %v686 = vpop.permute.xlu0 %685
        %687 = vrot.lane.b32.xlu0 %v594, 3
        %v688 = vpop.permute.xlu0 %687
        %689 = vrot.lane.b32.xlu0 %v595, 3
        %v690 = vpop.permute.xlu0 %689
        %691 = vrot.lane.b32.xlu0 %v596, 3
        %v692 = vpop.permute.xlu0 %691
        %vm725 = vcmask 48152
        %726 = vst.msk [vmem:[#allocation5] sm:$0xff] %vm725, %v630
        %727 = vst.msk [vmem:[#allocation5 + $0x8] sm:$0xff] %vm725, %v632
        %728 = vst.msk [vmem:[#allocation5 + $0x10] sm:$0xff] %vm725, %v634
        %729 = vst.msk [vmem:[#allocation5 + $0x18] sm:$0xff] %vm725, %v636
        %730 = vst.msk [vmem:[#allocation5 + $0x20] sm:$0xff] %vm725, %v638
        %731 = vst.msk [vmem:[#allocation5 + $0x28] sm:$0xff] %vm725, %v640
        %732 = vst.msk [vmem:[#allocation5 + $0x30] sm:$0xff] %vm725, %v642
        %733 = vst.msk [vmem:[#allocation5 + $0x38] sm:$0xff] %vm725, %v644
        %734 = vst.msk [vmem:[#allocation5 + $0x40] sm:$0xff] %vm725, %v646
        %735 = vst.msk [vmem:[#allocation5 + $0x48] sm:$0xff] %vm725, %v648
        %736 = vst.msk [vmem:[#allocation5 + $0x50] sm:$0xff] %vm725, %v650
        %737 = vst.msk [vmem:[#allocation5 + $0x58] sm:$0xff] %vm725, %v652
        %738 = vst.msk [vmem:[#allocation5 + $0x60] sm:$0xff] %vm725, %v654
        %739 = vst.msk [vmem:[#allocation5 + $0x68] sm:$0xff] %vm725, %v656
        %740 = vst.msk [vmem:[#allocation5 + $0x70] sm:$0xff] %vm725, %v658
        %741 = vst.msk [vmem:[#allocation5 + $0x78] sm:$0xff] %vm725, %v660
        %742 = vst.msk [vmem:[#allocation5 + $0x80] sm:$0xff] %vm725, %v662
        %743 = vst.msk [vmem:[#allocation5 + $0x88] sm:$0xff] %vm725, %v664
        %744 = vst.msk [vmem:[#allocation5 + $0x90] sm:$0xff] %vm725, %v666
        %745 = vst.msk [vmem:[#allocation5 + $0x98] sm:$0xff] %vm725, %v668
        %746 = vst.msk [vmem:[#allocation5 + $0xa0] sm:$0xff] %vm725, %v670
        %747 = vst.msk [vmem:[#allocation5 + $0xa8] sm:$0xff] %vm725, %v672
        %748 = vst.msk [vmem:[#allocation5 + $0xb0] sm:$0xff] %vm725, %v674
        %749 = vst.msk [vmem:[#allocation5 + $0xb8] sm:$0xff] %vm725, %v676
        %750 = vst.msk [vmem:[#allocation5 + $0xc0] sm:$0xff] %vm725, %v678
        %751 = vst.msk [vmem:[#allocation5 + $0xc8] sm:$0xff] %vm725, %v680
        %752 = vst.msk [vmem:[#allocation5 + $0xd0] sm:$0xff] %vm725, %v682
        %753 = vst.msk [vmem:[#allocation5 + $0xd8] sm:$0xff] %vm725, %v684
        %754 = vst.msk [vmem:[#allocation5 + $0xe0] sm:$0xff] %vm725, %v686
        %755 = vst.msk [vmem:[#allocation5 + $0xe8] sm:$0xff] %vm725, %v688
        %756 = vst.msk [vmem:[#allocation5 + $0xf0] sm:$0xff] %vm725, %v690
        %757 = vst.msk [vmem:[#allocation5 + $0xf8] sm:$0xff] %vm725, %v692
        %v758 = vld [vmem:[#allocation2 + $0x2] sm:$0xff]
        %v759 = vld [vmem:[#allocation2 + $0xa] sm:$0xff]
        %v760 = vld [vmem:[#allocation2 + $0x1a] sm:$0xff]
        %v761 = vld [vmem:[#allocation2 + $0x22] sm:$0xff]
        %v762 = vld [vmem:[#allocation2 + $0x32] sm:$0xff]
        %v763 = vld [vmem:[#allocation2 + $0x3a] sm:$0xff]
        %v764 = vld [vmem:[#allocation2 + $0x4a] sm:$0xff]
        %v765 = vld [vmem:[#allocation2 + $0x52] sm:$0xff]
        %v766 = vld [vmem:[#allocation2 + $0x62] sm:$0xff]
        %v767 = vld [vmem:[#allocation2 + $0x6a] sm:$0xff]
        %v768 = vld [vmem:[#allocation2 + $0x7a] sm:$0xff]
        %v769 = vld [vmem:[#allocation2 + $0x82] sm:$0xff]
        %v770 = vld [vmem:[#allocation2 + $0x92] sm:$0xff]
        %v771 = vld [vmem:[#allocation2 + $0x9a] sm:$0xff]
        %v772 = vld [vmem:[#allocation2 + $0xaa] sm:$0xff]
        %v773 = vld [vmem:[#allocation2 + $0xb2] sm:$0xff]
        %v774 = vld [vmem:[#allocation2 + $0xc2] sm:$0xff]
        %v775 = vld [vmem:[#allocation2 + $0xca] sm:$0xff]
        %v776 = vld [vmem:[#allocation2 + $0xda] sm:$0xff]
        %v777 = vld [vmem:[#allocation2 + $0xe2] sm:$0xff]
        %v778 = vld [vmem:[#allocation2 + $0xf2] sm:$0xff]
        %v779 = vld [vmem:[#allocation2 + $0xfa] sm:$0xff]
        %v780 = vld [vmem:[#allocation2 + $0x10a] sm:$0xff]
        %v781 = vld [vmem:[#allocation2 + $0x112] sm:$0xff]
        %v782 = vld [vmem:[#allocation2 + $0x122] sm:$0xff]
        %v783 = vld [vmem:[#allocation2 + $0x12a] sm:$0xff]
        %v784 = vld [vmem:[#allocation2 + $0x13a] sm:$0xff]
        %v785 = vld [vmem:[#allocation2 + $0x142] sm:$0xff]
        %v786 = vld [vmem:[#allocation2 + $0x152] sm:$0xff]
        %v787 = vld [vmem:[#allocation2 + $0x15a] sm:$0xff]
        %v788 = vld [vmem:[#allocation2 + $0x16a] sm:$0xff]
        %v789 = vld [vmem:[#allocation2 + $0x172] sm:$0xff]
        %822 = vrot.lane.b32.xlu0 %v758, 6
        %v823 = vpop.permute.xlu0 %822
        %824 = vrot.lane.b32.xlu0 %v759, 6
        %v825 = vpop.permute.xlu0 %824
        %826 = vrot.lane.b32.xlu0 %v760, 6
        %v827 = vpop.permute.xlu0 %826
        %828 = vrot.lane.b32.xlu0 %v761, 6
        %v829 = vpop.permute.xlu0 %828
        %830 = vrot.lane.b32.xlu0 %v762, 6
        %v831 = vpop.permute.xlu0 %830
        %832 = vrot.lane.b32.xlu0 %v763, 6
        %v833 = vpop.permute.xlu0 %832
        %834 = vrot.lane.b32.xlu0 %v764, 6
        %v835 = vpop.permute.xlu0 %834
        %836 = vrot.lane.b32.xlu0 %v765, 6
        %v837 = vpop.permute.xlu0 %836
        %838 = vrot.lane.b32.xlu0 %v766, 6
        %v839 = vpop.permute.xlu0 %838
        %840 = vrot.lane.b32.xlu0 %v767, 6
        %v841 = vpop.permute.xlu0 %840
        %842 = vrot.lane.b32.xlu0 %v768, 6
        %v843 = vpop.permute.xlu0 %842
        %844 = vrot.lane.b32.xlu0 %v769, 6
        %v845 = vpop.permute.xlu0 %844
        %846 = vrot.lane.b32.xlu0 %v770, 6
        %v847 = vpop.permute.xlu0 %846
        %848 = vrot.lane.b32.xlu0 %v771, 6
        %v849 = vpop.permute.xlu0 %848
        %850 = vrot.lane.b32.xlu0 %v772, 6
        %v851 = vpop.permute.xlu0 %850
        %852 = vrot.lane.b32.xlu0 %v773, 6
        %v853 = vpop.permute.xlu0 %852
        %854 = vrot.lane.b32.xlu0 %v774, 6
        %v855 = vpop.permute.xlu0 %854
        %856 = vrot.lane.b32.xlu0 %v775, 6
        %v857 = vpop.permute.xlu0 %856
        %858 = vrot.lane.b32.xlu0 %v776, 6
        %v859 = vpop.permute.xlu0 %858
        %860 = vrot.lane.b32.xlu0 %v777, 6
        %v861 = vpop.permute.xlu0 %860
        %862 = vrot.lane.b32.xlu0 %v778, 6
        %v863 = vpop.permute.xlu0 %862
        %864 = vrot.lane.b32.xlu0 %v779, 6
        %v865 = vpop.permute.xlu0 %864
        %866 = vrot.lane.b32.xlu0 %v780, 6
        %v867 = vpop.permute.xlu0 %866
        %868 = vrot.lane.b32.xlu0 %v781, 6
        %v869 = vpop.permute.xlu0 %868
        %870 = vrot.lane.b32.xlu0 %v782, 6
        %v871 = vpop.permute.xlu0 %870
        %872 = vrot.lane.b32.xlu0 %v783, 6
        %v873 = vpop.permute.xlu0 %872
        %874 = vrot.lane.b32.xlu0 %v784, 6
        %v875 = vpop.permute.xlu0 %874
        %876 = vrot.lane.b32.xlu0 %v785, 6
        %v877 = vpop.permute.xlu0 %876
        %878 = vrot.lane.b32.xlu0 %v786, 6
        %v879 = vpop.permute.xlu0 %878
        %880 = vrot.lane.b32.xlu0 %v787, 6
        %v881 = vpop.permute.xlu0 %880
        %882 = vrot.lane.b32.xlu0 %v788, 6
        %v883 = vpop.permute.xlu0 %882
        %884 = vrot.lane.b32.xlu0 %v789, 6
        %v885 = vpop.permute.xlu0 %884
        %vm918 = vcmask 72752
        %919 = vst.msk [vmem:[#allocation5] sm:$0xff] %vm918, %v823
        %920 = vst.msk [vmem:[#allocation5 + $0x8] sm:$0xff] %vm918, %v825
        %921 = vst.msk [vmem:[#allocation5 + $0x10] sm:$0xff] %vm918, %v827
        %922 = vst.msk [vmem:[#allocation5 + $0x18] sm:$0xff] %vm918, %v829
        %923 = vst.msk [vmem:[#allocation5 + $0x20] sm:$0xff] %vm918, %v831
        %924 = vst.msk [vmem:[#allocation5 + $0x28] sm:$0xff] %vm918, %v833
        %925 = vst.msk [vmem:[#allocation5 + $0x30] sm:$0xff] %vm918, %v835
        %926 = vst.msk [vmem:[#allocation5 + $0x38] sm:$0xff] %vm918, %v837
        %927 = vst.msk [vmem:[#allocation5 + $0x40] sm:$0xff] %vm918, %v839
        %928 = vst.msk [vmem:[#allocation5 + $0x48] sm:$0xff] %vm918, %v841
        %929 = vst.msk [vmem:[#allocation5 + $0x50] sm:$0xff] %vm918, %v843
        %930 = vst.msk [vmem:[#allocation5 + $0x58] sm:$0xff] %vm918, %v845
        %931 = vst.msk [vmem:[#allocation5 + $0x60] sm:$0xff] %vm918, %v847
        %932 = vst.msk [vmem:[#allocation5 + $0x68] sm:$0xff] %vm918, %v849
        %933 = vst.msk [vmem:[#allocation5 + $0x70] sm:$0xff] %vm918, %v851
        %934 = vst.msk [vmem:[#allocation5 + $0x78] sm:$0xff] %vm918, %v853
        %935 = vst.msk [vmem:[#allocation5 + $0x80] sm:$0xff] %vm918, %v855
        %936 = vst.msk [vmem:[#allocation5 + $0x88] sm:$0xff] %vm918, %v857
        %937 = vst.msk [vmem:[#allocation5 + $0x90] sm:$0xff] %vm918, %v859
        %938 = vst.msk [vmem:[#allocation5 + $0x98] sm:$0xff] %vm918, %v861
        %939 = vst.msk [vmem:[#allocation5 + $0xa0] sm:$0xff] %vm918, %v863
        %940 = vst.msk [vmem:[#allocation5 + $0xa8] sm:$0xff] %vm918, %v865
        %941 = vst.msk [vmem:[#allocation5 + $0xb0] sm:$0xff] %vm918, %v867
        %942 = vst.msk [vmem:[#allocation5 + $0xb8] sm:$0xff] %vm918, %v869
        %943 = vst.msk [vmem:[#allocation5 + $0xc0] sm:$0xff] %vm918, %v871
        %944 = vst.msk [vmem:[#allocation5 + $0xc8] sm:$0xff] %vm918, %v873
        %945 = vst.msk [vmem:[#allocation5 + $0xd0] sm:$0xff] %vm918, %v875
        %946 = vst.msk [vmem:[#allocation5 + $0xd8] sm:$0xff] %vm918, %v877
        %947 = vst.msk [vmem:[#allocation5 + $0xe0] sm:$0xff] %vm918, %v879
        %948 = vst.msk [vmem:[#allocation5 + $0xe8] sm:$0xff] %vm918, %v881
        %949 = vst.msk [vmem:[#allocation5 + $0xf0] sm:$0xff] %vm918, %v883
        %950 = vst.msk [vmem:[#allocation5 + $0xf8] sm:$0xff] %vm918, %v885
        %v951 = vld [vmem:[#allocation2 + $0x3] sm:$0xff]
        %v952 = vld [vmem:[#allocation2 + $0xb] sm:$0xff]
        %v953 = vld [vmem:[#allocation2 + $0x1b] sm:$0xff]
        %v954 = vld [vmem:[#allocation2 + $0x23] sm:$0xff]
        %v955 = vld [vmem:[#allocation2 + $0x33] sm:$0xff]
        %v956 = vld [vmem:[#allocation2 + $0x3b] sm:$0xff]
        %v957 = vld [vmem:[#allocation2 + $0x4b] sm:$0xff]
        %v958 = vld [vmem:[#allocation2 + $0x53] sm:$0xff]
        %v959 = vld [vmem:[#allocation2 + $0x63] sm:$0xff]
        %v960 = vld [vmem:[#allocation2 + $0x6b] sm:$0xff]
        %v961 = vld [vmem:[#allocation2 + $0x7b] sm:$0xff]
        %v962 = vld [vmem:[#allocation2 + $0x83] sm:$0xff]
        %v963 = vld [vmem:[#allocation2 + $0x93] sm:$0xff]
        %v964 = vld [vmem:[#allocation2 + $0x9b] sm:$0xff]
        %v965 = vld [vmem:[#allocation2 + $0xab] sm:$0xff]
        %v966 = vld [vmem:[#allocation2 + $0xb3] sm:$0xff]
        %v967 = vld [vmem:[#allocation2 + $0xc3] sm:$0xff]
        %v968 = vld [vmem:[#allocation2 + $0xcb] sm:$0xff]
        %v969 = vld [vmem:[#allocation2 + $0xdb] sm:$0xff]
        %v970 = vld [vmem:[#allocation2 + $0xe3] sm:$0xff]
        %v971 = vld [vmem:[#allocation2 + $0xf3] sm:$0xff]
        %v972 = vld [vmem:[#allocation2 + $0xfb] sm:$0xff]
        %v973 = vld [vmem:[#allocation2 + $0x10b] sm:$0xff]
        %v974 = vld [vmem:[#allocation2 + $0x113] sm:$0xff]
        %v975 = vld [vmem:[#allocation2 + $0x123] sm:$0xff]
        %v976 = vld [vmem:[#allocation2 + $0x12b] sm:$0xff]
        %v977 = vld [vmem:[#allocation2 + $0x13b] sm:$0xff]
        %v978 = vld [vmem:[#allocation2 + $0x143] sm:$0xff]
        %v979 = vld [vmem:[#allocation2 + $0x153] sm:$0xff]
        %v980 = vld [vmem:[#allocation2 + $0x15b] sm:$0xff]
        %v981 = vld [vmem:[#allocation2 + $0x16b] sm:$0xff]
        %v982 = vld [vmem:[#allocation2 + $0x173] sm:$0xff]
        %1015 = vrot.lane.b32.xlu0 %v951, 9
        %v1016 = vpop.permute.xlu0 %1015
        %1017 = vrot.lane.b32.xlu0 %v952, 9
        %v1018 = vpop.permute.xlu0 %1017
        %1019 = vrot.lane.b32.xlu0 %v953, 9
        %v1020 = vpop.permute.xlu0 %1019
        %1021 = vrot.lane.b32.xlu0 %v954, 9
        %v1022 = vpop.permute.xlu0 %1021
        %1023 = vrot.lane.b32.xlu0 %v955, 9
        %v1024 = vpop.permute.xlu0 %1023
        %1025 = vrot.lane.b32.xlu0 %v956, 9
        %v1026 = vpop.permute.xlu0 %1025
        %1027 = vrot.lane.b32.xlu0 %v957, 9
        %v1028 = vpop.permute.xlu0 %1027
        %1029 = vrot.lane.b32.xlu0 %v958, 9
        %v1030 = vpop.permute.xlu0 %1029
        %1031 = vrot.lane.b32.xlu0 %v959, 9
        %v1032 = vpop.permute.xlu0 %1031
        %1033 = vrot.lane.b32.xlu0 %v960, 9
        %v1034 = vpop.permute.xlu0 %1033
        %1035 = vrot.lane.b32.xlu0 %v961, 9
        %v1036 = vpop.permute.xlu0 %1035
        %1037 = vrot.lane.b32.xlu0 %v962, 9
        %v1038 = vpop.permute.xlu0 %1037
        %1039 = vrot.lane.b32.xlu0 %v963, 9
        %v1040 = vpop.permute.xlu0 %1039
        %1041 = vrot.lane.b32.xlu0 %v964, 9
        %v1042 = vpop.permute.xlu0 %1041
        %1043 = vrot.lane.b32.xlu0 %v965, 9
        %v1044 = vpop.permute.xlu0 %1043
        %1045 = vrot.lane.b32.xlu0 %v966, 9
        %v1046 = vpop.permute.xlu0 %1045
        %1047 = vrot.lane.b32.xlu0 %v967, 9
        %v1048 = vpop.permute.xlu0 %1047
        %1049 = vrot.lane.b32.xlu0 %v968, 9
        %v1050 = vpop.permute.xlu0 %1049
        %1051 = vrot.lane.b32.xlu0 %v969, 9
        %v1052 = vpop.permute.xlu0 %1051
        %1053 = vrot.lane.b32.xlu0 %v970, 9
        %v1054 = vpop.permute.xlu0 %1053
        %1055 = vrot.lane.b32.xlu0 %v971, 9
        %v1056 = vpop.permute.xlu0 %1055
        %1057 = vrot.lane.b32.xlu0 %v972, 9
        %v1058 = vpop.permute.xlu0 %1057
        %1059 = vrot.lane.b32.xlu0 %v973, 9
        %v1060 = vpop.permute.xlu0 %1059
        %1061 = vrot.lane.b32.xlu0 %v974, 9
        %v1062 = vpop.permute.xlu0 %1061
        %1063 = vrot.lane.b32.xlu0 %v975, 9
        %v1064 = vpop.permute.xlu0 %1063
        %1065 = vrot.lane.b32.xlu0 %v976, 9
        %v1066 = vpop.permute.xlu0 %1065
        %1067 = vrot.lane.b32.xlu0 %v977, 9
        %v1068 = vpop.permute.xlu0 %1067
        %1069 = vrot.lane.b32.xlu0 %v978, 9
        %v1070 = vpop.permute.xlu0 %1069
        %1071 = vrot.lane.b32.xlu0 %v979, 9
        %v1072 = vpop.permute.xlu0 %1071
        %1073 = vrot.lane.b32.xlu0 %v980, 9
        %v1074 = vpop.permute.xlu0 %1073
        %1075 = vrot.lane.b32.xlu0 %v981, 9
        %v1076 = vpop.permute.xlu0 %1075
        %1077 = vrot.lane.b32.xlu0 %v982, 9
        %v1078 = vpop.permute.xlu0 %1077
        %vm1111 = vcmask 97352
        %1112 = vst.msk [vmem:[#allocation5] sm:$0xff] %vm1111, %v1016
        %1113 = vst.msk [vmem:[#allocation5 + $0x8] sm:$0xff] %vm1111, %v1018
        %1114 = vst.msk [vmem:[#allocation5 + $0x10] sm:$0xff] %vm1111, %v1020
        %1115 = vst.msk [vmem:[#allocation5 + $0x18] sm:$0xff] %vm1111, %v1022
        %1116 = vst.msk [vmem:[#allocation5 + $0x20] sm:$0xff] %vm1111, %v1024
        %1117 = vst.msk [vmem:[#allocation5 + $0x28] sm:$0xff] %vm1111, %v1026
        %1118 = vst.msk [vmem:[#allocation5 + $0x30] sm:$0xff] %vm1111, %v1028
        %1119 = vst.msk [vmem:[#allocation5 + $0x38] sm:$0xff] %vm1111, %v1030
        %1120 = vst.msk [vmem:[#allocation5 + $0x40] sm:$0xff] %vm1111, %v1032
        %1121 = vst.msk [vmem:[#allocation5 + $0x48] sm:$0xff] %vm1111, %v1034
        %1122 = vst.msk [vmem:[#allocation5 + $0x50] sm:$0xff] %vm1111, %v1036
        %1123 = vst.msk [vmem:[#allocation5 + $0x58] sm:$0xff] %vm1111, %v1038
        %1124 = vst.msk [vmem:[#allocation5 + $0x60] sm:$0xff] %vm1111, %v1040
        %1125 = vst.msk [vmem:[#allocation5 + $0x68] sm:$0xff] %vm1111, %v1042
        %1126 = vst.msk [vmem:[#allocation5 + $0x70] sm:$0xff] %vm1111, %v1044
        %1127 = vst.msk [vmem:[#allocation5 + $0x78] sm:$0xff] %vm1111, %v1046
        %1128 = vst.msk [vmem:[#allocation5 + $0x80] sm:$0xff] %vm1111, %v1048
        %1129 = vst.msk [vmem:[#allocation5 + $0x88] sm:$0xff] %vm1111, %v1050
        %1130 = vst.msk [vmem:[#allocation5 + $0x90] sm:$0xff] %vm1111, %v1052
        %1131 = vst.msk [vmem:[#allocation5 + $0x98] sm:$0xff] %vm1111, %v1054
        %1132 = vst.msk [vmem:[#allocation5 + $0xa0] sm:$0xff] %vm1111, %v1056
        %1133 = vst.msk [vmem:[#allocation5 + $0xa8] sm:$0xff] %vm1111, %v1058
        %1134 = vst.msk [vmem:[#allocation5 + $0xb0] sm:$0xff] %vm1111, %v1060
        %1135 = vst.msk [vmem:[#allocation5 + $0xb8] sm:$0xff] %vm1111, %v1062
        %1136 = vst.msk [vmem:[#allocation5 + $0xc0] sm:$0xff] %vm1111, %v1064
        %1137 = vst.msk [vmem:[#allocation5 + $0xc8] sm:$0xff] %vm1111, %v1066
        %1138 = vst.msk [vmem:[#allocation5 + $0xd0] sm:$0xff] %vm1111, %v1068
        %1139 = vst.msk [vmem:[#allocation5 + $0xd8] sm:$0xff] %vm1111, %v1070
        %1140 = vst.msk [vmem:[#allocation5 + $0xe0] sm:$0xff] %vm1111, %v1072
        %1141 = vst.msk [vmem:[#allocation5 + $0xe8] sm:$0xff] %vm1111, %v1074
        %1142 = vst.msk [vmem:[#allocation5 + $0xf0] sm:$0xff] %vm1111, %v1076
        %1143 = vst.msk [vmem:[#allocation5 + $0xf8] sm:$0xff] %vm1111, %v1078
        %v1144 = vld [vmem:[#allocation2 + $0x4] sm:$0xff]
        %v1145 = vld [vmem:[#allocation2 + $0xc] sm:$0xff]
        %v1146 = vld [vmem:[#allocation2 + $0x1c] sm:$0xff]
        %v1147 = vld [vmem:[#allocation2 + $0x24] sm:$0xff]
        %v1148 = vld [vmem:[#allocation2 + $0x34] sm:$0xff]
        %v1149 = vld [vmem:[#allocation2 + $0x3c] sm:$0xff]
        %v1150 = vld [vmem:[#allocation2 + $0x4c] sm:$0xff]
        %v1151 = vld [vmem:[#allocation2 + $0x54] sm:$0xff]
        %v1152 = vld [vmem:[#allocation2 + $0x64] sm:$0xff]
        %v1153 = vld [vmem:[#allocation2 + $0x6c] sm:$0xff]
        %v1154 = vld [vmem:[#allocation2 + $0x7c] sm:$0xff]
        %v1155 = vld [vmem:[#allocation2 + $0x84] sm:$0xff]
        %v1156 = vld [vmem:[#allocation2 + $0x94] sm:$0xff]
        %v1157 = vld [vmem:[#allocation2 + $0x9c] sm:$0xff]
        %v1158 = vld [vmem:[#allocation2 + $0xac] sm:$0xff]
        %v1159 = vld [vmem:[#allocation2 + $0xb4] sm:$0xff]
        %v1160 = vld [vmem:[#allocation2 + $0xc4] sm:$0xff]
        %v1161 = vld [vmem:[#allocation2 + $0xcc] sm:$0xff]
        %v1162 = vld [vmem:[#allocation2 + $0xdc] sm:$0xff]
        %v1163 = vld [vmem:[#allocation2 + $0xe4] sm:$0xff]
        %v1164 = vld [vmem:[#allocation2 + $0xf4] sm:$0xff]
        %v1165 = vld [vmem:[#allocation2 + $0xfc] sm:$0xff]
        %v1166 = vld [vmem:[#allocation2 + $0x10c] sm:$0xff]
        %v1167 = vld [vmem:[#allocation2 + $0x114] sm:$0xff]
        %v1168 = vld [vmem:[#allocation2 + $0x124] sm:$0xff]
        %v1169 = vld [vmem:[#allocation2 + $0x12c] sm:$0xff]
        %v1170 = vld [vmem:[#allocation2 + $0x13c] sm:$0xff]
        %v1171 = vld [vmem:[#allocation2 + $0x144] sm:$0xff]
        %v1172 = vld [vmem:[#allocation2 + $0x154] sm:$0xff]
        %v1173 = vld [vmem:[#allocation2 + $0x15c] sm:$0xff]
        %v1174 = vld [vmem:[#allocation2 + $0x16c] sm:$0xff]
        %v1175 = vld [vmem:[#allocation2 + $0x174] sm:$0xff]
        %1208 = vrot.lane.b32.xlu0 %v1144, 12
        %v1209 = vpop.permute.xlu0 %1208
        %1210 = vrot.lane.b32.xlu0 %v1145, 12
        %v1211 = vpop.permute.xlu0 %1210
        %1212 = vrot.lane.b32.xlu0 %v1146, 12
        %v1213 = vpop.permute.xlu0 %1212
        %1214 = vrot.lane.b32.xlu0 %v1147, 12
        %v1215 = vpop.permute.xlu0 %1214
        %1216 = vrot.lane.b32.xlu0 %v1148, 12
        %v1217 = vpop.permute.xlu0 %1216
        %1218 = vrot.lane.b32.xlu0 %v1149, 12
        %v1219 = vpop.permute.xlu0 %1218
        %1220 = vrot.lane.b32.xlu0 %v1150, 12
        %v1221 = vpop.permute.xlu0 %1220
        %1222 = vrot.lane.b32.xlu0 %v1151, 12
        %v1223 = vpop.permute.xlu0 %1222
        %1224 = vrot.lane.b32.xlu0 %v1152, 12
        %v1225 = vpop.permute.xlu0 %1224
        %1226 = vrot.lane.b32.xlu0 %v1153, 12
        %v1227 = vpop.permute.xlu0 %1226
        %1228 = vrot.lane.b32.xlu0 %v1154, 12
        %v1229 = vpop.permute.xlu0 %1228
        %1230 = vrot.lane.b32.xlu0 %v1155, 12
        %v1231 = vpop.permute.xlu0 %1230
        %1232 = vrot.lane.b32.xlu0 %v1156, 12
        %v1233 = vpop.permute.xlu0 %1232
        %1234 = vrot.lane.b32.xlu0 %v1157, 12
        %v1235 = vpop.permute.xlu0 %1234
        %1236 = vrot.lane.b32.xlu0 %v1158, 12
        %v1237 = vpop.permute.xlu0 %1236
        %1238 = vrot.lane.b32.xlu0 %v1159, 12
        %v1239 = vpop.permute.xlu0 %1238
        %1240 = vrot.lane.b32.xlu0 %v1160, 12
        %v1241 = vpop.permute.xlu0 %1240
        %1242 = vrot.lane.b32.xlu0 %v1161, 12
        %v1243 = vpop.permute.xlu0 %1242
        %1244 = vrot.lane.b32.xlu0 %v1162, 12
        %v1245 = vpop.permute.xlu0 %1244
        %1246 = vrot.lane.b32.xlu0 %v1163, 12
        %v1247 = vpop.permute.xlu0 %1246
        %1248 = vrot.lane.b32.xlu0 %v1164, 12
        %v1249 = vpop.permute.xlu0 %1248
        %1250 = vrot.lane.b32.xlu0 %v1165, 12
        %v1251 = vpop.permute.xlu0 %1250
        %1252 = vrot.lane.b32.xlu0 %v1166, 12
        %v1253 = vpop.permute.xlu0 %1252
        %1254 = vrot.lane.b32.xlu0 %v1167, 12
        %v1255 = vpop.permute.xlu0 %1254
        %1256 = vrot.lane.b32.xlu0 %v1168, 12
        %v1257 = vpop.permute.xlu0 %1256
        %1258 = vrot.lane.b32.xlu0 %v1169, 12
        %v1259 = vpop.permute.xlu0 %1258
        %1260 = vrot.lane.b32.xlu0 %v1170, 12
        %v1261 = vpop.permute.xlu0 %1260
        %1262 = vrot.lane.b32.xlu0 %v1171, 12
        %v1263 = vpop.permute.xlu0 %1262
        %1264 = vrot.lane.b32.xlu0 %v1172, 12
        %v1265 = vpop.permute.xlu0 %1264
        %1266 = vrot.lane.b32.xlu0 %v1173, 12
        %v1267 = vpop.permute.xlu0 %1266
        %1268 = vrot.lane.b32.xlu0 %v1174, 12
        %v1269 = vpop.permute.xlu0 %1268
        %1270 = vrot.lane.b32.xlu0 %v1175, 12
        %v1271 = vpop.permute.xlu0 %1270
        %vm1304 = vcmask 121952
        %1305 = vst.msk [vmem:[#allocation5] sm:$0xff] %vm1304, %v1209
        %1306 = vst.msk [vmem:[#allocation5 + $0x8] sm:$0xff] %vm1304, %v1211
        %1307 = vst.msk [vmem:[#allocation5 + $0x10] sm:$0xff] %vm1304, %v1213
        %1308 = vst.msk [vmem:[#allocation5 + $0x18] sm:$0xff] %vm1304, %v1215
        %1309 = vst.msk [vmem:[#allocation5 + $0x20] sm:$0xff] %vm1304, %v1217
        %1310 = vst.msk [vmem:[#allocation5 + $0x28] sm:$0xff] %vm1304, %v1219
        %1311 = vst.msk [vmem:[#allocation5 + $0x30] sm:$0xff] %vm1304, %v1221
        %1312 = vst.msk [vmem:[#allocation5 + $0x38] sm:$0xff] %vm1304, %v1223
        %1313 = vst.msk [vmem:[#allocation5 + $0x40] sm:$0xff] %vm1304, %v1225
        %1314 = vst.msk [vmem:[#allocation5 + $0x48] sm:$0xff] %vm1304, %v1227
        %1315 = vst.msk [vmem:[#allocation5 + $0x50] sm:$0xff] %vm1304, %v1229
        %1316 = vst.msk [vmem:[#allocation5 + $0x58] sm:$0xff] %vm1304, %v1231
        %1317 = vst.msk [vmem:[#allocation5 + $0x60] sm:$0xff] %vm1304, %v1233
        %1318 = vst.msk [vmem:[#allocation5 + $0x68] sm:$0xff] %vm1304, %v1235
        %1319 = vst.msk [vmem:[#allocation5 + $0x70] sm:$0xff] %vm1304, %v1237
        %1320 = vst.msk [vmem:[#allocation5 + $0x78] sm:$0xff] %vm1304, %v1239
        %1321 = vst.msk [vmem:[#allocation5 + $0x80] sm:$0xff] %vm1304, %v1241
        %1322 = vst.msk [vmem:[#allocation5 + $0x88] sm:$0xff] %vm1304, %v1243
        %1323 = vst.msk [vmem:[#allocation5 + $0x90] sm:$0xff] %vm1304, %v1245
        %1324 = vst.msk [vmem:[#allocation5 + $0x98] sm:$0xff] %vm1304, %v1247
        %1325 = vst.msk [vmem:[#allocation5 + $0xa0] sm:$0xff] %vm1304, %v1249
        %1326 = vst.msk [vmem:[#allocation5 + $0xa8] sm:$0xff] %vm1304, %v1251
        %1327 = vst.msk [vmem:[#allocation5 + $0xb0] sm:$0xff] %vm1304, %v1253
        %1328 = vst.msk [vmem:[#allocation5 + $0xb8] sm:$0xff] %vm1304, %v1255
        %1329 = vst.msk [vmem:[#allocation5 + $0xc0] sm:$0xff] %vm1304, %v1257
        %1330 = vst.msk [vmem:[#allocation5 + $0xc8] sm:$0xff] %vm1304, %v1259
        %1331 = vst.msk [vmem:[#allocation5 + $0xd0] sm:$0xff] %vm1304, %v1261
        %1332 = vst.msk [vmem:[#allocation5 + $0xd8] sm:$0xff] %vm1304, %v1263
        %1333 = vst.msk [vmem:[#allocation5 + $0xe0] sm:$0xff] %vm1304, %v1265
        %1334 = vst.msk [vmem:[#allocation5 + $0xe8] sm:$0xff] %vm1304, %v1267
        %1335 = vst.msk [vmem:[#allocation5 + $0xf0] sm:$0xff] %vm1304, %v1269
        %1336 = vst.msk [vmem:[#allocation5 + $0xf8] sm:$0xff] %vm1304, %v1271
        %s1337 = scalar_lea.vmem [#allocation2], 24
        %v1338 = vld [vmem:[%s1337] sm:$0xff]
        %v1339 = vld [vmem:[%s1337 + $0x8] sm:$0xff]
        %v1340 = vld [vmem:[%s1337 + $0x18] sm:$0xff]
        %v1341 = vld [vmem:[%s1337 + $0x20] sm:$0xff]
        %v1342 = vld [vmem:[%s1337 + $0x30] sm:$0xff]
        %v1343 = vld [vmem:[%s1337 + $0x38] sm:$0xff]
        %v1344 = vld [vmem:[%s1337 + $0x48] sm:$0xff]
        %v1345 = vld [vmem:[%s1337 + $0x50] sm:$0xff]
        %v1346 = vld [vmem:[%s1337 + $0x60] sm:$0xff]
        %v1347 = vld [vmem:[%s1337 + $0x68] sm:$0xff]
        %v1348 = vld [vmem:[%s1337 + $0x78] sm:$0xff]
        %v1349 = vld [vmem:[%s1337 + $0x80] sm:$0xff]
        %v1350 = vld [vmem:[%s1337 + $0x90] sm:$0xff]
        %v1351 = vld [vmem:[%s1337 + $0x98] sm:$0xff]
        %v1352 = vld [vmem:[%s1337 + $0xa8] sm:$0xff]
        %v1353 = vld [vmem:[%s1337 + $0xb0] sm:$0xff]
        %v1354 = vld [vmem:[%s1337 + $0xc0] sm:$0xff]
        %v1355 = vld [vmem:[%s1337 + $0xc8] sm:$0xff]
        %v1356 = vld [vmem:[%s1337 + $0xd8] sm:$0xff]
        %v1357 = vld [vmem:[%s1337 + $0xe0] sm:$0xff]
        %v1358 = vld [vmem:[%s1337 + $0xf0] sm:$0xff]
        %v1359 = vld [vmem:[%s1337 + $0xf8] sm:$0xff]
        %v1360 = vld [vmem:[%s1337 + $0x108] sm:$0xff]
        %v1361 = vld [vmem:[%s1337 + $0x110] sm:$0xff]
        %v1362 = vld [vmem:[%s1337 + $0x120] sm:$0xff]
        %v1363 = vld [vmem:[%s1337 + $0x128] sm:$0xff]
        %v1364 = vld [vmem:[%s1337 + $0x138] sm:$0xff]
        %v1365 = vld [vmem:[%s1337 + $0x140] sm:$0xff]
        %v1366 = vld [vmem:[%s1337 + $0x150] sm:$0xff]
        %v1367 = vld [vmem:[%s1337 + $0x158] sm:$0xff]
        %v1368 = vld [vmem:[%s1337 + $0x168] sm:$0xff]
        %v1369 = vld [vmem:[%s1337 + $0x170] sm:$0xff]
        %1402 = vrot.lane.b32.xlu0 %v1338, 15
        %v1403 = vpop.permute.xlu0 %1402
        %1404 = vrot.lane.b32.xlu0 %v1339, 15
        %v1405 = vpop.permute.xlu0 %1404
        %1406 = vrot.lane.b32.xlu0 %v1340, 15
        %v1407 = vpop.permute.xlu0 %1406
        %1408 = vrot.lane.b32.xlu0 %v1341, 15
        %v1409 = vpop.permute.xlu0 %1408
        %1410 = vrot.lane.b32.xlu0 %v1342, 15
        %v1411 = vpop.permute.xlu0 %1410
        %1412 = vrot.lane.b32.xlu0 %v1343, 15
        %v1413 = vpop.permute.xlu0 %1412
        %1414 = vrot.lane.b32.xlu0 %v1344, 15
        %v1415 = vpop.permute.xlu0 %1414
        %1416 = vrot.lane.b32.xlu0 %v1345, 15
        %v1417 = vpop.permute.xlu0 %1416
        %1418 = vrot.lane.b32.xlu0 %v1346, 15
        %v1419 = vpop.permute.xlu0 %1418
        %1420 = vrot.lane.b32.xlu0 %v1347, 15
        %v1421 = vpop.permute.xlu0 %1420
        %1422 = vrot.lane.b32.xlu0 %v1348, 15
        %v1423 = vpop.permute.xlu0 %1422
        %1424 = vrot.lane.b32.xlu0 %v1349, 15
        %v1425 = vpop.permute.xlu0 %1424
        %1426 = vrot.lane.b32.xlu0 %v1350, 15
        %v1427 = vpop.permute.xlu0 %1426
        %1428 = vrot.lane.b32.xlu0 %v1351, 15
        %v1429 = vpop.permute.xlu0 %1428
        %1430 = vrot.lane.b32.xlu0 %v1352, 15
        %v1431 = vpop.permute.xlu0 %1430
        %1432 = vrot.lane.b32.xlu0 %v1353, 15
        %v1433 = vpop.permute.xlu0 %1432
        %1434 = vrot.lane.b32.xlu0 %v1354, 15
        %v1435 = vpop.permute.xlu0 %1434
        %1436 = vrot.lane.b32.xlu0 %v1355, 15
        %v1437 = vpop.permute.xlu0 %1436
        %1438 = vrot.lane.b32.xlu0 %v1356, 15
        %v1439 = vpop.permute.xlu0 %1438
        %1440 = vrot.lane.b32.xlu0 %v1357, 15
        %v1441 = vpop.permute.xlu0 %1440
        %1442 = vrot.lane.b32.xlu0 %v1358, 15
        %v1443 = vpop.permute.xlu0 %1442
        %1444 = vrot.lane.b32.xlu0 %v1359, 15
        %v1445 = vpop.permute.xlu0 %1444
        %1446 = vrot.lane.b32.xlu0 %v1360, 15
        %v1447 = vpop.permute.xlu0 %1446
        %1448 = vrot.lane.b32.xlu0 %v1361, 15
        %v1449 = vpop.permute.xlu0 %1448
        %1450 = vrot.lane.b32.xlu0 %v1362, 15
        %v1451 = vpop.permute.xlu0 %1450
        %1452 = vrot.lane.b32.xlu0 %v1363, 15
        %v1453 = vpop.permute.xlu0 %1452
        %1454 = vrot.lane.b32.xlu0 %v1364, 15
        %v1455 = vpop.permute.xlu0 %1454
        %1456 = vrot.lane.b32.xlu0 %v1365, 15
        %v1457 = vpop.permute.xlu0 %1456
        %1458 = vrot.lane.b32.xlu0 %v1366, 15
        %v1459 = vpop.permute.xlu0 %1458
        %1460 = vrot.lane.b32.xlu0 %v1367, 15
        %v1461 = vpop.permute.xlu0 %1460
        %1462 = vrot.lane.b32.xlu0 %v1368, 15
        %v1463 = vpop.permute.xlu0 %1462
        %1464 = vrot.lane.b32.xlu0 %v1369, 15
        %v1465 = vpop.permute.xlu0 %1464
        %vm1498 = vcmask 146552
        %1499 = vst.msk [vmem:[#allocation5] sm:$0xff] %vm1498, %v1403
        %1500 = vst.msk [vmem:[#allocation5 + $0x8] sm:$0xff] %vm1498, %v1405
        %1501 = vst.msk [vmem:[#allocation5 + $0x10] sm:$0xff] %vm1498, %v1407
        %1502 = vst.msk [vmem:[#allocation5 + $0x18] sm:$0xff] %vm1498, %v1409
        %1503 = vst.msk [vmem:[#allocation5 + $0x20] sm:$0xff] %vm1498, %v1411
        %1504 = vst.msk [vmem:[#allocation5 + $0x28] sm:$0xff] %vm1498, %v1413
        %1505 = vst.msk [vmem:[#allocation5 + $0x30] sm:$0xff] %vm1498, %v1415
        %1506 = vst.msk [vmem:[#allocation5 + $0x38] sm:$0xff] %vm1498, %v1417
        %1507 = vst.msk [vmem:[#allocation5 + $0x40] sm:$0xff] %vm1498, %v1419
        %1508 = vst.msk [vmem:[#allocation5 + $0x48] sm:$0xff] %vm1498, %v1421
        %1509 = vst.msk [vmem:[#allocation5 + $0x50] sm:$0xff] %vm1498, %v1423
        %1510 = vst.msk [vmem:[#allocation5 + $0x58] sm:$0xff] %vm1498, %v1425
        %1511 = vst.msk [vmem:[#allocation5 + $0x60] sm:$0xff] %vm1498, %v1427
        %1512 = vst.msk [vmem:[#allocation5 + $0x68] sm:$0xff] %vm1498, %v1429
        %1513 = vst.msk [vmem:[#allocation5 + $0x70] sm:$0xff] %vm1498, %v1431
        %1514 = vst.msk [vmem:[#allocation5 + $0x78] sm:$0xff] %vm1498, %v1433
        %1515 = vst.msk [vmem:[#allocation5 + $0x80] sm:$0xff] %vm1498, %v1435
        %1516 = vst.msk [vmem:[#allocation5 + $0x88] sm:$0xff] %vm1498, %v1437
        %1517 = vst.msk [vmem:[#allocation5 + $0x90] sm:$0xff] %vm1498, %v1439
        %1518 = vst.msk [vmem:[#allocation5 + $0x98] sm:$0xff] %vm1498, %v1441
        %1519 = vst.msk [vmem:[#allocation5 + $0xa0] sm:$0xff] %vm1498, %v1443
        %1520 = vst.msk [vmem:[#allocation5 + $0xa8] sm:$0xff] %vm1498, %v1445
        %1521 = vst.msk [vmem:[#allocation5 + $0xb0] sm:$0xff] %vm1498, %v1447
        %1522 = vst.msk [vmem:[#allocation5 + $0xb8] sm:$0xff] %vm1498, %v1449
        %1523 = vst.msk [vmem:[#allocation5 + $0xc0] sm:$0xff] %vm1498, %v1451
        %1524 = vst.msk [vmem:[#allocation5 + $0xc8] sm:$0xff] %vm1498, %v1453
        %1525 = vst.msk [vmem:[#allocation5 + $0xd0] sm:$0xff] %vm1498, %v1455
        %1526 = vst.msk [vmem:[#allocation5 + $0xd8] sm:$0xff] %vm1498, %v1457
        %1527 = vst.msk [vmem:[#allocation5 + $0xe0] sm:$0xff] %vm1498, %v1459
        %1528 = vst.msk [vmem:[#allocation5 + $0xe8] sm:$0xff] %vm1498, %v1461
        %1529 = vst.msk [vmem:[#allocation5 + $0xf0] sm:$0xff] %vm1498, %v1463
        %1530 = vst.msk [vmem:[#allocation5 + $0xf8] sm:$0xff] %vm1498, %v1465
        %v1531 = vld [vmem:[%s1337 + $0x1] sm:$0xff]
        %v1532 = vld [vmem:[%s1337 + $0x9] sm:$0xff]
        %v1533 = vld [vmem:[%s1337 + $0x19] sm:$0xff]
        %v1534 = vld [vmem:[%s1337 + $0x21] sm:$0xff]
        %v1535 = vld [vmem:[%s1337 + $0x31] sm:$0xff]
        %v1536 = vld [vmem:[%s1337 + $0x39] sm:$0xff]
        %v1537 = vld [vmem:[%s1337 + $0x49] sm:$0xff]
        %v1538 = vld [vmem:[%s1337 + $0x51] sm:$0xff]
        %v1539 = vld [vmem:[%s1337 + $0x61] sm:$0xff]
        %v1540 = vld [vmem:[%s1337 + $0x69] sm:$0xff]
        %v1541 = vld [vmem:[%s1337 + $0x79] sm:$0xff]
        %v1542 = vld [vmem:[%s1337 + $0x81] sm:$0xff]
        %v1543 = vld [vmem:[%s1337 + $0x91] sm:$0xff]
        %v1544 = vld [vmem:[%s1337 + $0x99] sm:$0xff]
        %v1545 = vld [vmem:[%s1337 + $0xa9] sm:$0xff]
        %v1546 = vld [vmem:[%s1337 + $0xb1] sm:$0xff]
        %v1547 = vld [vmem:[%s1337 + $0xc1] sm:$0xff]
        %v1548 = vld [vmem:[%s1337 + $0xc9] sm:$0xff]
        %v1549 = vld [vmem:[%s1337 + $0xd9] sm:$0xff]
        %v1550 = vld [vmem:[%s1337 + $0xe1] sm:$0xff]
        %v1551 = vld [vmem:[%s1337 + $0xf1] sm:$0xff]
        %v1552 = vld [vmem:[%s1337 + $0xf9] sm:$0xff]
        %v1553 = vld [vmem:[%s1337 + $0x109] sm:$0xff]
        %v1554 = vld [vmem:[%s1337 + $0x111] sm:$0xff]
        %v1555 = vld [vmem:[%s1337 + $0x121] sm:$0xff]
        %v1556 = vld [vmem:[%s1337 + $0x129] sm:$0xff]
        %v1557 = vld [vmem:[%s1337 + $0x139] sm:$0xff]
        %v1558 = vld [vmem:[%s1337 + $0x141] sm:$0xff]
        %v1559 = vld [vmem:[%s1337 + $0x151] sm:$0xff]
        %v1560 = vld [vmem:[%s1337 + $0x159] sm:$0xff]
        %v1561 = vld [vmem:[%s1337 + $0x169] sm:$0xff]
        %v1562 = vld [vmem:[%s1337 + $0x171] sm:$0xff]
        %1595 = vrot.lane.b32.xlu0 %v1531, 18
        %v1596 = vpop.permute.xlu0 %1595
        %1597 = vrot.lane.b32.xlu0 %v1532, 18
        %v1598 = vpop.permute.xlu0 %1597
        %1599 = vrot.lane.b32.xlu0 %v1533, 18
        %v1600 = vpop.permute.xlu0 %1599
        %1601 = vrot.lane.b32.xlu0 %v1534, 18
        %v1602 = vpop.permute.xlu0 %1601
        %1603 = vrot.lane.b32.xlu0 %v1535, 18
        %v1604 = vpop.permute.xlu0 %1603
        %1605 = vrot.lane.b32.xlu0 %v1536, 18
        %v1606 = vpop.permute.xlu0 %1605
        %1607 = vrot.lane.b32.xlu0 %v1537, 18
        %v1608 = vpop.permute.xlu0 %1607
        %1609 = vrot.lane.b32.xlu0 %v1538, 18
        %v1610 = vpop.permute.xlu0 %1609
        %1611 = vrot.lane.b32.xlu0 %v1539, 18
        %v1612 = vpop.permute.xlu0 %1611
        %1613 = vrot.lane.b32.xlu0 %v1540, 18
        %v1614 = vpop.permute.xlu0 %1613
        %1615 = vrot.lane.b32.xlu0 %v1541, 18
        %v1616 = vpop.permute.xlu0 %1615
        %1617 = vrot.lane.b32.xlu0 %v1542, 18
        %v1618 = vpop.permute.xlu0 %1617
        %1619 = vrot.lane.b32.xlu0 %v1543, 18
        %v1620 = vpop.permute.xlu0 %1619
        %1621 = vrot.lane.b32.xlu0 %v1544, 18
        %v1622 = vpop.permute.xlu0 %1621
        %1623 = vrot.lane.b32.xlu0 %v1545, 18
        %v1624 = vpop.permute.xlu0 %1623
        %1625 = vrot.lane.b32.xlu0 %v1546, 18
        %v1626 = vpop.permute.xlu0 %1625
        %1627 = vrot.lane.b32.xlu0 %v1547, 18
        %v1628 = vpop.permute.xlu0 %1627
        %1629 = vrot.lane.b32.xlu0 %v1548, 18
        %v1630 = vpop.permute.xlu0 %1629
        %1631 = vrot.lane.b32.xlu0 %v1549, 18
        %v1632 = vpop.permute.xlu0 %1631
        %1633 = vrot.lane.b32.xlu0 %v1550, 18
        %v1634 = vpop.permute.xlu0 %1633
        %1635 = vrot.lane.b32.xlu0 %v1551, 18
        %v1636 = vpop.permute.xlu0 %1635
        %1637 = vrot.lane.b32.xlu0 %v1552, 18
        %v1638 = vpop.permute.xlu0 %1637
        %1639 = vrot.lane.b32.xlu0 %v1553, 18
        %v1640 = vpop.permute.xlu0 %1639
        %1641 = vrot.lane.b32.xlu0 %v1554, 18
        %v1642 = vpop.permute.xlu0 %1641
        %1643 = vrot.lane.b32.xlu0 %v1555, 18
        %v1644 = vpop.permute.xlu0 %1643
        %1645 = vrot.lane.b32.xlu0 %v1556, 18
        %v1646 = vpop.permute.xlu0 %1645
        %1647 = vrot.lane.b32.xlu0 %v1557, 18
        %v1648 = vpop.permute.xlu0 %1647
        %1649 = vrot.lane.b32.xlu0 %v1558, 18
        %v1650 = vpop.permute.xlu0 %1649
        %1651 = vrot.lane.b32.xlu0 %v1559, 18
        %v1652 = vpop.permute.xlu0 %1651
        %1653 = vrot.lane.b32.xlu0 %v1560, 18
        %v1654 = vpop.permute.xlu0 %1653
        %1655 = vrot.lane.b32.xlu0 %v1561, 18
        %v1656 = vpop.permute.xlu0 %1655
        %1657 = vrot.lane.b32.xlu0 %v1562, 18
        %v1658 = vpop.permute.xlu0 %1657
        %vm1691 = vcmask 171152
        %1692 = vst.msk [vmem:[#allocation5] sm:$0xff] %vm1691, %v1596
        %1693 = vst.msk [vmem:[#allocation5 + $0x8] sm:$0xff] %vm1691, %v1598
        %1694 = vst.msk [vmem:[#allocation5 + $0x10] sm:$0xff] %vm1691, %v1600
        %1695 = vst.msk [vmem:[#allocation5 + $0x18] sm:$0xff] %vm1691, %v1602
        %1696 = vst.msk [vmem:[#allocation5 + $0x20] sm:$0xff] %vm1691, %v1604
        %1697 = vst.msk [vmem:[#allocation5 + $0x28] sm:$0xff] %vm1691, %v1606
        %1698 = vst.msk [vmem:[#allocation5 + $0x30] sm:$0xff] %vm1691, %v1608
        %1699 = vst.msk [vmem:[#allocation5 + $0x38] sm:$0xff] %vm1691, %v1610
        %1700 = vst.msk [vmem:[#allocation5 + $0x40] sm:$0xff] %vm1691, %v1612
        %1701 = vst.msk [vmem:[#allocation5 + $0x48] sm:$0xff] %vm1691, %v1614
        %1702 = vst.msk [vmem:[#allocation5 + $0x50] sm:$0xff] %vm1691, %v1616
        %1703 = vst.msk [vmem:[#allocation5 + $0x58] sm:$0xff] %vm1691, %v1618
        %1704 = vst.msk [vmem:[#allocation5 + $0x60] sm:$0xff] %vm1691, %v1620
        %1705 = vst.msk [vmem:[#allocation5 + $0x68] sm:$0xff] %vm1691, %v1622
        %1706 = vst.msk [vmem:[#allocation5 + $0x70] sm:$0xff] %vm1691, %v1624
        %1707 = vst.msk [vmem:[#allocation5 + $0x78] sm:$0xff] %vm1691, %v1626
        %1708 = vst.msk [vmem:[#allocation5 + $0x80] sm:$0xff] %vm1691, %v1628
        %1709 = vst.msk [vmem:[#allocation5 + $0x88] sm:$0xff] %vm1691, %v1630
        %1710 = vst.msk [vmem:[#allocation5 + $0x90] sm:$0xff] %vm1691, %v1632
        %1711 = vst.msk [vmem:[#allocation5 + $0x98] sm:$0xff] %vm1691, %v1634
        %1712 = vst.msk [vmem:[#allocation5 + $0xa0] sm:$0xff] %vm1691, %v1636
        %1713 = vst.msk [vmem:[#allocation5 + $0xa8] sm:$0xff] %vm1691, %v1638
        %1714 = vst.msk [vmem:[#allocation5 + $0xb0] sm:$0xff] %vm1691, %v1640
        %1715 = vst.msk [vmem:[#allocation5 + $0xb8] sm:$0xff] %vm1691, %v1642
        %1716 = vst.msk [vmem:[#allocation5 + $0xc0] sm:$0xff] %vm1691, %v1644
        %1717 = vst.msk [vmem:[#allocation5 + $0xc8] sm:$0xff] %vm1691, %v1646
        %1718 = vst.msk [vmem:[#allocation5 + $0xd0] sm:$0xff] %vm1691, %v1648
        %1719 = vst.msk [vmem:[#allocation5 + $0xd8] sm:$0xff] %vm1691, %v1650
        %1720 = vst.msk [vmem:[#allocation5 + $0xe0] sm:$0xff] %vm1691, %v1652
        %1721 = vst.msk [vmem:[#allocation5 + $0xe8] sm:$0xff] %vm1691, %v1654
        %1722 = vst.msk [vmem:[#allocation5 + $0xf0] sm:$0xff] %vm1691, %v1656
        %1723 = vst.msk [vmem:[#allocation5 + $0xf8] sm:$0xff] %vm1691, %v1658
        %v1724 = vld [vmem:[%s1337 + $0x2] sm:$0xff]
        %v1725 = vld [vmem:[%s1337 + $0xa] sm:$0xff]
        %v1726 = vld [vmem:[%s1337 + $0x1a] sm:$0xff]
        %v1727 = vld [vmem:[%s1337 + $0x22] sm:$0xff]
        %v1728 = vld [vmem:[%s1337 + $0x32] sm:$0xff]
        %v1729 = vld [vmem:[%s1337 + $0x3a] sm:$0xff]
        %v1730 = vld [vmem:[%s1337 + $0x4a] sm:$0xff]
        %v1731 = vld [vmem:[%s1337 + $0x52] sm:$0xff]
        %v1732 = vld [vmem:[%s1337 + $0x62] sm:$0xff]
        %v1733 = vld [vmem:[%s1337 + $0x6a] sm:$0xff]
        %v1734 = vld [vmem:[%s1337 + $0x7a] sm:$0xff]
        %v1735 = vld [vmem:[%s1337 + $0x82] sm:$0xff]
        %v1736 = vld [vmem:[%s1337 + $0x92] sm:$0xff]
        %v1737 = vld [vmem:[%s1337 + $0x9a] sm:$0xff]
        %v1738 = vld [vmem:[%s1337 + $0xaa] sm:$0xff]
        %v1739 = vld [vmem:[%s1337 + $0xb2] sm:$0xff]
        %v1740 = vld [vmem:[%s1337 + $0xc2] sm:$0xff]
        %v1741 = vld [vmem:[%s1337 + $0xca] sm:$0xff]
        %v1742 = vld [vmem:[%s1337 + $0xda] sm:$0xff]
        %v1743 = vld [vmem:[%s1337 + $0xe2] sm:$0xff]
        %v1744 = vld [vmem:[%s1337 + $0xf2] sm:$0xff]
        %v1745 = vld [vmem:[%s1337 + $0xfa] sm:$0xff]
        %v1746 = vld [vmem:[%s1337 + $0x10a] sm:$0xff]
        %v1747 = vld [vmem:[%s1337 + $0x112] sm:$0xff]
        %v1748 = vld [vmem:[%s1337 + $0x122] sm:$0xff]
        %v1749 = vld [vmem:[%s1337 + $0x12a] sm:$0xff]
        %v1750 = vld [vmem:[%s1337 + $0x13a] sm:$0xff]
        %v1751 = vld [vmem:[%s1337 + $0x142] sm:$0xff]
        %v1752 = vld [vmem:[%s1337 + $0x152] sm:$0xff]
        %v1753 = vld [vmem:[%s1337 + $0x15a] sm:$0xff]
        %v1754 = vld [vmem:[%s1337 + $0x16a] sm:$0xff]
        %v1755 = vld [vmem:[%s1337 + $0x172] sm:$0xff]
        %1788 = vrot.lane.b32.xlu0 %v1724, 21
        %v1789 = vpop.permute.xlu0 %1788
        %1790 = vrot.lane.b32.xlu0 %v1725, 21
        %v1791 = vpop.permute.xlu0 %1790
        %1792 = vrot.lane.b32.xlu0 %v1726, 21
        %v1793 = vpop.permute.xlu0 %1792
        %1794 = vrot.lane.b32.xlu0 %v1727, 21
        %v1795 = vpop.permute.xlu0 %1794
        %1796 = vrot.lane.b32.xlu0 %v1728, 21
        %v1797 = vpop.permute.xlu0 %1796
        %1798 = vrot.lane.b32.xlu0 %v1729, 21
        %v1799 = vpop.permute.xlu0 %1798
        %1800 = vrot.lane.b32.xlu0 %v1730, 21
        %v1801 = vpop.permute.xlu0 %1800
        %1802 = vrot.lane.b32.xlu0 %v1731, 21
        %v1803 = vpop.permute.xlu0 %1802
        %1804 = vrot.lane.b32.xlu0 %v1732, 21
        %v1805 = vpop.permute.xlu0 %1804
        %1806 = vrot.lane.b32.xlu0 %v1733, 21
        %v1807 = vpop.permute.xlu0 %1806
        %1808 = vrot.lane.b32.xlu0 %v1734, 21
        %v1809 = vpop.permute.xlu0 %1808
        %1810 = vrot.lane.b32.xlu0 %v1735, 21
        %v1811 = vpop.permute.xlu0 %1810
        %1812 = vrot.lane.b32.xlu0 %v1736, 21
        %v1813 = vpop.permute.xlu0 %1812
        %1814 = vrot.lane.b32.xlu0 %v1737, 21
        %v1815 = vpop.permute.xlu0 %1814
        %1816 = vrot.lane.b32.xlu0 %v1738, 21
        %v1817 = vpop.permute.xlu0 %1816
        %1818 = vrot.lane.b32.xlu0 %v1739, 21
        %v1819 = vpop.permute.xlu0 %1818
        %1820 = vrot.lane.b32.xlu0 %v1740, 21
        %v1821 = vpop.permute.xlu0 %1820
        %1822 = vrot.lane.b32.xlu0 %v1741, 21
        %v1823 = vpop.permute.xlu0 %1822
        %1824 = vrot.lane.b32.xlu0 %v1742, 21
        %v1825 = vpop.permute.xlu0 %1824
        %1826 = vrot.lane.b32.xlu0 %v1743, 21
        %v1827 = vpop.permute.xlu0 %1826
        %1828 = vrot.lane.b32.xlu0 %v1744, 21
        %v1829 = vpop.permute.xlu0 %1828
        %1830 = vrot.lane.b32.xlu0 %v1745, 21
        %v1831 = vpop.permute.xlu0 %1830
        %1832 = vrot.lane.b32.xlu0 %v1746, 21
        %v1833 = vpop.permute.xlu0 %1832
        %1834 = vrot.lane.b32.xlu0 %v1747, 21
        %v1835 = vpop.permute.xlu0 %1834
        %1836 = vrot.lane.b32.xlu0 %v1748, 21
        %v1837 = vpop.permute.xlu0 %1836
        %1838 = vrot.lane.b32.xlu0 %v1749, 21
        %v1839 = vpop.permute.xlu0 %1838
        %1840 = vrot.lane.b32.xlu0 %v1750, 21
        %v1841 = vpop.permute.xlu0 %1840
        %1842 = vrot.lane.b32.xlu0 %v1751, 21
        %v1843 = vpop.permute.xlu0 %1842
        %1844 = vrot.lane.b32.xlu0 %v1752, 21
        %v1845 = vpop.permute.xlu0 %1844
        %1846 = vrot.lane.b32.xlu0 %v1753, 21
        %v1847 = vpop.permute.xlu0 %1846
        %1848 = vrot.lane.b32.xlu0 %v1754, 21
        %v1849 = vpop.permute.xlu0 %1848
        %1850 = vrot.lane.b32.xlu0 %v1755, 21
        %v1851 = vpop.permute.xlu0 %1850
        %vm1884 = vcmask 195752
        %1885 = vst.msk [vmem:[#allocation5] sm:$0xff] %vm1884, %v1789
        %1886 = vst.msk [vmem:[#allocation5 + $0x8] sm:$0xff] %vm1884, %v1791
        %1887 = vst.msk [vmem:[#allocation5 + $0x10] sm:$0xff] %vm1884, %v1793
        %1888 = vst.msk [vmem:[#allocation5 + $0x18] sm:$0xff] %vm1884, %v1795
        %1889 = vst.msk [vmem:[#allocation5 + $0x20] sm:$0xff] %vm1884, %v1797
        %1890 = vst.msk [vmem:[#allocation5 + $0x28] sm:$0xff] %vm1884, %v1799
        %1891 = vst.msk [vmem:[#allocation5 + $0x30] sm:$0xff] %vm1884, %v1801
        %1892 = vst.msk [vmem:[#allocation5 + $0x38] sm:$0xff] %vm1884, %v1803
        %1893 = vst.msk [vmem:[#allocation5 + $0x40] sm:$0xff] %vm1884, %v1805
        %1894 = vst.msk [vmem:[#allocation5 + $0x48] sm:$0xff] %vm1884, %v1807
        %1895 = vst.msk [vmem:[#allocation5 + $0x50] sm:$0xff] %vm1884, %v1809
        %1896 = vst.msk [vmem:[#allocation5 + $0x58] sm:$0xff] %vm1884, %v1811
        %1897 = vst.msk [vmem:[#allocation5 + $0x60] sm:$0xff] %vm1884, %v1813
        %1898 = vst.msk [vmem:[#allocation5 + $0x68] sm:$0xff] %vm1884, %v1815
        %1899 = vst.msk [vmem:[#allocation5 + $0x70] sm:$0xff] %vm1884, %v1817
        %1900 = vst.msk [vmem:[#allocation5 + $0x78] sm:$0xff] %vm1884, %v1819
        %1901 = vst.msk [vmem:[#allocation5 + $0x80] sm:$0xff] %vm1884, %v1821
        %1902 = vst.msk [vmem:[#allocation5 + $0x88] sm:$0xff] %vm1884, %v1823
        %1903 = vst.msk [vmem:[#allocation5 + $0x90] sm:$0xff] %vm1884, %v1825
        %1904 = vst.msk [vmem:[#allocation5 + $0x98] sm:$0xff] %vm1884, %v1827
        %1905 = vst.msk [vmem:[#allocation5 + $0xa0] sm:$0xff] %vm1884, %v1829
        %1906 = vst.msk [vmem:[#allocation5 + $0xa8] sm:$0xff] %vm1884, %v1831
        %1907 = vst.msk [vmem:[#allocation5 + $0xb0] sm:$0xff] %vm1884, %v1833
        %1908 = vst.msk [vmem:[#allocation5 + $0xb8] sm:$0xff] %vm1884, %v1835
        %1909 = vst.msk [vmem:[#allocation5 + $0xc0] sm:$0xff] %vm1884, %v1837
        %1910 = vst.msk [vmem:[#allocation5 + $0xc8] sm:$0xff] %vm1884, %v1839
        %1911 = vst.msk [vmem:[#allocation5 + $0xd0] sm:$0xff] %vm1884, %v1841
        %1912 = vst.msk [vmem:[#allocation5 + $0xd8] sm:$0xff] %vm1884, %v1843
        %1913 = vst.msk [vmem:[#allocation5 + $0xe0] sm:$0xff] %vm1884, %v1845
        %1914 = vst.msk [vmem:[#allocation5 + $0xe8] sm:$0xff] %vm1884, %v1847
        %1915 = vst.msk [vmem:[#allocation5 + $0xf0] sm:$0xff] %vm1884, %v1849
        %1916 = vst.msk [vmem:[#allocation5 + $0xf8] sm:$0xff] %vm1884, %v1851
        %v1917 = vld [vmem:[%s1337 + $0x3] sm:$0xff]
        %v1918 = vld [vmem:[%s1337 + $0xb] sm:$0xff]
        %v1919 = vld [vmem:[%s1337 + $0x1b] sm:$0xff]
        %v1920 = vld [vmem:[%s1337 + $0x23] sm:$0xff]
        %v1921 = vld [vmem:[%s1337 + $0x33] sm:$0xff]
        %v1922 = vld [vmem:[%s1337 + $0x3b] sm:$0xff]
        %v1923 = vld [vmem:[%s1337 + $0x4b] sm:$0xff]
        %v1924 = vld [vmem:[%s1337 + $0x53] sm:$0xff]
        %v1925 = vld [vmem:[%s1337 + $0x63] sm:$0xff]
        %v1926 = vld [vmem:[%s1337 + $0x6b] sm:$0xff]
        %v1927 = vld [vmem:[%s1337 + $0x7b] sm:$0xff]
        %v1928 = vld [vmem:[%s1337 + $0x83] sm:$0xff]
        %v1929 = vld [vmem:[%s1337 + $0x93] sm:$0xff]
        %v1930 = vld [vmem:[%s1337 + $0x9b] sm:$0xff]
        %v1931 = vld [vmem:[%s1337 + $0xab] sm:$0xff]
        %v1932 = vld [vmem:[%s1337 + $0xb3] sm:$0xff]
        %v1933 = vld [vmem:[%s1337 + $0xc3] sm:$0xff]
        %v1934 = vld [vmem:[%s1337 + $0xcb] sm:$0xff]
        %v1935 = vld [vmem:[%s1337 + $0xdb] sm:$0xff]
        %v1936 = vld [vmem:[%s1337 + $0xe3] sm:$0xff]
        %v1937 = vld [vmem:[%s1337 + $0xf3] sm:$0xff]
        %v1938 = vld [vmem:[%s1337 + $0xfb] sm:$0xff]
        %v1939 = vld [vmem:[%s1337 + $0x10b] sm:$0xff]
        %v1940 = vld [vmem:[%s1337 + $0x113] sm:$0xff]
        %v1941 = vld [vmem:[%s1337 + $0x123] sm:$0xff]
        %v1942 = vld [vmem:[%s1337 + $0x12b] sm:$0xff]
        %v1943 = vld [vmem:[%s1337 + $0x13b] sm:$0xff]
        %v1944 = vld [vmem:[%s1337 + $0x143] sm:$0xff]
        %v1945 = vld [vmem:[%s1337 + $0x153] sm:$0xff]
        %v1946 = vld [vmem:[%s1337 + $0x15b] sm:$0xff]
        %v1947 = vld [vmem:[%s1337 + $0x16b] sm:$0xff]
        %v1948 = vld [vmem:[%s1337 + $0x173] sm:$0xff]
        %1981 = vrot.lane.b32.xlu0 %v1917, 24
        %v1982 = vpop.permute.xlu0 %1981
        %1983 = vrot.lane.b32.xlu0 %v1918, 24
        %v1984 = vpop.permute.xlu0 %1983
        %1985 = vrot.lane.b32.xlu0 %v1919, 24
        %v1986 = vpop.permute.xlu0 %1985
        %1987 = vrot.lane.b32.xlu0 %v1920, 24
        %v1988 = vpop.permute.xlu0 %1987
        %1989 = vrot.lane.b32.xlu0 %v1921, 24
        %v1990 = vpop.permute.xlu0 %1989
        %1991 = vrot.lane.b32.xlu0 %v1922, 24
        %v1992 = vpop.permute.xlu0 %1991
        %1993 = vrot.lane.b32.xlu0 %v1923, 24
        %v1994 = vpop.permute.xlu0 %1993
        %1995 = vrot.lane.b32.xlu0 %v1924, 24
        %v1996 = vpop.permute.xlu0 %1995
        %1997 = vrot.lane.b32.xlu0 %v1925, 24
        %v1998 = vpop.permute.xlu0 %1997
        %1999 = vrot.lane.b32.xlu0 %v1926, 24
        %v2000 = vpop.permute.xlu0 %1999
        %2001 = vrot.lane.b32.xlu0 %v1927, 24
        %v2002 = vpop.permute.xlu0 %2001
        %2003 = vrot.lane.b32.xlu0 %v1928, 24
        %v2004 = vpop.permute.xlu0 %2003
        %2005 = vrot.lane.b32.xlu0 %v1929, 24
        %v2006 = vpop.permute.xlu0 %2005
        %2007 = vrot.lane.b32.xlu0 %v1930, 24
        %v2008 = vpop.permute.xlu0 %2007
        %2009 = vrot.lane.b32.xlu0 %v1931, 24
        %v2010 = vpop.permute.xlu0 %2009
        %2011 = vrot.lane.b32.xlu0 %v1932, 24
        %v2012 = vpop.permute.xlu0 %2011
        %2013 = vrot.lane.b32.xlu0 %v1933, 24
        %v2014 = vpop.permute.xlu0 %2013
        %2015 = vrot.lane.b32.xlu0 %v1934, 24
        %v2016 = vpop.permute.xlu0 %2015
        %2017 = vrot.lane.b32.xlu0 %v1935, 24
        %v2018 = vpop.permute.xlu0 %2017
        %2019 = vrot.lane.b32.xlu0 %v1936, 24
        %v2020 = vpop.permute.xlu0 %2019
        %2021 = vrot.lane.b32.xlu0 %v1937, 24
        %v2022 = vpop.permute.xlu0 %2021
        %2023 = vrot.lane.b32.xlu0 %v1938, 24
        %v2024 = vpop.permute.xlu0 %2023
        %2025 = vrot.lane.b32.xlu0 %v1939, 24
        %v2026 = vpop.permute.xlu0 %2025
        %2027 = vrot.lane.b32.xlu0 %v1940, 24
        %v2028 = vpop.permute.xlu0 %2027
        %2029 = vrot.lane.b32.xlu0 %v1941, 24
        %v2030 = vpop.permute.xlu0 %2029
        %2031 = vrot.lane.b32.xlu0 %v1942, 24
        %v2032 = vpop.permute.xlu0 %2031
        %2033 = vrot.lane.b32.xlu0 %v1943, 24
        %v2034 = vpop.permute.xlu0 %2033
        %2035 = vrot.lane.b32.xlu0 %v1944, 24
        %v2036 = vpop.permute.xlu0 %2035
        %2037 = vrot.lane.b32.xlu0 %v1945, 24
        %v2038 = vpop.permute.xlu0 %2037
        %2039 = vrot.lane.b32.xlu0 %v1946, 24
        %v2040 = vpop.permute.xlu0 %2039
        %2041 = vrot.lane.b32.xlu0 %v1947, 24
        %v2042 = vpop.permute.xlu0 %2041
        %2043 = vrot.lane.b32.xlu0 %v1948, 24
        %v2044 = vpop.permute.xlu0 %2043
        %vm2077 = vcmask 220352
        %2078 = vst.msk [vmem:[#allocation5] sm:$0xff] %vm2077, %v1982
        %2079 = vst.msk [vmem:[#allocation5 + $0x8] sm:$0xff] %vm2077, %v1984
        %2080 = vst.msk [vmem:[#allocation5 + $0x10] sm:$0xff] %vm2077, %v1986
        %2081 = vst.msk [vmem:[#allocation5 + $0x18] sm:$0xff] %vm2077, %v1988
        %2082 = vst.msk [vmem:[#allocation5 + $0x20] sm:$0xff] %vm2077, %v1990
        %2083 = vst.msk [vmem:[#allocation5 + $0x28] sm:$0xff] %vm2077, %v1992
        %2084 = vst.msk [vmem:[#allocation5 + $0x30] sm:$0xff] %vm2077, %v1994
        %2085 = vst.msk [vmem:[#allocation5 + $0x38] sm:$0xff] %vm2077, %v1996
        %2086 = vst.msk [vmem:[#allocation5 + $0x40] sm:$0xff] %vm2077, %v1998
        %2087 = vst.msk [vmem:[#allocation5 + $0x48] sm:$0xff] %vm2077, %v2000
        %2088 = vst.msk [vmem:[#allocation5 + $0x50] sm:$0xff] %vm2077, %v2002
        %2089 = vst.msk [vmem:[#allocation5 + $0x58] sm:$0xff] %vm2077, %v2004
        %2090 = vst.msk [vmem:[#allocation5 + $0x60] sm:$0xff] %vm2077, %v2006
        %2091 = vst.msk [vmem:[#allocation5 + $0x68] sm:$0xff] %vm2077, %v2008
        %2092 = vst.msk [vmem:[#allocation5 + $0x70] sm:$0xff] %vm2077, %v2010
        %2093 = vst.msk [vmem:[#allocation5 + $0x78] sm:$0xff] %vm2077, %v2012
        %2094 = vst.msk [vmem:[#allocation5 + $0x80] sm:$0xff] %vm2077, %v2014
        %2095 = vst.msk [vmem:[#allocation5 + $0x88] sm:$0xff] %vm2077, %v2016
        %2096 = vst.msk [vmem:[#allocation5 + $0x90] sm:$0xff] %vm2077, %v2018
        %2097 = vst.msk [vmem:[#allocation5 + $0x98] sm:$0xff] %vm2077, %v2020
        %2098 = vst.msk [vmem:[#allocation5 + $0xa0] sm:$0xff] %vm2077, %v2022
        %2099 = vst.msk [vmem:[#allocation5 + $0xa8] sm:$0xff] %vm2077, %v2024
        %2100 = vst.msk [vmem:[#allocation5 + $0xb0] sm:$0xff] %vm2077, %v2026
        %2101 = vst.msk [vmem:[#allocation5 + $0xb8] sm:$0xff] %vm2077, %v2028
        %2102 = vst.msk [vmem:[#allocation5 + $0xc0] sm:$0xff] %vm2077, %v2030
        %2103 = vst.msk [vmem:[#allocation5 + $0xc8] sm:$0xff] %vm2077, %v2032
        %2104 = vst.msk [vmem:[#allocation5 + $0xd0] sm:$0xff] %vm2077, %v2034
        %2105 = vst.msk [vmem:[#allocation5 + $0xd8] sm:$0xff] %vm2077, %v2036
        %2106 = vst.msk [vmem:[#allocation5 + $0xe0] sm:$0xff] %vm2077, %v2038
        %2107 = vst.msk [vmem:[#allocation5 + $0xe8] sm:$0xff] %vm2077, %v2040
        %2108 = vst.msk [vmem:[#allocation5 + $0xf0] sm:$0xff] %vm2077, %v2042
        %2109 = vst.msk [vmem:[#allocation5 + $0xf8] sm:$0xff] %vm2077, %v2044
        %v2110 = vld [vmem:[%s1337 + $0x4] sm:$0xff]
        %v2111 = vld [vmem:[%s1337 + $0xc] sm:$0xff]
        %v2112 = vld [vmem:[%s1337 + $0x1c] sm:$0xff]
        %v2113 = vld [vmem:[%s1337 + $0x24] sm:$0xff]
        %v2114 = vld [vmem:[%s1337 + $0x34] sm:$0xff]
        %v2115 = vld [vmem:[%s1337 + $0x3c] sm:$0xff]
        %v2116 = vld [vmem:[%s1337 + $0x4c] sm:$0xff]
        %v2117 = vld [vmem:[%s1337 + $0x54] sm:$0xff]
        %v2118 = vld [vmem:[%s1337 + $0x64] sm:$0xff]
        %v2119 = vld [vmem:[%s1337 + $0x6c] sm:$0xff]
        %v2120 = vld [vmem:[%s1337 + $0x7c] sm:$0xff]
        %v2121 = vld [vmem:[%s1337 + $0x84] sm:$0xff]
        %v2122 = vld [vmem:[%s1337 + $0x94] sm:$0xff]
        %v2123 = vld [vmem:[%s1337 + $0x9c] sm:$0xff]
        %v2124 = vld [vmem:[%s1337 + $0xac] sm:$0xff]
        %v2125 = vld [vmem:[%s1337 + $0xb4] sm:$0xff]
        %v2126 = vld [vmem:[%s1337 + $0xc4] sm:$0xff]
        %v2127 = vld [vmem:[%s1337 + $0xcc] sm:$0xff]
        %v2128 = vld [vmem:[%s1337 + $0xdc] sm:$0xff]
        %v2129 = vld [vmem:[%s1337 + $0xe4] sm:$0xff]
        %v2130 = vld [vmem:[%s1337 + $0xf4] sm:$0xff]
        %v2131 = vld [vmem:[%s1337 + $0xfc] sm:$0xff]
        %v2132 = vld [vmem:[%s1337 + $0x10c] sm:$0xff]
        %v2133 = vld [vmem:[%s1337 + $0x114] sm:$0xff]
        %v2134 = vld [vmem:[%s1337 + $0x124] sm:$0xff]
        %v2135 = vld [vmem:[%s1337 + $0x12c] sm:$0xff]
        %v2136 = vld [vmem:[%s1337 + $0x13c] sm:$0xff]
        %v2137 = vld [vmem:[%s1337 + $0x144] sm:$0xff]
        %v2138 = vld [vmem:[%s1337 + $0x154] sm:$0xff]
        %v2139 = vld [vmem:[%s1337 + $0x15c] sm:$0xff]
        %v2140 = vld [vmem:[%s1337 + $0x16c] sm:$0xff]
        %v2141 = vld [vmem:[%s1337 + $0x174] sm:$0xff]
        %2174 = vrot.lane.b32.xlu0 %v2110, 27
        %v2175 = vpop.permute.xlu0 %2174
        %2176 = vrot.lane.b32.xlu0 %v2111, 27
        %v2177 = vpop.permute.xlu0 %2176
        %2178 = vrot.lane.b32.xlu0 %v2112, 27
        %v2179 = vpop.permute.xlu0 %2178
        %2180 = vrot.lane.b32.xlu0 %v2113, 27
        %v2181 = vpop.permute.xlu0 %2180
        %2182 = vrot.lane.b32.xlu0 %v2114, 27
        %v2183 = vpop.permute.xlu0 %2182
        %2184 = vrot.lane.b32.xlu0 %v2115, 27
        %v2185 = vpop.permute.xlu0 %2184
        %2186 = vrot.lane.b32.xlu0 %v2116, 27
        %v2187 = vpop.permute.xlu0 %2186
        %2188 = vrot.lane.b32.xlu0 %v2117, 27
        %v2189 = vpop.permute.xlu0 %2188
        %2190 = vrot.lane.b32.xlu0 %v2118, 27
        %v2191 = vpop.permute.xlu0 %2190
        %2192 = vrot.lane.b32.xlu0 %v2119, 27
        %v2193 = vpop.permute.xlu0 %2192
        %2194 = vrot.lane.b32.xlu0 %v2120, 27
        %v2195 = vpop.permute.xlu0 %2194
        %2196 = vrot.lane.b32.xlu0 %v2121, 27
        %v2197 = vpop.permute.xlu0 %2196
        %2198 = vrot.lane.b32.xlu0 %v2122, 27
        %v2199 = vpop.permute.xlu0 %2198
        %2200 = vrot.lane.b32.xlu0 %v2123, 27
        %v2201 = vpop.permute.xlu0 %2200
        %2202 = vrot.lane.b32.xlu0 %v2124, 27
        %v2203 = vpop.permute.xlu0 %2202
        %2204 = vrot.lane.b32.xlu0 %v2125, 27
        %v2205 = vpop.permute.xlu0 %2204
        %2206 = vrot.lane.b32.xlu0 %v2126, 27
        %v2207 = vpop.permute.xlu0 %2206
        %2208 = vrot.lane.b32.xlu0 %v2127, 27
        %v2209 = vpop.permute.xlu0 %2208
        %2210 = vrot.lane.b32.xlu0 %v2128, 27
        %v2211 = vpop.permute.xlu0 %2210
        %2212 = vrot.lane.b32.xlu0 %v2129, 27
        %v2213 = vpop.permute.xlu0 %2212
        %2214 = vrot.lane.b32.xlu0 %v2130, 27
        %v2215 = vpop.permute.xlu0 %2214
        %2216 = vrot.lane.b32.xlu0 %v2131, 27
        %v2217 = vpop.permute.xlu0 %2216
        %2218 = vrot.lane.b32.xlu0 %v2132, 27
        %v2219 = vpop.permute.xlu0 %2218
        %2220 = vrot.lane.b32.xlu0 %v2133, 27
        %v2221 = vpop.permute.xlu0 %2220
        %2222 = vrot.lane.b32.xlu0 %v2134, 27
        %v2223 = vpop.permute.xlu0 %2222
        %2224 = vrot.lane.b32.xlu0 %v2135, 27
        %v2225 = vpop.permute.xlu0 %2224
        %2226 = vrot.lane.b32.xlu0 %v2136, 27
        %v2227 = vpop.permute.xlu0 %2226
        %2228 = vrot.lane.b32.xlu0 %v2137, 27
        %v2229 = vpop.permute.xlu0 %2228
        %2230 = vrot.lane.b32.xlu0 %v2138, 27
        %v2231 = vpop.permute.xlu0 %2230
        %2232 = vrot.lane.b32.xlu0 %v2139, 27
        %v2233 = vpop.permute.xlu0 %2232
        %2234 = vrot.lane.b32.xlu0 %v2140, 27
        %v2235 = vpop.permute.xlu0 %2234
        %2236 = vrot.lane.b32.xlu0 %v2141, 27
        %v2237 = vpop.permute.xlu0 %2236
        %vm2270 = vcmask 244952
        %2271 = vst.msk [vmem:[#allocation5] sm:$0xff] %vm2270, %v2175
        %2272 = vst.msk [vmem:[#allocation5 + $0x8] sm:$0xff] %vm2270, %v2177
        %2273 = vst.msk [vmem:[#allocation5 + $0x10] sm:$0xff] %vm2270, %v2179
        %2274 = vst.msk [vmem:[#allocation5 + $0x18] sm:$0xff] %vm2270, %v2181
        %2275 = vst.msk [vmem:[#allocation5 + $0x20] sm:$0xff] %vm2270, %v2183
        %2276 = vst.msk [vmem:[#allocation5 + $0x28] sm:$0xff] %vm2270, %v2185
        %2277 = vst.msk [vmem:[#allocation5 + $0x30] sm:$0xff] %vm2270, %v2187
        %2278 = vst.msk [vmem:[#allocation5 + $0x38] sm:$0xff] %vm2270, %v2189
        %2279 = vst.msk [vmem:[#allocation5 + $0x40] sm:$0xff] %vm2270, %v2191
        %2280 = vst.msk [vmem:[#allocation5 + $0x48] sm:$0xff] %vm2270, %v2193
        %2281 = vst.msk [vmem:[#allocation5 + $0x50] sm:$0xff] %vm2270, %v2195
        %2282 = vst.msk [vmem:[#allocation5 + $0x58] sm:$0xff] %vm2270, %v2197
        %2283 = vst.msk [vmem:[#allocation5 + $0x60] sm:$0xff] %vm2270, %v2199
        %2284 = vst.msk [vmem:[#allocation5 + $0x68] sm:$0xff] %vm2270, %v2201
        %2285 = vst.msk [vmem:[#allocation5 + $0x70] sm:$0xff] %vm2270, %v2203
        %2286 = vst.msk [vmem:[#allocation5 + $0x78] sm:$0xff] %vm2270, %v2205
        %2287 = vst.msk [vmem:[#allocation5 + $0x80] sm:$0xff] %vm2270, %v2207
        %2288 = vst.msk [vmem:[#allocation5 + $0x88] sm:$0xff] %vm2270, %v2209
        %2289 = vst.msk [vmem:[#allocation5 + $0x90] sm:$0xff] %vm2270, %v2211
        %2290 = vst.msk [vmem:[#allocation5 + $0x98] sm:$0xff] %vm2270, %v2213
        %2291 = vst.msk [vmem:[#allocation5 + $0xa0] sm:$0xff] %vm2270, %v2215
        %2292 = vst.msk [vmem:[#allocation5 + $0xa8] sm:$0xff] %vm2270, %v2217
        %2293 = vst.msk [vmem:[#allocation5 + $0xb0] sm:$0xff] %vm2270, %v2219
        %2294 = vst.msk [vmem:[#allocation5 + $0xb8] sm:$0xff] %vm2270, %v2221
        %2295 = vst.msk [vmem:[#allocation5 + $0xc0] sm:$0xff] %vm2270, %v2223
        %2296 = vst.msk [vmem:[#allocation5 + $0xc8] sm:$0xff] %vm2270, %v2225
        %2297 = vst.msk [vmem:[#allocation5 + $0xd0] sm:$0xff] %vm2270, %v2227
        %2298 = vst.msk [vmem:[#allocation5 + $0xd8] sm:$0xff] %vm2270, %v2229
        %2299 = vst.msk [vmem:[#allocation5 + $0xe0] sm:$0xff] %vm2270, %v2231
        %2300 = vst.msk [vmem:[#allocation5 + $0xe8] sm:$0xff] %vm2270, %v2233
        %2301 = vst.msk [vmem:[#allocation5 + $0xf0] sm:$0xff] %vm2270, %v2235
        %2302 = vst.msk [vmem:[#allocation5 + $0xf8] sm:$0xff] %vm2270, %v2237
        %v2303 = vld [vmem:[%s412] sm:$0xff]
        %v2304 = vld [vmem:[%s412 + $0x8] sm:$0xff]
        %v2305 = vld [vmem:[%s412 + $0x18] sm:$0xff]
        %v2306 = vld [vmem:[%s412 + $0x20] sm:$0xff]
        %v2307 = vld [vmem:[%s412 + $0x30] sm:$0xff]
        %v2308 = vld [vmem:[%s412 + $0x38] sm:$0xff]
        %v2309 = vld [vmem:[%s412 + $0x48] sm:$0xff]
        %v2310 = vld [vmem:[%s412 + $0x50] sm:$0xff]
        %v2311 = vld [vmem:[%s412 + $0x60] sm:$0xff]
        %v2312 = vld [vmem:[%s412 + $0x68] sm:$0xff]
        %v2313 = vld [vmem:[%s412 + $0x78] sm:$0xff]
        %v2314 = vld [vmem:[%s412 + $0x80] sm:$0xff]
        %v2315 = vld [vmem:[%s412 + $0x90] sm:$0xff]
        %v2316 = vld [vmem:[%s412 + $0x98] sm:$0xff]
        %v2317 = vld [vmem:[%s412 + $0xa8] sm:$0xff]
        %v2318 = vld [vmem:[%s412 + $0xb0] sm:$0xff]
        %v2319 = vld [vmem:[%s412 + $0xc0] sm:$0xff]
        %v2320 = vld [vmem:[%s412 + $0xc8] sm:$0xff]
        %v2321 = vld [vmem:[%s412 + $0xd8] sm:$0xff]
        %v2322 = vld [vmem:[%s412 + $0xe0] sm:$0xff]
        %v2323 = vld [vmem:[%s412 + $0xf0] sm:$0xff]
        %v2324 = vld [vmem:[%s412 + $0xf8] sm:$0xff]
        %v2325 = vld [vmem:[%s412 + $0x108] sm:$0xff]
        %v2326 = vld [vmem:[%s412 + $0x110] sm:$0xff]
        %v2327 = vld [vmem:[%s412 + $0x120] sm:$0xff]
        %v2328 = vld [vmem:[%s412 + $0x128] sm:$0xff]
        %v2329 = vld [vmem:[%s412 + $0x138] sm:$0xff]
        %v2330 = vld [vmem:[%s412 + $0x140] sm:$0xff]
        %v2331 = vld [vmem:[%s412 + $0x150] sm:$0xff]
        %v2332 = vld [vmem:[%s412 + $0x158] sm:$0xff]
        %v2333 = vld [vmem:[%s412 + $0x168] sm:$0xff]
        %v2334 = vld [vmem:[%s412 + $0x170] sm:$0xff]
        %2367 = vrot.lane.b32.xlu0 %v2303, 30
        %v2368 = vpop.permute.xlu0 %2367
        %2369 = vrot.lane.b32.xlu0 %v2304, 30
        %v2370 = vpop.permute.xlu0 %2369
        %2371 = vrot.lane.b32.xlu0 %v2305, 30
        %v2372 = vpop.permute.xlu0 %2371
        %2373 = vrot.lane.b32.xlu0 %v2306, 30
        %v2374 = vpop.permute.xlu0 %2373
        %2375 = vrot.lane.b32.xlu0 %v2307, 30
        %v2376 = vpop.permute.xlu0 %2375
        %2377 = vrot.lane.b32.xlu0 %v2308, 30
        %v2378 = vpop.permute.xlu0 %2377
        %2379 = vrot.lane.b32.xlu0 %v2309, 30
        %v2380 = vpop.permute.xlu0 %2379
        %2381 = vrot.lane.b32.xlu0 %v2310, 30
        %v2382 = vpop.permute.xlu0 %2381
        %2383 = vrot.lane.b32.xlu0 %v2311, 30
        %v2384 = vpop.permute.xlu0 %2383
        %2385 = vrot.lane.b32.xlu0 %v2312, 30
        %v2386 = vpop.permute.xlu0 %2385
        %2387 = vrot.lane.b32.xlu0 %v2313, 30
        %v2388 = vpop.permute.xlu0 %2387
        %2389 = vrot.lane.b32.xlu0 %v2314, 30
        %v2390 = vpop.permute.xlu0 %2389
        %2391 = vrot.lane.b32.xlu0 %v2315, 30
        %v2392 = vpop.permute.xlu0 %2391
        %2393 = vrot.lane.b32.xlu0 %v2316, 30
        %v2394 = vpop.permute.xlu0 %2393
        %2395 = vrot.lane.b32.xlu0 %v2317, 30
        %v2396 = vpop.permute.xlu0 %2395
        %2397 = vrot.lane.b32.xlu0 %v2318, 30
        %v2398 = vpop.permute.xlu0 %2397
        %2399 = vrot.lane.b32.xlu0 %v2319, 30
        %v2400 = vpop.permute.xlu0 %2399
        %2401 = vrot.lane.b32.xlu0 %v2320, 30
        %v2402 = vpop.permute.xlu0 %2401
        %2403 = vrot.lane.b32.xlu0 %v2321, 30
        %v2404 = vpop.permute.xlu0 %2403
        %2405 = vrot.lane.b32.xlu0 %v2322, 30
        %v2406 = vpop.permute.xlu0 %2405
        %2407 = vrot.lane.b32.xlu0 %v2323, 30
        %v2408 = vpop.permute.xlu0 %2407
        %2409 = vrot.lane.b32.xlu0 %v2324, 30
        %v2410 = vpop.permute.xlu0 %2409
        %2411 = vrot.lane.b32.xlu0 %v2325, 30
        %v2412 = vpop.permute.xlu0 %2411
        %2413 = vrot.lane.b32.xlu0 %v2326, 30
        %v2414 = vpop.permute.xlu0 %2413
        %2415 = vrot.lane.b32.xlu0 %v2327, 30
        %v2416 = vpop.permute.xlu0 %2415
        %2417 = vrot.lane.b32.xlu0 %v2328, 30
        %v2418 = vpop.permute.xlu0 %2417
        %2419 = vrot.lane.b32.xlu0 %v2329, 30
        %v2420 = vpop.permute.xlu0 %2419
        %2421 = vrot.lane.b32.xlu0 %v2330, 30
        %v2422 = vpop.permute.xlu0 %2421
        %2423 = vrot.lane.b32.xlu0 %v2331, 30
        %v2424 = vpop.permute.xlu0 %2423
        %2425 = vrot.lane.b32.xlu0 %v2332, 30
        %v2426 = vpop.permute.xlu0 %2425
        %2427 = vrot.lane.b32.xlu0 %v2333, 30
        %v2428 = vpop.permute.xlu0 %2427
        %2429 = vrot.lane.b32.xlu0 %v2334, 30
        %v2430 = vpop.permute.xlu0 %2429
        %vm2463 = vcmask 269552
        %2464 = vst.msk [vmem:[#allocation5] sm:$0xff] %vm2463, %v2368
        %2465 = vst.msk [vmem:[#allocation5 + $0x8] sm:$0xff] %vm2463, %v2370
        %2466 = vst.msk [vmem:[#allocation5 + $0x10] sm:$0xff] %vm2463, %v2372
        %2467 = vst.msk [vmem:[#allocation5 + $0x18] sm:$0xff] %vm2463, %v2374
        %2468 = vst.msk [vmem:[#allocation5 + $0x20] sm:$0xff] %vm2463, %v2376
        %2469 = vst.msk [vmem:[#allocation5 + $0x28] sm:$0xff] %vm2463, %v2378
        %2470 = vst.msk [vmem:[#allocation5 + $0x30] sm:$0xff] %vm2463, %v2380
        %2471 = vst.msk [vmem:[#allocation5 + $0x38] sm:$0xff] %vm2463, %v2382
        %2472 = vst.msk [vmem:[#allocation5 + $0x40] sm:$0xff] %vm2463, %v2384
        %2473 = vst.msk [vmem:[#allocation5 + $0x48] sm:$0xff] %vm2463, %v2386
        %2474 = vst.msk [vmem:[#allocation5 + $0x50] sm:$0xff] %vm2463, %v2388
        %2475 = vst.msk [vmem:[#allocation5 + $0x58] sm:$0xff] %vm2463, %v2390
        %2476 = vst.msk [vmem:[#allocation5 + $0x60] sm:$0xff] %vm2463, %v2392
        %2477 = vst.msk [vmem:[#allocation5 + $0x68] sm:$0xff] %vm2463, %v2394
        %2478 = vst.msk [vmem:[#allocation5 + $0x70] sm:$0xff] %vm2463, %v2396
        %2479 = vst.msk [vmem:[#allocation5 + $0x78] sm:$0xff] %vm2463, %v2398
        %2480 = vst.msk [vmem:[#allocation5 + $0x80] sm:$0xff] %vm2463, %v2400
        %2481 = vst.msk [vmem:[#allocation5 + $0x88] sm:$0xff] %vm2463, %v2402
        %2482 = vst.msk [vmem:[#allocation5 + $0x90] sm:$0xff] %vm2463, %v2404
        %2483 = vst.msk [vmem:[#allocation5 + $0x98] sm:$0xff] %vm2463, %v2406
        %2484 = vst.msk [vmem:[#allocation5 + $0xa0] sm:$0xff] %vm2463, %v2408
        %2485 = vst.msk [vmem:[#allocation5 + $0xa8] sm:$0xff] %vm2463, %v2410
        %2486 = vst.msk [vmem:[#allocation5 + $0xb0] sm:$0xff] %vm2463, %v2412
        %2487 = vst.msk [vmem:[#allocation5 + $0xb8] sm:$0xff] %vm2463, %v2414
        %2488 = vst.msk [vmem:[#allocation5 + $0xc0] sm:$0xff] %vm2463, %v2416
        %2489 = vst.msk [vmem:[#allocation5 + $0xc8] sm:$0xff] %vm2463, %v2418
        %2490 = vst.msk [vmem:[#allocation5 + $0xd0] sm:$0xff] %vm2463, %v2420
        %2491 = vst.msk [vmem:[#allocation5 + $0xd8] sm:$0xff] %vm2463, %v2422
        %2492 = vst.msk [vmem:[#allocation5 + $0xe0] sm:$0xff] %vm2463, %v2424
        %2493 = vst.msk [vmem:[#allocation5 + $0xe8] sm:$0xff] %vm2463, %v2426
        %2494 = vst.msk [vmem:[#allocation5 + $0xf0] sm:$0xff] %vm2463, %v2428
        %2495 = vst.msk [vmem:[#allocation5 + $0xf8] sm:$0xff] %vm2463, %v2430
        %v2496 = vld [vmem:[%s412 + $0x1] sm:$0xff]
        %v2497 = vld [vmem:[%s412 + $0x9] sm:$0xff]
        %v2498 = vld [vmem:[%s412 + $0x19] sm:$0xff]
        %v2499 = vld [vmem:[%s412 + $0x21] sm:$0xff]
        %v2500 = vld [vmem:[%s412 + $0x31] sm:$0xff]
        %v2501 = vld [vmem:[%s412 + $0x39] sm:$0xff]
        %v2502 = vld [vmem:[%s412 + $0x49] sm:$0xff]
        %v2503 = vld [vmem:[%s412 + $0x51] sm:$0xff]
        %v2504 = vld [vmem:[%s412 + $0x61] sm:$0xff]
        %v2505 = vld [vmem:[%s412 + $0x69] sm:$0xff]
        %v2506 = vld [vmem:[%s412 + $0x79] sm:$0xff]
        %v2507 = vld [vmem:[%s412 + $0x81] sm:$0xff]
        %v2508 = vld [vmem:[%s412 + $0x91] sm:$0xff]
        %v2509 = vld [vmem:[%s412 + $0x99] sm:$0xff]
        %v2510 = vld [vmem:[%s412 + $0xa9] sm:$0xff]
        %v2511 = vld [vmem:[%s412 + $0xb1] sm:$0xff]
        %v2512 = vld [vmem:[%s412 + $0xc1] sm:$0xff]
        %v2513 = vld [vmem:[%s412 + $0xc9] sm:$0xff]
        %v2514 = vld [vmem:[%s412 + $0xd9] sm:$0xff]
        %v2515 = vld [vmem:[%s412 + $0xe1] sm:$0xff]
        %v2516 = vld [vmem:[%s412 + $0xf1] sm:$0xff]
        %v2517 = vld [vmem:[%s412 + $0xf9] sm:$0xff]
        %v2518 = vld [vmem:[%s412 + $0x109] sm:$0xff]
        %v2519 = vld [vmem:[%s412 + $0x111] sm:$0xff]
        %v2520 = vld [vmem:[%s412 + $0x121] sm:$0xff]
        %v2521 = vld [vmem:[%s412 + $0x129] sm:$0xff]
        %v2522 = vld [vmem:[%s412 + $0x139] sm:$0xff]
        %v2523 = vld [vmem:[%s412 + $0x141] sm:$0xff]
        %v2524 = vld [vmem:[%s412 + $0x151] sm:$0xff]
        %v2525 = vld [vmem:[%s412 + $0x159] sm:$0xff]
        %v2526 = vld [vmem:[%s412 + $0x169] sm:$0xff]
        %v2527 = vld [vmem:[%s412 + $0x171] sm:$0xff]
        %2560 = vrot.lane.b32.xlu0 %v2496, 33
        %v2561 = vpop.permute.xlu0 %2560
        %2562 = vrot.lane.b32.xlu0 %v2497, 33
        %v2563 = vpop.permute.xlu0 %2562
        %2564 = vrot.lane.b32.xlu0 %v2498, 33
        %v2565 = vpop.permute.xlu0 %2564
        %2566 = vrot.lane.b32.xlu0 %v2499, 33
        %v2567 = vpop.permute.xlu0 %2566
        %2568 = vrot.lane.b32.xlu0 %v2500, 33
        %v2569 = vpop.permute.xlu0 %2568
        %2570 = vrot.lane.b32.xlu0 %v2501, 33
        %v2571 = vpop.permute.xlu0 %2570
        %2572 = vrot.lane.b32.xlu0 %v2502, 33
        %v2573 = vpop.permute.xlu0 %2572
        %2574 = vrot.lane.b32.xlu0 %v2503, 33
        %v2575 = vpop.permute.xlu0 %2574
        %2576 = vrot.lane.b32.xlu0 %v2504, 33
        %v2577 = vpop.permute.xlu0 %2576
        %2578 = vrot.lane.b32.xlu0 %v2505, 33
        %v2579 = vpop.permute.xlu0 %2578
        %2580 = vrot.lane.b32.xlu0 %v2506, 33
        %v2581 = vpop.permute.xlu0 %2580
        %2582 = vrot.lane.b32.xlu0 %v2507, 33
        %v2583 = vpop.permute.xlu0 %2582
        %2584 = vrot.lane.b32.xlu0 %v2508, 33
        %v2585 = vpop.permute.xlu0 %2584
        %2586 = vrot.lane.b32.xlu0 %v2509, 33
        %v2587 = vpop.permute.xlu0 %2586
        %2588 = vrot.lane.b32.xlu0 %v2510, 33
        %v2589 = vpop.permute.xlu0 %2588
        %2590 = vrot.lane.b32.xlu0 %v2511, 33
        %v2591 = vpop.permute.xlu0 %2590
        %2592 = vrot.lane.b32.xlu0 %v2512, 33
        %v2593 = vpop.permute.xlu0 %2592
        %2594 = vrot.lane.b32.xlu0 %v2513, 33
        %v2595 = vpop.permute.xlu0 %2594
        %2596 = vrot.lane.b32.xlu0 %v2514, 33
        %v2597 = vpop.permute.xlu0 %2596
        %2598 = vrot.lane.b32.xlu0 %v2515, 33
        %v2599 = vpop.permute.xlu0 %2598
        %2600 = vrot.lane.b32.xlu0 %v2516, 33
        %v2601 = vpop.permute.xlu0 %2600
        %2602 = vrot.lane.b32.xlu0 %v2517, 33
        %v2603 = vpop.permute.xlu0 %2602
        %2604 = vrot.lane.b32.xlu0 %v2518, 33
        %v2605 = vpop.permute.xlu0 %2604
        %2606 = vrot.lane.b32.xlu0 %v2519, 33
        %v2607 = vpop.permute.xlu0 %2606
        %2608 = vrot.lane.b32.xlu0 %v2520, 33
        %v2609 = vpop.permute.xlu0 %2608
        %2610 = vrot.lane.b32.xlu0 %v2521, 33
        %v2611 = vpop.permute.xlu0 %2610
        %2612 = vrot.lane.b32.xlu0 %v2522, 33
        %v2613 = vpop.permute.xlu0 %2612
        %2614 = vrot.lane.b32.xlu0 %v2523, 33
        %v2615 = vpop.permute.xlu0 %2614
        %2616 = vrot.lane.b32.xlu0 %v2524, 33
        %v2617 = vpop.permute.xlu0 %2616
        %2618 = vrot.lane.b32.xlu0 %v2525, 33
        %v2619 = vpop.permute.xlu0 %2618
        %2620 = vrot.lane.b32.xlu0 %v2526, 33
        %v2621 = vpop.permute.xlu0 %2620
        %2622 = vrot.lane.b32.xlu0 %v2527, 33
        %v2623 = vpop.permute.xlu0 %2622
        %vm2656 = vcmask 294152
        %2657 = vst.msk [vmem:[#allocation5] sm:$0xff] %vm2656, %v2561
        %2658 = vst.msk [vmem:[#allocation5 + $0x8] sm:$0xff] %vm2656, %v2563
        %2659 = vst.msk [vmem:[#allocation5 + $0x10] sm:$0xff] %vm2656, %v2565
        %2660 = vst.msk [vmem:[#allocation5 + $0x18] sm:$0xff] %vm2656, %v2567
        %2661 = vst.msk [vmem:[#allocation5 + $0x20] sm:$0xff] %vm2656, %v2569
        %2662 = vst.msk [vmem:[#allocation5 + $0x28] sm:$0xff] %vm2656, %v2571
        %2663 = vst.msk [vmem:[#allocation5 + $0x30] sm:$0xff] %vm2656, %v2573
        %2664 = vst.msk [vmem:[#allocation5 + $0x38] sm:$0xff] %vm2656, %v2575
        %2665 = vst.msk [vmem:[#allocation5 + $0x40] sm:$0xff] %vm2656, %v2577
        %2666 = vst.msk [vmem:[#allocation5 + $0x48] sm:$0xff] %vm2656, %v2579
        %2667 = vst.msk [vmem:[#allocation5 + $0x50] sm:$0xff] %vm2656, %v2581
        %2668 = vst.msk [vmem:[#allocation5 + $0x58] sm:$0xff] %vm2656, %v2583
        %2669 = vst.msk [vmem:[#allocation5 + $0x60] sm:$0xff] %vm2656, %v2585
        %2670 = vst.msk [vmem:[#allocation5 + $0x68] sm:$0xff] %vm2656, %v2587
        %2671 = vst.msk [vmem:[#allocation5 + $0x70] sm:$0xff] %vm2656, %v2589
        %2672 = vst.msk [vmem:[#allocation5 + $0x78] sm:$0xff] %vm2656, %v2591
        %2673 = vst.msk [vmem:[#allocation5 + $0x80] sm:$0xff] %vm2656, %v2593
        %2674 = vst.msk [vmem:[#allocation5 + $0x88] sm:$0xff] %vm2656, %v2595
        %2675 = vst.msk [vmem:[#allocation5 + $0x90] sm:$0xff] %vm2656, %v2597
        %2676 = vst.msk [vmem:[#allocation5 + $0x98] sm:$0xff] %vm2656, %v2599
        %2677 = vst.msk [vmem:[#allocation5 + $0xa0] sm:$0xff] %vm2656, %v2601
        %2678 = vst.msk [vmem:[#allocation5 + $0xa8] sm:$0xff] %vm2656, %v2603
        %2679 = vst.msk [vmem:[#allocation5 + $0xb0] sm:$0xff] %vm2656, %v2605
        %2680 = vst.msk [vmem:[#allocation5 + $0xb8] sm:$0xff] %vm2656, %v2607
        %2681 = vst.msk [vmem:[#allocation5 + $0xc0] sm:$0xff] %vm2656, %v2609
        %2682 = vst.msk [vmem:[#allocation5 + $0xc8] sm:$0xff] %vm2656, %v2611
        %2683 = vst.msk [vmem:[#allocation5 + $0xd0] sm:$0xff] %vm2656, %v2613
        %2684 = vst.msk [vmem:[#allocation5 + $0xd8] sm:$0xff] %vm2656, %v2615
        %2685 = vst.msk [vmem:[#allocation5 + $0xe0] sm:$0xff] %vm2656, %v2617
        %2686 = vst.msk [vmem:[#allocation5 + $0xe8] sm:$0xff] %vm2656, %v2619
        %2687 = vst.msk [vmem:[#allocation5 + $0xf0] sm:$0xff] %vm2656, %v2621
        %2688 = vst.msk [vmem:[#allocation5 + $0xf8] sm:$0xff] %vm2656, %v2623
        %v2689 = vld [vmem:[%s412 + $0x2] sm:$0xff]
        %v2690 = vld [vmem:[%s412 + $0xa] sm:$0xff]
        %v2691 = vld [vmem:[%s412 + $0x1a] sm:$0xff]
        %v2692 = vld [vmem:[%s412 + $0x22] sm:$0xff]
        %v2693 = vld [vmem:[%s412 + $0x32] sm:$0xff]
        %v2694 = vld [vmem:[%s412 + $0x3a] sm:$0xff]
        %v2695 = vld [vmem:[%s412 + $0x4a] sm:$0xff]
        %v2696 = vld [vmem:[%s412 + $0x52] sm:$0xff]
        %v2697 = vld [vmem:[%s412 + $0x62] sm:$0xff]
        %v2698 = vld [vmem:[%s412 + $0x6a] sm:$0xff]
        %v2699 = vld [vmem:[%s412 + $0x7a] sm:$0xff]
        %v2700 = vld [vmem:[%s412 + $0x82] sm:$0xff]
        %v2701 = vld [vmem:[%s412 + $0x92] sm:$0xff]
        %v2702 = vld [vmem:[%s412 + $0x9a] sm:$0xff]
        %v2703 = vld [vmem:[%s412 + $0xaa] sm:$0xff]
        %v2704 = vld [vmem:[%s412 + $0xb2] sm:$0xff]
        %v2705 = vld [vmem:[%s412 + $0xc2] sm:$0xff]
        %v2706 = vld [vmem:[%s412 + $0xca] sm:$0xff]
        %v2707 = vld [vmem:[%s412 + $0xda] sm:$0xff]
        %v2708 = vld [vmem:[%s412 + $0xe2] sm:$0xff]
        %v2709 = vld [vmem:[%s412 + $0xf2] sm:$0xff]
        %v2710 = vld [vmem:[%s412 + $0xfa] sm:$0xff]
        %v2711 = vld [vmem:[%s412 + $0x10a] sm:$0xff]
        %v2712 = vld [vmem:[%s412 + $0x112] sm:$0xff]
        %v2713 = vld [vmem:[%s412 + $0x122] sm:$0xff]
        %v2714 = vld [vmem:[%s412 + $0x12a] sm:$0xff]
        %v2715 = vld [vmem:[%s412 + $0x13a] sm:$0xff]
        %v2716 = vld [vmem:[%s412 + $0x142] sm:$0xff]
        %v2717 = vld [vmem:[%s412 + $0x152] sm:$0xff]
        %v2718 = vld [vmem:[%s412 + $0x15a] sm:$0xff]
        %v2719 = vld [vmem:[%s412 + $0x16a] sm:$0xff]
        %v2720 = vld [vmem:[%s412 + $0x172] sm:$0xff]
        %2753 = vrot.lane.b32.xlu0 %v2689, 36
        %v2754 = vpop.permute.xlu0 %2753
        %2755 = vrot.lane.b32.xlu0 %v2690, 36
        %v2756 = vpop.permute.xlu0 %2755
        %2757 = vrot.lane.b32.xlu0 %v2691, 36
        %v2758 = vpop.permute.xlu0 %2757
        %2759 = vrot.lane.b32.xlu0 %v2692, 36
        %v2760 = vpop.permute.xlu0 %2759
        %2761 = vrot.lane.b32.xlu0 %v2693, 36
        %v2762 = vpop.permute.xlu0 %2761
        %2763 = vrot.lane.b32.xlu0 %v2694, 36
        %v2764 = vpop.permute.xlu0 %2763
        %2765 = vrot.lane.b32.xlu0 %v2695, 36
        %v2766 = vpop.permute.xlu0 %2765
        %2767 = vrot.lane.b32.xlu0 %v2696, 36
        %v2768 = vpop.permute.xlu0 %2767
        %2769 = vrot.lane.b32.xlu0 %v2697, 36
        %v2770 = vpop.permute.xlu0 %2769
        %2771 = vrot.lane.b32.xlu0 %v2698, 36
        %v2772 = vpop.permute.xlu0 %2771
        %2773 = vrot.lane.b32.xlu0 %v2699, 36
        %v2774 = vpop.permute.xlu0 %2773
        %2775 = vrot.lane.b32.xlu0 %v2700, 36
        %v2776 = vpop.permute.xlu0 %2775
        %2777 = vrot.lane.b32.xlu0 %v2701, 36
        %v2778 = vpop.permute.xlu0 %2777
        %2779 = vrot.lane.b32.xlu0 %v2702, 36
        %v2780 = vpop.permute.xlu0 %2779
        %2781 = vrot.lane.b32.xlu0 %v2703, 36
        %v2782 = vpop.permute.xlu0 %2781
        %2783 = vrot.lane.b32.xlu0 %v2704, 36
        %v2784 = vpop.permute.xlu0 %2783
        %2785 = vrot.lane.b32.xlu0 %v2705, 36
        %v2786 = vpop.permute.xlu0 %2785
        %2787 = vrot.lane.b32.xlu0 %v2706, 36
        %v2788 = vpop.permute.xlu0 %2787
        %2789 = vrot.lane.b32.xlu0 %v2707, 36
        %v2790 = vpop.permute.xlu0 %2789
        %2791 = vrot.lane.b32.xlu0 %v2708, 36
        %v2792 = vpop.permute.xlu0 %2791
        %2793 = vrot.lane.b32.xlu0 %v2709, 36
        %v2794 = vpop.permute.xlu0 %2793
        %2795 = vrot.lane.b32.xlu0 %v2710, 36
        %v2796 = vpop.permute.xlu0 %2795
        %2797 = vrot.lane.b32.xlu0 %v2711, 36
        %v2798 = vpop.permute.xlu0 %2797
        %2799 = vrot.lane.b32.xlu0 %v2712, 36
        %v2800 = vpop.permute.xlu0 %2799
        %2801 = vrot.lane.b32.xlu0 %v2713, 36
        %v2802 = vpop.permute.xlu0 %2801
        %2803 = vrot.lane.b32.xlu0 %v2714, 36
        %v2804 = vpop.permute.xlu0 %2803
        %2805 = vrot.lane.b32.xlu0 %v2715, 36
        %v2806 = vpop.permute.xlu0 %2805
        %2807 = vrot.lane.b32.xlu0 %v2716, 36
        %v2808 = vpop.permute.xlu0 %2807
        %2809 = vrot.lane.b32.xlu0 %v2717, 36
        %v2810 = vpop.permute.xlu0 %2809
        %2811 = vrot.lane.b32.xlu0 %v2718, 36
        %v2812 = vpop.permute.xlu0 %2811
        %2813 = vrot.lane.b32.xlu0 %v2719, 36
        %v2814 = vpop.permute.xlu0 %2813
        %2815 = vrot.lane.b32.xlu0 %v2720, 36
        %v2816 = vpop.permute.xlu0 %2815
        %vm2849 = vcmask 318752
        %2850 = vst.msk [vmem:[#allocation5] sm:$0xff] %vm2849, %v2754
        %2851 = vst.msk [vmem:[#allocation5 + $0x8] sm:$0xff] %vm2849, %v2756
        %2852 = vst.msk [vmem:[#allocation5 + $0x10] sm:$0xff] %vm2849, %v2758
        %2853 = vst.msk [vmem:[#allocation5 + $0x18] sm:$0xff] %vm2849, %v2760
        %2854 = vst.msk [vmem:[#allocation5 + $0x20] sm:$0xff] %vm2849, %v2762
        %2855 = vst.msk [vmem:[#allocation5 + $0x28] sm:$0xff] %vm2849, %v2764
        %2856 = vst.msk [vmem:[#allocation5 + $0x30] sm:$0xff] %vm2849, %v2766
        %2857 = vst.msk [vmem:[#allocation5 + $0x38] sm:$0xff] %vm2849, %v2768
        %2858 = vst.msk [vmem:[#allocation5 + $0x40] sm:$0xff] %vm2849, %v2770
        %2859 = vst.msk [vmem:[#allocation5 + $0x48] sm:$0xff] %vm2849, %v2772
        %2860 = vst.msk [vmem:[#allocation5 + $0x50] sm:$0xff] %vm2849, %v2774
        %2861 = vst.msk [vmem:[#allocation5 + $0x58] sm:$0xff] %vm2849, %v2776
        %2862 = vst.msk [vmem:[#allocation5 + $0x60] sm:$0xff] %vm2849, %v2778
        %2863 = vst.msk [vmem:[#allocation5 + $0x68] sm:$0xff] %vm2849, %v2780
        %2864 = vst.msk [vmem:[#allocation5 + $0x70] sm:$0xff] %vm2849, %v2782
        %2865 = vst.msk [vmem:[#allocation5 + $0x78] sm:$0xff] %vm2849, %v2784
        %2866 = vst.msk [vmem:[#allocation5 + $0x80] sm:$0xff] %vm2849, %v2786
        %2867 = vst.msk [vmem:[#allocation5 + $0x88] sm:$0xff] %vm2849, %v2788
        %2868 = vst.msk [vmem:[#allocation5 + $0x90] sm:$0xff] %vm2849, %v2790
        %2869 = vst.msk [vmem:[#allocation5 + $0x98] sm:$0xff] %vm2849, %v2792
        %2870 = vst.msk [vmem:[#allocation5 + $0xa0] sm:$0xff] %vm2849, %v2794
        %2871 = vst.msk [vmem:[#allocation5 + $0xa8] sm:$0xff] %vm2849, %v2796
        %2872 = vst.msk [vmem:[#allocation5 + $0xb0] sm:$0xff] %vm2849, %v2798
        %2873 = vst.msk [vmem:[#allocation5 + $0xb8] sm:$0xff] %vm2849, %v2800
        %2874 = vst.msk [vmem:[#allocation5 + $0xc0] sm:$0xff] %vm2849, %v2802
        %2875 = vst.msk [vmem:[#allocation5 + $0xc8] sm:$0xff] %vm2849, %v2804
        %2876 = vst.msk [vmem:[#allocation5 + $0xd0] sm:$0xff] %vm2849, %v2806
        %2877 = vst.msk [vmem:[#allocation5 + $0xd8] sm:$0xff] %vm2849, %v2808
        %2878 = vst.msk [vmem:[#allocation5 + $0xe0] sm:$0xff] %vm2849, %v2810
        %2879 = vst.msk [vmem:[#allocation5 + $0xe8] sm:$0xff] %vm2849, %v2812
        %2880 = vst.msk [vmem:[#allocation5 + $0xf0] sm:$0xff] %vm2849, %v2814
        %2881 = vst.msk [vmem:[#allocation5 + $0xf8] sm:$0xff] %vm2849, %v2816
        %v2882 = vld [vmem:[%s412 + $0x3] sm:$0xff]
        %v2883 = vld [vmem:[%s412 + $0xb] sm:$0xff]
        %v2884 = vld [vmem:[%s412 + $0x1b] sm:$0xff]
        %v2885 = vld [vmem:[%s412 + $0x23] sm:$0xff]
        %v2886 = vld [vmem:[%s412 + $0x33] sm:$0xff]
        %v2887 = vld [vmem:[%s412 + $0x3b] sm:$0xff]
        %v2888 = vld [vmem:[%s412 + $0x4b] sm:$0xff]
        %v2889 = vld [vmem:[%s412 + $0x53] sm:$0xff]
        %v2890 = vld [vmem:[%s412 + $0x63] sm:$0xff]
        %v2891 = vld [vmem:[%s412 + $0x6b] sm:$0xff]
        %v2892 = vld [vmem:[%s412 + $0x7b] sm:$0xff]
        %v2893 = vld [vmem:[%s412 + $0x83] sm:$0xff]
        %v2894 = vld [vmem:[%s412 + $0x93] sm:$0xff]
        %v2895 = vld [vmem:[%s412 + $0x9b] sm:$0xff]
        %v2896 = vld [vmem:[%s412 + $0xab] sm:$0xff]
        %v2897 = vld [vmem:[%s412 + $0xb3] sm:$0xff]
        %v2898 = vld [vmem:[%s412 + $0xc3] sm:$0xff]
        %v2899 = vld [vmem:[%s412 + $0xcb] sm:$0xff]
        %v2900 = vld [vmem:[%s412 + $0xdb] sm:$0xff]
        %v2901 = vld [vmem:[%s412 + $0xe3] sm:$0xff]
        %v2902 = vld [vmem:[%s412 + $0xf3] sm:$0xff]
        %v2903 = vld [vmem:[%s412 + $0xfb] sm:$0xff]
        %v2904 = vld [vmem:[%s412 + $0x10b] sm:$0xff]
        %v2905 = vld [vmem:[%s412 + $0x113] sm:$0xff]
        %v2906 = vld [vmem:[%s412 + $0x123] sm:$0xff]
        %v2907 = vld [vmem:[%s412 + $0x12b] sm:$0xff]
        %v2908 = vld [vmem:[%s412 + $0x13b] sm:$0xff]
        %v2909 = vld [vmem:[%s412 + $0x143] sm:$0xff]
        %v2910 = vld [vmem:[%s412 + $0x153] sm:$0xff]
        %v2911 = vld [vmem:[%s412 + $0x15b] sm:$0xff]
        %v2912 = vld [vmem:[%s412 + $0x16b] sm:$0xff]
        %v2913 = vld [vmem:[%s412 + $0x173] sm:$0xff]
        %2946 = vrot.lane.b32.xlu0 %v2882, 39
        %v2947 = vpop.permute.xlu0 %2946
        %2948 = vrot.lane.b32.xlu0 %v2883, 39
        %v2949 = vpop.permute.xlu0 %2948
        %2950 = vrot.lane.b32.xlu0 %v2884, 39
        %v2951 = vpop.permute.xlu0 %2950
        %2952 = vrot.lane.b32.xlu0 %v2885, 39
        %v2953 = vpop.permute.xlu0 %2952
        %2954 = vrot.lane.b32.xlu0 %v2886, 39
        %v2955 = vpop.permute.xlu0 %2954
        %2956 = vrot.lane.b32.xlu0 %v2887, 39
        %v2957 = vpop.permute.xlu0 %2956
        %2958 = vrot.lane.b32.xlu0 %v2888, 39
        %v2959 = vpop.permute.xlu0 %2958
        %2960 = vrot.lane.b32.xlu0 %v2889, 39
        %v2961 = vpop.permute.xlu0 %2960
        %2962 = vrot.lane.b32.xlu0 %v2890, 39
        %v2963 = vpop.permute.xlu0 %2962
        %2964 = vrot.lane.b32.xlu0 %v2891, 39
        %v2965 = vpop.permute.xlu0 %2964
        %2966 = vrot.lane.b32.xlu0 %v2892, 39
        %v2967 = vpop.permute.xlu0 %2966
        %2968 = vrot.lane.b32.xlu0 %v2893, 39
        %v2969 = vpop.permute.xlu0 %2968
        %2970 = vrot.lane.b32.xlu0 %v2894, 39
        %v2971 = vpop.permute.xlu0 %2970
        %2972 = vrot.lane.b32.xlu0 %v2895, 39
        %v2973 = vpop.permute.xlu0 %2972
        %2974 = vrot.lane.b32.xlu0 %v2896, 39
        %v2975 = vpop.permute.xlu0 %2974
        %2976 = vrot.lane.b32.xlu0 %v2897, 39
        %v2977 = vpop.permute.xlu0 %2976
        %2978 = vrot.lane.b32.xlu0 %v2898, 39
        %v2979 = vpop.permute.xlu0 %2978
        %2980 = vrot.lane.b32.xlu0 %v2899, 39
        %v2981 = vpop.permute.xlu0 %2980
        %2982 = vrot.lane.b32.xlu0 %v2900, 39
        %v2983 = vpop.permute.xlu0 %2982
        %2984 = vrot.lane.b32.xlu0 %v2901, 39
        %v2985 = vpop.permute.xlu0 %2984
        %2986 = vrot.lane.b32.xlu0 %v2902, 39
        %v2987 = vpop.permute.xlu0 %2986
        %2988 = vrot.lane.b32.xlu0 %v2903, 39
        %v2989 = vpop.permute.xlu0 %2988
        %2990 = vrot.lane.b32.xlu0 %v2904, 39
        %v2991 = vpop.permute.xlu0 %2990
        %2992 = vrot.lane.b32.xlu0 %v2905, 39
        %v2993 = vpop.permute.xlu0 %2992
        %2994 = vrot.lane.b32.xlu0 %v2906, 39
        %v2995 = vpop.permute.xlu0 %2994
        %2996 = vrot.lane.b32.xlu0 %v2907, 39
        %v2997 = vpop.permute.xlu0 %2996
        %2998 = vrot.lane.b32.xlu0 %v2908, 39
        %v2999 = vpop.permute.xlu0 %2998
        %3000 = vrot.lane.b32.xlu0 %v2909, 39
        %v3001 = vpop.permute.xlu0 %3000
        %3002 = vrot.lane.b32.xlu0 %v2910, 39
        %v3003 = vpop.permute.xlu0 %3002
        %3004 = vrot.lane.b32.xlu0 %v2911, 39
        %v3005 = vpop.permute.xlu0 %3004
        %3006 = vrot.lane.b32.xlu0 %v2912, 39
        %v3007 = vpop.permute.xlu0 %3006
        %3008 = vrot.lane.b32.xlu0 %v2913, 39
        %v3009 = vpop.permute.xlu0 %3008
        %vm3042 = vcmask 343352
        %3043 = vst.msk [vmem:[#allocation5] sm:$0xff] %vm3042, %v2947
        %3044 = vst.msk [vmem:[#allocation5 + $0x8] sm:$0xff] %vm3042, %v2949
        %3045 = vst.msk [vmem:[#allocation5 + $0x10] sm:$0xff] %vm3042, %v2951
        %3046 = vst.msk [vmem:[#allocation5 + $0x18] sm:$0xff] %vm3042, %v2953
        %3047 = vst.msk [vmem:[#allocation5 + $0x20] sm:$0xff] %vm3042, %v2955
        %3048 = vst.msk [vmem:[#allocation5 + $0x28] sm:$0xff] %vm3042, %v2957
        %3049 = vst.msk [vmem:[#allocation5 + $0x30] sm:$0xff] %vm3042, %v2959
        %3050 = vst.msk [vmem:[#allocation5 + $0x38] sm:$0xff] %vm3042, %v2961
        %3051 = vst.msk [vmem:[#allocation5 + $0x40] sm:$0xff] %vm3042, %v2963
        %3052 = vst.msk [vmem:[#allocation5 + $0x48] sm:$0xff] %vm3042, %v2965
        %3053 = vst.msk [vmem:[#allocation5 + $0x50] sm:$0xff] %vm3042, %v2967
        %3054 = vst.msk [vmem:[#allocation5 + $0x58] sm:$0xff] %vm3042, %v2969
        %3055 = vst.msk [vmem:[#allocation5 + $0x60] sm:$0xff] %vm3042, %v2971
        %3056 = vst.msk [vmem:[#allocation5 + $0x68] sm:$0xff] %vm3042, %v2973
        %3057 = vst.msk [vmem:[#allocation5 + $0x70] sm:$0xff] %vm3042, %v2975
        %3058 = vst.msk [vmem:[#allocation5 + $0x78] sm:$0xff] %vm3042, %v2977
        %3059 = vst.msk [vmem:[#allocation5 + $0x80] sm:$0xff] %vm3042, %v2979
        %3060 = vst.msk [vmem:[#allocation5 + $0x88] sm:$0xff] %vm3042, %v2981
        %3061 = vst.msk [vmem:[#allocation5 + $0x90] sm:$0xff] %vm3042, %v2983
        %3062 = vst.msk [vmem:[#allocation5 + $0x98] sm:$0xff] %vm3042, %v2985
        %3063 = vst.msk [vmem:[#allocation5 + $0xa0] sm:$0xff] %vm3042, %v2987
        %3064 = vst.msk [vmem:[#allocation5 + $0xa8] sm:$0xff] %vm3042, %v2989
        %3065 = vst.msk [vmem:[#allocation5 + $0xb0] sm:$0xff] %vm3042, %v2991
        %3066 = vst.msk [vmem:[#allocation5 + $0xb8] sm:$0xff] %vm3042, %v2993
        %3067 = vst.msk [vmem:[#allocation5 + $0xc0] sm:$0xff] %vm3042, %v2995
        %3068 = vst.msk [vmem:[#allocation5 + $0xc8] sm:$0xff] %vm3042, %v2997
        %3069 = vst.msk [vmem:[#allocation5 + $0xd0] sm:$0xff] %vm3042, %v2999
        %3070 = vst.msk [vmem:[#allocation5 + $0xd8] sm:$0xff] %vm3042, %v3001
        %3071 = vst.msk [vmem:[#allocation5 + $0xe0] sm:$0xff] %vm3042, %v3003
        %3072 = vst.msk [vmem:[#allocation5 + $0xe8] sm:$0xff] %vm3042, %v3005
        %3073 = vst.msk [vmem:[#allocation5 + $0xf0] sm:$0xff] %vm3042, %v3007
        %3074 = vst.msk [vmem:[#allocation5 + $0xf8] sm:$0xff] %vm3042, %v3009
        %v3075 = vld [vmem:[%s412 + $0x4] sm:$0xff]
        %v3076 = vld [vmem:[%s412 + $0xc] sm:$0xff]
        %v3077 = vld [vmem:[%s412 + $0x1c] sm:$0xff]
        %v3078 = vld [vmem:[%s412 + $0x24] sm:$0xff]
        %v3079 = vld [vmem:[%s412 + $0x34] sm:$0xff]
        %v3080 = vld [vmem:[%s412 + $0x3c] sm:$0xff]
        %v3081 = vld [vmem:[%s412 + $0x4c] sm:$0xff]
        %v3082 = vld [vmem:[%s412 + $0x54] sm:$0xff]
        %v3083 = vld [vmem:[%s412 + $0x64] sm:$0xff]
        %v3084 = vld [vmem:[%s412 + $0x6c] sm:$0xff]
        %v3085 = vld [vmem:[%s412 + $0x7c] sm:$0xff]
        %v3086 = vld [vmem:[%s412 + $0x84] sm:$0xff]
        %v3087 = vld [vmem:[%s412 + $0x94] sm:$0xff]
        %v3088 = vld [vmem:[%s412 + $0x9c] sm:$0xff]
        %v3089 = vld [vmem:[%s412 + $0xac] sm:$0xff]
        %v3090 = vld [vmem:[%s412 + $0xb4] sm:$0xff]
        %v3091 = vld [vmem:[%s412 + $0xc4] sm:$0xff]
        %v3092 = vld [vmem:[%s412 + $0xcc] sm:$0xff]
        %v3093 = vld [vmem:[%s412 + $0xdc] sm:$0xff]
        %v3094 = vld [vmem:[%s412 + $0xe4] sm:$0xff]
        %v3095 = vld [vmem:[%s412 + $0xf4] sm:$0xff]
        %v3096 = vld [vmem:[%s412 + $0xfc] sm:$0xff]
        %v3097 = vld [vmem:[%s412 + $0x10c] sm:$0xff]
        %v3098 = vld [vmem:[%s412 + $0x114] sm:$0xff]
        %v3099 = vld [vmem:[%s412 + $0x124] sm:$0xff]
        %v3100 = vld [vmem:[%s412 + $0x12c] sm:$0xff]
        %v3101 = vld [vmem:[%s412 + $0x13c] sm:$0xff]
        %v3102 = vld [vmem:[%s412 + $0x144] sm:$0xff]
        %v3103 = vld [vmem:[%s412 + $0x154] sm:$0xff]
        %v3104 = vld [vmem:[%s412 + $0x15c] sm:$0xff]
        %v3105 = vld [vmem:[%s412 + $0x16c] sm:$0xff]
        %v3106 = vld [vmem:[%s412 + $0x174] sm:$0xff]
        %3139 = vrot.lane.b32.xlu0 %v3075, 42
        %v3140 = vpop.permute.xlu0 %3139
        %3141 = vrot.lane.b32.xlu0 %v3076, 42
        %v3142 = vpop.permute.xlu0 %3141
        %3143 = vrot.lane.b32.xlu0 %v3077, 42
        %v3144 = vpop.permute.xlu0 %3143
        %3145 = vrot.lane.b32.xlu0 %v3078, 42
        %v3146 = vpop.permute.xlu0 %3145
        %3147 = vrot.lane.b32.xlu0 %v3079, 42
        %v3148 = vpop.permute.xlu0 %3147
        %3149 = vrot.lane.b32.xlu0 %v3080, 42
        %v3150 = vpop.permute.xlu0 %3149
        %3151 = vrot.lane.b32.xlu0 %v3081, 42
        %v3152 = vpop.permute.xlu0 %3151
        %3153 = vrot.lane.b32.xlu0 %v3082, 42
        %v3154 = vpop.permute.xlu0 %3153
        %3155 = vrot.lane.b32.xlu0 %v3083, 42
        %v3156 = vpop.permute.xlu0 %3155
        %3157 = vrot.lane.b32.xlu0 %v3084, 42
        %v3158 = vpop.permute.xlu0 %3157
        %3159 = vrot.lane.b32.xlu0 %v3085, 42
        %v3160 = vpop.permute.xlu0 %3159
        %3161 = vrot.lane.b32.xlu0 %v3086, 42
        %v3162 = vpop.permute.xlu0 %3161
        %3163 = vrot.lane.b32.xlu0 %v3087, 42
        %v3164 = vpop.permute.xlu0 %3163
        %3165 = vrot.lane.b32.xlu0 %v3088, 42
        %v3166 = vpop.permute.xlu0 %3165
        %3167 = vrot.lane.b32.xlu0 %v3089, 42
        %v3168 = vpop.permute.xlu0 %3167
        %3169 = vrot.lane.b32.xlu0 %v3090, 42
        %v3170 = vpop.permute.xlu0 %3169
        %3171 = vrot.lane.b32.xlu0 %v3091, 42
        %v3172 = vpop.permute.xlu0 %3171
        %3173 = vrot.lane.b32.xlu0 %v3092, 42
        %v3174 = vpop.permute.xlu0 %3173
        %3175 = vrot.lane.b32.xlu0 %v3093, 42
        %v3176 = vpop.permute.xlu0 %3175
        %3177 = vrot.lane.b32.xlu0 %v3094, 42
        %v3178 = vpop.permute.xlu0 %3177
        %3179 = vrot.lane.b32.xlu0 %v3095, 42
        %v3180 = vpop.permute.xlu0 %3179
        %3181 = vrot.lane.b32.xlu0 %v3096, 42
        %v3182 = vpop.permute.xlu0 %3181
        %3183 = vrot.lane.b32.xlu0 %v3097, 42
        %v3184 = vpop.permute.xlu0 %3183
        %3185 = vrot.lane.b32.xlu0 %v3098, 42
        %v3186 = vpop.permute.xlu0 %3185
        %3187 = vrot.lane.b32.xlu0 %v3099, 42
        %v3188 = vpop.permute.xlu0 %3187
        %3189 = vrot.lane.b32.xlu0 %v3100, 42
        %v3190 = vpop.permute.xlu0 %3189
        %3191 = vrot.lane.b32.xlu0 %v3101, 42
        %v3192 = vpop.permute.xlu0 %3191
        %3193 = vrot.lane.b32.xlu0 %v3102, 42
        %v3194 = vpop.permute.xlu0 %3193
        %3195 = vrot.lane.b32.xlu0 %v3103, 42
        %v3196 = vpop.permute.xlu0 %3195
        %3197 = vrot.lane.b32.xlu0 %v3104, 42
        %v3198 = vpop.permute.xlu0 %3197
        %3199 = vrot.lane.b32.xlu0 %v3105, 42
        %v3200 = vpop.permute.xlu0 %3199
        %3201 = vrot.lane.b32.xlu0 %v3106, 42
        %v3202 = vpop.permute.xlu0 %3201
        %vm3235 = vcmask 367952
        %3236 = vst.msk [vmem:[#allocation5] sm:$0xff] %vm3235, %v3140
        %3237 = vst.msk [vmem:[#allocation5 + $0x8] sm:$0xff] %vm3235, %v3142
        %3238 = vst.msk [vmem:[#allocation5 + $0x10] sm:$0xff] %vm3235, %v3144
        %3239 = vst.msk [vmem:[#allocation5 + $0x18] sm:$0xff] %vm3235, %v3146
        %3240 = vst.msk [vmem:[#allocation5 + $0x20] sm:$0xff] %vm3235, %v3148
        %3241 = vst.msk [vmem:[#allocation5 + $0x28] sm:$0xff] %vm3235, %v3150
        %3242 = vst.msk [vmem:[#allocation5 + $0x30] sm:$0xff] %vm3235, %v3152
        %3243 = vst.msk [vmem:[#allocation5 + $0x38] sm:$0xff] %vm3235, %v3154
        %3244 = vst.msk [vmem:[#allocation5 + $0x40] sm:$0xff] %vm3235, %v3156
        %3245 = vst.msk [vmem:[#allocation5 + $0x48] sm:$0xff] %vm3235, %v3158
        %3246 = vst.msk [vmem:[#allocation5 + $0x50] sm:$0xff] %vm3235, %v3160
        %3247 = vst.msk [vmem:[#allocation5 + $0x58] sm:$0xff] %vm3235, %v3162
        %3248 = vst.msk [vmem:[#allocation5 + $0x60] sm:$0xff] %vm3235, %v3164
        %3249 = vst.msk [vmem:[#allocation5 + $0x68] sm:$0xff] %vm3235, %v3166
        %3250 = vst.msk [vmem:[#allocation5 + $0x70] sm:$0xff] %vm3235, %v3168
        %3251 = vst.msk [vmem:[#allocation5 + $0x78] sm:$0xff] %vm3235, %v3170
        %3252 = vst.msk [vmem:[#allocation5 + $0x80] sm:$0xff] %vm3235, %v3172
        %3253 = vst.msk [vmem:[#allocation5 + $0x88] sm:$0xff] %vm3235, %v3174
        %3254 = vst.msk [vmem:[#allocation5 + $0x90] sm:$0xff] %vm3235, %v3176
        %3255 = vst.msk [vmem:[#allocation5 + $0x98] sm:$0xff] %vm3235, %v3178
        %3256 = vst.msk [vmem:[#allocation5 + $0xa0] sm:$0xff] %vm3235, %v3180
        %3257 = vst.msk [vmem:[#allocation5 + $0xa8] sm:$0xff] %vm3235, %v3182
        %3258 = vst.msk [vmem:[#allocation5 + $0xb0] sm:$0xff] %vm3235, %v3184
        %3259 = vst.msk [vmem:[#allocation5 + $0xb8] sm:$0xff] %vm3235, %v3186
        %3260 = vst.msk [vmem:[#allocation5 + $0xc0] sm:$0xff] %vm3235, %v3188
        %3261 = vst.msk [vmem:[#allocation5 + $0xc8] sm:$0xff] %vm3235, %v3190
        %3262 = vst.msk [vmem:[#allocation5 + $0xd0] sm:$0xff] %vm3235, %v3192
        %3263 = vst.msk [vmem:[#allocation5 + $0xd8] sm:$0xff] %vm3235, %v3194
        %3264 = vst.msk [vmem:[#allocation5 + $0xe0] sm:$0xff] %vm3235, %v3196
        %3265 = vst.msk [vmem:[#allocation5 + $0xe8] sm:$0xff] %vm3235, %v3198
        %3266 = vst.msk [vmem:[#allocation5 + $0xf0] sm:$0xff] %vm3235, %v3200
        %3267 = vst.msk [vmem:[#allocation5 + $0xf8] sm:$0xff] %vm3235, %v3202
        %s3268 = scalar_lea.vmem [#allocation2], 72
        %v3269 = vld [vmem:[%s3268] sm:$0xff]
        %v3270 = vld [vmem:[%s3268 + $0x8] sm:$0xff]
        %v3271 = vld [vmem:[%s3268 + $0x18] sm:$0xff]
        %v3272 = vld [vmem:[%s3268 + $0x20] sm:$0xff]
        %v3273 = vld [vmem:[%s3268 + $0x30] sm:$0xff]
        %v3274 = vld [vmem:[%s3268 + $0x38] sm:$0xff]
        %v3275 = vld [vmem:[%s3268 + $0x48] sm:$0xff]
        %v3276 = vld [vmem:[%s3268 + $0x50] sm:$0xff]
        %v3277 = vld [vmem:[%s3268 + $0x60] sm:$0xff]
        %v3278 = vld [vmem:[%s3268 + $0x68] sm:$0xff]
        %v3279 = vld [vmem:[%s3268 + $0x78] sm:$0xff]
        %v3280 = vld [vmem:[%s3268 + $0x80] sm:$0xff]
        %v3281 = vld [vmem:[%s3268 + $0x90] sm:$0xff]
        %v3282 = vld [vmem:[%s3268 + $0x98] sm:$0xff]
        %v3283 = vld [vmem:[%s3268 + $0xa8] sm:$0xff]
        %v3284 = vld [vmem:[%s3268 + $0xb0] sm:$0xff]
        %v3285 = vld [vmem:[%s3268 + $0xc0] sm:$0xff]
        %v3286 = vld [vmem:[%s3268 + $0xc8] sm:$0xff]
        %v3287 = vld [vmem:[%s3268 + $0xd8] sm:$0xff]
        %v3288 = vld [vmem:[%s3268 + $0xe0] sm:$0xff]
        %v3289 = vld [vmem:[%s3268 + $0xf0] sm:$0xff]
        %v3290 = vld [vmem:[%s3268 + $0xf8] sm:$0xff]
        %v3291 = vld [vmem:[%s3268 + $0x108] sm:$0xff]
        %v3292 = vld [vmem:[%s3268 + $0x110] sm:$0xff]
        %v3293 = vld [vmem:[%s3268 + $0x120] sm:$0xff]
        %v3294 = vld [vmem:[%s3268 + $0x128] sm:$0xff]
        %v3295 = vld [vmem:[%s3268 + $0x138] sm:$0xff]
        %v3296 = vld [vmem:[%s3268 + $0x140] sm:$0xff]
        %v3297 = vld [vmem:[%s3268 + $0x150] sm:$0xff]
        %v3298 = vld [vmem:[%s3268 + $0x158] sm:$0xff]
        %v3299 = vld [vmem:[%s3268 + $0x168] sm:$0xff]
        %v3300 = vld [vmem:[%s3268 + $0x170] sm:$0xff]
        %3333 = vrot.lane.b32.xlu0 %v3269, 45
        %v3334 = vpop.permute.xlu0 %3333
        %3335 = vrot.lane.b32.xlu0 %v3270, 45
        %v3336 = vpop.permute.xlu0 %3335
        %3337 = vrot.lane.b32.xlu0 %v3271, 45
        %v3338 = vpop.permute.xlu0 %3337
        %3339 = vrot.lane.b32.xlu0 %v3272, 45
        %v3340 = vpop.permute.xlu0 %3339
        %3341 = vrot.lane.b32.xlu0 %v3273, 45
        %v3342 = vpop.permute.xlu0 %3341
        %3343 = vrot.lane.b32.xlu0 %v3274, 45
        %v3344 = vpop.permute.xlu0 %3343
        %3345 = vrot.lane.b32.xlu0 %v3275, 45
        %v3346 = vpop.permute.xlu0 %3345
        %3347 = vrot.lane.b32.xlu0 %v3276, 45
        %v3348 = vpop.permute.xlu0 %3347
        %3349 = vrot.lane.b32.xlu0 %v3277, 45
        %v3350 = vpop.permute.xlu0 %3349
        %3351 = vrot.lane.b32.xlu0 %v3278, 45
        %v3352 = vpop.permute.xlu0 %3351
        %3353 = vrot.lane.b32.xlu0 %v3279, 45
        %v3354 = vpop.permute.xlu0 %3353
        %3355 = vrot.lane.b32.xlu0 %v3280, 45
        %v3356 = vpop.permute.xlu0 %3355
        %3357 = vrot.lane.b32.xlu0 %v3281, 45
        %v3358 = vpop.permute.xlu0 %3357
        %3359 = vrot.lane.b32.xlu0 %v3282, 45
        %v3360 = vpop.permute.xlu0 %3359
        %3361 = vrot.lane.b32.xlu0 %v3283, 45
        %v3362 = vpop.permute.xlu0 %3361
        %3363 = vrot.lane.b32.xlu0 %v3284, 45
        %v3364 = vpop.permute.xlu0 %3363
        %3365 = vrot.lane.b32.xlu0 %v3285, 45
        %v3366 = vpop.permute.xlu0 %3365
        %3367 = vrot.lane.b32.xlu0 %v3286, 45
        %v3368 = vpop.permute.xlu0 %3367
        %3369 = vrot.lane.b32.xlu0 %v3287, 45
        %v3370 = vpop.permute.xlu0 %3369
        %3371 = vrot.lane.b32.xlu0 %v3288, 45
        %v3372 = vpop.permute.xlu0 %3371
        %3373 = vrot.lane.b32.xlu0 %v3289, 45
        %v3374 = vpop.permute.xlu0 %3373
        %3375 = vrot.lane.b32.xlu0 %v3290, 45
        %v3376 = vpop.permute.xlu0 %3375
        %3377 = vrot.lane.b32.xlu0 %v3291, 45
        %v3378 = vpop.permute.xlu0 %3377
        %3379 = vrot.lane.b32.xlu0 %v3292, 45
        %v3380 = vpop.permute.xlu0 %3379
        %3381 = vrot.lane.b32.xlu0 %v3293, 45
        %v3382 = vpop.permute.xlu0 %3381
        %3383 = vrot.lane.b32.xlu0 %v3294, 45
        %v3384 = vpop.permute.xlu0 %3383
        %3385 = vrot.lane.b32.xlu0 %v3295, 45
        %v3386 = vpop.permute.xlu0 %3385
        %3387 = vrot.lane.b32.xlu0 %v3296, 45
        %v3388 = vpop.permute.xlu0 %3387
        %3389 = vrot.lane.b32.xlu0 %v3297, 45
        %v3390 = vpop.permute.xlu0 %3389
        %3391 = vrot.lane.b32.xlu0 %v3298, 45
        %v3392 = vpop.permute.xlu0 %3391
        %3393 = vrot.lane.b32.xlu0 %v3299, 45
        %v3394 = vpop.permute.xlu0 %3393
        %3395 = vrot.lane.b32.xlu0 %v3300, 45
        %v3396 = vpop.permute.xlu0 %3395
        %vm3429 = vcmask 392552
        %3430 = vst.msk [vmem:[#allocation5] sm:$0xff] %vm3429, %v3334
        %3431 = vst.msk [vmem:[#allocation5 + $0x8] sm:$0xff] %vm3429, %v3336
        %3432 = vst.msk [vmem:[#allocation5 + $0x10] sm:$0xff] %vm3429, %v3338
        %3433 = vst.msk [vmem:[#allocation5 + $0x18] sm:$0xff] %vm3429, %v3340
        %3434 = vst.msk [vmem:[#allocation5 + $0x20] sm:$0xff] %vm3429, %v3342
        %3435 = vst.msk [vmem:[#allocation5 + $0x28] sm:$0xff] %vm3429, %v3344
        %3436 = vst.msk [vmem:[#allocation5 + $0x30] sm:$0xff] %vm3429, %v3346
        %3437 = vst.msk [vmem:[#allocation5 + $0x38] sm:$0xff] %vm3429, %v3348
        %3438 = vst.msk [vmem:[#allocation5 + $0x40] sm:$0xff] %vm3429, %v3350
        %3439 = vst.msk [vmem:[#allocation5 + $0x48] sm:$0xff] %vm3429, %v3352
        %3440 = vst.msk [vmem:[#allocation5 + $0x50] sm:$0xff] %vm3429, %v3354
        %3441 = vst.msk [vmem:[#allocation5 + $0x58] sm:$0xff] %vm3429, %v3356
        %3442 = vst.msk [vmem:[#allocation5 + $0x60] sm:$0xff] %vm3429, %v3358
        %3443 = vst.msk [vmem:[#allocation5 + $0x68] sm:$0xff] %vm3429, %v3360
        %3444 = vst.msk [vmem:[#allocation5 + $0x70] sm:$0xff] %vm3429, %v3362
        %3445 = vst.msk [vmem:[#allocation5 + $0x78] sm:$0xff] %vm3429, %v3364
        %3446 = vst.msk [vmem:[#allocation5 + $0x80] sm:$0xff] %vm3429, %v3366
        %3447 = vst.msk [vmem:[#allocation5 + $0x88] sm:$0xff] %vm3429, %v3368
        %3448 = vst.msk [vmem:[#allocation5 + $0x90] sm:$0xff] %vm3429, %v3370
        %3449 = vst.msk [vmem:[#allocation5 + $0x98] sm:$0xff] %vm3429, %v3372
        %3450 = vst.msk [vmem:[#allocation5 + $0xa0] sm:$0xff] %vm3429, %v3374
        %3451 = vst.msk [vmem:[#allocation5 + $0xa8] sm:$0xff] %vm3429, %v3376
        %3452 = vst.msk [vmem:[#allocation5 + $0xb0] sm:$0xff] %vm3429, %v3378
        %3453 = vst.msk [vmem:[#allocation5 + $0xb8] sm:$0xff] %vm3429, %v3380
        %3454 = vst.msk [vmem:[#allocation5 + $0xc0] sm:$0xff] %vm3429, %v3382
        %3455 = vst.msk [vmem:[#allocation5 + $0xc8] sm:$0xff] %vm3429, %v3384
        %3456 = vst.msk [vmem:[#allocation5 + $0xd0] sm:$0xff] %vm3429, %v3386
        %3457 = vst.msk [vmem:[#allocation5 + $0xd8] sm:$0xff] %vm3429, %v3388
        %3458 = vst.msk [vmem:[#allocation5 + $0xe0] sm:$0xff] %vm3429, %v3390
        %3459 = vst.msk [vmem:[#allocation5 + $0xe8] sm:$0xff] %vm3429, %v3392
        %3460 = vst.msk [vmem:[#allocation5 + $0xf0] sm:$0xff] %vm3429, %v3394
        %3461 = vst.msk [vmem:[#allocation5 + $0xf8] sm:$0xff] %vm3429, %v3396
        %v3462 = vld [vmem:[%s3268 + $0x1] sm:$0xff]
        %v3463 = vld [vmem:[%s3268 + $0x9] sm:$0xff]
        %v3464 = vld [vmem:[%s3268 + $0x19] sm:$0xff]
        %v3465 = vld [vmem:[%s3268 + $0x21] sm:$0xff]
        %v3466 = vld [vmem:[%s3268 + $0x31] sm:$0xff]
        %v3467 = vld [vmem:[%s3268 + $0x39] sm:$0xff]
        %v3468 = vld [vmem:[%s3268 + $0x49] sm:$0xff]
        %v3469 = vld [vmem:[%s3268 + $0x51] sm:$0xff]
        %v3470 = vld [vmem:[%s3268 + $0x61] sm:$0xff]
        %v3471 = vld [vmem:[%s3268 + $0x69] sm:$0xff]
        %v3472 = vld [vmem:[%s3268 + $0x79] sm:$0xff]
        %v3473 = vld [vmem:[%s3268 + $0x81] sm:$0xff]
        %v3474 = vld [vmem:[%s3268 + $0x91] sm:$0xff]
        %v3475 = vld [vmem:[%s3268 + $0x99] sm:$0xff]
        %v3476 = vld [vmem:[%s3268 + $0xa9] sm:$0xff]
        %v3477 = vld [vmem:[%s3268 + $0xb1] sm:$0xff]
        %v3478 = vld [vmem:[%s3268 + $0xc1] sm:$0xff]
        %v3479 = vld [vmem:[%s3268 + $0xc9] sm:$0xff]
        %v3480 = vld [vmem:[%s3268 + $0xd9] sm:$0xff]
        %v3481 = vld [vmem:[%s3268 + $0xe1] sm:$0xff]
        %v3482 = vld [vmem:[%s3268 + $0xf1] sm:$0xff]
        %v3483 = vld [vmem:[%s3268 + $0xf9] sm:$0xff]
        %v3484 = vld [vmem:[%s3268 + $0x109] sm:$0xff]
        %v3485 = vld [vmem:[%s3268 + $0x111] sm:$0xff]
        %v3486 = vld [vmem:[%s3268 + $0x121] sm:$0xff]
        %v3487 = vld [vmem:[%s3268 + $0x129] sm:$0xff]
        %v3488 = vld [vmem:[%s3268 + $0x139] sm:$0xff]
        %v3489 = vld [vmem:[%s3268 + $0x141] sm:$0xff]
        %v3490 = vld [vmem:[%s3268 + $0x151] sm:$0xff]
        %v3491 = vld [vmem:[%s3268 + $0x159] sm:$0xff]
        %v3492 = vld [vmem:[%s3268 + $0x169] sm:$0xff]
        %v3493 = vld [vmem:[%s3268 + $0x171] sm:$0xff]
        %3526 = vrot.lane.b32.xlu0 %v3462, 48
        %v3527 = vpop.permute.xlu0 %3526
        %3528 = vrot.lane.b32.xlu0 %v3463, 48
        %v3529 = vpop.permute.xlu0 %3528
        %3530 = vrot.lane.b32.xlu0 %v3464, 48
        %v3531 = vpop.permute.xlu0 %3530
        %3532 = vrot.lane.b32.xlu0 %v3465, 48
        %v3533 = vpop.permute.xlu0 %3532
        %3534 = vrot.lane.b32.xlu0 %v3466, 48
        %v3535 = vpop.permute.xlu0 %3534
        %3536 = vrot.lane.b32.xlu0 %v3467, 48
        %v3537 = vpop.permute.xlu0 %3536
        %3538 = vrot.lane.b32.xlu0 %v3468, 48
        %v3539 = vpop.permute.xlu0 %3538
        %3540 = vrot.lane.b32.xlu0 %v3469, 48
        %v3541 = vpop.permute.xlu0 %3540
        %3542 = vrot.lane.b32.xlu0 %v3470, 48
        %v3543 = vpop.permute.xlu0 %3542
        %3544 = vrot.lane.b32.xlu0 %v3471, 48
        %v3545 = vpop.permute.xlu0 %3544
        %3546 = vrot.lane.b32.xlu0 %v3472, 48
        %v3547 = vpop.permute.xlu0 %3546
        %3548 = vrot.lane.b32.xlu0 %v3473, 48
        %v3549 = vpop.permute.xlu0 %3548
        %3550 = vrot.lane.b32.xlu0 %v3474, 48
        %v3551 = vpop.permute.xlu0 %3550
        %3552 = vrot.lane.b32.xlu0 %v3475, 48
        %v3553 = vpop.permute.xlu0 %3552
        %3554 = vrot.lane.b32.xlu0 %v3476, 48
        %v3555 = vpop.permute.xlu0 %3554
        %3556 = vrot.lane.b32.xlu0 %v3477, 48
        %v3557 = vpop.permute.xlu0 %3556
        %3558 = vrot.lane.b32.xlu0 %v3478, 48
        %v3559 = vpop.permute.xlu0 %3558
        %3560 = vrot.lane.b32.xlu0 %v3479, 48
        %v3561 = vpop.permute.xlu0 %3560
        %3562 = vrot.lane.b32.xlu0 %v3480, 48
        %v3563 = vpop.permute.xlu0 %3562
        %3564 = vrot.lane.b32.xlu0 %v3481, 48
        %v3565 = vpop.permute.xlu0 %3564
        %3566 = vrot.lane.b32.xlu0 %v3482, 48
        %v3567 = vpop.permute.xlu0 %3566
        %3568 = vrot.lane.b32.xlu0 %v3483, 48
        %v3569 = vpop.permute.xlu0 %3568
        %3570 = vrot.lane.b32.xlu0 %v3484, 48
        %v3571 = vpop.permute.xlu0 %3570
        %3572 = vrot.lane.b32.xlu0 %v3485, 48
        %v3573 = vpop.permute.xlu0 %3572
        %3574 = vrot.lane.b32.xlu0 %v3486, 48
        %v3575 = vpop.permute.xlu0 %3574
        %3576 = vrot.lane.b32.xlu0 %v3487, 48
        %v3577 = vpop.permute.xlu0 %3576
        %3578 = vrot.lane.b32.xlu0 %v3488, 48
        %v3579 = vpop.permute.xlu0 %3578
        %3580 = vrot.lane.b32.xlu0 %v3489, 48
        %v3581 = vpop.permute.xlu0 %3580
        %3582 = vrot.lane.b32.xlu0 %v3490, 48
        %v3583 = vpop.permute.xlu0 %3582
        %3584 = vrot.lane.b32.xlu0 %v3491, 48
        %v3585 = vpop.permute.xlu0 %3584
        %3586 = vrot.lane.b32.xlu0 %v3492, 48
        %v3587 = vpop.permute.xlu0 %3586
        %3588 = vrot.lane.b32.xlu0 %v3493, 48
        %v3589 = vpop.permute.xlu0 %3588
        %vm3622 = vcmask 417152
        %3623 = vst.msk [vmem:[#allocation5] sm:$0xff] %vm3622, %v3527
        %3624 = vst.msk [vmem:[#allocation5 + $0x8] sm:$0xff] %vm3622, %v3529
        %3625 = vst.msk [vmem:[#allocation5 + $0x10] sm:$0xff] %vm3622, %v3531
        %3626 = vst.msk [vmem:[#allocation5 + $0x18] sm:$0xff] %vm3622, %v3533
        %3627 = vst.msk [vmem:[#allocation5 + $0x20] sm:$0xff] %vm3622, %v3535
        %3628 = vst.msk [vmem:[#allocation5 + $0x28] sm:$0xff] %vm3622, %v3537
        %3629 = vst.msk [vmem:[#allocation5 + $0x30] sm:$0xff] %vm3622, %v3539
        %3630 = vst.msk [vmem:[#allocation5 + $0x38] sm:$0xff] %vm3622, %v3541
        %3631 = vst.msk [vmem:[#allocation5 + $0x40] sm:$0xff] %vm3622, %v3543
        %3632 = vst.msk [vmem:[#allocation5 + $0x48] sm:$0xff] %vm3622, %v3545
        %3633 = vst.msk [vmem:[#allocation5 + $0x50] sm:$0xff] %vm3622, %v3547
        %3634 = vst.msk [vmem:[#allocation5 + $0x58] sm:$0xff] %vm3622, %v3549
        %3635 = vst.msk [vmem:[#allocation5 + $0x60] sm:$0xff] %vm3622, %v3551
        %3636 = vst.msk [vmem:[#allocation5 + $0x68] sm:$0xff] %vm3622, %v3553
        %3637 = vst.msk [vmem:[#allocation5 + $0x70] sm:$0xff] %vm3622, %v3555
        %3638 = vst.msk [vmem:[#allocation5 + $0x78] sm:$0xff] %vm3622, %v3557
        %3639 = vst.msk [vmem:[#allocation5 + $0x80] sm:$0xff] %vm3622, %v3559
        %3640 = vst.msk [vmem:[#allocation5 + $0x88] sm:$0xff] %vm3622, %v3561
        %3641 = vst.msk [vmem:[#allocation5 + $0x90] sm:$0xff] %vm3622, %v3563
        %3642 = vst.msk [vmem:[#allocation5 + $0x98] sm:$0xff] %vm3622, %v3565
        %3643 = vst.msk [vmem:[#allocation5 + $0xa0] sm:$0xff] %vm3622, %v3567
        %3644 = vst.msk [vmem:[#allocation5 + $0xa8] sm:$0xff] %vm3622, %v3569
        %3645 = vst.msk [vmem:[#allocation5 + $0xb0] sm:$0xff] %vm3622, %v3571
        %3646 = vst.msk [vmem:[#allocation5 + $0xb8] sm:$0xff] %vm3622, %v3573
        %3647 = vst.msk [vmem:[#allocation5 + $0xc0] sm:$0xff] %vm3622, %v3575
        %3648 = vst.msk [vmem:[#allocation5 + $0xc8] sm:$0xff] %vm3622, %v3577
        %3649 = vst.msk [vmem:[#allocation5 + $0xd0] sm:$0xff] %vm3622, %v3579
        %3650 = vst.msk [vmem:[#allocation5 + $0xd8] sm:$0xff] %vm3622, %v3581
        %3651 = vst.msk [vmem:[#allocation5 + $0xe0] sm:$0xff] %vm3622, %v3583
        %3652 = vst.msk [vmem:[#allocation5 + $0xe8] sm:$0xff] %vm3622, %v3585
        %3653 = vst.msk [vmem:[#allocation5 + $0xf0] sm:$0xff] %vm3622, %v3587
        %3654 = vst.msk [vmem:[#allocation5 + $0xf8] sm:$0xff] %vm3622, %v3589
        %v3655 = vld [vmem:[%s3268 + $0x2] sm:$0xff]
        %v3656 = vld [vmem:[%s3268 + $0xa] sm:$0xff]
        %v3657 = vld [vmem:[%s3268 + $0x1a] sm:$0xff]
        %v3658 = vld [vmem:[%s3268 + $0x22] sm:$0xff]
        %v3659 = vld [vmem:[%s3268 + $0x32] sm:$0xff]
        %v3660 = vld [vmem:[%s3268 + $0x3a] sm:$0xff]
        %v3661 = vld [vmem:[%s3268 + $0x4a] sm:$0xff]
        %v3662 = vld [vmem:[%s3268 + $0x52] sm:$0xff]
        %v3663 = vld [vmem:[%s3268 + $0x62] sm:$0xff]
        %v3664 = vld [vmem:[%s3268 + $0x6a] sm:$0xff]
        %v3665 = vld [vmem:[%s3268 + $0x7a] sm:$0xff]
        %v3666 = vld [vmem:[%s3268 + $0x82] sm:$0xff]
        %v3667 = vld [vmem:[%s3268 + $0x92] sm:$0xff]
        %v3668 = vld [vmem:[%s3268 + $0x9a] sm:$0xff]
        %v3669 = vld [vmem:[%s3268 + $0xaa] sm:$0xff]
        %v3670 = vld [vmem:[%s3268 + $0xb2] sm:$0xff]
        %v3671 = vld [vmem:[%s3268 + $0xc2] sm:$0xff]
        %v3672 = vld [vmem:[%s3268 + $0xca] sm:$0xff]
        %v3673 = vld [vmem:[%s3268 + $0xda] sm:$0xff]
        %v3674 = vld [vmem:[%s3268 + $0xe2] sm:$0xff]
        %v3675 = vld [vmem:[%s3268 + $0xf2] sm:$0xff]
        %v3676 = vld [vmem:[%s3268 + $0xfa] sm:$0xff]
        %v3677 = vld [vmem:[%s3268 + $0x10a] sm:$0xff]
        %v3678 = vld [vmem:[%s3268 + $0x112] sm:$0xff]
        %v3679 = vld [vmem:[%s3268 + $0x122] sm:$0xff]
        %v3680 = vld [vmem:[%s3268 + $0x12a] sm:$0xff]
        %v3681 = vld [vmem:[%s3268 + $0x13a] sm:$0xff]
        %v3682 = vld [vmem:[%s3268 + $0x142] sm:$0xff]
        %v3683 = vld [vmem:[%s3268 + $0x152] sm:$0xff]
        %v3684 = vld [vmem:[%s3268 + $0x15a] sm:$0xff]
        %v3685 = vld [vmem:[%s3268 + $0x16a] sm:$0xff]
        %v3686 = vld [vmem:[%s3268 + $0x172] sm:$0xff]
        %3719 = vrot.lane.b32.xlu0 %v3655, 51
        %v3720 = vpop.permute.xlu0 %3719
        %3721 = vrot.lane.b32.xlu0 %v3656, 51
        %v3722 = vpop.permute.xlu0 %3721
        %3723 = vrot.lane.b32.xlu0 %v3657, 51
        %v3724 = vpop.permute.xlu0 %3723
        %3725 = vrot.lane.b32.xlu0 %v3658, 51
        %v3726 = vpop.permute.xlu0 %3725
        %3727 = vrot.lane.b32.xlu0 %v3659, 51
        %v3728 = vpop.permute.xlu0 %3727
        %3729 = vrot.lane.b32.xlu0 %v3660, 51
        %v3730 = vpop.permute.xlu0 %3729
        %3731 = vrot.lane.b32.xlu0 %v3661, 51
        %v3732 = vpop.permute.xlu0 %3731
        %3733 = vrot.lane.b32.xlu0 %v3662, 51
        %v3734 = vpop.permute.xlu0 %3733
        %3735 = vrot.lane.b32.xlu0 %v3663, 51
        %v3736 = vpop.permute.xlu0 %3735
        %3737 = vrot.lane.b32.xlu0 %v3664, 51
        %v3738 = vpop.permute.xlu0 %3737
        %3739 = vrot.lane.b32.xlu0 %v3665, 51
        %v3740 = vpop.permute.xlu0 %3739
        %3741 = vrot.lane.b32.xlu0 %v3666, 51
        %v3742 = vpop.permute.xlu0 %3741
        %3743 = vrot.lane.b32.xlu0 %v3667, 51
        %v3744 = vpop.permute.xlu0 %3743
        %3745 = vrot.lane.b32.xlu0 %v3668, 51
        %v3746 = vpop.permute.xlu0 %3745
        %3747 = vrot.lane.b32.xlu0 %v3669, 51
        %v3748 = vpop.permute.xlu0 %3747
        %3749 = vrot.lane.b32.xlu0 %v3670, 51
        %v3750 = vpop.permute.xlu0 %3749
        %3751 = vrot.lane.b32.xlu0 %v3671, 51
        %v3752 = vpop.permute.xlu0 %3751
        %3753 = vrot.lane.b32.xlu0 %v3672, 51
        %v3754 = vpop.permute.xlu0 %3753
        %3755 = vrot.lane.b32.xlu0 %v3673, 51
        %v3756 = vpop.permute.xlu0 %3755
        %3757 = vrot.lane.b32.xlu0 %v3674, 51
        %v3758 = vpop.permute.xlu0 %3757
        %3759 = vrot.lane.b32.xlu0 %v3675, 51
        %v3760 = vpop.permute.xlu0 %3759
        %3761 = vrot.lane.b32.xlu0 %v3676, 51
        %v3762 = vpop.permute.xlu0 %3761
        %3763 = vrot.lane.b32.xlu0 %v3677, 51
        %v3764 = vpop.permute.xlu0 %3763
        %3765 = vrot.lane.b32.xlu0 %v3678, 51
        %v3766 = vpop.permute.xlu0 %3765
        %3767 = vrot.lane.b32.xlu0 %v3679, 51
        %v3768 = vpop.permute.xlu0 %3767
        %3769 = vrot.lane.b32.xlu0 %v3680, 51
        %v3770 = vpop.permute.xlu0 %3769
        %3771 = vrot.lane.b32.xlu0 %v3681, 51
        %v3772 = vpop.permute.xlu0 %3771
        %3773 = vrot.lane.b32.xlu0 %v3682, 51
        %v3774 = vpop.permute.xlu0 %3773
        %3775 = vrot.lane.b32.xlu0 %v3683, 51
        %v3776 = vpop.permute.xlu0 %3775
        %3777 = vrot.lane.b32.xlu0 %v3684, 51
        %v3778 = vpop.permute.xlu0 %3777
        %3779 = vrot.lane.b32.xlu0 %v3685, 51
        %v3780 = vpop.permute.xlu0 %3779
        %3781 = vrot.lane.b32.xlu0 %v3686, 51
        %v3782 = vpop.permute.xlu0 %3781
        %vm3815 = vcmask 441752
        %3816 = vst.msk [vmem:[#allocation5] sm:$0xff] %vm3815, %v3720
        %3817 = vst.msk [vmem:[#allocation5 + $0x8] sm:$0xff] %vm3815, %v3722
        %3818 = vst.msk [vmem:[#allocation5 + $0x10] sm:$0xff] %vm3815, %v3724
        %3819 = vst.msk [vmem:[#allocation5 + $0x18] sm:$0xff] %vm3815, %v3726
        %3820 = vst.msk [vmem:[#allocation5 + $0x20] sm:$0xff] %vm3815, %v3728
        %3821 = vst.msk [vmem:[#allocation5 + $0x28] sm:$0xff] %vm3815, %v3730
        %3822 = vst.msk [vmem:[#allocation5 + $0x30] sm:$0xff] %vm3815, %v3732
        %3823 = vst.msk [vmem:[#allocation5 + $0x38] sm:$0xff] %vm3815, %v3734
        %3824 = vst.msk [vmem:[#allocation5 + $0x40] sm:$0xff] %vm3815, %v3736
        %3825 = vst.msk [vmem:[#allocation5 + $0x48] sm:$0xff] %vm3815, %v3738
        %3826 = vst.msk [vmem:[#allocation5 + $0x50] sm:$0xff] %vm3815, %v3740
        %3827 = vst.msk [vmem:[#allocation5 + $0x58] sm:$0xff] %vm3815, %v3742
        %3828 = vst.msk [vmem:[#allocation5 + $0x60] sm:$0xff] %vm3815, %v3744
        %3829 = vst.msk [vmem:[#allocation5 + $0x68] sm:$0xff] %vm3815, %v3746
        %3830 = vst.msk [vmem:[#allocation5 + $0x70] sm:$0xff] %vm3815, %v3748
        %3831 = vst.msk [vmem:[#allocation5 + $0x78] sm:$0xff] %vm3815, %v3750
        %3832 = vst.msk [vmem:[#allocation5 + $0x80] sm:$0xff] %vm3815, %v3752
        %3833 = vst.msk [vmem:[#allocation5 + $0x88] sm:$0xff] %vm3815, %v3754
        %3834 = vst.msk [vmem:[#allocation5 + $0x90] sm:$0xff] %vm3815, %v3756
        %3835 = vst.msk [vmem:[#allocation5 + $0x98] sm:$0xff] %vm3815, %v3758
        %3836 = vst.msk [vmem:[#allocation5 + $0xa0] sm:$0xff] %vm3815, %v3760
        %3837 = vst.msk [vmem:[#allocation5 + $0xa8] sm:$0xff] %vm3815, %v3762
        %3838 = vst.msk [vmem:[#allocation5 + $0xb0] sm:$0xff] %vm3815, %v3764
        %3839 = vst.msk [vmem:[#allocation5 + $0xb8] sm:$0xff] %vm3815, %v3766
        %3840 = vst.msk [vmem:[#allocation5 + $0xc0] sm:$0xff] %vm3815, %v3768
        %3841 = vst.msk [vmem:[#allocation5 + $0xc8] sm:$0xff] %vm3815, %v3770
        %3842 = vst.msk [vmem:[#allocation5 + $0xd0] sm:$0xff] %vm3815, %v3772
        %3843 = vst.msk [vmem:[#allocation5 + $0xd8] sm:$0xff] %vm3815, %v3774
        %3844 = vst.msk [vmem:[#allocation5 + $0xe0] sm:$0xff] %vm3815, %v3776
        %3845 = vst.msk [vmem:[#allocation5 + $0xe8] sm:$0xff] %vm3815, %v3778
        %3846 = vst.msk [vmem:[#allocation5 + $0xf0] sm:$0xff] %vm3815, %v3780
        %3847 = vst.msk [vmem:[#allocation5 + $0xf8] sm:$0xff] %vm3815, %v3782
        %v3848 = vld [vmem:[%s3268 + $0x3] sm:$0xff]
        %v3849 = vld [vmem:[%s3268 + $0xb] sm:$0xff]
        %v3850 = vld [vmem:[%s3268 + $0x1b] sm:$0xff]
        %v3851 = vld [vmem:[%s3268 + $0x23] sm:$0xff]
        %v3852 = vld [vmem:[%s3268 + $0x33] sm:$0xff]
        %v3853 = vld [vmem:[%s3268 + $0x3b] sm:$0xff]
        %v3854 = vld [vmem:[%s3268 + $0x4b] sm:$0xff]
        %v3855 = vld [vmem:[%s3268 + $0x53] sm:$0xff]
        %v3856 = vld [vmem:[%s3268 + $0x63] sm:$0xff]
        %v3857 = vld [vmem:[%s3268 + $0x6b] sm:$0xff]
        %v3858 = vld [vmem:[%s3268 + $0x7b] sm:$0xff]
        %v3859 = vld [vmem:[%s3268 + $0x83] sm:$0xff]
        %v3860 = vld [vmem:[%s3268 + $0x93] sm:$0xff]
        %v3861 = vld [vmem:[%s3268 + $0x9b] sm:$0xff]
        %v3862 = vld [vmem:[%s3268 + $0xab] sm:$0xff]
        %v3863 = vld [vmem:[%s3268 + $0xb3] sm:$0xff]
        %v3864 = vld [vmem:[%s3268 + $0xc3] sm:$0xff]
        %v3865 = vld [vmem:[%s3268 + $0xcb] sm:$0xff]
        %v3866 = vld [vmem:[%s3268 + $0xdb] sm:$0xff]
        %v3867 = vld [vmem:[%s3268 + $0xe3] sm:$0xff]
        %v3868 = vld [vmem:[%s3268 + $0xf3] sm:$0xff]
        %v3869 = vld [vmem:[%s3268 + $0xfb] sm:$0xff]
        %v3870 = vld [vmem:[%s3268 + $0x10b] sm:$0xff]
        %v3871 = vld [vmem:[%s3268 + $0x113] sm:$0xff]
        %v3872 = vld [vmem:[%s3268 + $0x123] sm:$0xff]
        %v3873 = vld [vmem:[%s3268 + $0x12b] sm:$0xff]
        %v3874 = vld [vmem:[%s3268 + $0x13b] sm:$0xff]
        %v3875 = vld [vmem:[%s3268 + $0x143] sm:$0xff]
        %v3876 = vld [vmem:[%s3268 + $0x153] sm:$0xff]
        %v3877 = vld [vmem:[%s3268 + $0x15b] sm:$0xff]
        %v3878 = vld [vmem:[%s3268 + $0x16b] sm:$0xff]
        %v3879 = vld [vmem:[%s3268 + $0x173] sm:$0xff]
        %3912 = vrot.lane.b32.xlu0 %v3848, 54
        %v3913 = vpop.permute.xlu0 %3912
        %3914 = vrot.lane.b32.xlu0 %v3849, 54
        %v3915 = vpop.permute.xlu0 %3914
        %3916 = vrot.lane.b32.xlu0 %v3850, 54
        %v3917 = vpop.permute.xlu0 %3916
        %3918 = vrot.lane.b32.xlu0 %v3851, 54
        %v3919 = vpop.permute.xlu0 %3918
        %3920 = vrot.lane.b32.xlu0 %v3852, 54
        %v3921 = vpop.permute.xlu0 %3920
        %3922 = vrot.lane.b32.xlu0 %v3853, 54
        %v3923 = vpop.permute.xlu0 %3922
        %3924 = vrot.lane.b32.xlu0 %v3854, 54
        %v3925 = vpop.permute.xlu0 %3924
        %3926 = vrot.lane.b32.xlu0 %v3855, 54
        %v3927 = vpop.permute.xlu0 %3926
        %3928 = vrot.lane.b32.xlu0 %v3856, 54
        %v3929 = vpop.permute.xlu0 %3928
        %3930 = vrot.lane.b32.xlu0 %v3857, 54
        %v3931 = vpop.permute.xlu0 %3930
        %3932 = vrot.lane.b32.xlu0 %v3858, 54
        %v3933 = vpop.permute.xlu0 %3932
        %3934 = vrot.lane.b32.xlu0 %v3859, 54
        %v3935 = vpop.permute.xlu0 %3934
        %3936 = vrot.lane.b32.xlu0 %v3860, 54
        %v3937 = vpop.permute.xlu0 %3936
        %3938 = vrot.lane.b32.xlu0 %v3861, 54
        %v3939 = vpop.permute.xlu0 %3938
        %3940 = vrot.lane.b32.xlu0 %v3862, 54
        %v3941 = vpop.permute.xlu0 %3940
        %3942 = vrot.lane.b32.xlu0 %v3863, 54
        %v3943 = vpop.permute.xlu0 %3942
        %3944 = vrot.lane.b32.xlu0 %v3864, 54
        %v3945 = vpop.permute.xlu0 %3944
        %3946 = vrot.lane.b32.xlu0 %v3865, 54
        %v3947 = vpop.permute.xlu0 %3946
        %3948 = vrot.lane.b32.xlu0 %v3866, 54
        %v3949 = vpop.permute.xlu0 %3948
        %3950 = vrot.lane.b32.xlu0 %v3867, 54
        %v3951 = vpop.permute.xlu0 %3950
        %3952 = vrot.lane.b32.xlu0 %v3868, 54
        %v3953 = vpop.permute.xlu0 %3952
        %3954 = vrot.lane.b32.xlu0 %v3869, 54
        %v3955 = vpop.permute.xlu0 %3954
        %3956 = vrot.lane.b32.xlu0 %v3870, 54
        %v3957 = vpop.permute.xlu0 %3956
        %3958 = vrot.lane.b32.xlu0 %v3871, 54
        %v3959 = vpop.permute.xlu0 %3958
        %3960 = vrot.lane.b32.xlu0 %v3872, 54
        %v3961 = vpop.permute.xlu0 %3960
        %3962 = vrot.lane.b32.xlu0 %v3873, 54
        %v3963 = vpop.permute.xlu0 %3962
        %3964 = vrot.lane.b32.xlu0 %v3874, 54
        %v3965 = vpop.permute.xlu0 %3964
        %3966 = vrot.lane.b32.xlu0 %v3875, 54
        %v3967 = vpop.permute.xlu0 %3966
        %3968 = vrot.lane.b32.xlu0 %v3876, 54
        %v3969 = vpop.permute.xlu0 %3968
        %3970 = vrot.lane.b32.xlu0 %v3877, 54
        %v3971 = vpop.permute.xlu0 %3970
        %3972 = vrot.lane.b32.xlu0 %v3878, 54
        %v3973 = vpop.permute.xlu0 %3972
        %3974 = vrot.lane.b32.xlu0 %v3879, 54
        %v3975 = vpop.permute.xlu0 %3974
        %vm4008 = vcmask 466352
        %4009 = vst.msk [vmem:[#allocation5] sm:$0xff] %vm4008, %v3913
        %4010 = vst.msk [vmem:[#allocation5 + $0x8] sm:$0xff] %vm4008, %v3915
        %4011 = vst.msk [vmem:[#allocation5 + $0x10] sm:$0xff] %vm4008, %v3917
        %4012 = vst.msk [vmem:[#allocation5 + $0x18] sm:$0xff] %vm4008, %v3919
        %4013 = vst.msk [vmem:[#allocation5 + $0x20] sm:$0xff] %vm4008, %v3921
        %4014 = vst.msk [vmem:[#allocation5 + $0x28] sm:$0xff] %vm4008, %v3923
        %4015 = vst.msk [vmem:[#allocation5 + $0x30] sm:$0xff] %vm4008, %v3925
        %4016 = vst.msk [vmem:[#allocation5 + $0x38] sm:$0xff] %vm4008, %v3927
        %4017 = vst.msk [vmem:[#allocation5 + $0x40] sm:$0xff] %vm4008, %v3929
        %4018 = vst.msk [vmem:[#allocation5 + $0x48] sm:$0xff] %vm4008, %v3931
        %4019 = vst.msk [vmem:[#allocation5 + $0x50] sm:$0xff] %vm4008, %v3933
        %4020 = vst.msk [vmem:[#allocation5 + $0x58] sm:$0xff] %vm4008, %v3935
        %4021 = vst.msk [vmem:[#allocation5 + $0x60] sm:$0xff] %vm4008, %v3937
        %4022 = vst.msk [vmem:[#allocation5 + $0x68] sm:$0xff] %vm4008, %v3939
        %4023 = vst.msk [vmem:[#allocation5 + $0x70] sm:$0xff] %vm4008, %v3941
        %4024 = vst.msk [vmem:[#allocation5 + $0x78] sm:$0xff] %vm4008, %v3943
        %4025 = vst.msk [vmem:[#allocation5 + $0x80] sm:$0xff] %vm4008, %v3945
        %4026 = vst.msk [vmem:[#allocation5 + $0x88] sm:$0xff] %vm4008, %v3947
        %4027 = vst.msk [vmem:[#allocation5 + $0x90] sm:$0xff] %vm4008, %v3949
        %4028 = vst.msk [vmem:[#allocation5 + $0x98] sm:$0xff] %vm4008, %v3951
        %4029 = vst.msk [vmem:[#allocation5 + $0xa0] sm:$0xff] %vm4008, %v3953
        %4030 = vst.msk [vmem:[#allocation5 + $0xa8] sm:$0xff] %vm4008, %v3955
        %4031 = vst.msk [vmem:[#allocation5 + $0xb0] sm:$0xff] %vm4008, %v3957
        %4032 = vst.msk [vmem:[#allocation5 + $0xb8] sm:$0xff] %vm4008, %v3959
        %4033 = vst.msk [vmem:[#allocation5 + $0xc0] sm:$0xff] %vm4008, %v3961
        %4034 = vst.msk [vmem:[#allocation5 + $0xc8] sm:$0xff] %vm4008, %v3963
        %4035 = vst.msk [vmem:[#allocation5 + $0xd0] sm:$0xff] %vm4008, %v3965
        %4036 = vst.msk [vmem:[#allocation5 + $0xd8] sm:$0xff] %vm4008, %v3967
        %4037 = vst.msk [vmem:[#allocation5 + $0xe0] sm:$0xff] %vm4008, %v3969
        %4038 = vst.msk [vmem:[#allocation5 + $0xe8] sm:$0xff] %vm4008, %v3971
        %4039 = vst.msk [vmem:[#allocation5 + $0xf0] sm:$0xff] %vm4008, %v3973
        %4040 = vst.msk [vmem:[#allocation5 + $0xf8] sm:$0xff] %vm4008, %v3975
        %v4041 = vld [vmem:[%s3268 + $0x4] sm:$0xff]
        %v4042 = vld [vmem:[%s3268 + $0xc] sm:$0xff]
        %v4043 = vld [vmem:[%s3268 + $0x1c] sm:$0xff]
        %v4044 = vld [vmem:[%s3268 + $0x24] sm:$0xff]
        %v4045 = vld [vmem:[%s3268 + $0x34] sm:$0xff]
        %v4046 = vld [vmem:[%s3268 + $0x3c] sm:$0xff]
        %v4047 = vld [vmem:[%s3268 + $0x4c] sm:$0xff]
        %v4048 = vld [vmem:[%s3268 + $0x54] sm:$0xff]
        %v4049 = vld [vmem:[%s3268 + $0x64] sm:$0xff]
        %v4050 = vld [vmem:[%s3268 + $0x6c] sm:$0xff]
        %v4051 = vld [vmem:[%s3268 + $0x7c] sm:$0xff]
        %v4052 = vld [vmem:[%s3268 + $0x84] sm:$0xff]
        %v4053 = vld [vmem:[%s3268 + $0x94] sm:$0xff]
        %v4054 = vld [vmem:[%s3268 + $0x9c] sm:$0xff]
        %v4055 = vld [vmem:[%s3268 + $0xac] sm:$0xff]
        %v4056 = vld [vmem:[%s3268 + $0xb4] sm:$0xff]
        %v4057 = vld [vmem:[%s3268 + $0xc4] sm:$0xff]
        %v4058 = vld [vmem:[%s3268 + $0xcc] sm:$0xff]
        %v4059 = vld [vmem:[%s3268 + $0xdc] sm:$0xff]
        %v4060 = vld [vmem:[%s3268 + $0xe4] sm:$0xff]
        %v4061 = vld [vmem:[%s3268 + $0xf4] sm:$0xff]
        %v4062 = vld [vmem:[%s3268 + $0xfc] sm:$0xff]
        %v4063 = vld [vmem:[%s3268 + $0x10c] sm:$0xff]
        %v4064 = vld [vmem:[%s3268 + $0x114] sm:$0xff]
        %v4065 = vld [vmem:[%s3268 + $0x124] sm:$0xff]
        %v4066 = vld [vmem:[%s3268 + $0x12c] sm:$0xff]
        %v4067 = vld [vmem:[%s3268 + $0x13c] sm:$0xff]
        %v4068 = vld [vmem:[%s3268 + $0x144] sm:$0xff]
        %v4069 = vld [vmem:[%s3268 + $0x154] sm:$0xff]
        %v4070 = vld [vmem:[%s3268 + $0x15c] sm:$0xff]
        %v4071 = vld [vmem:[%s3268 + $0x16c] sm:$0xff]
        %v4072 = vld [vmem:[%s3268 + $0x174] sm:$0xff]
        %4105 = vrot.lane.b32.xlu0 %v4041, 57
        %v4106 = vpop.permute.xlu0 %4105
        %4107 = vrot.lane.b32.xlu0 %v4042, 57
        %v4108 = vpop.permute.xlu0 %4107
        %4109 = vrot.lane.b32.xlu0 %v4043, 57
        %v4110 = vpop.permute.xlu0 %4109
        %4111 = vrot.lane.b32.xlu0 %v4044, 57
        %v4112 = vpop.permute.xlu0 %4111
        %4113 = vrot.lane.b32.xlu0 %v4045, 57
        %v4114 = vpop.permute.xlu0 %4113
        %4115 = vrot.lane.b32.xlu0 %v4046, 57
        %v4116 = vpop.permute.xlu0 %4115
        %4117 = vrot.lane.b32.xlu0 %v4047, 57
        %v4118 = vpop.permute.xlu0 %4117
        %4119 = vrot.lane.b32.xlu0 %v4048, 57
        %v4120 = vpop.permute.xlu0 %4119
        %4121 = vrot.lane.b32.xlu0 %v4049, 57
        %v4122 = vpop.permute.xlu0 %4121
        %4123 = vrot.lane.b32.xlu0 %v4050, 57
        %v4124 = vpop.permute.xlu0 %4123
        %4125 = vrot.lane.b32.xlu0 %v4051, 57
        %v4126 = vpop.permute.xlu0 %4125
        %4127 = vrot.lane.b32.xlu0 %v4052, 57
        %v4128 = vpop.permute.xlu0 %4127
        %4129 = vrot.lane.b32.xlu0 %v4053, 57
        %v4130 = vpop.permute.xlu0 %4129
        %4131 = vrot.lane.b32.xlu0 %v4054, 57
        %v4132 = vpop.permute.xlu0 %4131
        %4133 = vrot.lane.b32.xlu0 %v4055, 57
        %v4134 = vpop.permute.xlu0 %4133
        %4135 = vrot.lane.b32.xlu0 %v4056, 57
        %v4136 = vpop.permute.xlu0 %4135
        %4137 = vrot.lane.b32.xlu0 %v4057, 57
        %v4138 = vpop.permute.xlu0 %4137
        %4139 = vrot.lane.b32.xlu0 %v4058, 57
        %v4140 = vpop.permute.xlu0 %4139
        %4141 = vrot.lane.b32.xlu0 %v4059, 57
        %v4142 = vpop.permute.xlu0 %4141
        %4143 = vrot.lane.b32.xlu0 %v4060, 57
        %v4144 = vpop.permute.xlu0 %4143
        %4145 = vrot.lane.b32.xlu0 %v4061, 57
        %v4146 = vpop.permute.xlu0 %4145
        %4147 = vrot.lane.b32.xlu0 %v4062, 57
        %v4148 = vpop.permute.xlu0 %4147
        %4149 = vrot.lane.b32.xlu0 %v4063, 57
        %v4150 = vpop.permute.xlu0 %4149
        %4151 = vrot.lane.b32.xlu0 %v4064, 57
        %v4152 = vpop.permute.xlu0 %4151
        %4153 = vrot.lane.b32.xlu0 %v4065, 57
        %v4154 = vpop.permute.xlu0 %4153
        %4155 = vrot.lane.b32.xlu0 %v4066, 57
        %v4156 = vpop.permute.xlu0 %4155
        %4157 = vrot.lane.b32.xlu0 %v4067, 57
        %v4158 = vpop.permute.xlu0 %4157
        %4159 = vrot.lane.b32.xlu0 %v4068, 57
        %v4160 = vpop.permute.xlu0 %4159
        %4161 = vrot.lane.b32.xlu0 %v4069, 57
        %v4162 = vpop.permute.xlu0 %4161
        %4163 = vrot.lane.b32.xlu0 %v4070, 57
        %v4164 = vpop.permute.xlu0 %4163
        %4165 = vrot.lane.b32.xlu0 %v4071, 57
        %v4166 = vpop.permute.xlu0 %4165
        %4167 = vrot.lane.b32.xlu0 %v4072, 57
        %v4168 = vpop.permute.xlu0 %4167
        %vm4201 = vcmask 490952
        %4202 = vst.msk [vmem:[#allocation5] sm:$0xff] %vm4201, %v4106
        %4203 = vst.msk [vmem:[#allocation5 + $0x8] sm:$0xff] %vm4201, %v4108
        %4204 = vst.msk [vmem:[#allocation5 + $0x10] sm:$0xff] %vm4201, %v4110
        %4205 = vst.msk [vmem:[#allocation5 + $0x18] sm:$0xff] %vm4201, %v4112
        %4206 = vst.msk [vmem:[#allocation5 + $0x20] sm:$0xff] %vm4201, %v4114
        %4207 = vst.msk [vmem:[#allocation5 + $0x28] sm:$0xff] %vm4201, %v4116
        %4208 = vst.msk [vmem:[#allocation5 + $0x30] sm:$0xff] %vm4201, %v4118
        %4209 = vst.msk [vmem:[#allocation5 + $0x38] sm:$0xff] %vm4201, %v4120
        %4210 = vst.msk [vmem:[#allocation5 + $0x40] sm:$0xff] %vm4201, %v4122
        %4211 = vst.msk [vmem:[#allocation5 + $0x48] sm:$0xff] %vm4201, %v4124
        %4212 = vst.msk [vmem:[#allocation5 + $0x50] sm:$0xff] %vm4201, %v4126
        %4213 = vst.msk [vmem:[#allocation5 + $0x58] sm:$0xff] %vm4201, %v4128
        %4214 = vst.msk [vmem:[#allocation5 + $0x60] sm:$0xff] %vm4201, %v4130
        %4215 = vst.msk [vmem:[#allocation5 + $0x68] sm:$0xff] %vm4201, %v4132
        %4216 = vst.msk [vmem:[#allocation5 + $0x70] sm:$0xff] %vm4201, %v4134
        %4217 = vst.msk [vmem:[#allocation5 + $0x78] sm:$0xff] %vm4201, %v4136
        %4218 = vst.msk [vmem:[#allocation5 + $0x80] sm:$0xff] %vm4201, %v4138
        %4219 = vst.msk [vmem:[#allocation5 + $0x88] sm:$0xff] %vm4201, %v4140
        %4220 = vst.msk [vmem:[#allocation5 + $0x90] sm:$0xff] %vm4201, %v4142
        %4221 = vst.msk [vmem:[#allocation5 + $0x98] sm:$0xff] %vm4201, %v4144
        %4222 = vst.msk [vmem:[#allocation5 + $0xa0] sm:$0xff] %vm4201, %v4146
        %4223 = vst.msk [vmem:[#allocation5 + $0xa8] sm:$0xff] %vm4201, %v4148
        %4224 = vst.msk [vmem:[#allocation5 + $0xb0] sm:$0xff] %vm4201, %v4150
        %4225 = vst.msk [vmem:[#allocation5 + $0xb8] sm:$0xff] %vm4201, %v4152
        %4226 = vst.msk [vmem:[#allocation5 + $0xc0] sm:$0xff] %vm4201, %v4154
        %4227 = vst.msk [vmem:[#allocation5 + $0xc8] sm:$0xff] %vm4201, %v4156
        %4228 = vst.msk [vmem:[#allocation5 + $0xd0] sm:$0xff] %vm4201, %v4158
        %4229 = vst.msk [vmem:[#allocation5 + $0xd8] sm:$0xff] %vm4201, %v4160
        %4230 = vst.msk [vmem:[#allocation5 + $0xe0] sm:$0xff] %vm4201, %v4162
        %4231 = vst.msk [vmem:[#allocation5 + $0xe8] sm:$0xff] %vm4201, %v4164
        %4232 = vst.msk [vmem:[#allocation5 + $0xf0] sm:$0xff] %vm4201, %v4166
        %4233 = vst.msk [vmem:[#allocation5 + $0xf8] sm:$0xff] %vm4201, %v4168
        %s4234 = scalar_lea.vmem [#allocation2], 96
        %v4235 = vld [vmem:[%s4234] sm:$0xff]
        %v4236 = vld [vmem:[%s4234 + $0x8] sm:$0xff]
        %v4237 = vld [vmem:[%s4234 + $0x18] sm:$0xff]
        %v4238 = vld [vmem:[%s4234 + $0x20] sm:$0xff]
        %v4239 = vld [vmem:[%s4234 + $0x30] sm:$0xff]
        %v4240 = vld [vmem:[%s4234 + $0x38] sm:$0xff]
        %v4241 = vld [vmem:[%s4234 + $0x48] sm:$0xff]
        %v4242 = vld [vmem:[%s4234 + $0x50] sm:$0xff]
        %v4243 = vld [vmem:[%s4234 + $0x60] sm:$0xff]
        %v4244 = vld [vmem:[%s4234 + $0x68] sm:$0xff]
        %v4245 = vld [vmem:[%s4234 + $0x78] sm:$0xff]
        %v4246 = vld [vmem:[%s4234 + $0x80] sm:$0xff]
        %v4247 = vld [vmem:[%s4234 + $0x90] sm:$0xff]
        %v4248 = vld [vmem:[%s4234 + $0x98] sm:$0xff]
        %v4249 = vld [vmem:[%s4234 + $0xa8] sm:$0xff]
        %v4250 = vld [vmem:[%s4234 + $0xb0] sm:$0xff]
        %v4251 = vld [vmem:[%s4234 + $0xc0] sm:$0xff]
        %v4252 = vld [vmem:[%s4234 + $0xc8] sm:$0xff]
        %v4253 = vld [vmem:[%s4234 + $0xd8] sm:$0xff]
        %v4254 = vld [vmem:[%s4234 + $0xe0] sm:$0xff]
        %v4255 = vld [vmem:[%s4234 + $0xf0] sm:$0xff]
        %v4256 = vld [vmem:[%s4234 + $0xf8] sm:$0xff]
        %v4257 = vld [vmem:[%s4234 + $0x108] sm:$0xff]
        %v4258 = vld [vmem:[%s4234 + $0x110] sm:$0xff]
        %v4259 = vld [vmem:[%s4234 + $0x120] sm:$0xff]
        %v4260 = vld [vmem:[%s4234 + $0x128] sm:$0xff]
        %v4261 = vld [vmem:[%s4234 + $0x138] sm:$0xff]
        %v4262 = vld [vmem:[%s4234 + $0x140] sm:$0xff]
        %v4263 = vld [vmem:[%s4234 + $0x150] sm:$0xff]
        %v4264 = vld [vmem:[%s4234 + $0x158] sm:$0xff]
        %v4265 = vld [vmem:[%s4234 + $0x168] sm:$0xff]
        %v4266 = vld [vmem:[%s4234 + $0x170] sm:$0xff]
        %4299 = vrot.lane.b32.xlu0 %v4235, 60
        %v4300 = vpop.permute.xlu0 %4299
        %4301 = vrot.lane.b32.xlu0 %v4236, 60
        %v4302 = vpop.permute.xlu0 %4301
        %4303 = vrot.lane.b32.xlu0 %v4237, 60
        %v4304 = vpop.permute.xlu0 %4303
        %4305 = vrot.lane.b32.xlu0 %v4238, 60
        %v4306 = vpop.permute.xlu0 %4305
        %4307 = vrot.lane.b32.xlu0 %v4239, 60
        %v4308 = vpop.permute.xlu0 %4307
        %4309 = vrot.lane.b32.xlu0 %v4240, 60
        %v4310 = vpop.permute.xlu0 %4309
        %4311 = vrot.lane.b32.xlu0 %v4241, 60
        %v4312 = vpop.permute.xlu0 %4311
        %4313 = vrot.lane.b32.xlu0 %v4242, 60
        %v4314 = vpop.permute.xlu0 %4313
        %4315 = vrot.lane.b32.xlu0 %v4243, 60
        %v4316 = vpop.permute.xlu0 %4315
        %4317 = vrot.lane.b32.xlu0 %v4244, 60
        %v4318 = vpop.permute.xlu0 %4317
        %4319 = vrot.lane.b32.xlu0 %v4245, 60
        %v4320 = vpop.permute.xlu0 %4319
        %4321 = vrot.lane.b32.xlu0 %v4246, 60
        %v4322 = vpop.permute.xlu0 %4321
        %4323 = vrot.lane.b32.xlu0 %v4247, 60
        %v4324 = vpop.permute.xlu0 %4323
        %4325 = vrot.lane.b32.xlu0 %v4248, 60
        %v4326 = vpop.permute.xlu0 %4325
        %4327 = vrot.lane.b32.xlu0 %v4249, 60
        %v4328 = vpop.permute.xlu0 %4327
        %4329 = vrot.lane.b32.xlu0 %v4250, 60
        %v4330 = vpop.permute.xlu0 %4329
        %4331 = vrot.lane.b32.xlu0 %v4251, 60
        %v4332 = vpop.permute.xlu0 %4331
        %4333 = vrot.lane.b32.xlu0 %v4252, 60
        %v4334 = vpop.permute.xlu0 %4333
        %4335 = vrot.lane.b32.xlu0 %v4253, 60
        %v4336 = vpop.permute.xlu0 %4335
        %4337 = vrot.lane.b32.xlu0 %v4254, 60
        %v4338 = vpop.permute.xlu0 %4337
        %4339 = vrot.lane.b32.xlu0 %v4255, 60
        %v4340 = vpop.permute.xlu0 %4339
        %4341 = vrot.lane.b32.xlu0 %v4256, 60
        %v4342 = vpop.permute.xlu0 %4341
        %4343 = vrot.lane.b32.xlu0 %v4257, 60
        %v4344 = vpop.permute.xlu0 %4343
        %4345 = vrot.lane.b32.xlu0 %v4258, 60
        %v4346 = vpop.permute.xlu0 %4345
        %4347 = vrot.lane.b32.xlu0 %v4259, 60
        %v4348 = vpop.permute.xlu0 %4347
        %4349 = vrot.lane.b32.xlu0 %v4260, 60
        %v4350 = vpop.permute.xlu0 %4349
        %4351 = vrot.lane.b32.xlu0 %v4261, 60
        %v4352 = vpop.permute.xlu0 %4351
        %4353 = vrot.lane.b32.xlu0 %v4262, 60
        %v4354 = vpop.permute.xlu0 %4353
        %4355 = vrot.lane.b32.xlu0 %v4263, 60
        %v4356 = vpop.permute.xlu0 %4355
        %4357 = vrot.lane.b32.xlu0 %v4264, 60
        %v4358 = vpop.permute.xlu0 %4357
        %4359 = vrot.lane.b32.xlu0 %v4265, 60
        %v4360 = vpop.permute.xlu0 %4359
        %4361 = vrot.lane.b32.xlu0 %v4266, 60
        %v4362 = vpop.permute.xlu0 %4361
        %vm4395 = vcmask 515552
        %4396 = vst.msk [vmem:[#allocation5] sm:$0xff] %vm4395, %v4300
        %4397 = vst.msk [vmem:[#allocation5 + $0x8] sm:$0xff] %vm4395, %v4302
        %4398 = vst.msk [vmem:[#allocation5 + $0x10] sm:$0xff] %vm4395, %v4304
        %4399 = vst.msk [vmem:[#allocation5 + $0x18] sm:$0xff] %vm4395, %v4306
        %4400 = vst.msk [vmem:[#allocation5 + $0x20] sm:$0xff] %vm4395, %v4308
        %4401 = vst.msk [vmem:[#allocation5 + $0x28] sm:$0xff] %vm4395, %v4310
        %4402 = vst.msk [vmem:[#allocation5 + $0x30] sm:$0xff] %vm4395, %v4312
        %4403 = vst.msk [vmem:[#allocation5 + $0x38] sm:$0xff] %vm4395, %v4314
        %4404 = vst.msk [vmem:[#allocation5 + $0x40] sm:$0xff] %vm4395, %v4316
        %4405 = vst.msk [vmem:[#allocation5 + $0x48] sm:$0xff] %vm4395, %v4318
        %4406 = vst.msk [vmem:[#allocation5 + $0x50] sm:$0xff] %vm4395, %v4320
        %4407 = vst.msk [vmem:[#allocation5 + $0x58] sm:$0xff] %vm4395, %v4322
        %4408 = vst.msk [vmem:[#allocation5 + $0x60] sm:$0xff] %vm4395, %v4324
        %4409 = vst.msk [vmem:[#allocation5 + $0x68] sm:$0xff] %vm4395, %v4326
        %4410 = vst.msk [vmem:[#allocation5 + $0x70] sm:$0xff] %vm4395, %v4328
        %4411 = vst.msk [vmem:[#allocation5 + $0x78] sm:$0xff] %vm4395, %v4330
        %4412 = vst.msk [vmem:[#allocation5 + $0x80] sm:$0xff] %vm4395, %v4332
        %4413 = vst.msk [vmem:[#allocation5 + $0x88] sm:$0xff] %vm4395, %v4334
        %4414 = vst.msk [vmem:[#allocation5 + $0x90] sm:$0xff] %vm4395, %v4336
        %4415 = vst.msk [vmem:[#allocation5 + $0x98] sm:$0xff] %vm4395, %v4338
        %4416 = vst.msk [vmem:[#allocation5 + $0xa0] sm:$0xff] %vm4395, %v4340
        %4417 = vst.msk [vmem:[#allocation5 + $0xa8] sm:$0xff] %vm4395, %v4342
        %4418 = vst.msk [vmem:[#allocation5 + $0xb0] sm:$0xff] %vm4395, %v4344
        %4419 = vst.msk [vmem:[#allocation5 + $0xb8] sm:$0xff] %vm4395, %v4346
        %4420 = vst.msk [vmem:[#allocation5 + $0xc0] sm:$0xff] %vm4395, %v4348
        %4421 = vst.msk [vmem:[#allocation5 + $0xc8] sm:$0xff] %vm4395, %v4350
        %4422 = vst.msk [vmem:[#allocation5 + $0xd0] sm:$0xff] %vm4395, %v4352
        %4423 = vst.msk [vmem:[#allocation5 + $0xd8] sm:$0xff] %vm4395, %v4354
        %4424 = vst.msk [vmem:[#allocation5 + $0xe0] sm:$0xff] %vm4395, %v4356
        %4425 = vst.msk [vmem:[#allocation5 + $0xe8] sm:$0xff] %vm4395, %v4358
        %4426 = vst.msk [vmem:[#allocation5 + $0xf0] sm:$0xff] %vm4395, %v4360
        %4427 = vst.msk [vmem:[#allocation5 + $0xf8] sm:$0xff] %vm4395, %v4362
        %v4428 = vld [vmem:[%s4234 + $0x1] sm:$0xff]
        %v4429 = vld [vmem:[%s4234 + $0x9] sm:$0xff]
        %v4430 = vld [vmem:[%s4234 + $0x19] sm:$0xff]
        %v4431 = vld [vmem:[%s4234 + $0x21] sm:$0xff]
        %v4432 = vld [vmem:[%s4234 + $0x31] sm:$0xff]
        %v4433 = vld [vmem:[%s4234 + $0x39] sm:$0xff]
        %v4434 = vld [vmem:[%s4234 + $0x49] sm:$0xff]
        %v4435 = vld [vmem:[%s4234 + $0x51] sm:$0xff]
        %v4436 = vld [vmem:[%s4234 + $0x61] sm:$0xff]
        %v4437 = vld [vmem:[%s4234 + $0x69] sm:$0xff]
        %v4438 = vld [vmem:[%s4234 + $0x79] sm:$0xff]
        %v4439 = vld [vmem:[%s4234 + $0x81] sm:$0xff]
        %v4440 = vld [vmem:[%s4234 + $0x91] sm:$0xff]
        %v4441 = vld [vmem:[%s4234 + $0x99] sm:$0xff]
        %v4442 = vld [vmem:[%s4234 + $0xa9] sm:$0xff]
        %v4443 = vld [vmem:[%s4234 + $0xb1] sm:$0xff]
        %v4444 = vld [vmem:[%s4234 + $0xc1] sm:$0xff]
        %v4445 = vld [vmem:[%s4234 + $0xc9] sm:$0xff]
        %v4446 = vld [vmem:[%s4234 + $0xd9] sm:$0xff]
        %v4447 = vld [vmem:[%s4234 + $0xe1] sm:$0xff]
        %v4448 = vld [vmem:[%s4234 + $0xf1] sm:$0xff]
        %v4449 = vld [vmem:[%s4234 + $0xf9] sm:$0xff]
        %v4450 = vld [vmem:[%s4234 + $0x109] sm:$0xff]
        %v4451 = vld [vmem:[%s4234 + $0x111] sm:$0xff]
        %v4452 = vld [vmem:[%s4234 + $0x121] sm:$0xff]
        %v4453 = vld [vmem:[%s4234 + $0x129] sm:$0xff]
        %v4454 = vld [vmem:[%s4234 + $0x139] sm:$0xff]
        %v4455 = vld [vmem:[%s4234 + $0x141] sm:$0xff]
        %v4456 = vld [vmem:[%s4234 + $0x151] sm:$0xff]
        %v4457 = vld [vmem:[%s4234 + $0x159] sm:$0xff]
        %v4458 = vld [vmem:[%s4234 + $0x169] sm:$0xff]
        %v4459 = vld [vmem:[%s4234 + $0x171] sm:$0xff]
        %4492 = vrot.lane.b32.xlu0 %v4428, 63
        %v4493 = vpop.permute.xlu0 %4492
        %4494 = vrot.lane.b32.xlu0 %v4429, 63
        %v4495 = vpop.permute.xlu0 %4494
        %4496 = vrot.lane.b32.xlu0 %v4430, 63
        %v4497 = vpop.permute.xlu0 %4496
        %4498 = vrot.lane.b32.xlu0 %v4431, 63
        %v4499 = vpop.permute.xlu0 %4498
        %4500 = vrot.lane.b32.xlu0 %v4432, 63
        %v4501 = vpop.permute.xlu0 %4500
        %4502 = vrot.lane.b32.xlu0 %v4433, 63
        %v4503 = vpop.permute.xlu0 %4502
        %4504 = vrot.lane.b32.xlu0 %v4434, 63
        %v4505 = vpop.permute.xlu0 %4504
        %4506 = vrot.lane.b32.xlu0 %v4435, 63
        %v4507 = vpop.permute.xlu0 %4506
        %4508 = vrot.lane.b32.xlu0 %v4436, 63
        %v4509 = vpop.permute.xlu0 %4508
        %4510 = vrot.lane.b32.xlu0 %v4437, 63
        %v4511 = vpop.permute.xlu0 %4510
        %4512 = vrot.lane.b32.xlu0 %v4438, 63
        %v4513 = vpop.permute.xlu0 %4512
        %4514 = vrot.lane.b32.xlu0 %v4439, 63
        %v4515 = vpop.permute.xlu0 %4514
        %4516 = vrot.lane.b32.xlu0 %v4440, 63
        %v4517 = vpop.permute.xlu0 %4516
        %4518 = vrot.lane.b32.xlu0 %v4441, 63
        %v4519 = vpop.permute.xlu0 %4518
        %4520 = vrot.lane.b32.xlu0 %v4442, 63
        %v4521 = vpop.permute.xlu0 %4520
        %4522 = vrot.lane.b32.xlu0 %v4443, 63
        %v4523 = vpop.permute.xlu0 %4522
        %4524 = vrot.lane.b32.xlu0 %v4444, 63
        %v4525 = vpop.permute.xlu0 %4524
        %4526 = vrot.lane.b32.xlu0 %v4445, 63
        %v4527 = vpop.permute.xlu0 %4526
        %4528 = vrot.lane.b32.xlu0 %v4446, 63
        %v4529 = vpop.permute.xlu0 %4528
        %4530 = vrot.lane.b32.xlu0 %v4447, 63
        %v4531 = vpop.permute.xlu0 %4530
        %4532 = vrot.lane.b32.xlu0 %v4448, 63
        %v4533 = vpop.permute.xlu0 %4532
        %4534 = vrot.lane.b32.xlu0 %v4449, 63
        %v4535 = vpop.permute.xlu0 %4534
        %4536 = vrot.lane.b32.xlu0 %v4450, 63
        %v4537 = vpop.permute.xlu0 %4536
        %4538 = vrot.lane.b32.xlu0 %v4451, 63
        %v4539 = vpop.permute.xlu0 %4538
        %4540 = vrot.lane.b32.xlu0 %v4452, 63
        %v4541 = vpop.permute.xlu0 %4540
        %4542 = vrot.lane.b32.xlu0 %v4453, 63
        %v4543 = vpop.permute.xlu0 %4542
        %4544 = vrot.lane.b32.xlu0 %v4454, 63
        %v4545 = vpop.permute.xlu0 %4544
        %4546 = vrot.lane.b32.xlu0 %v4455, 63
        %v4547 = vpop.permute.xlu0 %4546
        %4548 = vrot.lane.b32.xlu0 %v4456, 63
        %v4549 = vpop.permute.xlu0 %4548
        %4550 = vrot.lane.b32.xlu0 %v4457, 63
        %v4551 = vpop.permute.xlu0 %4550
        %4552 = vrot.lane.b32.xlu0 %v4458, 63
        %v4553 = vpop.permute.xlu0 %4552
        %4554 = vrot.lane.b32.xlu0 %v4459, 63
        %v4555 = vpop.permute.xlu0 %4554
        %vm4588 = vcmask 540152
        %4589 = vst.msk [vmem:[#allocation5] sm:$0xff] %vm4588, %v4493
        %4590 = vst.msk [vmem:[#allocation5 + $0x8] sm:$0xff] %vm4588, %v4495
        %4591 = vst.msk [vmem:[#allocation5 + $0x10] sm:$0xff] %vm4588, %v4497
        %4592 = vst.msk [vmem:[#allocation5 + $0x18] sm:$0xff] %vm4588, %v4499
        %4593 = vst.msk [vmem:[#allocation5 + $0x20] sm:$0xff] %vm4588, %v4501
        %4594 = vst.msk [vmem:[#allocation5 + $0x28] sm:$0xff] %vm4588, %v4503
        %4595 = vst.msk [vmem:[#allocation5 + $0x30] sm:$0xff] %vm4588, %v4505
        %4596 = vst.msk [vmem:[#allocation5 + $0x38] sm:$0xff] %vm4588, %v4507
        %4597 = vst.msk [vmem:[#allocation5 + $0x40] sm:$0xff] %vm4588, %v4509
        %4598 = vst.msk [vmem:[#allocation5 + $0x48] sm:$0xff] %vm4588, %v4511
        %4599 = vst.msk [vmem:[#allocation5 + $0x50] sm:$0xff] %vm4588, %v4513
        %4600 = vst.msk [vmem:[#allocation5 + $0x58] sm:$0xff] %vm4588, %v4515
        %4601 = vst.msk [vmem:[#allocation5 + $0x60] sm:$0xff] %vm4588, %v4517
        %4602 = vst.msk [vmem:[#allocation5 + $0x68] sm:$0xff] %vm4588, %v4519
        %4603 = vst.msk [vmem:[#allocation5 + $0x70] sm:$0xff] %vm4588, %v4521
        %4604 = vst.msk [vmem:[#allocation5 + $0x78] sm:$0xff] %vm4588, %v4523
        %4605 = vst.msk [vmem:[#allocation5 + $0x80] sm:$0xff] %vm4588, %v4525
        %4606 = vst.msk [vmem:[#allocation5 + $0x88] sm:$0xff] %vm4588, %v4527
        %4607 = vst.msk [vmem:[#allocation5 + $0x90] sm:$0xff] %vm4588, %v4529
        %4608 = vst.msk [vmem:[#allocation5 + $0x98] sm:$0xff] %vm4588, %v4531
        %4609 = vst.msk [vmem:[#allocation5 + $0xa0] sm:$0xff] %vm4588, %v4533
        %4610 = vst.msk [vmem:[#allocation5 + $0xa8] sm:$0xff] %vm4588, %v4535
        %4611 = vst.msk [vmem:[#allocation5 + $0xb0] sm:$0xff] %vm4588, %v4537
        %4612 = vst.msk [vmem:[#allocation5 + $0xb8] sm:$0xff] %vm4588, %v4539
        %4613 = vst.msk [vmem:[#allocation5 + $0xc0] sm:$0xff] %vm4588, %v4541
        %4614 = vst.msk [vmem:[#allocation5 + $0xc8] sm:$0xff] %vm4588, %v4543
        %4615 = vst.msk [vmem:[#allocation5 + $0xd0] sm:$0xff] %vm4588, %v4545
        %4616 = vst.msk [vmem:[#allocation5 + $0xd8] sm:$0xff] %vm4588, %v4547
        %4617 = vst.msk [vmem:[#allocation5 + $0xe0] sm:$0xff] %vm4588, %v4549
        %4618 = vst.msk [vmem:[#allocation5 + $0xe8] sm:$0xff] %vm4588, %v4551
        %4619 = vst.msk [vmem:[#allocation5 + $0xf0] sm:$0xff] %vm4588, %v4553
        %4620 = vst.msk [vmem:[#allocation5 + $0xf8] sm:$0xff] %vm4588, %v4555
        %v4621 = vld [vmem:[%s4234 + $0x2] sm:$0xff]
        %v4622 = vld [vmem:[%s4234 + $0xa] sm:$0xff]
        %v4623 = vld [vmem:[%s4234 + $0x1a] sm:$0xff]
        %v4624 = vld [vmem:[%s4234 + $0x22] sm:$0xff]
        %v4625 = vld [vmem:[%s4234 + $0x32] sm:$0xff]
        %v4626 = vld [vmem:[%s4234 + $0x3a] sm:$0xff]
        %v4627 = vld [vmem:[%s4234 + $0x4a] sm:$0xff]
        %v4628 = vld [vmem:[%s4234 + $0x52] sm:$0xff]
        %v4629 = vld [vmem:[%s4234 + $0x62] sm:$0xff]
        %v4630 = vld [vmem:[%s4234 + $0x6a] sm:$0xff]
        %v4631 = vld [vmem:[%s4234 + $0x7a] sm:$0xff]
        %v4632 = vld [vmem:[%s4234 + $0x82] sm:$0xff]
        %v4633 = vld [vmem:[%s4234 + $0x92] sm:$0xff]
        %v4634 = vld [vmem:[%s4234 + $0x9a] sm:$0xff]
        %v4635 = vld [vmem:[%s4234 + $0xaa] sm:$0xff]
        %v4636 = vld [vmem:[%s4234 + $0xb2] sm:$0xff]
        %v4637 = vld [vmem:[%s4234 + $0xc2] sm:$0xff]
        %v4638 = vld [vmem:[%s4234 + $0xca] sm:$0xff]
        %v4639 = vld [vmem:[%s4234 + $0xda] sm:$0xff]
        %v4640 = vld [vmem:[%s4234 + $0xe2] sm:$0xff]
        %v4641 = vld [vmem:[%s4234 + $0xf2] sm:$0xff]
        %v4642 = vld [vmem:[%s4234 + $0xfa] sm:$0xff]
        %v4643 = vld [vmem:[%s4234 + $0x10a] sm:$0xff]
        %v4644 = vld [vmem:[%s4234 + $0x112] sm:$0xff]
        %v4645 = vld [vmem:[%s4234 + $0x122] sm:$0xff]
        %v4646 = vld [vmem:[%s4234 + $0x12a] sm:$0xff]
        %v4647 = vld [vmem:[%s4234 + $0x13a] sm:$0xff]
        %v4648 = vld [vmem:[%s4234 + $0x142] sm:$0xff]
        %v4649 = vld [vmem:[%s4234 + $0x152] sm:$0xff]
        %v4650 = vld [vmem:[%s4234 + $0x15a] sm:$0xff]
        %v4651 = vld [vmem:[%s4234 + $0x16a] sm:$0xff]
        %v4652 = vld [vmem:[%s4234 + $0x172] sm:$0xff]
        %4685 = vrot.lane.b32.xlu0 %v4621, 66
        %v4686 = vpop.permute.xlu0 %4685
        %4687 = vrot.lane.b32.xlu0 %v4622, 66
        %v4688 = vpop.permute.xlu0 %4687
        %4689 = vrot.lane.b32.xlu0 %v4623, 66
        %v4690 = vpop.permute.xlu0 %4689
        %4691 = vrot.lane.b32.xlu0 %v4624, 66
        %v4692 = vpop.permute.xlu0 %4691
        %4693 = vrot.lane.b32.xlu0 %v4625, 66
        %v4694 = vpop.permute.xlu0 %4693
        %4695 = vrot.lane.b32.xlu0 %v4626, 66
        %v4696 = vpop.permute.xlu0 %4695
        %4697 = vrot.lane.b32.xlu0 %v4627, 66
        %v4698 = vpop.permute.xlu0 %4697
        %4699 = vrot.lane.b32.xlu0 %v4628, 66
        %v4700 = vpop.permute.xlu0 %4699
        %4701 = vrot.lane.b32.xlu0 %v4629, 66
        %v4702 = vpop.permute.xlu0 %4701
        %4703 = vrot.lane.b32.xlu0 %v4630, 66
        %v4704 = vpop.permute.xlu0 %4703
        %4705 = vrot.lane.b32.xlu0 %v4631, 66
        %v4706 = vpop.permute.xlu0 %4705
        %4707 = vrot.lane.b32.xlu0 %v4632, 66
        %v4708 = vpop.permute.xlu0 %4707
        %4709 = vrot.lane.b32.xlu0 %v4633, 66
        %v4710 = vpop.permute.xlu0 %4709
        %4711 = vrot.lane.b32.xlu0 %v4634, 66
        %v4712 = vpop.permute.xlu0 %4711
        %4713 = vrot.lane.b32.xlu0 %v4635, 66
        %v4714 = vpop.permute.xlu0 %4713
        %4715 = vrot.lane.b32.xlu0 %v4636, 66
        %v4716 = vpop.permute.xlu0 %4715
        %4717 = vrot.lane.b32.xlu0 %v4637, 66
        %v4718 = vpop.permute.xlu0 %4717
        %4719 = vrot.lane.b32.xlu0 %v4638, 66
        %v4720 = vpop.permute.xlu0 %4719
        %4721 = vrot.lane.b32.xlu0 %v4639, 66
        %v4722 = vpop.permute.xlu0 %4721
        %4723 = vrot.lane.b32.xlu0 %v4640, 66
        %v4724 = vpop.permute.xlu0 %4723
        %4725 = vrot.lane.b32.xlu0 %v4641, 66
        %v4726 = vpop.permute.xlu0 %4725
        %4727 = vrot.lane.b32.xlu0 %v4642, 66
        %v4728 = vpop.permute.xlu0 %4727
        %4729 = vrot.lane.b32.xlu0 %v4643, 66
        %v4730 = vpop.permute.xlu0 %4729
        %4731 = vrot.lane.b32.xlu0 %v4644, 66
        %v4732 = vpop.permute.xlu0 %4731
        %4733 = vrot.lane.b32.xlu0 %v4645, 66
        %v4734 = vpop.permute.xlu0 %4733
        %4735 = vrot.lane.b32.xlu0 %v4646, 66
        %v4736 = vpop.permute.xlu0 %4735
        %4737 = vrot.lane.b32.xlu0 %v4647, 66
        %v4738 = vpop.permute.xlu0 %4737
        %4739 = vrot.lane.b32.xlu0 %v4648, 66
        %v4740 = vpop.permute.xlu0 %4739
        %4741 = vrot.lane.b32.xlu0 %v4649, 66
        %v4742 = vpop.permute.xlu0 %4741
        %4743 = vrot.lane.b32.xlu0 %v4650, 66
        %v4744 = vpop.permute.xlu0 %4743
        %4745 = vrot.lane.b32.xlu0 %v4651, 66
        %v4746 = vpop.permute.xlu0 %4745
        %4747 = vrot.lane.b32.xlu0 %v4652, 66
        %v4748 = vpop.permute.xlu0 %4747
        %vm4781 = vcmask 564752
        %4782 = vst.msk [vmem:[#allocation5] sm:$0xff] %vm4781, %v4686
        %4783 = vst.msk [vmem:[#allocation5 + $0x8] sm:$0xff] %vm4781, %v4688
        %4784 = vst.msk [vmem:[#allocation5 + $0x10] sm:$0xff] %vm4781, %v4690
        %4785 = vst.msk [vmem:[#allocation5 + $0x18] sm:$0xff] %vm4781, %v4692
        %4786 = vst.msk [vmem:[#allocation5 + $0x20] sm:$0xff] %vm4781, %v4694
        %4787 = vst.msk [vmem:[#allocation5 + $0x28] sm:$0xff] %vm4781, %v4696
        %4788 = vst.msk [vmem:[#allocation5 + $0x30] sm:$0xff] %vm4781, %v4698
        %4789 = vst.msk [vmem:[#allocation5 + $0x38] sm:$0xff] %vm4781, %v4700
        %4790 = vst.msk [vmem:[#allocation5 + $0x40] sm:$0xff] %vm4781, %v4702
        %4791 = vst.msk [vmem:[#allocation5 + $0x48] sm:$0xff] %vm4781, %v4704
        %4792 = vst.msk [vmem:[#allocation5 + $0x50] sm:$0xff] %vm4781, %v4706
        %4793 = vst.msk [vmem:[#allocation5 + $0x58] sm:$0xff] %vm4781, %v4708
        %4794 = vst.msk [vmem:[#allocation5 + $0x60] sm:$0xff] %vm4781, %v4710
        %4795 = vst.msk [vmem:[#allocation5 + $0x68] sm:$0xff] %vm4781, %v4712
        %4796 = vst.msk [vmem:[#allocation5 + $0x70] sm:$0xff] %vm4781, %v4714
        %4797 = vst.msk [vmem:[#allocation5 + $0x78] sm:$0xff] %vm4781, %v4716
        %4798 = vst.msk [vmem:[#allocation5 + $0x80] sm:$0xff] %vm4781, %v4718
        %4799 = vst.msk [vmem:[#allocation5 + $0x88] sm:$0xff] %vm4781, %v4720
        %4800 = vst.msk [vmem:[#allocation5 + $0x90] sm:$0xff] %vm4781, %v4722
        %4801 = vst.msk [vmem:[#allocation5 + $0x98] sm:$0xff] %vm4781, %v4724
        %4802 = vst.msk [vmem:[#allocation5 + $0xa0] sm:$0xff] %vm4781, %v4726
        %4803 = vst.msk [vmem:[#allocation5 + $0xa8] sm:$0xff] %vm4781, %v4728
        %4804 = vst.msk [vmem:[#allocation5 + $0xb0] sm:$0xff] %vm4781, %v4730
        %4805 = vst.msk [vmem:[#allocation5 + $0xb8] sm:$0xff] %vm4781, %v4732
        %4806 = vst.msk [vmem:[#allocation5 + $0xc0] sm:$0xff] %vm4781, %v4734
        %4807 = vst.msk [vmem:[#allocation5 + $0xc8] sm:$0xff] %vm4781, %v4736
        %4808 = vst.msk [vmem:[#allocation5 + $0xd0] sm:$0xff] %vm4781, %v4738
        %4809 = vst.msk [vmem:[#allocation5 + $0xd8] sm:$0xff] %vm4781, %v4740
        %4810 = vst.msk [vmem:[#allocation5 + $0xe0] sm:$0xff] %vm4781, %v4742
        %4811 = vst.msk [vmem:[#allocation5 + $0xe8] sm:$0xff] %vm4781, %v4744
        %4812 = vst.msk [vmem:[#allocation5 + $0xf0] sm:$0xff] %vm4781, %v4746
        %4813 = vst.msk [vmem:[#allocation5 + $0xf8] sm:$0xff] %vm4781, %v4748
        %v4814 = vld [vmem:[%s4234 + $0x3] sm:$0xff]
        %v4815 = vld [vmem:[%s4234 + $0xb] sm:$0xff]
        %v4816 = vld [vmem:[%s4234 + $0x1b] sm:$0xff]
        %v4817 = vld [vmem:[%s4234 + $0x23] sm:$0xff]
        %v4818 = vld [vmem:[%s4234 + $0x33] sm:$0xff]
        %v4819 = vld [vmem:[%s4234 + $0x3b] sm:$0xff]
        %v4820 = vld [vmem:[%s4234 + $0x4b] sm:$0xff]
        %v4821 = vld [vmem:[%s4234 + $0x53] sm:$0xff]
        %v4822 = vld [vmem:[%s4234 + $0x63] sm:$0xff]
        %v4823 = vld [vmem:[%s4234 + $0x6b] sm:$0xff]
        %v4824 = vld [vmem:[%s4234 + $0x7b] sm:$0xff]
        %v4825 = vld [vmem:[%s4234 + $0x83] sm:$0xff]
        %v4826 = vld [vmem:[%s4234 + $0x93] sm:$0xff]
        %v4827 = vld [vmem:[%s4234 + $0x9b] sm:$0xff]
        %v4828 = vld [vmem:[%s4234 + $0xab] sm:$0xff]
        %v4829 = vld [vmem:[%s4234 + $0xb3] sm:$0xff]
        %v4830 = vld [vmem:[%s4234 + $0xc3] sm:$0xff]
        %v4831 = vld [vmem:[%s4234 + $0xcb] sm:$0xff]
        %v4832 = vld [vmem:[%s4234 + $0xdb] sm:$0xff]
        %v4833 = vld [vmem:[%s4234 + $0xe3] sm:$0xff]
        %v4834 = vld [vmem:[%s4234 + $0xf3] sm:$0xff]
        %v4835 = vld [vmem:[%s4234 + $0xfb] sm:$0xff]
        %v4836 = vld [vmem:[%s4234 + $0x10b] sm:$0xff]
        %v4837 = vld [vmem:[%s4234 + $0x113] sm:$0xff]
        %v4838 = vld [vmem:[%s4234 + $0x123] sm:$0xff]
        %v4839 = vld [vmem:[%s4234 + $0x12b] sm:$0xff]
        %v4840 = vld [vmem:[%s4234 + $0x13b] sm:$0xff]
        %v4841 = vld [vmem:[%s4234 + $0x143] sm:$0xff]
        %v4842 = vld [vmem:[%s4234 + $0x153] sm:$0xff]
        %v4843 = vld [vmem:[%s4234 + $0x15b] sm:$0xff]
        %v4844 = vld [vmem:[%s4234 + $0x16b] sm:$0xff]
        %v4845 = vld [vmem:[%s4234 + $0x173] sm:$0xff]
        %4878 = vrot.lane.b32.xlu0 %v4814, 69
        %v4879 = vpop.permute.xlu0 %4878
        %4880 = vrot.lane.b32.xlu0 %v4815, 69
        %v4881 = vpop.permute.xlu0 %4880
        %4882 = vrot.lane.b32.xlu0 %v4816, 69
        %v4883 = vpop.permute.xlu0 %4882
        %4884 = vrot.lane.b32.xlu0 %v4817, 69
        %v4885 = vpop.permute.xlu0 %4884
        %4886 = vrot.lane.b32.xlu0 %v4818, 69
        %v4887 = vpop.permute.xlu0 %4886
        %4888 = vrot.lane.b32.xlu0 %v4819, 69
        %v4889 = vpop.permute.xlu0 %4888
        %4890 = vrot.lane.b32.xlu0 %v4820, 69
        %v4891 = vpop.permute.xlu0 %4890
        %4892 = vrot.lane.b32.xlu0 %v4821, 69
        %v4893 = vpop.permute.xlu0 %4892
        %4894 = vrot.lane.b32.xlu0 %v4822, 69
        %v4895 = vpop.permute.xlu0 %4894
        %4896 = vrot.lane.b32.xlu0 %v4823, 69
        %v4897 = vpop.permute.xlu0 %4896
        %4898 = vrot.lane.b32.xlu0 %v4824, 69
        %v4899 = vpop.permute.xlu0 %4898
        %4900 = vrot.lane.b32.xlu0 %v4825, 69
        %v4901 = vpop.permute.xlu0 %4900
        %4902 = vrot.lane.b32.xlu0 %v4826, 69
        %v4903 = vpop.permute.xlu0 %4902
        %4904 = vrot.lane.b32.xlu0 %v4827, 69
        %v4905 = vpop.permute.xlu0 %4904
        %4906 = vrot.lane.b32.xlu0 %v4828, 69
        %v4907 = vpop.permute.xlu0 %4906
        %4908 = vrot.lane.b32.xlu0 %v4829, 69
        %v4909 = vpop.permute.xlu0 %4908
        %4910 = vrot.lane.b32.xlu0 %v4830, 69
        %v4911 = vpop.permute.xlu0 %4910
        %4912 = vrot.lane.b32.xlu0 %v4831, 69
        %v4913 = vpop.permute.xlu0 %4912
        %4914 = vrot.lane.b32.xlu0 %v4832, 69
        %v4915 = vpop.permute.xlu0 %4914
        %4916 = vrot.lane.b32.xlu0 %v4833, 69
        %v4917 = vpop.permute.xlu0 %4916
        %4918 = vrot.lane.b32.xlu0 %v4834, 69
        %v4919 = vpop.permute.xlu0 %4918
        %4920 = vrot.lane.b32.xlu0 %v4835, 69
        %v4921 = vpop.permute.xlu0 %4920
        %4922 = vrot.lane.b32.xlu0 %v4836, 69
        %v4923 = vpop.permute.xlu0 %4922
        %4924 = vrot.lane.b32.xlu0 %v4837, 69
        %v4925 = vpop.permute.xlu0 %4924
        %4926 = vrot.lane.b32.xlu0 %v4838, 69
        %v4927 = vpop.permute.xlu0 %4926
        %4928 = vrot.lane.b32.xlu0 %v4839, 69
        %v4929 = vpop.permute.xlu0 %4928
        %4930 = vrot.lane.b32.xlu0 %v4840, 69
        %v4931 = vpop.permute.xlu0 %4930
        %4932 = vrot.lane.b32.xlu0 %v4841, 69
        %v4933 = vpop.permute.xlu0 %4932
        %4934 = vrot.lane.b32.xlu0 %v4842, 69
        %v4935 = vpop.permute.xlu0 %4934
        %4936 = vrot.lane.b32.xlu0 %v4843, 69
        %v4937 = vpop.permute.xlu0 %4936
        %4938 = vrot.lane.b32.xlu0 %v4844, 69
        %v4939 = vpop.permute.xlu0 %4938
        %4940 = vrot.lane.b32.xlu0 %v4845, 69
        %v4941 = vpop.permute.xlu0 %4940
        %vm4974 = vcmask 589352
        %4975 = vst.msk [vmem:[#allocation5] sm:$0xff] %vm4974, %v4879
        %4976 = vst.msk [vmem:[#allocation5 + $0x8] sm:$0xff] %vm4974, %v4881
        %4977 = vst.msk [vmem:[#allocation5 + $0x10] sm:$0xff] %vm4974, %v4883
        %4978 = vst.msk [vmem:[#allocation5 + $0x18] sm:$0xff] %vm4974, %v4885
        %4979 = vst.msk [vmem:[#allocation5 + $0x20] sm:$0xff] %vm4974, %v4887
        %4980 = vst.msk [vmem:[#allocation5 + $0x28] sm:$0xff] %vm4974, %v4889
        %4981 = vst.msk [vmem:[#allocation5 + $0x30] sm:$0xff] %vm4974, %v4891
        %4982 = vst.msk [vmem:[#allocation5 + $0x38] sm:$0xff] %vm4974, %v4893
        %4983 = vst.msk [vmem:[#allocation5 + $0x40] sm:$0xff] %vm4974, %v4895
        %4984 = vst.msk [vmem:[#allocation5 + $0x48] sm:$0xff] %vm4974, %v4897
        %4985 = vst.msk [vmem:[#allocation5 + $0x50] sm:$0xff] %vm4974, %v4899
        %4986 = vst.msk [vmem:[#allocation5 + $0x58] sm:$0xff] %vm4974, %v4901
        %4987 = vst.msk [vmem:[#allocation5 + $0x60] sm:$0xff] %vm4974, %v4903
        %4988 = vst.msk [vmem:[#allocation5 + $0x68] sm:$0xff] %vm4974, %v4905
        %4989 = vst.msk [vmem:[#allocation5 + $0x70] sm:$0xff] %vm4974, %v4907
        %4990 = vst.msk [vmem:[#allocation5 + $0x78] sm:$0xff] %vm4974, %v4909
        %4991 = vst.msk [vmem:[#allocation5 + $0x80] sm:$0xff] %vm4974, %v4911
        %4992 = vst.msk [vmem:[#allocation5 + $0x88] sm:$0xff] %vm4974, %v4913
        %4993 = vst.msk [vmem:[#allocation5 + $0x90] sm:$0xff] %vm4974, %v4915
        %4994 = vst.msk [vmem:[#allocation5 + $0x98] sm:$0xff] %vm4974, %v4917
        %4995 = vst.msk [vmem:[#allocation5 + $0xa0] sm:$0xff] %vm4974, %v4919
        %4996 = vst.msk [vmem:[#allocation5 + $0xa8] sm:$0xff] %vm4974, %v4921
        %4997 = vst.msk [vmem:[#allocation5 + $0xb0] sm:$0xff] %vm4974, %v4923
        %4998 = vst.msk [vmem:[#allocation5 + $0xb8] sm:$0xff] %vm4974, %v4925
        %4999 = vst.msk [vmem:[#allocation5 + $0xc0] sm:$0xff] %vm4974, %v4927
        %5000 = vst.msk [vmem:[#allocation5 + $0xc8] sm:$0xff] %vm4974, %v4929
        %5001 = vst.msk [vmem:[#allocation5 + $0xd0] sm:$0xff] %vm4974, %v4931
        %5002 = vst.msk [vmem:[#allocation5 + $0xd8] sm:$0xff] %vm4974, %v4933
        %5003 = vst.msk [vmem:[#allocation5 + $0xe0] sm:$0xff] %vm4974, %v4935
        %5004 = vst.msk [vmem:[#allocation5 + $0xe8] sm:$0xff] %vm4974, %v4937
        %5005 = vst.msk [vmem:[#allocation5 + $0xf0] sm:$0xff] %vm4974, %v4939
        %5006 = vst.msk [vmem:[#allocation5 + $0xf8] sm:$0xff] %vm4974, %v4941
        %v5007 = vld [vmem:[%s4234 + $0x4] sm:$0xff]
        %v5008 = vld [vmem:[%s4234 + $0xc] sm:$0xff]
        %v5009 = vld [vmem:[%s4234 + $0x1c] sm:$0xff]
        %v5010 = vld [vmem:[%s4234 + $0x24] sm:$0xff]
        %v5011 = vld [vmem:[%s4234 + $0x34] sm:$0xff]
        %v5012 = vld [vmem:[%s4234 + $0x3c] sm:$0xff]
        %v5013 = vld [vmem:[%s4234 + $0x4c] sm:$0xff]
        %v5014 = vld [vmem:[%s4234 + $0x54] sm:$0xff]
        %v5015 = vld [vmem:[%s4234 + $0x64] sm:$0xff]
        %v5016 = vld [vmem:[%s4234 + $0x6c] sm:$0xff]
        %v5017 = vld [vmem:[%s4234 + $0x7c] sm:$0xff]
        %v5018 = vld [vmem:[%s4234 + $0x84] sm:$0xff]
        %v5019 = vld [vmem:[%s4234 + $0x94] sm:$0xff]
        %v5020 = vld [vmem:[%s4234 + $0x9c] sm:$0xff]
        %v5021 = vld [vmem:[%s4234 + $0xac] sm:$0xff]
        %v5022 = vld [vmem:[%s4234 + $0xb4] sm:$0xff]
        %v5023 = vld [vmem:[%s4234 + $0xc4] sm:$0xff]
        %v5024 = vld [vmem:[%s4234 + $0xcc] sm:$0xff]
        %v5025 = vld [vmem:[%s4234 + $0xdc] sm:$0xff]
        %v5026 = vld [vmem:[%s4234 + $0xe4] sm:$0xff]
        %v5027 = vld [vmem:[%s4234 + $0xf4] sm:$0xff]
        %v5028 = vld [vmem:[%s4234 + $0xfc] sm:$0xff]
        %v5029 = vld [vmem:[%s4234 + $0x10c] sm:$0xff]
        %v5030 = vld [vmem:[%s4234 + $0x114] sm:$0xff]
        %v5031 = vld [vmem:[%s4234 + $0x124] sm:$0xff]
        %v5032 = vld [vmem:[%s4234 + $0x12c] sm:$0xff]
        %v5033 = vld [vmem:[%s4234 + $0x13c] sm:$0xff]
        %v5034 = vld [vmem:[%s4234 + $0x144] sm:$0xff]
        %v5035 = vld [vmem:[%s4234 + $0x154] sm:$0xff]
        %v5036 = vld [vmem:[%s4234 + $0x15c] sm:$0xff]
        %v5037 = vld [vmem:[%s4234 + $0x16c] sm:$0xff]
        %v5038 = vld [vmem:[%s4234 + $0x174] sm:$0xff]
        %5071 = vrot.lane.b32.xlu0 %v5007, 72
        %v5072 = vpop.permute.xlu0 %5071
        %5073 = vrot.lane.b32.xlu0 %v5008, 72
        %v5074 = vpop.permute.xlu0 %5073
        %5075 = vrot.lane.b32.xlu0 %v5009, 72
        %v5076 = vpop.permute.xlu0 %5075
        %5077 = vrot.lane.b32.xlu0 %v5010, 72
        %v5078 = vpop.permute.xlu0 %5077
        %5079 = vrot.lane.b32.xlu0 %v5011, 72
        %v5080 = vpop.permute.xlu0 %5079
        %5081 = vrot.lane.b32.xlu0 %v5012, 72
        %v5082 = vpop.permute.xlu0 %5081
        %5083 = vrot.lane.b32.xlu0 %v5013, 72
        %v5084 = vpop.permute.xlu0 %5083
        %5085 = vrot.lane.b32.xlu0 %v5014, 72
        %v5086 = vpop.permute.xlu0 %5085
        %5087 = vrot.lane.b32.xlu0 %v5015, 72
        %v5088 = vpop.permute.xlu0 %5087
        %5089 = vrot.lane.b32.xlu0 %v5016, 72
        %v5090 = vpop.permute.xlu0 %5089
        %5091 = vrot.lane.b32.xlu0 %v5017, 72
        %v5092 = vpop.permute.xlu0 %5091
        %5093 = vrot.lane.b32.xlu0 %v5018, 72
        %v5094 = vpop.permute.xlu0 %5093
        %5095 = vrot.lane.b32.xlu0 %v5019, 72
        %v5096 = vpop.permute.xlu0 %5095
        %5097 = vrot.lane.b32.xlu0 %v5020, 72
        %v5098 = vpop.permute.xlu0 %5097
        %5099 = vrot.lane.b32.xlu0 %v5021, 72
        %v5100 = vpop.permute.xlu0 %5099
        %5101 = vrot.lane.b32.xlu0 %v5022, 72
        %v5102 = vpop.permute.xlu0 %5101
        %5103 = vrot.lane.b32.xlu0 %v5023, 72
        %v5104 = vpop.permute.xlu0 %5103
        %5105 = vrot.lane.b32.xlu0 %v5024, 72
        %v5106 = vpop.permute.xlu0 %5105
        %5107 = vrot.lane.b32.xlu0 %v5025, 72
        %v5108 = vpop.permute.xlu0 %5107
        %5109 = vrot.lane.b32.xlu0 %v5026, 72
        %v5110 = vpop.permute.xlu0 %5109
        %5111 = vrot.lane.b32.xlu0 %v5027, 72
        %v5112 = vpop.permute.xlu0 %5111
        %5113 = vrot.lane.b32.xlu0 %v5028, 72
        %v5114 = vpop.permute.xlu0 %5113
        %5115 = vrot.lane.b32.xlu0 %v5029, 72
        %v5116 = vpop.permute.xlu0 %5115
        %5117 = vrot.lane.b32.xlu0 %v5030, 72
        %v5118 = vpop.permute.xlu0 %5117
        %5119 = vrot.lane.b32.xlu0 %v5031, 72
        %v5120 = vpop.permute.xlu0 %5119
        %5121 = vrot.lane.b32.xlu0 %v5032, 72
        %v5122 = vpop.permute.xlu0 %5121
        %5123 = vrot.lane.b32.xlu0 %v5033, 72
        %v5124 = vpop.permute.xlu0 %5123
        %5125 = vrot.lane.b32.xlu0 %v5034, 72
        %v5126 = vpop.permute.xlu0 %5125
        %5127 = vrot.lane.b32.xlu0 %v5035, 72
        %v5128 = vpop.permute.xlu0 %5127
        %5129 = vrot.lane.b32.xlu0 %v5036, 72
        %v5130 = vpop.permute.xlu0 %5129
        %5131 = vrot.lane.b32.xlu0 %v5037, 72
        %v5132 = vpop.permute.xlu0 %5131
        %5133 = vrot.lane.b32.xlu0 %v5038, 72
        %v5134 = vpop.permute.xlu0 %5133
        %vm5167 = vcmask 613952
        %5168 = vst.msk [vmem:[#allocation5] sm:$0xff] %vm5167, %v5072
        %5169 = vst.msk [vmem:[#allocation5 + $0x8] sm:$0xff] %vm5167, %v5074
        %5170 = vst.msk [vmem:[#allocation5 + $0x10] sm:$0xff] %vm5167, %v5076
        %5171 = vst.msk [vmem:[#allocation5 + $0x18] sm:$0xff] %vm5167, %v5078
        %5172 = vst.msk [vmem:[#allocation5 + $0x20] sm:$0xff] %vm5167, %v5080
        %5173 = vst.msk [vmem:[#allocation5 + $0x28] sm:$0xff] %vm5167, %v5082
        %5174 = vst.msk [vmem:[#allocation5 + $0x30] sm:$0xff] %vm5167, %v5084
        %5175 = vst.msk [vmem:[#allocation5 + $0x38] sm:$0xff] %vm5167, %v5086
        %5176 = vst.msk [vmem:[#allocation5 + $0x40] sm:$0xff] %vm5167, %v5088
        %5177 = vst.msk [vmem:[#allocation5 + $0x48] sm:$0xff] %vm5167, %v5090
        %5178 = vst.msk [vmem:[#allocation5 + $0x50] sm:$0xff] %vm5167, %v5092
        %5179 = vst.msk [vmem:[#allocation5 + $0x58] sm:$0xff] %vm5167, %v5094
        %5180 = vst.msk [vmem:[#allocation5 + $0x60] sm:$0xff] %vm5167, %v5096
        %5181 = vst.msk [vmem:[#allocation5 + $0x68] sm:$0xff] %vm5167, %v5098
        %5182 = vst.msk [vmem:[#allocation5 + $0x70] sm:$0xff] %vm5167, %v5100
        %5183 = vst.msk [vmem:[#allocation5 + $0x78] sm:$0xff] %vm5167, %v5102
        %5184 = vst.msk [vmem:[#allocation5 + $0x80] sm:$0xff] %vm5167, %v5104
        %5185 = vst.msk [vmem:[#allocation5 + $0x88] sm:$0xff] %vm5167, %v5106
        %5186 = vst.msk [vmem:[#allocation5 + $0x90] sm:$0xff] %vm5167, %v5108
        %5187 = vst.msk [vmem:[#allocation5 + $0x98] sm:$0xff] %vm5167, %v5110
        %5188 = vst.msk [vmem:[#allocation5 + $0xa0] sm:$0xff] %vm5167, %v5112
        %5189 = vst.msk [vmem:[#allocation5 + $0xa8] sm:$0xff] %vm5167, %v5114
        %5190 = vst.msk [vmem:[#allocation5 + $0xb0] sm:$0xff] %vm5167, %v5116
        %5191 = vst.msk [vmem:[#allocation5 + $0xb8] sm:$0xff] %vm5167, %v5118
        %5192 = vst.msk [vmem:[#allocation5 + $0xc0] sm:$0xff] %vm5167, %v5120
        %5193 = vst.msk [vmem:[#allocation5 + $0xc8] sm:$0xff] %vm5167, %v5122
        %5194 = vst.msk [vmem:[#allocation5 + $0xd0] sm:$0xff] %vm5167, %v5124
        %5195 = vst.msk [vmem:[#allocation5 + $0xd8] sm:$0xff] %vm5167, %v5126
        %5196 = vst.msk [vmem:[#allocation5 + $0xe0] sm:$0xff] %vm5167, %v5128
        %5197 = vst.msk [vmem:[#allocation5 + $0xe8] sm:$0xff] %vm5167, %v5130
        %5198 = vst.msk [vmem:[#allocation5 + $0xf0] sm:$0xff] %vm5167, %v5132
        %5199 = vst.msk [vmem:[#allocation5 + $0xf8] sm:$0xff] %vm5167, %v5134
        %v5200 = vld [vmem:[#allocation5] sm:$0xff]
        %v5201 = vld [vmem:[#allocation5 + $0x8] sm:$0xff]
        %v5202 = vld [vmem:[#allocation5 + $0x10] sm:$0xff]
        %v5203 = vld [vmem:[#allocation5 + $0x18] sm:$0xff]
        %v5204 = vld [vmem:[#allocation5 + $0x20] sm:$0xff]
        %v5205 = vld [vmem:[#allocation5 + $0x28] sm:$0xff]
        %v5206 = vld [vmem:[#allocation5 + $0x30] sm:$0xff]
        %v5207 = vld [vmem:[#allocation5 + $0x38] sm:$0xff]
        %v5208 = vld [vmem:[#allocation5 + $0x40] sm:$0xff]
        %v5209 = vld [vmem:[#allocation5 + $0x48] sm:$0xff]
        %v5210 = vld [vmem:[#allocation5 + $0x50] sm:$0xff]
        %v5211 = vld [vmem:[#allocation5 + $0x58] sm:$0xff]
        %v5212 = vld [vmem:[#allocation5 + $0x60] sm:$0xff]
        %v5213 = vld [vmem:[#allocation5 + $0x68] sm:$0xff]
        %v5214 = vld [vmem:[#allocation5 + $0x70] sm:$0xff]
        %v5215 = vld [vmem:[#allocation5 + $0x78] sm:$0xff]
        %v5216 = vld [vmem:[#allocation5 + $0x80] sm:$0xff]
        %v5217 = vld [vmem:[#allocation5 + $0x88] sm:$0xff]
        %v5218 = vld [vmem:[#allocation5 + $0x90] sm:$0xff]
        %v5219 = vld [vmem:[#allocation5 + $0x98] sm:$0xff]
        %v5220 = vld [vmem:[#allocation5 + $0xa0] sm:$0xff]
        %v5221 = vld [vmem:[#allocation5 + $0xa8] sm:$0xff]
        %v5222 = vld [vmem:[#allocation5 + $0xb0] sm:$0xff]
        %v5223 = vld [vmem:[#allocation5 + $0xb8] sm:$0xff]
        %v5224 = vld [vmem:[#allocation5 + $0xc0] sm:$0xff]
        %v5225 = vld [vmem:[#allocation5 + $0xc8] sm:$0xff]
        %v5226 = vld [vmem:[#allocation5 + $0xd0] sm:$0xff]
        %v5227 = vld [vmem:[#allocation5 + $0xd8] sm:$0xff]
        %v5228 = vld [vmem:[#allocation5 + $0xe0] sm:$0xff]
        %v5229 = vld [vmem:[#allocation5 + $0xe8] sm:$0xff]
        %v5230 = vld [vmem:[#allocation5 + $0xf0] sm:$0xff]
        %v5231 = vld [vmem:[#allocation5 + $0xf8] sm:$0xff]
        %v5232 = vpack.c.bf16 %v5201, %v5200
        %v5233 = vpack.c.bf16 %v5203, %v5202
        %v5234 = vpack.c.bf16 %v5205, %v5204
        %v5235 = vpack.c.bf16 %v5207, %v5206
        %v5236 = vpack.c.bf16 %v5209, %v5208
        %v5237 = vpack.c.bf16 %v5211, %v5210
        %v5238 = vpack.c.bf16 %v5213, %v5212
        %v5239 = vpack.c.bf16 %v5215, %v5214
        %v5240 = vpack.c.bf16 %v5217, %v5216
        %v5241 = vpack.c.bf16 %v5219, %v5218
        %v5242 = vpack.c.bf16 %v5221, %v5220
        %v5243 = vpack.c.bf16 %v5223, %v5222
        %v5244 = vpack.c.bf16 %v5225, %v5224
        %v5245 = vpack.c.bf16 %v5227, %v5226
        %v5246 = vpack.c.bf16 %v5229, %v5228
        %v5247 = vpack.c.bf16 %v5231, %v5230
        %v5248 = vld [vmem:[%s1] sm:$0xf]
        %v5249 = vld [vmem:[%s1 + $0x4] sm:$0xf]
        %v5250 = vld [vmem:[%s1 + $0x8] sm:$0xf]
        %v5251 = vld [vmem:[%s1 + $0xc] sm:$0xf]
        %v5252 = vld [vmem:[%s1 + $0x10] sm:$0xf]
        %v5253 = vld [vmem:[%s1 + $0x14] sm:$0xf]
        %v5254 = vld [vmem:[%s1 + $0x18] sm:$0xf]
        %v5255 = vld [vmem:[%s1 + $0x1c] sm:$0xf]
        %v5256 = vld [vmem:[%s1 + $0x20] sm:$0xf]
        %v5257 = vld [vmem:[%s1 + $0x24] sm:$0x3]
        %v5258 = vld [vmem:[#allocation8] sm:$0x1]
        %v5260 = vlaneseq
        %v5261 = vshrl.u32 %v5260, 7
        %v5262 = vsub.s32 0, %v5261
        %v5263 = vrot.slane %v5258, %v5262
        %v5275 = vunpack.c.l.b16 %v5248
        %v5276 = vunpack.c.l.b16 %v5249
        %v5277 = vunpack.c.l.b16 %v5250
        %v5278 = vunpack.c.l.b16 %v5251
        %v5279 = vunpack.c.l.b16 %v5252
        %v5280 = vunpack.c.l.b16 %v5253
        %v5281 = vunpack.c.l.b16 %v5254
        %v5282 = vunpack.c.l.b16 %v5255
        %v5283 = vunpack.c.l.b16 %v5256
        %v5284 = vunpack.c.l.b16 %v5257
        %v5285 = vpack.c.b16 %v5276, %v5275
        %v5286 = vpack.c.b16 %v5278, %v5277
        %v5287 = vpack.c.b16 %v5280, %v5279
        %v5288 = vpack.c.b16 %v5282, %v5281
        %v5289 = vpack.c.b16 %v5284, %v5283
        %vm5294 = vcmask 613376
        %v5296 = vsel %vm5294, %v5232, 0
        %v5299 = vsel %vm5294, %v5233, 0
        %v5302 = vsel %vm5294, %v5234, 0
        %v5305 = vsel %vm5294, %v5235, 0
        %v5308 = vsel %vm5294, %v5236, 0
        %v5311 = vsel %vm5294, %v5237, 0
        %v5314 = vsel %vm5294, %v5238, 0
        %v5317 = vsel %vm5294, %v5239, 0
        %v5320 = vsel %vm5294, %v5240, 0
        %v5323 = vsel %vm5294, %v5241, 0
        %v5326 = vsel %vm5294, %v5242, 0
        %v5329 = vsel %vm5294, %v5243, 0
        %v5332 = vsel %vm5294, %v5244, 0
        %v5335 = vsel %vm5294, %v5245, 0
        %v5338 = vsel %vm5294, %v5246, 0
        %v5341 = vsel %vm5294, %v5247, 0
        %vm5343 = vcmask 1044480
        %vm5344 = vcmask 1045504
        %v5345 = vsel %vm5343, 4294967295, 65535
        %v5346 = vsel %vm5344, %v5345, 0
        %v5348 = vand.u32 %v5289, %v5346
        %5350 = vmatprep.subr.bf16.mxu0 0
        %5351 = vmatpush1.bf16.msra.mxu0 %v5285
        %5352 = vmatprep.subr.bf16.mxu0 0
        %5353 = vmatpush1.bf16.msra.mxu0 %v5286
        %5354 = vmatprep.subr.bf16.mxu0 0
        %5355 = vmatpush1.bf16.msra.mxu0 %v5287
        %5356 = vmatprep.subr.bf16.mxu0 0
        %5357 = vmatpush1.bf16.msra.mxu0 %v5288
        %5358 = vmatprep.subr.bf16.mxu0 0
        %5359 = vmatpush1.bf16.msra.mxu0 %v5348
        %5360 = vmatprep.subr.bf16.mxu0 0
        %5361 = vmatpush1.bf16.msra.mxu0 0
        %5362 = vmatprep.subr.bf16.mxu0 0
        %5363 = vmatpush1.bf16.msra.mxu0 0
        %5364 = vmatprep.subr.bf16.mxu0 0
        %5365 = vmatpush1.bf16.msra.mxu0 0
        %5366 = vmatprep.subr.bf16.mxu0 0
        %5367 = vmatpush1.bf16.msra.mxu0 0
        %5368 = vmatprep.subr.bf16.mxu0 0
        %5369 = vmatpush1.bf16.msra.mxu0 0
        %5370 = vmatprep.subr.bf16.mxu0 0
        %5371 = vmatpush1.bf16.msra.mxu0 0
        %5372 = vmatprep.subr.bf16.mxu0 0
        %5373 = vmatpush1.bf16.msra.mxu0 0
        %5374 = vmatprep.subr.bf16.mxu0 0
        %5375 = vmatpush1.bf16.msra.mxu0 0
        %5376 = vmatprep.subr.bf16.mxu0 0
        %5377 = vmatpush1.bf16.msra.mxu0 0
        %5378 = vmatprep.subr.bf16.mxu0 0
        %5379 = vmatpush1.bf16.msra.mxu0 0
        %5380 = vmatprep.subr.bf16.mxu0 0
        %5381 = vmatpush1.bf16.msra.mxu0 0
        %5382 = vmatprep.mubr.bf16.mxu0 0
        %5383 = vmatmul.mubr.bf16.gmra.mrb[0].mxu0 %v5296
        %v5384 = vpop.f32.mrb[0].mxu0
        %v5385 = vadd.f32 %v5263, %v5384
        %v5386 = vpop.f32.mrb[0].mxu0
        %v5387 = vpop.f32.mrb[0].mxu0
        %v5388 = vadd.f32 %v5263, %v5387
        %v5389 = vpop.f32.mrb[0].mxu0
        %5390 = vmatprep.mubr.bf16.mxu0 0
        %5391 = vmatmul.mubr.bf16.gmra.mrb[0].mxu0 %v5299
        %v5392 = vpop.f32.mrb[0].mxu0
        %v5393 = vadd.f32 %v5263, %v5392
        %v5394 = vpop.f32.mrb[0].mxu0
        %v5395 = vpop.f32.mrb[0].mxu0
        %v5396 = vadd.f32 %v5263, %v5395
        %v5397 = vpop.f32.mrb[0].mxu0
        %5398 = vmatprep.mubr.bf16.mxu0 0
        %5399 = vmatmul.mubr.bf16.gmra.mrb[0].mxu0 %v5302
        %v5400 = vpop.f32.mrb[0].mxu0
        %v5401 = vadd.f32 %v5263, %v5400
        %v5402 = vpop.f32.mrb[0].mxu0
        %v5403 = vpop.f32.mrb[0].mxu0
        %v5404 = vadd.f32 %v5263, %v5403
        %v5405 = vpop.f32.mrb[0].mxu0
        %5406 = vmatprep.mubr.bf16.mxu0 0
        %5407 = vmatmul.mubr.bf16.gmra.mrb[0].mxu0 %v5305
        %v5408 = vpop.f32.mrb[0].mxu0
        %v5409 = vadd.f32 %v5263, %v5408
        %v5410 = vpop.f32.mrb[0].mxu0
        %v5411 = vpop.f32.mrb[0].mxu0
        %v5412 = vadd.f32 %v5263, %v5411
        %v5413 = vpop.f32.mrb[0].mxu0
        %5414 = vmatprep.mubr.bf16.mxu0 0
        %5415 = vmatmul.mubr.bf16.gmra.mrb[0].mxu0 %v5308
        %v5416 = vpop.f32.mrb[0].mxu0
        %v5417 = vadd.f32 %v5263, %v5416
        %v5418 = vpop.f32.mrb[0].mxu0
        %v5419 = vpop.f32.mrb[0].mxu0
        %v5420 = vadd.f32 %v5263, %v5419
        %v5421 = vpop.f32.mrb[0].mxu0
        %5422 = vmatprep.mubr.bf16.mxu0 0
        %5423 = vmatmul.mubr.bf16.gmra.mrb[0].mxu0 %v5311
        %v5424 = vpop.f32.mrb[0].mxu0
        %v5425 = vadd.f32 %v5263, %v5424
        %v5426 = vpop.f32.mrb[0].mxu0
        %v5427 = vpop.f32.mrb[0].mxu0
        %v5428 = vadd.f32 %v5263, %v5427
        %v5429 = vpop.f32.mrb[0].mxu0
        %5430 = vmatprep.mubr.bf16.mxu0 0
        %5431 = vmatmul.mubr.bf16.gmra.mrb[0].mxu0 %v5314
        %v5432 = vpop.f32.mrb[0].mxu0
        %v5433 = vadd.f32 %v5263, %v5432
        %v5434 = vpop.f32.mrb[0].mxu0
        %v5435 = vpop.f32.mrb[0].mxu0
        %v5436 = vadd.f32 %v5263, %v5435
        %v5437 = vpop.f32.mrb[0].mxu0
        %5438 = vmatprep.mubr.bf16.mxu0 0
        %5439 = vmatmul.mubr.bf16.gmra.mrb[0].mxu0 %v5317
        %v5440 = vpop.f32.mrb[0].mxu0
        %v5441 = vadd.f32 %v5263, %v5440
        %v5442 = vpop.f32.mrb[0].mxu0
        %v5443 = vpop.f32.mrb[0].mxu0
        %v5444 = vadd.f32 %v5263, %v5443
        %v5445 = vpop.f32.mrb[0].mxu0
        %5446 = vmatprep.mubr.bf16.mxu0 0
        %5447 = vmatmul.mubr.bf16.gmra.mrb[0].mxu0 %v5320
        %v5448 = vpop.f32.mrb[0].mxu0
        %v5449 = vadd.f32 %v5263, %v5448
        %v5450 = vpop.f32.mrb[0].mxu0
        %v5451 = vpop.f32.mrb[0].mxu0
        %v5452 = vadd.f32 %v5263, %v5451
        %v5453 = vpop.f32.mrb[0].mxu0
        %5454 = vmatprep.mubr.bf16.mxu0 0
        %5455 = vmatmul.mubr.bf16.gmra.mrb[0].mxu0 %v5323
        %v5456 = vpop.f32.mrb[0].mxu0
        %v5457 = vadd.f32 %v5263, %v5456
        %v5458 = vpop.f32.mrb[0].mxu0
        %v5459 = vpop.f32.mrb[0].mxu0
        %v5460 = vadd.f32 %v5263, %v5459
        %v5461 = vpop.f32.mrb[0].mxu0
        %5462 = vmatprep.mubr.bf16.mxu0 0
        %5463 = vmatmul.mubr.bf16.gmra.mrb[0].mxu0 %v5326
        %v5464 = vpop.f32.mrb[0].mxu0
        %v5465 = vadd.f32 %v5263, %v5464
        %v5466 = vpop.f32.mrb[0].mxu0
        %v5467 = vpop.f32.mrb[0].mxu0
        %v5468 = vadd.f32 %v5263, %v5467
        %v5469 = vpop.f32.mrb[0].mxu0
        %5470 = vmatprep.mubr.bf16.mxu0 0
        %5471 = vmatmul.mubr.bf16.gmra.mrb[0].mxu0 %v5329
        %v5472 = vpop.f32.mrb[0].mxu0
        %v5473 = vadd.f32 %v5263, %v5472
        %v5474 = vpop.f32.mrb[0].mxu0
        %v5475 = vpop.f32.mrb[0].mxu0
        %v5476 = vadd.f32 %v5263, %v5475
        %v5477 = vpop.f32.mrb[0].mxu0
        %5478 = vmatprep.mubr.bf16.mxu0 0
        %5479 = vmatmul.mubr.bf16.gmra.mrb[0].mxu0 %v5332
        %v5480 = vpop.f32.mrb[0].mxu0
        %v5481 = vadd.f32 %v5263, %v5480
        %v5482 = vpop.f32.mrb[0].mxu0
        %v5483 = vpop.f32.mrb[0].mxu0
        %v5484 = vadd.f32 %v5263, %v5483
        %v5485 = vpop.f32.mrb[0].mxu0
        %5486 = vmatprep.mubr.bf16.mxu0 0
        %5487 = vmatmul.mubr.bf16.gmra.mrb[0].mxu0 %v5335
        %v5488 = vpop.f32.mrb[0].mxu0
        %v5489 = vadd.f32 %v5263, %v5488
        %v5490 = vpop.f32.mrb[0].mxu0
        %v5491 = vpop.f32.mrb[0].mxu0
        %v5492 = vadd.f32 %v5263, %v5491
        %v5493 = vpop.f32.mrb[0].mxu0
        %5494 = vmatprep.mubr.bf16.mxu0 0
        %5495 = vmatmul.mubr.bf16.gmra.mrb[0].mxu0 %v5338
        %v5496 = vpop.f32.mrb[0].mxu0
        %v5497 = vadd.f32 %v5263, %v5496
        %v5498 = vpop.f32.mrb[0].mxu0
        %v5499 = vpop.f32.mrb[0].mxu0
        %v5500 = vadd.f32 %v5263, %v5499
        %v5501 = vpop.f32.mrb[0].mxu0
        %5502 = vmatprep.mubr.bf16.mxu0 0
        %5503 = vmatmul.mubr.bf16.gmra.mrb[0].mxu0 %v5341
        %v5504 = vpop.f32.mrb[0].mxu0
        %v5505 = vadd.f32 %v5263, %v5504
        %v5506 = vpop.f32.mrb[0].mxu0
        %v5507 = vpop.f32.mrb[0].mxu0
        %v5508 = vadd.f32 %v5263, %v5507
        %v5509 = vpop.f32.mrb[0].mxu0
        %5510 = vdwg.mxu0
        %v5511 = vtanh.pop %v5385
        %v5512 = vtanh.pop %v5388
        %v5513 = vtanh.pop %v5393
        %v5514 = vtanh.pop %v5396
        %v5515 = vtanh.pop %v5401
        %v5516 = vtanh.pop %v5404
        %v5517 = vtanh.pop %v5409
        %v5518 = vtanh.pop %v5412
        %v5519 = vtanh.pop %v5417
        %v5520 = vtanh.pop %v5420
        %v5521 = vtanh.pop %v5425
        %v5522 = vtanh.pop %v5428
        %v5523 = vtanh.pop %v5433
        %v5524 = vtanh.pop %v5436
        %v5525 = vtanh.pop %v5441
        %v5526 = vtanh.pop %v5444
        %v5527 = vtanh.pop %v5449
        %v5528 = vtanh.pop %v5452
        %v5529 = vtanh.pop %v5457
        %v5530 = vtanh.pop %v5460
        %v5531 = vtanh.pop %v5465
        %v5532 = vtanh.pop %v5468
        %v5533 = vtanh.pop %v5473
        %v5534 = vtanh.pop %v5476
        %v5535 = vtanh.pop %v5481
        %v5536 = vtanh.pop %v5484
        %v5537 = vtanh.pop %v5489
        %v5538 = vtanh.pop %v5492
        %v5539 = vtanh.pop %v5497
        %v5540 = vtanh.pop %v5500
        %v5541 = vtanh.pop %v5505
        %v5542 = vtanh.pop %v5508
        %s5543 = scalar_lea.vmem [#allocation3], 24
        %5544 = vst.msk [vmem:[%s5543 + $0x1] sm:$0xff] %vm445, %v5511
        %5545 = vst.msk [vmem:[%s5543 + $0x9] sm:$0xff] %vm445, %v5512
        %5546 = vst.msk [vmem:[%s5543 + $0x19] sm:$0xff] %vm445, %v5513
        %5547 = vst.msk [vmem:[%s5543 + $0x21] sm:$0xff] %vm445, %v5514
        %5548 = vst.msk [vmem:[%s5543 + $0x31] sm:$0xff] %vm445, %v5515
        %5549 = vst.msk [vmem:[%s5543 + $0x39] sm:$0xff] %vm445, %v5516
        %5550 = vst.msk [vmem:[%s5543 + $0x49] sm:$0xff] %vm445, %v5517
        %5551 = vst.msk [vmem:[%s5543 + $0x51] sm:$0xff] %vm445, %v5518
        %5552 = vst.msk [vmem:[%s5543 + $0x61] sm:$0xff] %vm445, %v5519
        %5553 = vst.msk [vmem:[%s5543 + $0x69] sm:$0xff] %vm445, %v5520
        %5554 = vst.msk [vmem:[%s5543 + $0x79] sm:$0xff] %vm445, %v5521
        %5555 = vst.msk [vmem:[%s5543 + $0x81] sm:$0xff] %vm445, %v5522
        %5556 = vst.msk [vmem:[%s5543 + $0x91] sm:$0xff] %vm445, %v5523
        %5557 = vst.msk [vmem:[%s5543 + $0x99] sm:$0xff] %vm445, %v5524
        %5558 = vst.msk [vmem:[%s5543 + $0xa9] sm:$0xff] %vm445, %v5525
        %5559 = vst.msk [vmem:[%s5543 + $0xb1] sm:$0xff] %vm445, %v5526
        %5560 = vst.msk [vmem:[%s5543 + $0xc1] sm:$0xff] %vm445, %v5527
        %5561 = vst.msk [vmem:[%s5543 + $0xc9] sm:$0xff] %vm445, %v5528
        %5562 = vst.msk [vmem:[%s5543 + $0xd9] sm:$0xff] %vm445, %v5529
        %5563 = vst.msk [vmem:[%s5543 + $0xe1] sm:$0xff] %vm445, %v5530
        %5564 = vst.msk [vmem:[%s5543 + $0xf1] sm:$0xff] %vm445, %v5531
        %5565 = vst.msk [vmem:[%s5543 + $0xf9] sm:$0xff] %vm445, %v5532
        %5566 = vst.msk [vmem:[%s5543 + $0x109] sm:$0xff] %vm445, %v5533
        %5567 = vst.msk [vmem:[%s5543 + $0x111] sm:$0xff] %vm445, %v5534
        %5568 = vst.msk [vmem:[%s5543 + $0x121] sm:$0xff] %vm445, %v5535
        %5569 = vst.msk [vmem:[%s5543 + $0x129] sm:$0xff] %vm445, %v5536
        %5570 = vst.msk [vmem:[%s5543 + $0x139] sm:$0xff] %vm445, %v5537
        %5571 = vst.msk [vmem:[%s5543 + $0x141] sm:$0xff] %vm445, %v5538
        %5572 = vst.msk [vmem:[%s5543 + $0x151] sm:$0xff] %vm445, %v5539
        %5573 = vst.msk [vmem:[%s5543 + $0x159] sm:$0xff] %vm445, %v5540
        %5574 = vst.msk [vmem:[%s5543 + $0x169] sm:$0xff] %vm445, %v5541
        %5575 = vst.msk [vmem:[%s5543 + $0x171] sm:$0xff] %vm445, %v5542
        %vm5576 = vcmask 261120
        %5577 = vst.msk [vmem:[#allocation4] sm:$0xff] %vm5576, 0.0
        %5578 = vst.msk [vmem:[#allocation4 + $0x8] sm:$0xff] %vm5576, 0.0
        %vm5579 = vcmask 254976
        %5580 = vst.msk [vmem:[#allocation4 + $0x10] sm:$0x3] %vm5579, 0.0
        %5581 = vst.msk [vmem:[#allocation4 + $0x18] sm:$0xff] %vm5576, 0.0
        %5582 = vst.msk [vmem:[#allocation4 + $0x20] sm:$0xff] %vm5576, 0.0
        %5583 = vst.msk [vmem:[#allocation4 + $0x28] sm:$0x3] %vm5579, 0.0
        %5584 = vst.msk [vmem:[#allocation4 + $0x30] sm:$0xff] %vm5576, 0.0
        %5585 = vst.msk [vmem:[#allocation4 + $0x38] sm:$0xff] %vm5576, 0.0
        %5586 = vst.msk [vmem:[#allocation4 + $0x40] sm:$0x3] %vm5579, 0.0
        %5587 = vst.msk [vmem:[#allocation4 + $0x48] sm:$0xff] %vm5576, 0.0
        %5588 = vst.msk [vmem:[#allocation4 + $0x50] sm:$0xff] %vm5576, 0.0
        %5589 = vst.msk [vmem:[#allocation4 + $0x58] sm:$0x3] %vm5579, 0.0
        %5590 = vst.msk [vmem:[#allocation4 + $0x60] sm:$0xff] %vm5576, 0.0
        %5591 = vst.msk [vmem:[#allocation4 + $0x68] sm:$0xff] %vm5576, 0.0
        %5592 = vst.msk [vmem:[#allocation4 + $0x70] sm:$0x3] %vm5579, 0.0
        %5593 = vst.msk [vmem:[#allocation4 + $0x78] sm:$0xff] %vm5576, 0.0
        %5594 = vst.msk [vmem:[#allocation4 + $0x80] sm:$0xff] %vm5576, 0.0
        %5595 = vst.msk [vmem:[#allocation4 + $0x88] sm:$0x3] %vm5579, 0.0
        %5596 = vst.msk [vmem:[#allocation4 + $0x90] sm:$0xff] %vm5576, 0.0
        %5597 = vst.msk [vmem:[#allocation4 + $0x98] sm:$0xff] %vm5576, 0.0
        %5598 = vst.msk [vmem:[#allocation4 + $0xa0] sm:$0x3] %vm5579, 0.0
        %5599 = vst.msk [vmem:[#allocation4 + $0xa8] sm:$0xff] %vm5576, 0.0
        %5600 = vst.msk [vmem:[#allocation4 + $0xb0] sm:$0xff] %vm5576, 0.0
        %5601 = vst.msk [vmem:[#allocation4 + $0xb8] sm:$0x3] %vm5579, 0.0
        %5602 = vst.msk [vmem:[#allocation4 + $0xc0] sm:$0xff] %vm5576, 0.0
        %5603 = vst.msk [vmem:[#allocation4 + $0xc8] sm:$0xff] %vm5576, 0.0
        %5604 = vst.msk [vmem:[#allocation4 + $0xd0] sm:$0x3] %vm5579, 0.0
        %5605 = vst.msk [vmem:[#allocation4 + $0xd8] sm:$0xff] %vm5576, 0.0
        %5606 = vst.msk [vmem:[#allocation4 + $0xe0] sm:$0xff] %vm5576, 0.0
        %5607 = vst.msk [vmem:[#allocation4 + $0xe8] sm:$0x3] %vm5579, 0.0
        %5608 = vst.msk [vmem:[#allocation4 + $0xf0] sm:$0xff] %vm5576, 0.0
        %5609 = vst.msk [vmem:[#allocation4 + $0xf8] sm:$0xff] %vm5576, 0.0
        %5610 = vst.msk [vmem:[#allocation4 + $0x100] sm:$0x3] %vm5579, 0.0
        %5611 = vst.msk [vmem:[#allocation4 + $0x108] sm:$0xff] %vm5576, 0.0
        %5612 = vst.msk [vmem:[#allocation4 + $0x110] sm:$0xff] %vm5576, 0.0
        %5613 = vst.msk [vmem:[#allocation4 + $0x118] sm:$0x3] %vm5579, 0.0
        %5614 = vst.msk [vmem:[#allocation4 + $0x120] sm:$0xff] %vm5576, 0.0
        %5615 = vst.msk [vmem:[#allocation4 + $0x128] sm:$0xff] %vm5576, 0.0
        %5616 = vst.msk [vmem:[#allocation4 + $0x130] sm:$0x3] %vm5579, 0.0
        %5617 = vst.msk [vmem:[#allocation4 + $0x138] sm:$0xff] %vm5576, 0.0
        %5618 = vst.msk [vmem:[#allocation4 + $0x140] sm:$0xff] %vm5576, 0.0
        %5619 = vst.msk [vmem:[#allocation4 + $0x148] sm:$0x3] %vm5579, 0.0
        %5620 = vst.msk [vmem:[#allocation4 + $0x150] sm:$0xff] %vm5576, 0.0
        %5621 = vst.msk [vmem:[#allocation4 + $0x158] sm:$0xff] %vm5576, 0.0
        %5622 = vst.msk [vmem:[#allocation4 + $0x160] sm:$0x3] %vm5579, 0.0
        %5623 = vst.msk [vmem:[#allocation4 + $0x168] sm:$0xff] %vm5576, 0.0
        %5624 = vst.msk [vmem:[#allocation4 + $0x170] sm:$0xff] %vm5576, 0.0
        %5625 = vst.msk [vmem:[#allocation4 + $0x178] sm:$0x3] %vm5579, 0.0
        %5626 = vst.msk [vmem:[#allocation4 + $0x180] sm:$0xff] %vm5576, 0.0
        %5627 = vst.msk [vmem:[#allocation4 + $0x188] sm:$0xff] %vm5576, 0.0
        %5628 = vst.msk [vmem:[#allocation4 + $0x190] sm:$0x3] %vm5579, 0.0
        %5629 = vst.msk [vmem:[#allocation4 + $0x198] sm:$0xff] %vm5576, 0.0
        %5630 = vst.msk [vmem:[#allocation4 + $0x1a0] sm:$0xff] %vm5576, 0.0
        %5631 = vst.msk [vmem:[#allocation4 + $0x1a8] sm:$0x3] %vm5579, 0.0
        %v5632 = vld [vmem:[#allocation3] sm:$0xff]
        %v5633 = vld [vmem:[#allocation3 + $0x8] sm:$0xff]
        %v5634 = vld [vmem:[#allocation3 + $0x18] sm:$0xff]
        %v5635 = vld [vmem:[#allocation3 + $0x20] sm:$0xff]
        %v5636 = vld [vmem:[#allocation3 + $0x30] sm:$0xff]
        %v5637 = vld [vmem:[#allocation3 + $0x38] sm:$0xff]
        %v5638 = vld [vmem:[#allocation3 + $0x48] sm:$0xff]
        %v5639 = vld [vmem:[#allocation3 + $0x50] sm:$0xff]
        %v5640 = vld [vmem:[#allocation3 + $0x60] sm:$0xff]
        %v5641 = vld [vmem:[#allocation3 + $0x68] sm:$0xff]
        %v5642 = vld [vmem:[#allocation3 + $0x78] sm:$0xff]
        %v5643 = vld [vmem:[#allocation3 + $0x80] sm:$0xff]
        %v5644 = vld [vmem:[#allocation3 + $0x90] sm:$0xff]
        %v5645 = vld [vmem:[#allocation3 + $0x98] sm:$0xff]
        %v5646 = vld [vmem:[#allocation3 + $0xa8] sm:$0xff]
        %v5647 = vld [vmem:[#allocation3 + $0xb0] sm:$0xff]
        %v5648 = vld [vmem:[#allocation3 + $0xc0] sm:$0xff]
        %v5649 = vld [vmem:[#allocation3 + $0xc8] sm:$0xff]
        %v5650 = vld [vmem:[#allocation3 + $0xd8] sm:$0xff]
        %v5651 = vld [vmem:[#allocation3 + $0xe0] sm:$0xff]
        %v5652 = vld [vmem:[#allocation3 + $0xf0] sm:$0xff]
        %v5653 = vld [vmem:[#allocation3 + $0xf8] sm:$0xff]
        %v5654 = vld [vmem:[#allocation3 + $0x108] sm:$0xff]
        %v5655 = vld [vmem:[#allocation3 + $0x110] sm:$0xff]
        %v5656 = vld [vmem:[#allocation3 + $0x120] sm:$0xff]
        %v5657 = vld [vmem:[#allocation3 + $0x128] sm:$0xff]
        %v5658 = vld [vmem:[#allocation3 + $0x138] sm:$0xff]
        %v5659 = vld [vmem:[#allocation3 + $0x140] sm:$0xff]
        %v5660 = vld [vmem:[#allocation3 + $0x150] sm:$0xff]
        %v5661 = vld [vmem:[#allocation3 + $0x158] sm:$0xff]
        %v5662 = vld [vmem:[#allocation3 + $0x168] sm:$0xff]
        %v5663 = vld [vmem:[#allocation3 + $0x170] sm:$0xff]
        %5664 = vst.msk [vmem:[#allocation6] sm:$0xff] %vm445, %v5632
        %5665 = vst.msk [vmem:[#allocation6 + $0x28] sm:$0xff] %vm445, %v5633
        %5666 = vst.msk [vmem:[#allocation6 + $0x50] sm:$0xff] %vm445, %v5634
        %5667 = vst.msk [vmem:[#allocation6 + $0x78] sm:$0xff] %vm445, %v5635
        %5668 = vst.msk [vmem:[#allocation6 + $0xa0] sm:$0xff] %vm445, %v5636
        %5669 = vst.msk [vmem:[#allocation6 + $0xc8] sm:$0xff] %vm445, %v5637
        %5670 = vst.msk [vmem:[#allocation6 + $0xf0] sm:$0xff] %vm445, %v5638
        %5671 = vst.msk [vmem:[#allocation6 + $0x118] sm:$0xff] %vm445, %v5639
        %5672 = vst.msk [vmem:[#allocation6 + $0x140] sm:$0xff] %vm445, %v5640
        %5673 = vst.msk [vmem:[#allocation6 + $0x168] sm:$0xff] %vm445, %v5641
        %5674 = vst.msk [vmem:[#allocation6 + $0x190] sm:$0xff] %vm445, %v5642
        %5675 = vst.msk [vmem:[#allocation6 + $0x1b8] sm:$0xff] %vm445, %v5643
        %5676 = vst.msk [vmem:[#allocation6 + $0x1e0] sm:$0xff] %vm445, %v5644
        %5677 = vst.msk [vmem:[#allocation6 + $0x208] sm:$0xff] %vm445, %v5645
        %5678 = vst.msk [vmem:[#allocation6 + $0x230] sm:$0xff] %vm445, %v5646
        %5679 = vst.msk [vmem:[#allocation6 + $0x258] sm:$0xff] %vm445, %v5647
        %5680 = vst.msk [vmem:[#allocation6 + $0x280] sm:$0xff] %vm445, %v5648
        %5681 = vst.msk [vmem:[#allocation6 + $0x2a8] sm:$0xff] %vm445, %v5649
        %5682 = vst.msk [vmem:[#allocation6 + $0x2d0] sm:$0xff] %vm445, %v5650
        %5683 = vst.msk [vmem:[#allocation6 + $0x2f8] sm:$0xff] %vm445, %v5651
        %5684 = vst.msk [vmem:[#allocation6 + $0x320] sm:$0xff] %vm445, %v5652
        %5685 = vst.msk [vmem:[#allocation6 + $0x348] sm:$0xff] %vm445, %v5653
        %5686 = vst.msk [vmem:[#allocation6 + $0x370] sm:$0xff] %vm445, %v5654
        %5687 = vst.msk [vmem:[#allocation6 + $0x398] sm:$0xff] %vm445, %v5655
        %5688 = vst.msk [vmem:[#allocation6 + $0x3c0] sm:$0xff] %vm445, %v5656
        %5689 = vst.msk [vmem:[#allocation6 + $0x3e8] sm:$0xff] %vm445, %v5657
        %5690 = vst.msk [vmem:[#allocation6 + $0x410] sm:$0xff] %vm445, %v5658
        %5691 = vst.msk [vmem:[#allocation6 + $0x438] sm:$0xff] %vm445, %v5659
        %5692 = vst.msk [vmem:[#allocation6 + $0x460] sm:$0xff] %vm445, %v5660
        %5693 = vst.msk [vmem:[#allocation6 + $0x488] sm:$0xff] %vm445, %v5661
        %5694 = vst.msk [vmem:[#allocation6 + $0x4b0] sm:$0xff] %vm445, %v5662
        %5695 = vst.msk [vmem:[#allocation6 + $0x4d8] sm:$0xff] %vm445, %v5663
        %v5696 = vld [vmem:[#allocation3 + $0x1] sm:$0xff]
        %v5697 = vld [vmem:[#allocation3 + $0x9] sm:$0xff]
        %v5698 = vld [vmem:[#allocation3 + $0x19] sm:$0xff]
        %v5699 = vld [vmem:[#allocation3 + $0x21] sm:$0xff]
        %v5700 = vld [vmem:[#allocation3 + $0x31] sm:$0xff]
        %v5701 = vld [vmem:[#allocation3 + $0x39] sm:$0xff]
        %v5702 = vld [vmem:[#allocation3 + $0x49] sm:$0xff]
        %v5703 = vld [vmem:[#allocation3 + $0x51] sm:$0xff]
        %v5704 = vld [vmem:[#allocation3 + $0x61] sm:$0xff]
        %v5705 = vld [vmem:[#allocation3 + $0x69] sm:$0xff]
        %v5706 = vld [vmem:[#allocation3 + $0x79] sm:$0xff]
        %v5707 = vld [vmem:[#allocation3 + $0x81] sm:$0xff]
        %v5708 = vld [vmem:[#allocation3 + $0x91] sm:$0xff]
        %v5709 = vld [vmem:[#allocation3 + $0x99] sm:$0xff]
        %v5710 = vld [vmem:[#allocation3 + $0xa9] sm:$0xff]
        %v5711 = vld [vmem:[#allocation3 + $0xb1] sm:$0xff]
        %v5712 = vld [vmem:[#allocation3 + $0xc1] sm:$0xff]
        %v5713 = vld [vmem:[#allocation3 + $0xc9] sm:$0xff]
        %v5714 = vld [vmem:[#allocation3 + $0xd9] sm:$0xff]
        %v5715 = vld [vmem:[#allocation3 + $0xe1] sm:$0xff]
        %v5716 = vld [vmem:[#allocation3 + $0xf1] sm:$0xff]
        %v5717 = vld [vmem:[#allocation3 + $0xf9] sm:$0xff]
        %v5718 = vld [vmem:[#allocation3 + $0x109] sm:$0xff]
        %v5719 = vld [vmem:[#allocation3 + $0x111] sm:$0xff]
        %v5720 = vld [vmem:[#allocation3 + $0x121] sm:$0xff]
        %v5721 = vld [vmem:[#allocation3 + $0x129] sm:$0xff]
        %v5722 = vld [vmem:[#allocation3 + $0x139] sm:$0xff]
        %v5723 = vld [vmem:[#allocation3 + $0x141] sm:$0xff]
        %v5724 = vld [vmem:[#allocation3 + $0x151] sm:$0xff]
        %v5725 = vld [vmem:[#allocation3 + $0x159] sm:$0xff]
        %v5726 = vld [vmem:[#allocation3 + $0x169] sm:$0xff]
        %v5727 = vld [vmem:[#allocation3 + $0x171] sm:$0xff]
        %5760 = vrot.lane.b32.xlu0 %v5696, 64
        %v5761 = vpop.permute.xlu0 %5760
        %5762 = vrot.lane.b32.xlu0 %v5697, 64
        %v5763 = vpop.permute.xlu0 %5762
        %5764 = vrot.lane.b32.xlu0 %v5698, 64
        %v5765 = vpop.permute.xlu0 %5764
        %5766 = vrot.lane.b32.xlu0 %v5699, 64
        %v5767 = vpop.permute.xlu0 %5766
        %5768 = vrot.lane.b32.xlu0 %v5700, 64
        %v5769 = vpop.permute.xlu0 %5768
        %5770 = vrot.lane.b32.xlu0 %v5701, 64
        %v5771 = vpop.permute.xlu0 %5770
        %5772 = vrot.lane.b32.xlu0 %v5702, 64
        %v5773 = vpop.permute.xlu0 %5772
        %5774 = vrot.lane.b32.xlu0 %v5703, 64
        %v5775 = vpop.permute.xlu0 %5774
        %5776 = vrot.lane.b32.xlu0 %v5704, 64
        %v5777 = vpop.permute.xlu0 %5776
        %5778 = vrot.lane.b32.xlu0 %v5705, 64
        %v5779 = vpop.permute.xlu0 %5778
        %5780 = vrot.lane.b32.xlu0 %v5706, 64
        %v5781 = vpop.permute.xlu0 %5780
        %5782 = vrot.lane.b32.xlu0 %v5707, 64
        %v5783 = vpop.permute.xlu0 %5782
        %5784 = vrot.lane.b32.xlu0 %v5708, 64
        %v5785 = vpop.permute.xlu0 %5784
        %5786 = vrot.lane.b32.xlu0 %v5709, 64
        %v5787 = vpop.permute.xlu0 %5786
        %5788 = vrot.lane.b32.xlu0 %v5710, 64
        %v5789 = vpop.permute.xlu0 %5788
        %5790 = vrot.lane.b32.xlu0 %v5711, 64
        %v5791 = vpop.permute.xlu0 %5790
        %5792 = vrot.lane.b32.xlu0 %v5712, 64
        %v5793 = vpop.permute.xlu0 %5792
        %5794 = vrot.lane.b32.xlu0 %v5713, 64
        %v5795 = vpop.permute.xlu0 %5794
        %5796 = vrot.lane.b32.xlu0 %v5714, 64
        %v5797 = vpop.permute.xlu0 %5796
        %5798 = vrot.lane.b32.xlu0 %v5715, 64
        %v5799 = vpop.permute.xlu0 %5798
        %5800 = vrot.lane.b32.xlu0 %v5716, 64
        %v5801 = vpop.permute.xlu0 %5800
        %5802 = vrot.lane.b32.xlu0 %v5717, 64
        %v5803 = vpop.permute.xlu0 %5802
        %5804 = vrot.lane.b32.xlu0 %v5718, 64
        %v5805 = vpop.permute.xlu0 %5804
        %5806 = vrot.lane.b32.xlu0 %v5719, 64
        %v5807 = vpop.permute.xlu0 %5806
        %5808 = vrot.lane.b32.xlu0 %v5720, 64
        %v5809 = vpop.permute.xlu0 %5808
        %5810 = vrot.lane.b32.xlu0 %v5721, 64
        %v5811 = vpop.permute.xlu0 %5810
        %5812 = vrot.lane.b32.xlu0 %v5722, 64
        %v5813 = vpop.permute.xlu0 %5812
        %5814 = vrot.lane.b32.xlu0 %v5723, 64
        %v5815 = vpop.permute.xlu0 %5814
        %5816 = vrot.lane.b32.xlu0 %v5724, 64
        %v5817 = vpop.permute.xlu0 %5816
        %5818 = vrot.lane.b32.xlu0 %v5725, 64
        %v5819 = vpop.permute.xlu0 %5818
        %5820 = vrot.lane.b32.xlu0 %v5726, 64
        %v5821 = vpop.permute.xlu0 %5820
        %5822 = vrot.lane.b32.xlu0 %v5727, 64
        %v5823 = vpop.permute.xlu0 %5822
        %vm5856 = vcmask 1048064
        %5857 = vst.msk [vmem:[#allocation6] sm:$0xff] %vm5856, %v5761
        %5858 = vst.msk [vmem:[#allocation6 + $0x28] sm:$0xff] %vm5856, %v5763
        %5859 = vst.msk [vmem:[#allocation6 + $0x50] sm:$0xff] %vm5856, %v5765
        %5860 = vst.msk [vmem:[#allocation6 + $0x78] sm:$0xff] %vm5856, %v5767
        %5861 = vst.msk [vmem:[#allocation6 + $0xa0] sm:$0xff] %vm5856, %v5769
        %5862 = vst.msk [vmem:[#allocation6 + $0xc8] sm:$0xff] %vm5856, %v5771
        %5863 = vst.msk [vmem:[#allocation6 + $0xf0] sm:$0xff] %vm5856, %v5773
        %5864 = vst.msk [vmem:[#allocation6 + $0x118] sm:$0xff] %vm5856, %v5775
        %5865 = vst.msk [vmem:[#allocation6 + $0x140] sm:$0xff] %vm5856, %v5777
        %5866 = vst.msk [vmem:[#allocation6 + $0x168] sm:$0xff] %vm5856, %v5779
        %5867 = vst.msk [vmem:[#allocation6 + $0x190] sm:$0xff] %vm5856, %v5781
        %5868 = vst.msk [vmem:[#allocation6 + $0x1b8] sm:$0xff] %vm5856, %v5783
        %5869 = vst.msk [vmem:[#allocation6 + $0x1e0] sm:$0xff] %vm5856, %v5785
        %5870 = vst.msk [vmem:[#allocation6 + $0x208] sm:$0xff] %vm5856, %v5787
        %5871 = vst.msk [vmem:[#allocation6 + $0x230] sm:$0xff] %vm5856, %v5789
        %5872 = vst.msk [vmem:[#allocation6 + $0x258] sm:$0xff] %vm5856, %v5791
        %5873 = vst.msk [vmem:[#allocation6 + $0x280] sm:$0xff] %vm5856, %v5793
        %5874 = vst.msk [vmem:[#allocation6 + $0x2a8] sm:$0xff] %vm5856, %v5795
        %5875 = vst.msk [vmem:[#allocation6 + $0x2d0] sm:$0xff] %vm5856, %v5797
        %5876 = vst.msk [vmem:[#allocation6 + $0x2f8] sm:$0xff] %vm5856, %v5799
        %5877 = vst.msk [vmem:[#allocation6 + $0x320] sm:$0xff] %vm5856, %v5801
        %5878 = vst.msk [vmem:[#allocation6 + $0x348] sm:$0xff] %vm5856, %v5803
        %5879 = vst.msk [vmem:[#allocation6 + $0x370] sm:$0xff] %vm5856, %v5805
        %5880 = vst.msk [vmem:[#allocation6 + $0x398] sm:$0xff] %vm5856, %v5807
        %5881 = vst.msk [vmem:[#allocation6 + $0x3c0] sm:$0xff] %vm5856, %v5809
        %5882 = vst.msk [vmem:[#allocation6 + $0x3e8] sm:$0xff] %vm5856, %v5811
        %5883 = vst.msk [vmem:[#allocation6 + $0x410] sm:$0xff] %vm5856, %v5813
        %5884 = vst.msk [vmem:[#allocation6 + $0x438] sm:$0xff] %vm5856, %v5815
        %5885 = vst.msk [vmem:[#allocation6 + $0x460] sm:$0xff] %vm5856, %v5817
        %5886 = vst.msk [vmem:[#allocation6 + $0x488] sm:$0xff] %vm5856, %v5819
        %5887 = vst.msk [vmem:[#allocation6 + $0x4b0] sm:$0xff] %vm5856, %v5821
        %5888 = vst.msk [vmem:[#allocation6 + $0x4d8] sm:$0xff] %vm5856, %v5823
        %v5889 = vld [vmem:[#allocation3 + $0x2] sm:$0xff]
        %v5890 = vld [vmem:[#allocation3 + $0xa] sm:$0xff]
        %v5891 = vld [vmem:[#allocation3 + $0x1a] sm:$0xff]
        %v5892 = vld [vmem:[#allocation3 + $0x22] sm:$0xff]
        %v5893 = vld [vmem:[#allocation3 + $0x32] sm:$0xff]
        %v5894 = vld [vmem:[#allocation3 + $0x3a] sm:$0xff]
        %v5895 = vld [vmem:[#allocation3 + $0x4a] sm:$0xff]
        %v5896 = vld [vmem:[#allocation3 + $0x52] sm:$0xff]
        %v5897 = vld [vmem:[#allocation3 + $0x62] sm:$0xff]
        %v5898 = vld [vmem:[#allocation3 + $0x6a] sm:$0xff]
        %v5899 = vld [vmem:[#allocation3 + $0x7a] sm:$0xff]
        %v5900 = vld [vmem:[#allocation3 + $0x82] sm:$0xff]
        %v5901 = vld [vmem:[#allocation3 + $0x92] sm:$0xff]
        %v5902 = vld [vmem:[#allocation3 + $0x9a] sm:$0xff]
        %v5903 = vld [vmem:[#allocation3 + $0xaa] sm:$0xff]
        %v5904 = vld [vmem:[#allocation3 + $0xb2] sm:$0xff]
        %v5905 = vld [vmem:[#allocation3 + $0xc2] sm:$0xff]
        %v5906 = vld [vmem:[#allocation3 + $0xca] sm:$0xff]
        %v5907 = vld [vmem:[#allocation3 + $0xda] sm:$0xff]
        %v5908 = vld [vmem:[#allocation3 + $0xe2] sm:$0xff]
        %v5909 = vld [vmem:[#allocation3 + $0xf2] sm:$0xff]
        %v5910 = vld [vmem:[#allocation3 + $0xfa] sm:$0xff]
        %v5911 = vld [vmem:[#allocation3 + $0x10a] sm:$0xff]
        %v5912 = vld [vmem:[#allocation3 + $0x112] sm:$0xff]
        %v5913 = vld [vmem:[#allocation3 + $0x122] sm:$0xff]
        %v5914 = vld [vmem:[#allocation3 + $0x12a] sm:$0xff]
        %v5915 = vld [vmem:[#allocation3 + $0x13a] sm:$0xff]
        %v5916 = vld [vmem:[#allocation3 + $0x142] sm:$0xff]
        %v5917 = vld [vmem:[#allocation3 + $0x152] sm:$0xff]
        %v5918 = vld [vmem:[#allocation3 + $0x15a] sm:$0xff]
        %v5919 = vld [vmem:[#allocation3 + $0x16a] sm:$0xff]
        %v5920 = vld [vmem:[#allocation3 + $0x172] sm:$0xff]
        %5921 = vst.msk [vmem:[#allocation6 + $0x8] sm:$0xff] %vm445, %v5889
        %5922 = vst.msk [vmem:[#allocation6 + $0x30] sm:$0xff] %vm445, %v5890
        %5923 = vst.msk [vmem:[#allocation6 + $0x58] sm:$0xff] %vm445, %v5891
        %5924 = vst.msk [vmem:[#allocation6 + $0x80] sm:$0xff] %vm445, %v5892
        %5925 = vst.msk [vmem:[#allocation6 + $0xa8] sm:$0xff] %vm445, %v5893
        %5926 = vst.msk [vmem:[#allocation6 + $0xd0] sm:$0xff] %vm445, %v5894
        %5927 = vst.msk [vmem:[#allocation6 + $0xf8] sm:$0xff] %vm445, %v5895
        %5928 = vst.msk [vmem:[#allocation6 + $0x120] sm:$0xff] %vm445, %v5896
        %5929 = vst.msk [vmem:[#allocation6 + $0x148] sm:$0xff] %vm445, %v5897
        %5930 = vst.msk [vmem:[#allocation6 + $0x170] sm:$0xff] %vm445, %v5898
        %5931 = vst.msk [vmem:[#allocation6 + $0x198] sm:$0xff] %vm445, %v5899
        %5932 = vst.msk [vmem:[#allocation6 + $0x1c0] sm:$0xff] %vm445, %v5900
        %5933 = vst.msk [vmem:[#allocation6 + $0x1e8] sm:$0xff] %vm445, %v5901
        %5934 = vst.msk [vmem:[#allocation6 + $0x210] sm:$0xff] %vm445, %v5902
        %5935 = vst.msk [vmem:[#allocation6 + $0x238] sm:$0xff] %vm445, %v5903
        %5936 = vst.msk [vmem:[#allocation6 + $0x260] sm:$0xff] %vm445, %v5904
        %5937 = vst.msk [vmem:[#allocation6 + $0x288] sm:$0xff] %vm445, %v5905
        %5938 = vst.msk [vmem:[#allocation6 + $0x2b0] sm:$0xff] %vm445, %v5906
        %5939 = vst.msk [vmem:[#allocation6 + $0x2d8] sm:$0xff] %vm445, %v5907
        %5940 = vst.msk [vmem:[#allocation6 + $0x300] sm:$0xff] %vm445, %v5908
        %5941 = vst.msk [vmem:[#allocation6 + $0x328] sm:$0xff] %vm445, %v5909
        %5942 = vst.msk [vmem:[#allocation6 + $0x350] sm:$0xff] %vm445, %v5910
        %5943 = vst.msk [vmem:[#allocation6 + $0x378] sm:$0xff] %vm445, %v5911
        %5944 = vst.msk [vmem:[#allocation6 + $0x3a0] sm:$0xff] %vm445, %v5912
        %5945 = vst.msk [vmem:[#allocation6 + $0x3c8] sm:$0xff] %vm445, %v5913
        %5946 = vst.msk [vmem:[#allocation6 + $0x3f0] sm:$0xff] %vm445, %v5914
        %5947 = vst.msk [vmem:[#allocation6 + $0x418] sm:$0xff] %vm445, %v5915
        %5948 = vst.msk [vmem:[#allocation6 + $0x440] sm:$0xff] %vm445, %v5916
        %5949 = vst.msk [vmem:[#allocation6 + $0x468] sm:$0xff] %vm445, %v5917
        %5950 = vst.msk [vmem:[#allocation6 + $0x490] sm:$0xff] %vm445, %v5918
        %5951 = vst.msk [vmem:[#allocation6 + $0x4b8] sm:$0xff] %vm445, %v5919
        %5952 = vst.msk [vmem:[#allocation6 + $0x4e0] sm:$0xff] %vm445, %v5920
        %v5953 = vld [vmem:[%s5543] sm:$0xff]
        %v5954 = vld [vmem:[%s5543 + $0x8] sm:$0xff]
        %v5955 = vld [vmem:[%s5543 + $0x18] sm:$0xff]
        %v5956 = vld [vmem:[%s5543 + $0x20] sm:$0xff]
        %v5957 = vld [vmem:[%s5543 + $0x30] sm:$0xff]
        %v5958 = vld [vmem:[%s5543 + $0x38] sm:$0xff]
        %v5959 = vld [vmem:[%s5543 + $0x48] sm:$0xff]
        %v5960 = vld [vmem:[%s5543 + $0x50] sm:$0xff]
        %v5961 = vld [vmem:[%s5543 + $0x60] sm:$0xff]
        %v5962 = vld [vmem:[%s5543 + $0x68] sm:$0xff]
        %v5963 = vld [vmem:[%s5543 + $0x78] sm:$0xff]
        %v5964 = vld [vmem:[%s5543 + $0x80] sm:$0xff]
        %v5965 = vld [vmem:[%s5543 + $0x90] sm:$0xff]
        %v5966 = vld [vmem:[%s5543 + $0x98] sm:$0xff]
        %v5967 = vld [vmem:[%s5543 + $0xa8] sm:$0xff]
        %v5968 = vld [vmem:[%s5543 + $0xb0] sm:$0xff]
        %v5969 = vld [vmem:[%s5543 + $0xc0] sm:$0xff]
        %v5970 = vld [vmem:[%s5543 + $0xc8] sm:$0xff]
        %v5971 = vld [vmem:[%s5543 + $0xd8] sm:$0xff]
        %v5972 = vld [vmem:[%s5543 + $0xe0] sm:$0xff]
        %v5973 = vld [vmem:[%s5543 + $0xf0] sm:$0xff]
        %v5974 = vld [vmem:[%s5543 + $0xf8] sm:$0xff]
        %v5975 = vld [vmem:[%s5543 + $0x108] sm:$0xff]
        %v5976 = vld [vmem:[%s5543 + $0x110] sm:$0xff]
        %v5977 = vld [vmem:[%s5543 + $0x120] sm:$0xff]
        %v5978 = vld [vmem:[%s5543 + $0x128] sm:$0xff]
        %v5979 = vld [vmem:[%s5543 + $0x138] sm:$0xff]
        %v5980 = vld [vmem:[%s5543 + $0x140] sm:$0xff]
        %v5981 = vld [vmem:[%s5543 + $0x150] sm:$0xff]
        %v5982 = vld [vmem:[%s5543 + $0x158] sm:$0xff]
        %v5983 = vld [vmem:[%s5543 + $0x168] sm:$0xff]
        %v5984 = vld [vmem:[%s5543 + $0x170] sm:$0xff]
        %6017 = vrot.lane.b32.xlu0 %v5953, 64
        %v6018 = vpop.permute.xlu0 %6017
        %6019 = vrot.lane.b32.xlu0 %v5954, 64
        %v6020 = vpop.permute.xlu0 %6019
        %6021 = vrot.lane.b32.xlu0 %v5955, 64
        %v6022 = vpop.permute.xlu0 %6021
        %6023 = vrot.lane.b32.xlu0 %v5956, 64
        %v6024 = vpop.permute.xlu0 %6023
        %6025 = vrot.lane.b32.xlu0 %v5957, 64
        %v6026 = vpop.permute.xlu0 %6025
        %6027 = vrot.lane.b32.xlu0 %v5958, 64
        %v6028 = vpop.permute.xlu0 %6027
        %6029 = vrot.lane.b32.xlu0 %v5959, 64
        %v6030 = vpop.permute.xlu0 %6029
        %6031 = vrot.lane.b32.xlu0 %v5960, 64
        %v6032 = vpop.permute.xlu0 %6031
        %6033 = vrot.lane.b32.xlu0 %v5961, 64
        %v6034 = vpop.permute.xlu0 %6033
        %6035 = vrot.lane.b32.xlu0 %v5962, 64
        %v6036 = vpop.permute.xlu0 %6035
        %6037 = vrot.lane.b32.xlu0 %v5963, 64
        %v6038 = vpop.permute.xlu0 %6037
        %6039 = vrot.lane.b32.xlu0 %v5964, 64
        %v6040 = vpop.permute.xlu0 %6039
        %6041 = vrot.lane.b32.xlu0 %v5965, 64
        %v6042 = vpop.permute.xlu0 %6041
        %6043 = vrot.lane.b32.xlu0 %v5966, 64
        %v6044 = vpop.permute.xlu0 %6043
        %6045 = vrot.lane.b32.xlu0 %v5967, 64
        %v6046 = vpop.permute.xlu0 %6045
        %6047 = vrot.lane.b32.xlu0 %v5968, 64
        %v6048 = vpop.permute.xlu0 %6047
        %6049 = vrot.lane.b32.xlu0 %v5969, 64
        %v6050 = vpop.permute.xlu0 %6049
        %6051 = vrot.lane.b32.xlu0 %v5970, 64
        %v6052 = vpop.permute.xlu0 %6051
        %6053 = vrot.lane.b32.xlu0 %v5971, 64
        %v6054 = vpop.permute.xlu0 %6053
        %6055 = vrot.lane.b32.xlu0 %v5972, 64
        %v6056 = vpop.permute.xlu0 %6055
        %6057 = vrot.lane.b32.xlu0 %v5973, 64
        %v6058 = vpop.permute.xlu0 %6057
        %6059 = vrot.lane.b32.xlu0 %v5974, 64
        %v6060 = vpop.permute.xlu0 %6059
        %6061 = vrot.lane.b32.xlu0 %v5975, 64
        %v6062 = vpop.permute.xlu0 %6061
        %6063 = vrot.lane.b32.xlu0 %v5976, 64
        %v6064 = vpop.permute.xlu0 %6063
        %6065 = vrot.lane.b32.xlu0 %v5977, 64
        %v6066 = vpop.permute.xlu0 %6065
        %6067 = vrot.lane.b32.xlu0 %v5978, 64
        %v6068 = vpop.permute.xlu0 %6067
        %6069 = vrot.lane.b32.xlu0 %v5979, 64
        %v6070 = vpop.permute.xlu0 %6069
        %6071 = vrot.lane.b32.xlu0 %v5980, 64
        %v6072 = vpop.permute.xlu0 %6071
        %6073 = vrot.lane.b32.xlu0 %v5981, 64
        %v6074 = vpop.permute.xlu0 %6073
        %6075 = vrot.lane.b32.xlu0 %v5982, 64
        %v6076 = vpop.permute.xlu0 %6075
        %6077 = vrot.lane.b32.xlu0 %v5983, 64
        %v6078 = vpop.permute.xlu0 %6077
        %6079 = vrot.lane.b32.xlu0 %v5984, 64
        %v6080 = vpop.permute.xlu0 %6079
        %6113 = vst.msk [vmem:[#allocation6 + $0x8] sm:$0xff] %vm5856, %v6018
        %6114 = vst.msk [vmem:[#allocation6 + $0x30] sm:$0xff] %vm5856, %v6020
        %6115 = vst.msk [vmem:[#allocation6 + $0x58] sm:$0xff] %vm5856, %v6022
        %6116 = vst.msk [vmem:[#allocation6 + $0x80] sm:$0xff] %vm5856, %v6024
        %6117 = vst.msk [vmem:[#allocation6 + $0xa8] sm:$0xff] %vm5856, %v6026
        %6118 = vst.msk [vmem:[#allocation6 + $0xd0] sm:$0xff] %vm5856, %v6028
        %6119 = vst.msk [vmem:[#allocation6 + $0xf8] sm:$0xff] %vm5856, %v6030
        %6120 = vst.msk [vmem:[#allocation6 + $0x120] sm:$0xff] %vm5856, %v6032
        %6121 = vst.msk [vmem:[#allocation6 + $0x148] sm:$0xff] %vm5856, %v6034
        %6122 = vst.msk [vmem:[#allocation6 + $0x170] sm:$0xff] %vm5856, %v6036
        %6123 = vst.msk [vmem:[#allocation6 + $0x198] sm:$0xff] %vm5856, %v6038
        %6124 = vst.msk [vmem:[#allocation6 + $0x1c0] sm:$0xff] %vm5856, %v6040
        %6125 = vst.msk [vmem:[#allocation6 + $0x1e8] sm:$0xff] %vm5856, %v6042
        %6126 = vst.msk [vmem:[#allocation6 + $0x210] sm:$0xff] %vm5856, %v6044
        %6127 = vst.msk [vmem:[#allocation6 + $0x238] sm:$0xff] %vm5856, %v6046
        %6128 = vst.msk [vmem:[#allocation6 + $0x260] sm:$0xff] %vm5856, %v6048
        %6129 = vst.msk [vmem:[#allocation6 + $0x288] sm:$0xff] %vm5856, %v6050
        %6130 = vst.msk [vmem:[#allocation6 + $0x2b0] sm:$0xff] %vm5856, %v6052
        %6131 = vst.msk [vmem:[#allocation6 + $0x2d8] sm:$0xff] %vm5856, %v6054
        %6132 = vst.msk [vmem:[#allocation6 + $0x300] sm:$0xff] %vm5856, %v6056
        %6133 = vst.msk [vmem:[#allocation6 + $0x328] sm:$0xff] %vm5856, %v6058
        %6134 = vst.msk [vmem:[#allocation6 + $0x350] sm:$0xff] %vm5856, %v6060
        %6135 = vst.msk [vmem:[#allocation6 + $0x378] sm:$0xff] %vm5856, %v6062
        %6136 = vst.msk [vmem:[#allocation6 + $0x3a0] sm:$0xff] %vm5856, %v6064
        %6137 = vst.msk [vmem:[#allocation6 + $0x3c8] sm:$0xff] %vm5856, %v6066
        %6138 = vst.msk [vmem:[#allocation6 + $0x3f0] sm:$0xff] %vm5856, %v6068
        %6139 = vst.msk [vmem:[#allocation6 + $0x418] sm:$0xff] %vm5856, %v6070
        %6140 = vst.msk [vmem:[#allocation6 + $0x440] sm:$0xff] %vm5856, %v6072
        %6141 = vst.msk [vmem:[#allocation6 + $0x468] sm:$0xff] %vm5856, %v6074
        %6142 = vst.msk [vmem:[#allocation6 + $0x490] sm:$0xff] %vm5856, %v6076
        %6143 = vst.msk [vmem:[#allocation6 + $0x4b8] sm:$0xff] %vm5856, %v6078
        %6144 = vst.msk [vmem:[#allocation6 + $0x4e0] sm:$0xff] %vm5856, %v6080
        %v6145 = vld [vmem:[%s5543 + $0x1] sm:$0xff]
        %v6146 = vld [vmem:[%s5543 + $0x9] sm:$0xff]
        %v6147 = vld [vmem:[%s5543 + $0x19] sm:$0xff]
        %v6148 = vld [vmem:[%s5543 + $0x21] sm:$0xff]
        %v6149 = vld [vmem:[%s5543 + $0x31] sm:$0xff]
        %v6150 = vld [vmem:[%s5543 + $0x39] sm:$0xff]
        %v6151 = vld [vmem:[%s5543 + $0x49] sm:$0xff]
        %v6152 = vld [vmem:[%s5543 + $0x51] sm:$0xff]
        %v6153 = vld [vmem:[%s5543 + $0x61] sm:$0xff]
        %v6154 = vld [vmem:[%s5543 + $0x69] sm:$0xff]
        %v6155 = vld [vmem:[%s5543 + $0x79] sm:$0xff]
        %v6156 = vld [vmem:[%s5543 + $0x81] sm:$0xff]
        %v6157 = vld [vmem:[%s5543 + $0x91] sm:$0xff]
        %v6158 = vld [vmem:[%s5543 + $0x99] sm:$0xff]
        %v6159 = vld [vmem:[%s5543 + $0xa9] sm:$0xff]
        %v6160 = vld [vmem:[%s5543 + $0xb1] sm:$0xff]
        %v6161 = vld [vmem:[%s5543 + $0xc1] sm:$0xff]
        %v6162 = vld [vmem:[%s5543 + $0xc9] sm:$0xff]
        %v6163 = vld [vmem:[%s5543 + $0xd9] sm:$0xff]
        %v6164 = vld [vmem:[%s5543 + $0xe1] sm:$0xff]
        %v6165 = vld [vmem:[%s5543 + $0xf1] sm:$0xff]
        %v6166 = vld [vmem:[%s5543 + $0xf9] sm:$0xff]
        %v6167 = vld [vmem:[%s5543 + $0x109] sm:$0xff]
        %v6168 = vld [vmem:[%s5543 + $0x111] sm:$0xff]
        %v6169 = vld [vmem:[%s5543 + $0x121] sm:$0xff]
        %v6170 = vld [vmem:[%s5543 + $0x129] sm:$0xff]
        %v6171 = vld [vmem:[%s5543 + $0x139] sm:$0xff]
        %v6172 = vld [vmem:[%s5543 + $0x141] sm:$0xff]
        %v6173 = vld [vmem:[%s5543 + $0x151] sm:$0xff]
        %v6174 = vld [vmem:[%s5543 + $0x159] sm:$0xff]
        %v6175 = vld [vmem:[%s5543 + $0x169] sm:$0xff]
        %v6176 = vld [vmem:[%s5543 + $0x171] sm:$0xff]
        %6177 = vst.msk [vmem:[#allocation6 + $0x10] sm:$0xff] %vm445, %v6145
        %6178 = vst.msk [vmem:[#allocation6 + $0x38] sm:$0xff] %vm445, %v6146
        %6179 = vst.msk [vmem:[#allocation6 + $0x60] sm:$0xff] %vm445, %v6147
        %6180 = vst.msk [vmem:[#allocation6 + $0x88] sm:$0xff] %vm445, %v6148
        %6181 = vst.msk [vmem:[#allocation6 + $0xb0] sm:$0xff] %vm445, %v6149
        %6182 = vst.msk [vmem:[#allocation6 + $0xd8] sm:$0xff] %vm445, %v6150
        %6183 = vst.msk [vmem:[#allocation6 + $0x100] sm:$0xff] %vm445, %v6151
        %6184 = vst.msk [vmem:[#allocation6 + $0x128] sm:$0xff] %vm445, %v6152
        %6185 = vst.msk [vmem:[#allocation6 + $0x150] sm:$0xff] %vm445, %v6153
        %6186 = vst.msk [vmem:[#allocation6 + $0x178] sm:$0xff] %vm445, %v6154
        %6187 = vst.msk [vmem:[#allocation6 + $0x1a0] sm:$0xff] %vm445, %v6155
        %6188 = vst.msk [vmem:[#allocation6 + $0x1c8] sm:$0xff] %vm445, %v6156
        %6189 = vst.msk [vmem:[#allocation6 + $0x1f0] sm:$0xff] %vm445, %v6157
        %6190 = vst.msk [vmem:[#allocation6 + $0x218] sm:$0xff] %vm445, %v6158
        %6191 = vst.msk [vmem:[#allocation6 + $0x240] sm:$0xff] %vm445, %v6159
        %6192 = vst.msk [vmem:[#allocation6 + $0x268] sm:$0xff] %vm445, %v6160
        %6193 = vst.msk [vmem:[#allocation6 + $0x290] sm:$0xff] %vm445, %v6161
        %6194 = vst.msk [vmem:[#allocation6 + $0x2b8] sm:$0xff] %vm445, %v6162
        %6195 = vst.msk [vmem:[#allocation6 + $0x2e0] sm:$0xff] %vm445, %v6163
        %6196 = vst.msk [vmem:[#allocation6 + $0x308] sm:$0xff] %vm445, %v6164
        %6197 = vst.msk [vmem:[#allocation6 + $0x330] sm:$0xff] %vm445, %v6165
        %6198 = vst.msk [vmem:[#allocation6 + $0x358] sm:$0xff] %vm445, %v6166
        %6199 = vst.msk [vmem:[#allocation6 + $0x380] sm:$0xff] %vm445, %v6167
        %6200 = vst.msk [vmem:[#allocation6 + $0x3a8] sm:$0xff] %vm445, %v6168
        %6201 = vst.msk [vmem:[#allocation6 + $0x3d0] sm:$0xff] %vm445, %v6169
        %6202 = vst.msk [vmem:[#allocation6 + $0x3f8] sm:$0xff] %vm445, %v6170
        %6203 = vst.msk [vmem:[#allocation6 + $0x420] sm:$0xff] %vm445, %v6171
        %6204 = vst.msk [vmem:[#allocation6 + $0x448] sm:$0xff] %vm445, %v6172
        %6205 = vst.msk [vmem:[#allocation6 + $0x470] sm:$0xff] %vm445, %v6173
        %6206 = vst.msk [vmem:[#allocation6 + $0x498] sm:$0xff] %vm445, %v6174
        %6207 = vst.msk [vmem:[#allocation6 + $0x4c0] sm:$0xff] %vm445, %v6175
        %6208 = vst.msk [vmem:[#allocation6 + $0x4e8] sm:$0xff] %vm445, %v6176
        %v6209 = vld [vmem:[%s5543 + $0x2] sm:$0xff]
        %v6210 = vld [vmem:[%s5543 + $0xa] sm:$0xff]
        %v6211 = vld [vmem:[%s5543 + $0x1a] sm:$0xff]
        %v6212 = vld [vmem:[%s5543 + $0x22] sm:$0xff]
        %v6213 = vld [vmem:[%s5543 + $0x32] sm:$0xff]
        %v6214 = vld [vmem:[%s5543 + $0x3a] sm:$0xff]
        %v6215 = vld [vmem:[%s5543 + $0x4a] sm:$0xff]
        %v6216 = vld [vmem:[%s5543 + $0x52] sm:$0xff]
        %v6217 = vld [vmem:[%s5543 + $0x62] sm:$0xff]
        %v6218 = vld [vmem:[%s5543 + $0x6a] sm:$0xff]
        %v6219 = vld [vmem:[%s5543 + $0x7a] sm:$0xff]
        %v6220 = vld [vmem:[%s5543 + $0x82] sm:$0xff]
        %v6221 = vld [vmem:[%s5543 + $0x92] sm:$0xff]
        %v6222 = vld [vmem:[%s5543 + $0x9a] sm:$0xff]
        %v6223 = vld [vmem:[%s5543 + $0xaa] sm:$0xff]
        %v6224 = vld [vmem:[%s5543 + $0xb2] sm:$0xff]
        %v6225 = vld [vmem:[%s5543 + $0xc2] sm:$0xff]
        %v6226 = vld [vmem:[%s5543 + $0xca] sm:$0xff]
        %v6227 = vld [vmem:[%s5543 + $0xda] sm:$0xff]
        %v6228 = vld [vmem:[%s5543 + $0xe2] sm:$0xff]
        %v6229 = vld [vmem:[%s5543 + $0xf2] sm:$0xff]
        %v6230 = vld [vmem:[%s5543 + $0xfa] sm:$0xff]
        %v6231 = vld [vmem:[%s5543 + $0x10a] sm:$0xff]
        %v6232 = vld [vmem:[%s5543 + $0x112] sm:$0xff]
        %v6233 = vld [vmem:[%s5543 + $0x122] sm:$0xff]
        %v6234 = vld [vmem:[%s5543 + $0x12a] sm:$0xff]
        %v6235 = vld [vmem:[%s5543 + $0x13a] sm:$0xff]
        %v6236 = vld [vmem:[%s5543 + $0x142] sm:$0xff]
        %v6237 = vld [vmem:[%s5543 + $0x152] sm:$0xff]
        %v6238 = vld [vmem:[%s5543 + $0x15a] sm:$0xff]
        %v6239 = vld [vmem:[%s5543 + $0x16a] sm:$0xff]
        %v6240 = vld [vmem:[%s5543 + $0x172] sm:$0xff]
        %6273 = vrot.lane.b32.xlu0 %v6209, 64
        %v6274 = vpop.permute.xlu0 %6273
        %6275 = vrot.lane.b32.xlu0 %v6210, 64
        %v6276 = vpop.permute.xlu0 %6275
        %6277 = vrot.lane.b32.xlu0 %v6211, 64
        %v6278 = vpop.permute.xlu0 %6277
        %6279 = vrot.lane.b32.xlu0 %v6212, 64
        %v6280 = vpop.permute.xlu0 %6279
        %6281 = vrot.lane.b32.xlu0 %v6213, 64
        %v6282 = vpop.permute.xlu0 %6281
        %6283 = vrot.lane.b32.xlu0 %v6214, 64
        %v6284 = vpop.permute.xlu0 %6283
        %6285 = vrot.lane.b32.xlu0 %v6215, 64
        %v6286 = vpop.permute.xlu0 %6285
        %6287 = vrot.lane.b32.xlu0 %v6216, 64
        %v6288 = vpop.permute.xlu0 %6287
        %6289 = vrot.lane.b32.xlu0 %v6217, 64
        %v6290 = vpop.permute.xlu0 %6289
        %6291 = vrot.lane.b32.xlu0 %v6218, 64
        %v6292 = vpop.permute.xlu0 %6291
        %6293 = vrot.lane.b32.xlu0 %v6219, 64
        %v6294 = vpop.permute.xlu0 %6293
        %6295 = vrot.lane.b32.xlu0 %v6220, 64
        %v6296 = vpop.permute.xlu0 %6295
        %6297 = vrot.lane.b32.xlu0 %v6221, 64
        %v6298 = vpop.permute.xlu0 %6297
        %6299 = vrot.lane.b32.xlu0 %v6222, 64
        %v6300 = vpop.permute.xlu0 %6299
        %6301 = vrot.lane.b32.xlu0 %v6223, 64
        %v6302 = vpop.permute.xlu0 %6301
        %6303 = vrot.lane.b32.xlu0 %v6224, 64
        %v6304 = vpop.permute.xlu0 %6303
        %6305 = vrot.lane.b32.xlu0 %v6225, 64
        %v6306 = vpop.permute.xlu0 %6305
        %6307 = vrot.lane.b32.xlu0 %v6226, 64
        %v6308 = vpop.permute.xlu0 %6307
        %6309 = vrot.lane.b32.xlu0 %v6227, 64
        %v6310 = vpop.permute.xlu0 %6309
        %6311 = vrot.lane.b32.xlu0 %v6228, 64
        %v6312 = vpop.permute.xlu0 %6311
        %6313 = vrot.lane.b32.xlu0 %v6229, 64
        %v6314 = vpop.permute.xlu0 %6313
        %6315 = vrot.lane.b32.xlu0 %v6230, 64
        %v6316 = vpop.permute.xlu0 %6315
        %6317 = vrot.lane.b32.xlu0 %v6231, 64
        %v6318 = vpop.permute.xlu0 %6317
        %6319 = vrot.lane.b32.xlu0 %v6232, 64
        %v6320 = vpop.permute.xlu0 %6319
        %6321 = vrot.lane.b32.xlu0 %v6233, 64
        %v6322 = vpop.permute.xlu0 %6321
        %6323 = vrot.lane.b32.xlu0 %v6234, 64
        %v6324 = vpop.permute.xlu0 %6323
        %6325 = vrot.lane.b32.xlu0 %v6235, 64
        %v6326 = vpop.permute.xlu0 %6325
        %6327 = vrot.lane.b32.xlu0 %v6236, 64
        %v6328 = vpop.permute.xlu0 %6327
        %6329 = vrot.lane.b32.xlu0 %v6237, 64
        %v6330 = vpop.permute.xlu0 %6329
        %6331 = vrot.lane.b32.xlu0 %v6238, 64
        %v6332 = vpop.permute.xlu0 %6331
        %6333 = vrot.lane.b32.xlu0 %v6239, 64
        %v6334 = vpop.permute.xlu0 %6333
        %6335 = vrot.lane.b32.xlu0 %v6240, 64
        %v6336 = vpop.permute.xlu0 %6335
        %6369 = vst.msk [vmem:[#allocation6 + $0x10] sm:$0xff] %vm5856, %v6274
        %6370 = vst.msk [vmem:[#allocation6 + $0x38] sm:$0xff] %vm5856, %v6276
        %6371 = vst.msk [vmem:[#allocation6 + $0x60] sm:$0xff] %vm5856, %v6278
        %6372 = vst.msk [vmem:[#allocation6 + $0x88] sm:$0xff] %vm5856, %v6280
        %6373 = vst.msk [vmem:[#allocation6 + $0xb0] sm:$0xff] %vm5856, %v6282
        %6374 = vst.msk [vmem:[#allocation6 + $0xd8] sm:$0xff] %vm5856, %v6284
        %6375 = vst.msk [vmem:[#allocation6 + $0x100] sm:$0xff] %vm5856, %v6286
        %6376 = vst.msk [vmem:[#allocation6 + $0x128] sm:$0xff] %vm5856, %v6288
        %6377 = vst.msk [vmem:[#allocation6 + $0x150] sm:$0xff] %vm5856, %v6290
        %6378 = vst.msk [vmem:[#allocation6 + $0x178] sm:$0xff] %vm5856, %v6292
        %6379 = vst.msk [vmem:[#allocation6 + $0x1a0] sm:$0xff] %vm5856, %v6294
        %6380 = vst.msk [vmem:[#allocation6 + $0x1c8] sm:$0xff] %vm5856, %v6296
        %6381 = vst.msk [vmem:[#allocation6 + $0x1f0] sm:$0xff] %vm5856, %v6298
        %6382 = vst.msk [vmem:[#allocation6 + $0x218] sm:$0xff] %vm5856, %v6300
        %6383 = vst.msk [vmem:[#allocation6 + $0x240] sm:$0xff] %vm5856, %v6302
        %6384 = vst.msk [vmem:[#allocation6 + $0x268] sm:$0xff] %vm5856, %v6304
        %6385 = vst.msk [vmem:[#allocation6 + $0x290] sm:$0xff] %vm5856, %v6306
        %6386 = vst.msk [vmem:[#allocation6 + $0x2b8] sm:$0xff] %vm5856, %v6308
        %6387 = vst.msk [vmem:[#allocation6 + $0x2e0] sm:$0xff] %vm5856, %v6310
        %6388 = vst.msk [vmem:[#allocation6 + $0x308] sm:$0xff] %vm5856, %v6312
        %6389 = vst.msk [vmem:[#allocation6 + $0x330] sm:$0xff] %vm5856, %v6314
        %6390 = vst.msk [vmem:[#allocation6 + $0x358] sm:$0xff] %vm5856, %v6316
        %6391 = vst.msk [vmem:[#allocation6 + $0x380] sm:$0xff] %vm5856, %v6318
        %6392 = vst.msk [vmem:[#allocation6 + $0x3a8] sm:$0xff] %vm5856, %v6320
        %6393 = vst.msk [vmem:[#allocation6 + $0x3d0] sm:$0xff] %vm5856, %v6322
        %6394 = vst.msk [vmem:[#allocation6 + $0x3f8] sm:$0xff] %vm5856, %v6324
        %6395 = vst.msk [vmem:[#allocation6 + $0x420] sm:$0xff] %vm5856, %v6326
        %6396 = vst.msk [vmem:[#allocation6 + $0x448] sm:$0xff] %vm5856, %v6328
        %6397 = vst.msk [vmem:[#allocation6 + $0x470] sm:$0xff] %vm5856, %v6330
        %6398 = vst.msk [vmem:[#allocation6 + $0x498] sm:$0xff] %vm5856, %v6332
        %6399 = vst.msk [vmem:[#allocation6 + $0x4c0] sm:$0xff] %vm5856, %v6334
        %6400 = vst.msk [vmem:[#allocation6 + $0x4e8] sm:$0xff] %vm5856, %v6336
        %s6401 = scalar_lea.vmem [#allocation3], 48
        %v6402 = vld [vmem:[%s6401] sm:$0xff]
        %v6403 = vld [vmem:[%s6401 + $0x8] sm:$0xff]
        %v6404 = vld [vmem:[%s6401 + $0x18] sm:$0xff]
        %v6405 = vld [vmem:[%s6401 + $0x20] sm:$0xff]
        %v6406 = vld [vmem:[%s6401 + $0x30] sm:$0xff]
        %v6407 = vld [vmem:[%s6401 + $0x38] sm:$0xff]
        %v6408 = vld [vmem:[%s6401 + $0x48] sm:$0xff]
        %v6409 = vld [vmem:[%s6401 + $0x50] sm:$0xff]
        %v6410 = vld [vmem:[%s6401 + $0x60] sm:$0xff]
        %v6411 = vld [vmem:[%s6401 + $0x68] sm:$0xff]
        %v6412 = vld [vmem:[%s6401 + $0x78] sm:$0xff]
        %v6413 = vld [vmem:[%s6401 + $0x80] sm:$0xff]
        %v6414 = vld [vmem:[%s6401 + $0x90] sm:$0xff]
        %v6415 = vld [vmem:[%s6401 + $0x98] sm:$0xff]
        %v6416 = vld [vmem:[%s6401 + $0xa8] sm:$0xff]
        %v6417 = vld [vmem:[%s6401 + $0xb0] sm:$0xff]
        %v6418 = vld [vmem:[%s6401 + $0xc0] sm:$0xff]
        %v6419 = vld [vmem:[%s6401 + $0xc8] sm:$0xff]
        %v6420 = vld [vmem:[%s6401 + $0xd8] sm:$0xff]
        %v6421 = vld [vmem:[%s6401 + $0xe0] sm:$0xff]
        %v6422 = vld [vmem:[%s6401 + $0xf0] sm:$0xff]
        %v6423 = vld [vmem:[%s6401 + $0xf8] sm:$0xff]
        %v6424 = vld [vmem:[%s6401 + $0x108] sm:$0xff]
        %v6425 = vld [vmem:[%s6401 + $0x110] sm:$0xff]
        %v6426 = vld [vmem:[%s6401 + $0x120] sm:$0xff]
        %v6427 = vld [vmem:[%s6401 + $0x128] sm:$0xff]
        %v6428 = vld [vmem:[%s6401 + $0x138] sm:$0xff]
        %v6429 = vld [vmem:[%s6401 + $0x140] sm:$0xff]
        %v6430 = vld [vmem:[%s6401 + $0x150] sm:$0xff]
        %v6431 = vld [vmem:[%s6401 + $0x158] sm:$0xff]
        %v6432 = vld [vmem:[%s6401 + $0x168] sm:$0xff]
        %v6433 = vld [vmem:[%s6401 + $0x170] sm:$0xff]
        %6434 = vst.msk [vmem:[#allocation6 + $0x18] sm:$0xff] %vm445, %v6402
        %6435 = vst.msk [vmem:[#allocation6 + $0x40] sm:$0xff] %vm445, %v6403
        %6436 = vst.msk [vmem:[#allocation6 + $0x68] sm:$0xff] %vm445, %v6404
        %6437 = vst.msk [vmem:[#allocation6 + $0x90] sm:$0xff] %vm445, %v6405
        %6438 = vst.msk [vmem:[#allocation6 + $0xb8] sm:$0xff] %vm445, %v6406
        %6439 = vst.msk [vmem:[#allocation6 + $0xe0] sm:$0xff] %vm445, %v6407
        %6440 = vst.msk [vmem:[#allocation6 + $0x108] sm:$0xff] %vm445, %v6408
        %6441 = vst.msk [vmem:[#allocation6 + $0x130] sm:$0xff] %vm445, %v6409
        %6442 = vst.msk [vmem:[#allocation6 + $0x158] sm:$0xff] %vm445, %v6410
        %6443 = vst.msk [vmem:[#allocation6 + $0x180] sm:$0xff] %vm445, %v6411
        %6444 = vst.msk [vmem:[#allocation6 + $0x1a8] sm:$0xff] %vm445, %v6412
        %6445 = vst.msk [vmem:[#allocation6 + $0x1d0] sm:$0xff] %vm445, %v6413
        %6446 = vst.msk [vmem:[#allocation6 + $0x1f8] sm:$0xff] %vm445, %v6414
        %6447 = vst.msk [vmem:[#allocation6 + $0x220] sm:$0xff] %vm445, %v6415
        %6448 = vst.msk [vmem:[#allocation6 + $0x248] sm:$0xff] %vm445, %v6416
        %6449 = vst.msk [vmem:[#allocation6 + $0x270] sm:$0xff] %vm445, %v6417
        %6450 = vst.msk [vmem:[#allocation6 + $0x298] sm:$0xff] %vm445, %v6418
        %6451 = vst.msk [vmem:[#allocation6 + $0x2c0] sm:$0xff] %vm445, %v6419
        %6452 = vst.msk [vmem:[#allocation6 + $0x2e8] sm:$0xff] %vm445, %v6420
        %6453 = vst.msk [vmem:[#allocation6 + $0x310] sm:$0xff] %vm445, %v6421
        %6454 = vst.msk [vmem:[#allocation6 + $0x338] sm:$0xff] %vm445, %v6422
        %6455 = vst.msk [vmem:[#allocation6 + $0x360] sm:$0xff] %vm445, %v6423
        %6456 = vst.msk [vmem:[#allocation6 + $0x388] sm:$0xff] %vm445, %v6424
        %6457 = vst.msk [vmem:[#allocation6 + $0x3b0] sm:$0xff] %vm445, %v6425
        %6458 = vst.msk [vmem:[#allocation6 + $0x3d8] sm:$0xff] %vm445, %v6426
        %6459 = vst.msk [vmem:[#allocation6 + $0x400] sm:$0xff] %vm445, %v6427
        %6460 = vst.msk [vmem:[#allocation6 + $0x428] sm:$0xff] %vm445, %v6428
        %6461 = vst.msk [vmem:[#allocation6 + $0x450] sm:$0xff] %vm445, %v6429
        %6462 = vst.msk [vmem:[#allocation6 + $0x478] sm:$0xff] %vm445, %v6430
        %6463 = vst.msk [vmem:[#allocation6 + $0x4a0] sm:$0xff] %vm445, %v6431
        %6464 = vst.msk [vmem:[#allocation6 + $0x4c8] sm:$0xff] %vm445, %v6432
        %6465 = vst.msk [vmem:[#allocation6 + $0x4f0] sm:$0xff] %vm445, %v6433
        %v6466 = vld [vmem:[%s6401 + $0x1] sm:$0xff]
        %v6467 = vld [vmem:[%s6401 + $0x9] sm:$0xff]
        %v6468 = vld [vmem:[%s6401 + $0x19] sm:$0xff]
        %v6469 = vld [vmem:[%s6401 + $0x21] sm:$0xff]
        %v6470 = vld [vmem:[%s6401 + $0x31] sm:$0xff]
        %v6471 = vld [vmem:[%s6401 + $0x39] sm:$0xff]
        %v6472 = vld [vmem:[%s6401 + $0x49] sm:$0xff]
        %v6473 = vld [vmem:[%s6401 + $0x51] sm:$0xff]
        %v6474 = vld [vmem:[%s6401 + $0x61] sm:$0xff]
        %v6475 = vld [vmem:[%s6401 + $0x69] sm:$0xff]
        %v6476 = vld [vmem:[%s6401 + $0x79] sm:$0xff]
        %v6477 = vld [vmem:[%s6401 + $0x81] sm:$0xff]
        %v6478 = vld [vmem:[%s6401 + $0x91] sm:$0xff]
        %v6479 = vld [vmem:[%s6401 + $0x99] sm:$0xff]
        %v6480 = vld [vmem:[%s6401 + $0xa9] sm:$0xff]
        %v6481 = vld [vmem:[%s6401 + $0xb1] sm:$0xff]
        %v6482 = vld [vmem:[%s6401 + $0xc1] sm:$0xff]
        %v6483 = vld [vmem:[%s6401 + $0xc9] sm:$0xff]
        %v6484 = vld [vmem:[%s6401 + $0xd9] sm:$0xff]
        %v6485 = vld [vmem:[%s6401 + $0xe1] sm:$0xff]
        %v6486 = vld [vmem:[%s6401 + $0xf1] sm:$0xff]
        %v6487 = vld [vmem:[%s6401 + $0xf9] sm:$0xff]
        %v6488 = vld [vmem:[%s6401 + $0x109] sm:$0xff]
        %v6489 = vld [vmem:[%s6401 + $0x111] sm:$0xff]
        %v6490 = vld [vmem:[%s6401 + $0x121] sm:$0xff]
        %v6491 = vld [vmem:[%s6401 + $0x129] sm:$0xff]
        %v6492 = vld [vmem:[%s6401 + $0x139] sm:$0xff]
        %v6493 = vld [vmem:[%s6401 + $0x141] sm:$0xff]
        %v6494 = vld [vmem:[%s6401 + $0x151] sm:$0xff]
        %v6495 = vld [vmem:[%s6401 + $0x159] sm:$0xff]
        %v6496 = vld [vmem:[%s6401 + $0x169] sm:$0xff]
        %v6497 = vld [vmem:[%s6401 + $0x171] sm:$0xff]
        %6530 = vrot.lane.b32.xlu0 %v6466, 64
        %v6531 = vpop.permute.xlu0 %6530
        %6532 = vrot.lane.b32.xlu0 %v6467, 64
        %v6533 = vpop.permute.xlu0 %6532
        %6534 = vrot.lane.b32.xlu0 %v6468, 64
        %v6535 = vpop.permute.xlu0 %6534
        %6536 = vrot.lane.b32.xlu0 %v6469, 64
        %v6537 = vpop.permute.xlu0 %6536
        %6538 = vrot.lane.b32.xlu0 %v6470, 64
        %v6539 = vpop.permute.xlu0 %6538
        %6540 = vrot.lane.b32.xlu0 %v6471, 64
        %v6541 = vpop.permute.xlu0 %6540
        %6542 = vrot.lane.b32.xlu0 %v6472, 64
        %v6543 = vpop.permute.xlu0 %6542
        %6544 = vrot.lane.b32.xlu0 %v6473, 64
        %v6545 = vpop.permute.xlu0 %6544
        %6546 = vrot.lane.b32.xlu0 %v6474, 64
        %v6547 = vpop.permute.xlu0 %6546
        %6548 = vrot.lane.b32.xlu0 %v6475, 64
        %v6549 = vpop.permute.xlu0 %6548
        %6550 = vrot.lane.b32.xlu0 %v6476, 64
        %v6551 = vpop.permute.xlu0 %6550
        %6552 = vrot.lane.b32.xlu0 %v6477, 64
        %v6553 = vpop.permute.xlu0 %6552
        %6554 = vrot.lane.b32.xlu0 %v6478, 64
        %v6555 = vpop.permute.xlu0 %6554
        %6556 = vrot.lane.b32.xlu0 %v6479, 64
        %v6557 = vpop.permute.xlu0 %6556
        %6558 = vrot.lane.b32.xlu0 %v6480, 64
        %v6559 = vpop.permute.xlu0 %6558
        %6560 = vrot.lane.b32.xlu0 %v6481, 64
        %v6561 = vpop.permute.xlu0 %6560
        %6562 = vrot.lane.b32.xlu0 %v6482, 64
        %v6563 = vpop.permute.xlu0 %6562
        %6564 = vrot.lane.b32.xlu0 %v6483, 64
        %v6565 = vpop.permute.xlu0 %6564
        %6566 = vrot.lane.b32.xlu0 %v6484, 64
        %v6567 = vpop.permute.xlu0 %6566
        %6568 = vrot.lane.b32.xlu0 %v6485, 64
        %v6569 = vpop.permute.xlu0 %6568
        %6570 = vrot.lane.b32.xlu0 %v6486, 64
        %v6571 = vpop.permute.xlu0 %6570
        %6572 = vrot.lane.b32.xlu0 %v6487, 64
        %v6573 = vpop.permute.xlu0 %6572
        %6574 = vrot.lane.b32.xlu0 %v6488, 64
        %v6575 = vpop.permute.xlu0 %6574
        %6576 = vrot.lane.b32.xlu0 %v6489, 64
        %v6577 = vpop.permute.xlu0 %6576
        %6578 = vrot.lane.b32.xlu0 %v6490, 64
        %v6579 = vpop.permute.xlu0 %6578
        %6580 = vrot.lane.b32.xlu0 %v6491, 64
        %v6581 = vpop.permute.xlu0 %6580
        %6582 = vrot.lane.b32.xlu0 %v6492, 64
        %v6583 = vpop.permute.xlu0 %6582
        %6584 = vrot.lane.b32.xlu0 %v6493, 64
        %v6585 = vpop.permute.xlu0 %6584
        %6586 = vrot.lane.b32.xlu0 %v6494, 64
        %v6587 = vpop.permute.xlu0 %6586
        %6588 = vrot.lane.b32.xlu0 %v6495, 64
        %v6589 = vpop.permute.xlu0 %6588
        %6590 = vrot.lane.b32.xlu0 %v6496, 64
        %v6591 = vpop.permute.xlu0 %6590
        %6592 = vrot.lane.b32.xlu0 %v6497, 64
        %v6593 = vpop.permute.xlu0 %6592
        %6626 = vst.msk [vmem:[#allocation6 + $0x18] sm:$0xff] %vm5856, %v6531
        %6627 = vst.msk [vmem:[#allocation6 + $0x40] sm:$0xff] %vm5856, %v6533
        %6628 = vst.msk [vmem:[#allocation6 + $0x68] sm:$0xff] %vm5856, %v6535
        %6629 = vst.msk [vmem:[#allocation6 + $0x90] sm:$0xff] %vm5856, %v6537
        %6630 = vst.msk [vmem:[#allocation6 + $0xb8] sm:$0xff] %vm5856, %v6539
        %6631 = vst.msk [vmem:[#allocation6 + $0xe0] sm:$0xff] %vm5856, %v6541
        %6632 = vst.msk [vmem:[#allocation6 + $0x108] sm:$0xff] %vm5856, %v6543
        %6633 = vst.msk [vmem:[#allocation6 + $0x130] sm:$0xff] %vm5856, %v6545
        %6634 = vst.msk [vmem:[#allocation6 + $0x158] sm:$0xff] %vm5856, %v6547
        %6635 = vst.msk [vmem:[#allocation6 + $0x180] sm:$0xff] %vm5856, %v6549
        %6636 = vst.msk [vmem:[#allocation6 + $0x1a8] sm:$0xff] %vm5856, %v6551
        %6637 = vst.msk [vmem:[#allocation6 + $0x1d0] sm:$0xff] %vm5856, %v6553
        %6638 = vst.msk [vmem:[#allocation6 + $0x1f8] sm:$0xff] %vm5856, %v6555
        %6639 = vst.msk [vmem:[#allocation6 + $0x220] sm:$0xff] %vm5856, %v6557
        %6640 = vst.msk [vmem:[#allocation6 + $0x248] sm:$0xff] %vm5856, %v6559
        %6641 = vst.msk [vmem:[#allocation6 + $0x270] sm:$0xff] %vm5856, %v6561
        %6642 = vst.msk [vmem:[#allocation6 + $0x298] sm:$0xff] %vm5856, %v6563
        %6643 = vst.msk [vmem:[#allocation6 + $0x2c0] sm:$0xff] %vm5856, %v6565
        %6644 = vst.msk [vmem:[#allocation6 + $0x2e8] sm:$0xff] %vm5856, %v6567
        %6645 = vst.msk [vmem:[#allocation6 + $0x310] sm:$0xff] %vm5856, %v6569
        %6646 = vst.msk [vmem:[#allocation6 + $0x338] sm:$0xff] %vm5856, %v6571
        %6647 = vst.msk [vmem:[#allocation6 + $0x360] sm:$0xff] %vm5856, %v6573
        %6648 = vst.msk [vmem:[#allocation6 + $0x388] sm:$0xff] %vm5856, %v6575
        %6649 = vst.msk [vmem:[#allocation6 + $0x3b0] sm:$0xff] %vm5856, %v6577
        %6650 = vst.msk [vmem:[#allocation6 + $0x3d8] sm:$0xff] %vm5856, %v6579
        %6651 = vst.msk [vmem:[#allocation6 + $0x400] sm:$0xff] %vm5856, %v6581
        %6652 = vst.msk [vmem:[#allocation6 + $0x428] sm:$0xff] %vm5856, %v6583
        %6653 = vst.msk [vmem:[#allocation6 + $0x450] sm:$0xff] %vm5856, %v6585
        %6654 = vst.msk [vmem:[#allocation6 + $0x478] sm:$0xff] %vm5856, %v6587
        %6655 = vst.msk [vmem:[#allocation6 + $0x4a0] sm:$0xff] %vm5856, %v6589
        %6656 = vst.msk [vmem:[#allocation6 + $0x4c8] sm:$0xff] %vm5856, %v6591
        %6657 = vst.msk [vmem:[#allocation6 + $0x4f0] sm:$0xff] %vm5856, %v6593
        %v6658 = vld [vmem:[%s6401 + $0x2] sm:$0xff]
        %v6659 = vld [vmem:[%s6401 + $0xa] sm:$0xff]
        %v6660 = vld [vmem:[%s6401 + $0x1a] sm:$0xff]
        %v6661 = vld [vmem:[%s6401 + $0x22] sm:$0xff]
        %v6662 = vld [vmem:[%s6401 + $0x32] sm:$0xff]
        %v6663 = vld [vmem:[%s6401 + $0x3a] sm:$0xff]
        %v6664 = vld [vmem:[%s6401 + $0x4a] sm:$0xff]
        %v6665 = vld [vmem:[%s6401 + $0x52] sm:$0xff]
        %v6666 = vld [vmem:[%s6401 + $0x62] sm:$0xff]
        %v6667 = vld [vmem:[%s6401 + $0x6a] sm:$0xff]
        %v6668 = vld [vmem:[%s6401 + $0x7a] sm:$0xff]
        %v6669 = vld [vmem:[%s6401 + $0x82] sm:$0xff]
        %v6670 = vld [vmem:[%s6401 + $0x92] sm:$0xff]
        %v6671 = vld [vmem:[%s6401 + $0x9a] sm:$0xff]
        %v6672 = vld [vmem:[%s6401 + $0xaa] sm:$0xff]
        %v6673 = vld [vmem:[%s6401 + $0xb2] sm:$0xff]
        %v6674 = vld [vmem:[%s6401 + $0xc2] sm:$0xff]
        %v6675 = vld [vmem:[%s6401 + $0xca] sm:$0xff]
        %v6676 = vld [vmem:[%s6401 + $0xda] sm:$0xff]
        %v6677 = vld [vmem:[%s6401 + $0xe2] sm:$0xff]
        %v6678 = vld [vmem:[%s6401 + $0xf2] sm:$0xff]
        %v6679 = vld [vmem:[%s6401 + $0xfa] sm:$0xff]
        %v6680 = vld [vmem:[%s6401 + $0x10a] sm:$0xff]
        %v6681 = vld [vmem:[%s6401 + $0x112] sm:$0xff]
        %v6682 = vld [vmem:[%s6401 + $0x122] sm:$0xff]
        %v6683 = vld [vmem:[%s6401 + $0x12a] sm:$0xff]
        %v6684 = vld [vmem:[%s6401 + $0x13a] sm:$0xff]
        %v6685 = vld [vmem:[%s6401 + $0x142] sm:$0xff]
        %v6686 = vld [vmem:[%s6401 + $0x152] sm:$0xff]
        %v6687 = vld [vmem:[%s6401 + $0x15a] sm:$0xff]
        %v6688 = vld [vmem:[%s6401 + $0x16a] sm:$0xff]
        %v6689 = vld [vmem:[%s6401 + $0x172] sm:$0xff]
        %6690 = vst.msk [vmem:[#allocation6 + $0x20] sm:$0xff] %vm445, %v6658
        %6691 = vst.msk [vmem:[#allocation6 + $0x48] sm:$0xff] %vm445, %v6659
        %6692 = vst.msk [vmem:[#allocation6 + $0x70] sm:$0xff] %vm445, %v6660
        %6693 = vst.msk [vmem:[#allocation6 + $0x98] sm:$0xff] %vm445, %v6661
        %6694 = vst.msk [vmem:[#allocation6 + $0xc0] sm:$0xff] %vm445, %v6662
        %6695 = vst.msk [vmem:[#allocation6 + $0xe8] sm:$0xff] %vm445, %v6663
        %6696 = vst.msk [vmem:[#allocation6 + $0x110] sm:$0xff] %vm445, %v6664
        %6697 = vst.msk [vmem:[#allocation6 + $0x138] sm:$0xff] %vm445, %v6665
        %6698 = vst.msk [vmem:[#allocation6 + $0x160] sm:$0xff] %vm445, %v6666
        %6699 = vst.msk [vmem:[#allocation6 + $0x188] sm:$0xff] %vm445, %v6667
        %6700 = vst.msk [vmem:[#allocation6 + $0x1b0] sm:$0xff] %vm445, %v6668
        %6701 = vst.msk [vmem:[#allocation6 + $0x1d8] sm:$0xff] %vm445, %v6669
        %6702 = vst.msk [vmem:[#allocation6 + $0x200] sm:$0xff] %vm445, %v6670
        %6703 = vst.msk [vmem:[#allocation6 + $0x228] sm:$0xff] %vm445, %v6671
        %6704 = vst.msk [vmem:[#allocation6 + $0x250] sm:$0xff] %vm445, %v6672
        %6705 = vst.msk [vmem:[#allocation6 + $0x278] sm:$0xff] %vm445, %v6673
        %6706 = vst.msk [vmem:[#allocation6 + $0x2a0] sm:$0xff] %vm445, %v6674
        %6707 = vst.msk [vmem:[#allocation6 + $0x2c8] sm:$0xff] %vm445, %v6675
        %6708 = vst.msk [vmem:[#allocation6 + $0x2f0] sm:$0xff] %vm445, %v6676
        %6709 = vst.msk [vmem:[#allocation6 + $0x318] sm:$0xff] %vm445, %v6677
        %6710 = vst.msk [vmem:[#allocation6 + $0x340] sm:$0xff] %vm445, %v6678
        %6711 = vst.msk [vmem:[#allocation6 + $0x368] sm:$0xff] %vm445, %v6679
        %6712 = vst.msk [vmem:[#allocation6 + $0x390] sm:$0xff] %vm445, %v6680
        %6713 = vst.msk [vmem:[#allocation6 + $0x3b8] sm:$0xff] %vm445, %v6681
        %6714 = vst.msk [vmem:[#allocation6 + $0x3e0] sm:$0xff] %vm445, %v6682
        %6715 = vst.msk [vmem:[#allocation6 + $0x408] sm:$0xff] %vm445, %v6683
        %6716 = vst.msk [vmem:[#allocation6 + $0x430] sm:$0xff] %vm445, %v6684
        %6717 = vst.msk [vmem:[#allocation6 + $0x458] sm:$0xff] %vm445, %v6685
        %6718 = vst.msk [vmem:[#allocation6 + $0x480] sm:$0xff] %vm445, %v6686
        %6719 = vst.msk [vmem:[#allocation6 + $0x4a8] sm:$0xff] %vm445, %v6687
        %6720 = vst.msk [vmem:[#allocation6 + $0x4d0] sm:$0xff] %vm445, %v6688
        %6721 = vst.msk [vmem:[#allocation6 + $0x4f8] sm:$0xff] %vm445, %v6689
        %v6722 = vld [vmem:[#allocation6] sm:$0xff]
        %v6723 = vld [vmem:[#allocation6 + $0x8] sm:$0xff]
        %v6724 = vld [vmem:[#allocation6 + $0x10] sm:$0xff]
        %v6725 = vld [vmem:[#allocation6 + $0x18] sm:$0xff]
        %v6726 = vld [vmem:[#allocation6 + $0x20] sm:$0xff]
        %v6727 = vld [vmem:[#allocation6 + $0x28] sm:$0xff]
        %v6728 = vld [vmem:[#allocation6 + $0x30] sm:$0xff]
        %v6729 = vld [vmem:[#allocation6 + $0x38] sm:$0xff]
        %v6730 = vld [vmem:[#allocation6 + $0x40] sm:$0xff]
        %v6731 = vld [vmem:[#allocation6 + $0x48] sm:$0xff]
        %v6732 = vld [vmem:[#allocation6 + $0x50] sm:$0xff]
        %v6733 = vld [vmem:[#allocation6 + $0x58] sm:$0xff]
        %v6734 = vld [vmem:[#allocation6 + $0x60] sm:$0xff]
        %v6735 = vld [vmem:[#allocation6 + $0x68] sm:$0xff]
        %v6736 = vld [vmem:[#allocation6 + $0x70] sm:$0xff]
        %v6737 = vld [vmem:[#allocation6 + $0x78] sm:$0xff]
        %v6738 = vld [vmem:[#allocation6 + $0x80] sm:$0xff]
        %v6739 = vld [vmem:[#allocation6 + $0x88] sm:$0xff]
        %v6740 = vld [vmem:[#allocation6 + $0x90] sm:$0xff]
        %v6741 = vld [vmem:[#allocation6 + $0x98] sm:$0xff]
        %v6742 = vld [vmem:[#allocation6 + $0xa0] sm:$0xff]
        %v6743 = vld [vmem:[#allocation6 + $0xa8] sm:$0xff]
        %v6744 = vld [vmem:[#allocation6 + $0xb0] sm:$0xff]
        %v6745 = vld [vmem:[#allocation6 + $0xb8] sm:$0xff]
        %v6746 = vld [vmem:[#allocation6 + $0xc0] sm:$0xff]
        %v6747 = vld [vmem:[#allocation6 + $0xc8] sm:$0xff]
        %v6748 = vld [vmem:[#allocation6 + $0xd0] sm:$0xff]
        %v6749 = vld [vmem:[#allocation6 + $0xd8] sm:$0xff]
        %v6750 = vld [vmem:[#allocation6 + $0xe0] sm:$0xff]
        %v6751 = vld [vmem:[#allocation6 + $0xe8] sm:$0xff]
        %v6752 = vld [vmem:[#allocation6 + $0xf0] sm:$0xff]
        %v6753 = vld [vmem:[#allocation6 + $0xf8] sm:$0xff]
        %v6754 = vld [vmem:[#allocation6 + $0x100] sm:$0xff]
        %v6755 = vld [vmem:[#allocation6 + $0x108] sm:$0xff]
        %v6756 = vld [vmem:[#allocation6 + $0x110] sm:$0xff]
        %v6757 = vld [vmem:[#allocation6 + $0x118] sm:$0xff]
        %v6758 = vld [vmem:[#allocation6 + $0x120] sm:$0xff]
        %v6759 = vld [vmem:[#allocation6 + $0x128] sm:$0xff]
        %v6760 = vld [vmem:[#allocation6 + $0x130] sm:$0xff]
        %v6761 = vld [vmem:[#allocation6 + $0x138] sm:$0xff]
        %v6762 = vld [vmem:[#allocation6 + $0x140] sm:$0xff]
        %v6763 = vld [vmem:[#allocation6 + $0x148] sm:$0xff]
        %v6764 = vld [vmem:[#allocation6 + $0x150] sm:$0xff]
        %v6765 = vld [vmem:[#allocation6 + $0x158] sm:$0xff]
        %v6766 = vld [vmem:[#allocation6 + $0x160] sm:$0xff]
        %v6767 = vld [vmem:[#allocation6 + $0x168] sm:$0xff]
        %v6768 = vld [vmem:[#allocation6 + $0x170] sm:$0xff]
        %v6769 = vld [vmem:[#allocation6 + $0x178] sm:$0xff]
        %v6770 = vld [vmem:[#allocation6 + $0x180] sm:$0xff]
        %v6771 = vld [vmem:[#allocation6 + $0x188] sm:$0xff]
        %v6772 = vld [vmem:[#allocation6 + $0x190] sm:$0xff]
        %v6773 = vld [vmem:[#allocation6 + $0x198] sm:$0xff]
        %v6774 = vld [vmem:[#allocation6 + $0x1a0] sm:$0xff]
        %v6775 = vld [vmem:[#allocation6 + $0x1a8] sm:$0xff]
        %v6776 = vld [vmem:[#allocation6 + $0x1b0] sm:$0xff]
        %v6777 = vld [vmem:[#allocation6 + $0x1b8] sm:$0xff]
        %v6778 = vld [vmem:[#allocation6 + $0x1c0] sm:$0xff]
        %v6779 = vld [vmem:[#allocation6 + $0x1c8] sm:$0xff]
        %v6780 = vld [vmem:[#allocation6 + $0x1d0] sm:$0xff]
        %v6781 = vld [vmem:[#allocation6 + $0x1d8] sm:$0xff]
        %v6782 = vld [vmem:[#allocation6 + $0x1e0] sm:$0xff]
        %v6783 = vld [vmem:[#allocation6 + $0x1e8] sm:$0xff]
        %v6784 = vld [vmem:[#allocation6 + $0x1f0] sm:$0xff]
        %v6785 = vld [vmem:[#allocation6 + $0x1f8] sm:$0xff]
        %v6786 = vld [vmem:[#allocation6 + $0x200] sm:$0xff]
        %v6787 = vld [vmem:[#allocation6 + $0x208] sm:$0xff]
        %v6788 = vld [vmem:[#allocation6 + $0x210] sm:$0xff]
        %v6789 = vld [vmem:[#allocation6 + $0x218] sm:$0xff]
        %v6790 = vld [vmem:[#allocation6 + $0x220] sm:$0xff]
        %v6791 = vld [vmem:[#allocation6 + $0x228] sm:$0xff]
        %v6792 = vld [vmem:[#allocation6 + $0x230] sm:$0xff]
        %v6793 = vld [vmem:[#allocation6 + $0x238] sm:$0xff]
        %v6794 = vld [vmem:[#allocation6 + $0x240] sm:$0xff]
        %v6795 = vld [vmem:[#allocation6 + $0x248] sm:$0xff]
        %v6796 = vld [vmem:[#allocation6 + $0x250] sm:$0xff]
        %v6797 = vld [vmem:[#allocation6 + $0x258] sm:$0xff]
        %v6798 = vld [vmem:[#allocation6 + $0x260] sm:$0xff]
        %v6799 = vld [vmem:[#allocation6 + $0x268] sm:$0xff]
        %v6800 = vld [vmem:[#allocation6 + $0x270] sm:$0xff]
        %v6801 = vld [vmem:[#allocation6 + $0x278] sm:$0xff]
        %v6802 = vld [vmem:[#allocation6 + $0x280] sm:$0xff]
        %v6803 = vld [vmem:[#allocation6 + $0x288] sm:$0xff]
        %v6804 = vld [vmem:[#allocation6 + $0x290] sm:$0xff]
        %v6805 = vld [vmem:[#allocation6 + $0x298] sm:$0xff]
        %v6806 = vld [vmem:[#allocation6 + $0x2a0] sm:$0xff]
        %v6807 = vld [vmem:[#allocation6 + $0x2a8] sm:$0xff]
        %v6808 = vld [vmem:[#allocation6 + $0x2b0] sm:$0xff]
        %v6809 = vld [vmem:[#allocation6 + $0x2b8] sm:$0xff]
        %v6810 = vld [vmem:[#allocation6 + $0x2c0] sm:$0xff]
        %v6811 = vld [vmem:[#allocation6 + $0x2c8] sm:$0xff]
        %v6812 = vld [vmem:[#allocation6 + $0x2d0] sm:$0xff]
        %v6813 = vld [vmem:[#allocation6 + $0x2d8] sm:$0xff]
        %v6814 = vld [vmem:[#allocation6 + $0x2e0] sm:$0xff]
        %v6815 = vld [vmem:[#allocation6 + $0x2e8] sm:$0xff]
        %v6816 = vld [vmem:[#allocation6 + $0x2f0] sm:$0xff]
        %v6817 = vld [vmem:[#allocation6 + $0x2f8] sm:$0xff]
        %v6818 = vld [vmem:[#allocation6 + $0x300] sm:$0xff]
        %v6819 = vld [vmem:[#allocation6 + $0x308] sm:$0xff]
        %v6820 = vld [vmem:[#allocation6 + $0x310] sm:$0xff]
        %v6821 = vld [vmem:[#allocation6 + $0x318] sm:$0xff]
        %v6822 = vld [vmem:[#allocation6 + $0x320] sm:$0xff]
        %v6823 = vld [vmem:[#allocation6 + $0x328] sm:$0xff]
        %v6824 = vld [vmem:[#allocation6 + $0x330] sm:$0xff]
        %v6825 = vld [vmem:[#allocation6 + $0x338] sm:$0xff]
        %v6826 = vld [vmem:[#allocation6 + $0x340] sm:$0xff]
        %v6827 = vld [vmem:[#allocation6 + $0x348] sm:$0xff]
        %v6828 = vld [vmem:[#allocation6 + $0x350] sm:$0xff]
        %v6829 = vld [vmem:[#allocation6 + $0x358] sm:$0xff]
        %v6830 = vld [vmem:[#allocation6 + $0x360] sm:$0xff]
        %v6831 = vld [vmem:[#allocation6 + $0x368] sm:$0xff]
        %v6832 = vld [vmem:[#allocation6 + $0x370] sm:$0xff]
        %v6833 = vld [vmem:[#allocation6 + $0x378] sm:$0xff]
        %v6834 = vld [vmem:[#allocation6 + $0x380] sm:$0xff]
        %v6835 = vld [vmem:[#allocation6 + $0x388] sm:$0xff]
        %v6836 = vld [vmem:[#allocation6 + $0x390] sm:$0xff]
        %v6837 = vld [vmem:[#allocation6 + $0x398] sm:$0xff]
        %v6838 = vld [vmem:[#allocation6 + $0x3a0] sm:$0xff]
        %v6839 = vld [vmem:[#allocation6 + $0x3a8] sm:$0xff]
        %v6840 = vld [vmem:[#allocation6 + $0x3b0] sm:$0xff]
        %v6841 = vld [vmem:[#allocation6 + $0x3b8] sm:$0xff]
        %v6842 = vld [vmem:[#allocation6 + $0x3c0] sm:$0xff]
        %v6843 = vld [vmem:[#allocation6 + $0x3c8] sm:$0xff]
        %v6844 = vld [vmem:[#allocation6 + $0x3d0] sm:$0xff]
        %v6845 = vld [vmem:[#allocation6 + $0x3d8] sm:$0xff]
        %v6846 = vld [vmem:[#allocation6 + $0x3e0] sm:$0xff]
        %v6847 = vld [vmem:[#allocation6 + $0x3e8] sm:$0xff]
        %v6848 = vld [vmem:[#allocation6 + $0x3f0] sm:$0xff]
        %v6849 = vld [vmem:[#allocation6 + $0x3f8] sm:$0xff]
        %v6850 = vld [vmem:[#allocation6 + $0x400] sm:$0xff]
        %v6851 = vld [vmem:[#allocation6 + $0x408] sm:$0xff]
        %v6852 = vld [vmem:[#allocation6 + $0x410] sm:$0xff]
        %v6853 = vld [vmem:[#allocation6 + $0x418] sm:$0xff]
        %v6854 = vld [vmem:[#allocation6 + $0x420] sm:$0xff]
        %v6855 = vld [vmem:[#allocation6 + $0x428] sm:$0xff]
        %v6856 = vld [vmem:[#allocation6 + $0x430] sm:$0xff]
        %v6857 = vld [vmem:[#allocation6 + $0x438] sm:$0xff]
        %v6858 = vld [vmem:[#allocation6 + $0x440] sm:$0xff]
        %v6859 = vld [vmem:[#allocation6 + $0x448] sm:$0xff]
        %v6860 = vld [vmem:[#allocation6 + $0x450] sm:$0xff]
        %v6861 = vld [vmem:[#allocation6 + $0x458] sm:$0xff]
        %v6862 = vld [vmem:[#allocation6 + $0x460] sm:$0xff]
        %v6863 = vld [vmem:[#allocation6 + $0x468] sm:$0xff]
        %v6864 = vld [vmem:[#allocation6 + $0x470] sm:$0xff]
        %v6865 = vld [vmem:[#allocation6 + $0x478] sm:$0xff]
        %v6866 = vld [vmem:[#allocation6 + $0x480] sm:$0xff]
        %v6867 = vld [vmem:[#allocation6 + $0x488] sm:$0xff]
        %v6868 = vld [vmem:[#allocation6 + $0x490] sm:$0xff]
        %v6869 = vld [vmem:[#allocation6 + $0x498] sm:$0xff]
        %v6870 = vld [vmem:[#allocation6 + $0x4a0] sm:$0xff]
        %v6871 = vld [vmem:[#allocation6 + $0x4a8] sm:$0xff]
        %v6872 = vld [vmem:[#allocation6 + $0x4b0] sm:$0xff]
        %v6873 = vld [vmem:[#allocation6 + $0x4b8] sm:$0xff]
        %v6874 = vld [vmem:[#allocation6 + $0x4c0] sm:$0xff]
        %v6875 = vld [vmem:[#allocation6 + $0x4c8] sm:$0xff]
        %v6876 = vld [vmem:[#allocation6 + $0x4d0] sm:$0xff]
        %v6877 = vld [vmem:[#allocation6 + $0x4d8] sm:$0xff]
        %v6878 = vld [vmem:[#allocation6 + $0x4e0] sm:$0xff]
        %v6879 = vld [vmem:[#allocation6 + $0x4e8] sm:$0xff]
        %v6880 = vld [vmem:[#allocation6 + $0x4f0] sm:$0xff]
        %v6881 = vld [vmem:[#allocation6 + $0x4f8] sm:$0xff]
        %v6882 = vpack.c.bf16 %v6727, %v6722
        %v6883 = vpack.c.bf16 %v6728, %v6723
        %v6884 = vpack.c.bf16 %v6729, %v6724
        %v6885 = vpack.c.bf16 %v6730, %v6725
        %v6886 = vpack.c.bf16 %v6731, %v6726
        %v6887 = vpack.c.bf16 %v6737, %v6732
        %v6888 = vpack.c.bf16 %v6738, %v6733
        %v6889 = vpack.c.bf16 %v6739, %v6734
        %v6890 = vpack.c.bf16 %v6740, %v6735
        %v6891 = vpack.c.bf16 %v6741, %v6736
        %v6892 = vpack.c.bf16 %v6747, %v6742
        %v6893 = vpack.c.bf16 %v6748, %v6743
        %v6894 = vpack.c.bf16 %v6749, %v6744
        %v6895 = vpack.c.bf16 %v6750, %v6745
        %v6896 = vpack.c.bf16 %v6751, %v6746
        %v6897 = vpack.c.bf16 %v6757, %v6752
        %v6898 = vpack.c.bf16 %v6758, %v6753
        %v6899 = vpack.c.bf16 %v6759, %v6754
        %v6900 = vpack.c.bf16 %v6760, %v6755
        %v6901 = vpack.c.bf16 %v6761, %v6756
        %v6902 = vpack.c.bf16 %v6767, %v6762
        %v6903 = vpack.c.bf16 %v6768, %v6763
        %v6904 = vpack.c.bf16 %v6769, %v6764
        %v6905 = vpack.c.bf16 %v6770, %v6765
        %v6906 = vpack.c.bf16 %v6771, %v6766
        %v6907 = vpack.c.bf16 %v6777, %v6772
        %v6908 = vpack.c.bf16 %v6778, %v6773
        %v6909 = vpack.c.bf16 %v6779, %v6774
        %v6910 = vpack.c.bf16 %v6780, %v6775
        %v6911 = vpack.c.bf16 %v6781, %v6776
        %v6912 = vpack.c.bf16 %v6787, %v6782
        %v6913 = vpack.c.bf16 %v6788, %v6783
        %v6914 = vpack.c.bf16 %v6789, %v6784
        %v6915 = vpack.c.bf16 %v6790, %v6785
        %v6916 = vpack.c.bf16 %v6791, %v6786
        %v6917 = vpack.c.bf16 %v6797, %v6792
        %v6918 = vpack.c.bf16 %v6798, %v6793
        %v6919 = vpack.c.bf16 %v6799, %v6794
        %v6920 = vpack.c.bf16 %v6800, %v6795
        %v6921 = vpack.c.bf16 %v6801, %v6796
        %v6922 = vpack.c.bf16 %v6807, %v6802
        %v6923 = vpack.c.bf16 %v6808, %v6803
        %v6924 = vpack.c.bf16 %v6809, %v6804
        %v6925 = vpack.c.bf16 %v6810, %v6805
        %v6926 = vpack.c.bf16 %v6811, %v6806
        %v6927 = vpack.c.bf16 %v6817, %v6812
        %v6928 = vpack.c.bf16 %v6818, %v6813
        %v6929 = vpack.c.bf16 %v6819, %v6814
        %v6930 = vpack.c.bf16 %v6820, %v6815
        %v6931 = vpack.c.bf16 %v6821, %v6816
        %v6932 = vpack.c.bf16 %v6827, %v6822
        %v6933 = vpack.c.bf16 %v6828, %v6823
        %v6934 = vpack.c.bf16 %v6829, %v6824
        %v6935 = vpack.c.bf16 %v6830, %v6825
        %v6936 = vpack.c.bf16 %v6831, %v6826
        %v6937 = vpack.c.bf16 %v6837, %v6832
        %v6938 = vpack.c.bf16 %v6838, %v6833
        %v6939 = vpack.c.bf16 %v6839, %v6834
        %v6940 = vpack.c.bf16 %v6840, %v6835
        %v6941 = vpack.c.bf16 %v6841, %v6836
        %v6942 = vpack.c.bf16 %v6847, %v6842
        %v6943 = vpack.c.bf16 %v6848, %v6843
        %v6944 = vpack.c.bf16 %v6849, %v6844
        %v6945 = vpack.c.bf16 %v6850, %v6845
        %v6946 = vpack.c.bf16 %v6851, %v6846
        %v6947 = vpack.c.bf16 %v6857, %v6852
        %v6948 = vpack.c.bf16 %v6858, %v6853
        %v6949 = vpack.c.bf16 %v6859, %v6854
        %v6950 = vpack.c.bf16 %v6860, %v6855
        %v6951 = vpack.c.bf16 %v6861, %v6856
        %v6952 = vpack.c.bf16 %v6867, %v6862
        %v6953 = vpack.c.bf16 %v6868, %v6863
        %v6954 = vpack.c.bf16 %v6869, %v6864
        %v6955 = vpack.c.bf16 %v6870, %v6865
        %v6956 = vpack.c.bf16 %v6871, %v6866
        %v6957 = vpack.c.bf16 %v6877, %v6872
        %v6958 = vpack.c.bf16 %v6878, %v6873
        %v6959 = vpack.c.bf16 %v6879, %v6874
        %v6960 = vpack.c.bf16 %v6880, %v6875
        %v6961 = vpack.c.bf16 %v6881, %v6876
        %v6962 = vld [vmem:[%s3] sm:$0xf]
        %v6963 = vld [vmem:[%s3 + $0x4] sm:$0xf]
        %v6964 = vld [vmem:[%s3 + $0x8] sm:$0xf]
        %v6965 = vld [vmem:[%s3 + $0xc] sm:$0xf]
        %v6966 = vld [vmem:[%s3 + $0x10] sm:$0xf]
        %v6967 = vld [vmem:[%s3 + $0x14] sm:$0xf]
        %v6968 = vld [vmem:[%s3 + $0x18] sm:$0xf]
        %v6969 = vld [vmem:[%s3 + $0x1c] sm:$0xf]
        %v6970 = vld [vmem:[%s3 + $0x20] sm:$0xf]
        %v6971 = vld [vmem:[%s3 + $0x24] sm:$0xf]
        %v6972 = vld [vmem:[%s3 + $0x28] sm:$0xf]
        %v6973 = vld [vmem:[%s3 + $0x2c] sm:$0xf]
        %v6974 = vld [vmem:[%s3 + $0x30] sm:$0xf]
        %v6975 = vld [vmem:[%s3 + $0x34] sm:$0xf]
        %v6976 = vld [vmem:[%s3 + $0x38] sm:$0xf]
        %v6977 = vld [vmem:[%s3 + $0x3c] sm:$0xf]
        %v6978 = vld [vmem:[%s3 + $0x40] sm:$0xf]
        %v6979 = vld [vmem:[%s3 + $0x44] sm:$0xf]
        %v6980 = vld [vmem:[%s3 + $0x48] sm:$0xf]
        %v6981 = vld [vmem:[%s3 + $0x4c] sm:$0xf]
        %v6982 = vld [vmem:[%s3 + $0x50] sm:$0xf]
        %v6983 = vld [vmem:[%s3 + $0x54] sm:$0xf]
        %v6984 = vld [vmem:[%s3 + $0x58] sm:$0xf]
        %v6985 = vld [vmem:[%s3 + $0x5c] sm:$0xf]
        %v6986 = vld [vmem:[%s3 + $0x60] sm:$0xf]
        %v6987 = vld [vmem:[%s3 + $0x64] sm:$0xf]
        %v6988 = vld [vmem:[%s3 + $0x68] sm:$0xf]
        %v6989 = vld [vmem:[%s3 + $0x6c] sm:$0xf]
        %v6990 = vld [vmem:[%s3 + $0x70] sm:$0xf]
        %v6991 = vld [vmem:[%s3 + $0x74] sm:$0xf]
        %v6992 = vld [vmem:[%s3 + $0x78] sm:$0xf]
        %v6993 = vld [vmem:[%s3 + $0x7c] sm:$0xf]
        %v6994 = vld [vmem:[%s3 + $0x80] sm:$0xf]
        %v6995 = vld [vmem:[%s3 + $0x84] sm:$0xf]
        %v6996 = vld [vmem:[%s3 + $0x88] sm:$0xf]
        %v6997 = vld [vmem:[%s3 + $0x8c] sm:$0xf]
        %v6998 = vld [vmem:[%s3 + $0x90] sm:$0xf]
        %v6999 = vld [vmem:[%s3 + $0x94] sm:$0xf]
        %v7000 = vld [vmem:[%s3 + $0x98] sm:$0xf]
        %v7001 = vld [vmem:[%s3 + $0x9c] sm:$0xf]
        %v7002 = vld [vmem:[%s3 + $0xa0] sm:$0xf]
        %v7003 = vld [vmem:[%s3 + $0xa4] sm:$0xf]
        %v7004 = vld [vmem:[%s3 + $0xa8] sm:$0xf]
        %v7005 = vld [vmem:[%s3 + $0xac] sm:$0xf]
        %v7006 = vld [vmem:[%s3 + $0xb0] sm:$0xf]
        %v7007 = vld [vmem:[%s3 + $0xb4] sm:$0xf]
        %v7008 = vld [vmem:[%s3 + $0xb8] sm:$0xf]
        %v7009 = vld [vmem:[%s3 + $0xbc] sm:$0xf]
        %v7010 = vld [vmem:[%s3 + $0xc0] sm:$0xf]
        %v7011 = vld [vmem:[%s3 + $0xc4] sm:$0xf]
        %v7012 = vld [vmem:[%s3 + $0xc8] sm:$0xf]
        %v7013 = vld [vmem:[%s3 + $0xcc] sm:$0xf]
        %v7014 = vld [vmem:[%s3 + $0xd0] sm:$0xf]
        %v7015 = vld [vmem:[%s3 + $0xd4] sm:$0xf]
        %v7016 = vld [vmem:[%s3 + $0xd8] sm:$0xf]
        %v7017 = vld [vmem:[%s3 + $0xdc] sm:$0xf]
        %v7018 = vld [vmem:[%s3 + $0xe0] sm:$0xf]
        %v7019 = vld [vmem:[%s3 + $0xe4] sm:$0xf]
        %v7020 = vld [vmem:[%s3 + $0xe8] sm:$0xf]
        %v7021 = vld [vmem:[%s3 + $0xec] sm:$0xf]
        %v7022 = vld [vmem:[%s3 + $0xf0] sm:$0xf]
        %v7023 = vld [vmem:[%s3 + $0xf4] sm:$0xf]
        %v7024 = vld [vmem:[%s3 + $0xf8] sm:$0xf]
        %v7025 = vld [vmem:[%s3 + $0xfc] sm:$0xf]
        %v7026 = vld [vmem:[%s3 + $0x100] sm:$0xf]
        %v7027 = vld [vmem:[%s3 + $0x104] sm:$0xf]
        %v7028 = vld [vmem:[%s3 + $0x108] sm:$0xf]
        %v7029 = vld [vmem:[%s3 + $0x10c] sm:$0xf]
        %v7030 = vld [vmem:[%s3 + $0x110] sm:$0xf]
        %v7031 = vld [vmem:[%s3 + $0x114] sm:$0xf]
        %v7032 = vld [vmem:[%s3 + $0x118] sm:$0xf]
        %v7033 = vld [vmem:[%s3 + $0x11c] sm:$0xf]
        %v7034 = vld [vmem:[#allocation10] sm:$0x1]
        %v7036 = vlaneseq
        %v7037 = vshrl.u32 %v7036, 7
        %v7038 = vsub.s32 0, %v7037
        %v7039 = vrot.slane %v7034, %v7038
        %v7113 = vunpack.c.l.b16 %v6962
        %v7114 = vunpack.c.l.b16 %v6963
        %v7115 = vunpack.c.l.b16 %v6964
        %v7116 = vunpack.c.l.b16 %v6965
        %v7117 = vunpack.c.l.b16 %v6966
        %v7118 = vunpack.c.l.b16 %v6967
        %v7119 = vunpack.c.l.b16 %v6968
        %v7120 = vunpack.c.l.b16 %v6969
        %v7121 = vunpack.c.l.b16 %v6970
        %v7122 = vunpack.c.l.b16 %v6971
        %v7123 = vunpack.c.l.b16 %v6972
        %v7124 = vunpack.c.l.b16 %v6973
        %v7125 = vunpack.c.l.b16 %v6974
        %v7126 = vunpack.c.l.b16 %v6975
        %v7127 = vunpack.c.l.b16 %v6976
        %v7128 = vunpack.c.l.b16 %v6977
        %v7129 = vunpack.c.l.b16 %v6978
        %v7130 = vunpack.c.l.b16 %v6979
        %v7131 = vunpack.c.l.b16 %v6980
        %v7132 = vunpack.c.l.b16 %v6981
        %v7133 = vunpack.c.l.b16 %v6982
        %v7134 = vunpack.c.l.b16 %v6983
        %v7135 = vunpack.c.l.b16 %v6984
        %v7136 = vunpack.c.l.b16 %v6985
        %v7137 = vunpack.c.l.b16 %v6986
        %v7138 = vunpack.c.l.b16 %v6987
        %v7139 = vunpack.c.l.b16 %v6988
        %v7140 = vunpack.c.l.b16 %v6989
        %v7141 = vunpack.c.l.b16 %v6990
        %v7142 = vunpack.c.l.b16 %v6991
        %v7143 = vunpack.c.l.b16 %v6992
        %v7144 = vunpack.c.l.b16 %v6993
        %v7145 = vunpack.c.l.b16 %v6994
        %v7146 = vunpack.c.l.b16 %v6995
        %v7147 = vunpack.c.l.b16 %v6996
        %v7148 = vunpack.c.l.b16 %v6997
        %v7149 = vunpack.c.l.b16 %v6998
        %v7150 = vunpack.c.l.b16 %v6999
        %v7151 = vunpack.c.l.b16 %v7000
        %v7152 = vunpack.c.l.b16 %v7001
        %v7153 = vunpack.c.l.b16 %v7002
        %v7154 = vunpack.c.l.b16 %v7003
        %v7155 = vunpack.c.l.b16 %v7004
        %v7156 = vunpack.c.l.b16 %v7005
        %v7157 = vunpack.c.l.b16 %v7006
        %v7158 = vunpack.c.l.b16 %v7007
        %v7159 = vunpack.c.l.b16 %v7008
        %v7160 = vunpack.c.l.b16 %v7009
        %v7161 = vunpack.c.l.b16 %v7010
        %v7162 = vunpack.c.l.b16 %v7011
        %v7163 = vunpack.c.l.b16 %v7012
        %v7164 = vunpack.c.l.b16 %v7013
        %v7165 = vunpack.c.l.b16 %v7014
        %v7166 = vunpack.c.l.b16 %v7015
        %v7167 = vunpack.c.l.b16 %v7016
        %v7168 = vunpack.c.l.b16 %v7017
        %v7169 = vunpack.c.l.b16 %v7018
        %v7170 = vunpack.c.l.b16 %v7019
        %v7171 = vunpack.c.l.b16 %v7020
        %v7172 = vunpack.c.l.b16 %v7021
        %v7173 = vunpack.c.l.b16 %v7022
        %v7174 = vunpack.c.l.b16 %v7023
        %v7175 = vunpack.c.l.b16 %v7024
        %v7176 = vunpack.c.l.b16 %v7025
        %v7177 = vunpack.c.l.b16 %v7026
        %v7178 = vunpack.c.l.b16 %v7027
        %v7179 = vunpack.c.l.b16 %v7028
        %v7180 = vunpack.c.l.b16 %v7029
        %v7181 = vunpack.c.l.b16 %v7030
        %v7182 = vunpack.c.l.b16 %v7031
        %v7183 = vunpack.c.l.b16 %v7032
        %v7184 = vunpack.c.l.b16 %v7033
        %v7185 = vpack.c.b16 %v7114, %v7113
        %v7186 = vpack.c.b16 %v7116, %v7115
        %v7187 = vpack.c.b16 %v7118, %v7117
        %v7188 = vpack.c.b16 %v7120, %v7119
        %v7189 = vpack.c.b16 %v7122, %v7121
        %v7190 = vpack.c.b16 %v7124, %v7123
        %v7191 = vpack.c.b16 %v7126, %v7125
        %v7192 = vpack.c.b16 %v7128, %v7127
        %v7193 = vpack.c.b16 %v7130, %v7129
        %v7194 = vpack.c.b16 %v7132, %v7131
        %v7195 = vpack.c.b16 %v7134, %v7133
        %v7196 = vpack.c.b16 %v7136, %v7135
        %v7197 = vpack.c.b16 %v7138, %v7137
        %v7198 = vpack.c.b16 %v7140, %v7139
        %v7199 = vpack.c.b16 %v7142, %v7141
        %v7200 = vpack.c.b16 %v7144, %v7143
        %v7201 = vpack.c.b16 %v7146, %v7145
        %v7202 = vpack.c.b16 %v7148, %v7147
        %v7203 = vpack.c.b16 %v7150, %v7149
        %v7204 = vpack.c.b16 %v7152, %v7151
        %v7205 = vpack.c.b16 %v7154, %v7153
        %v7206 = vpack.c.b16 %v7156, %v7155
        %v7207 = vpack.c.b16 %v7158, %v7157
        %v7208 = vpack.c.b16 %v7160, %v7159
        %v7209 = vpack.c.b16 %v7162, %v7161
        %v7210 = vpack.c.b16 %v7164, %v7163
        %v7211 = vpack.c.b16 %v7166, %v7165
        %v7212 = vpack.c.b16 %v7168, %v7167
        %v7213 = vpack.c.b16 %v7170, %v7169
        %v7214 = vpack.c.b16 %v7172, %v7171
        %v7215 = vpack.c.b16 %v7174, %v7173
        %v7216 = vpack.c.b16 %v7176, %v7175
        %v7217 = vpack.c.b16 %v7178, %v7177
        %v7218 = vpack.c.b16 %v7180, %v7179
        %v7219 = vpack.c.b16 %v7182, %v7181
        %v7220 = vpack.c.b16 %v7184, %v7183
        %v7258 = vsel %vm445, %v6886, 0
        %v7261 = vsel %vm445, %v6891, 0
        %v7264 = vsel %vm445, %v6896, 0
        %v7267 = vsel %vm445, %v6901, 0
        %v7270 = vsel %vm445, %v6906, 0
        %v7273 = vsel %vm445, %v6911, 0
        %v7276 = vsel %vm445, %v6916, 0
        %v7279 = vsel %vm445, %v6921, 0
        %v7282 = vsel %vm445, %v6926, 0
        %v7285 = vsel %vm445, %v6931, 0
        %v7288 = vsel %vm445, %v6936, 0
        %v7291 = vsel %vm445, %v6941, 0
        %v7294 = vsel %vm445, %v6946, 0
        %v7297 = vsel %vm445, %v6951, 0
        %v7300 = vsel %vm445, %v6956, 0
        %v7303 = vsel %vm445, %v6961, 0
        %7305 = vmatprep.subr.bf16.mxu0 0
        %7306 = vmatpush1.bf16.msra.mxu0 %v7185
        %7307 = vmatprep.subr.bf16.mxu0 0
        %7308 = vmatpush1.bf16.msra.mxu0 %v7186
        %7309 = vmatprep.subr.bf16.mxu0 0
        %7310 = vmatpush1.bf16.msra.mxu0 %v7187
        %7311 = vmatprep.subr.bf16.mxu0 0
        %7312 = vmatpush1.bf16.msra.mxu0 %v7188
        %7313 = vmatprep.subr.bf16.mxu0 0
        %7314 = vmatpush1.bf16.msra.mxu0 %v7189
        %7315 = vmatprep.subr.bf16.mxu0 0
        %7316 = vmatpush1.bf16.msra.mxu0 %v7190
        %7317 = vmatprep.subr.bf16.mxu0 0
        %7318 = vmatpush1.bf16.msra.mxu0 %v7191
        %7319 = vmatprep.subr.bf16.mxu0 0
        %7320 = vmatpush1.bf16.msra.mxu0 %v7192
        %7321 = vmatprep.subr.bf16.mxu0 0
        %7322 = vmatpush1.bf16.msra.mxu0 %v7193
        %7323 = vmatprep.subr.bf16.mxu0 0
        %7324 = vmatpush1.bf16.msra.mxu0 %v7194
        %7325 = vmatprep.subr.bf16.mxu0 0
        %7326 = vmatpush1.bf16.msra.mxu0 %v7195
        %7327 = vmatprep.subr.bf16.mxu0 0
        %7328 = vmatpush1.bf16.msra.mxu0 %v7196
        %7329 = vmatprep.subr.bf16.mxu0 0
        %7330 = vmatpush1.bf16.msra.mxu0 %v7197
        %7331 = vmatprep.subr.bf16.mxu0 0
        %7332 = vmatpush1.bf16.msra.mxu0 %v7198
        %7333 = vmatprep.subr.bf16.mxu0 0
        %7334 = vmatpush1.bf16.msra.mxu0 %v7199
        %7335 = vmatprep.subr.bf16.mxu0 0
        %7336 = vmatpush1.bf16.msra.mxu0 %v7200
        %7337 = vmatprep.mubr.bf16.mxu0 %v6883
        %7338 = vmatmul.mubr.bf16.gmra.mrb[0].mxu0 %v6882
        %v7339 = vpop.f32.mrb[0].mxu0
        %v7340 = vadd.f32 %v7039, %v7339
        %v7341 = vpop.f32.mrb[0].mxu0
        %v7342 = vpop.f32.mrb[0].mxu0
        %v7343 = vadd.f32 %v7039, %v7342
        %v7344 = vpop.f32.mrb[0].mxu0
        %7345 = vmatprep.mubr.bf16.mxu0 %v6888
        %7346 = vmatmul.mubr.bf16.gmra.mrb[0].mxu0 %v6887
        %v7347 = vpop.f32.mrb[0].mxu0
        %v7348 = vadd.f32 %v7039, %v7347
        %v7349 = vpop.f32.mrb[0].mxu0
        %v7350 = vpop.f32.mrb[0].mxu0
        %v7351 = vadd.f32 %v7039, %v7350
        %v7352 = vpop.f32.mrb[0].mxu0
        %7353 = vmatprep.mubr.bf16.mxu0 %v6893
        %7354 = vmatmul.mubr.bf16.gmra.mrb[0].mxu0 %v6892
        %v7355 = vpop.f32.mrb[0].mxu0
        %v7356 = vadd.f32 %v7039, %v7355
        %v7357 = vpop.f32.mrb[0].mxu0
        %v7358 = vpop.f32.mrb[0].mxu0
        %v7359 = vadd.f32 %v7039, %v7358
        %v7360 = vpop.f32.mrb[0].mxu0
        %7361 = vmatprep.mubr.bf16.mxu0 %v6898
        %7362 = vmatmul.mubr.bf16.gmra.mrb[0].mxu0 %v6897
        %v7363 = vpop.f32.mrb[0].mxu0
        %v7364 = vadd.f32 %v7039, %v7363
        %v7365 = vpop.f32.mrb[0].mxu0
        %v7366 = vpop.f32.mrb[0].mxu0
        %v7367 = vadd.f32 %v7039, %v7366
        %v7368 = vpop.f32.mrb[0].mxu0
        %7369 = vmatprep.mubr.bf16.mxu0 %v6903
        %7370 = vmatmul.mubr.bf16.gmra.mrb[0].mxu0 %v6902
        %v7371 = vpop.f32.mrb[0].mxu0
        %v7372 = vadd.f32 %v7039, %v7371
        %v7373 = vpop.f32.mrb[0].mxu0
        %v7374 = vpop.f32.mrb[0].mxu0
        %v7375 = vadd.f32 %v7039, %v7374
        %v7376 = vpop.f32.mrb[0].mxu0
        %7377 = vmatprep.mubr.bf16.mxu0 %v6908
        %7378 = vmatmul.mubr.bf16.gmra.mrb[0].mxu0 %v6907
        %v7379 = vpop.f32.mrb[0].mxu0
        %v7380 = vadd.f32 %v7039, %v7379
        %v7381 = vpop.f32.mrb[0].mxu0
        %v7382 = vpop.f32.mrb[0].mxu0
        %v7383 = vadd.f32 %v7039, %v7382
        %v7384 = vpop.f32.mrb[0].mxu0
        %7385 = vmatprep.mubr.bf16.mxu0 %v6913
        %7386 = vmatmul.mubr.bf16.gmra.mrb[0].mxu0 %v6912
        %v7387 = vpop.f32.mrb[0].mxu0
        %v7388 = vadd.f32 %v7039, %v7387
        %v7389 = vpop.f32.mrb[0].mxu0
        %v7390 = vpop.f32.mrb[0].mxu0
        %v7391 = vadd.f32 %v7039, %v7390
        %v7392 = vpop.f32.mrb[0].mxu0
        %7393 = vmatprep.mubr.bf16.mxu0 %v6918
        %7394 = vmatmul.mubr.bf16.gmra.mrb[0].mxu0 %v6917
        %v7395 = vpop.f32.mrb[0].mxu0
        %v7396 = vadd.f32 %v7039, %v7395
        %v7397 = vpop.f32.mrb[0].mxu0
        %v7398 = vpop.f32.mrb[0].mxu0
        %v7399 = vadd.f32 %v7039, %v7398
        %v7400 = vpop.f32.mrb[0].mxu0
        %7401 = vmatprep.mubr.bf16.mxu0 %v6923
        %7402 = vmatmul.mubr.bf16.gmra.mrb[0].mxu0 %v6922
        %v7403 = vpop.f32.mrb[0].mxu0
        %v7404 = vadd.f32 %v7039, %v7403
        %v7405 = vpop.f32.mrb[0].mxu0
        %v7406 = vpop.f32.mrb[0].mxu0
        %v7407 = vadd.f32 %v7039, %v7406
        %v7408 = vpop.f32.mrb[0].mxu0
        %7409 = vmatprep.mubr.bf16.mxu0 %v6928
        %7410 = vmatmul.mubr.bf16.gmra.mrb[0].mxu0 %v6927
        %v7411 = vpop.f32.mrb[0].mxu0
        %v7412 = vadd.f32 %v7039, %v7411
        %v7413 = vpop.f32.mrb[0].mxu0
        %v7414 = vpop.f32.mrb[0].mxu0
        %v7415 = vadd.f32 %v7039, %v7414
        %v7416 = vpop.f32.mrb[0].mxu0
        %7417 = vmatprep.mubr.bf16.mxu0 %v6933
        %7418 = vmatmul.mubr.bf16.gmra.mrb[0].mxu0 %v6932
        %v7419 = vpop.f32.mrb[0].mxu0
        %v7420 = vadd.f32 %v7039, %v7419
        %v7421 = vpop.f32.mrb[0].mxu0
        %v7422 = vpop.f32.mrb[0].mxu0
        %v7423 = vadd.f32 %v7039, %v7422
        %v7424 = vpop.f32.mrb[0].mxu0
        %7425 = vmatprep.mubr.bf16.mxu0 %v6938
        %7426 = vmatmul.mubr.bf16.gmra.mrb[0].mxu0 %v6937
        %v7427 = vpop.f32.mrb[0].mxu0
        %v7428 = vadd.f32 %v7039, %v7427
        %v7429 = vpop.f32.mrb[0].mxu0
        %v7430 = vpop.f32.mrb[0].mxu0
        %v7431 = vadd.f32 %v7039, %v7430
        %v7432 = vpop.f32.mrb[0].mxu0
        %7433 = vmatprep.mubr.bf16.mxu0 %v6943
        %7434 = vmatmul.mubr.bf16.gmra.mrb[0].mxu0 %v6942
        %v7435 = vpop.f32.mrb[0].mxu0
        %v7436 = vadd.f32 %v7039, %v7435
        %v7437 = vpop.f32.mrb[0].mxu0
        %v7438 = vpop.f32.mrb[0].mxu0
        %v7439 = vadd.f32 %v7039, %v7438
        %v7440 = vpop.f32.mrb[0].mxu0
        %7441 = vmatprep.mubr.bf16.mxu0 %v6948
        %7442 = vmatmul.mubr.bf16.gmra.mrb[0].mxu0 %v6947
        %v7443 = vpop.f32.mrb[0].mxu0
        %v7444 = vadd.f32 %v7039, %v7443
        %v7445 = vpop.f32.mrb[0].mxu0
        %v7446 = vpop.f32.mrb[0].mxu0
        %v7447 = vadd.f32 %v7039, %v7446
        %v7448 = vpop.f32.mrb[0].mxu0
        %7449 = vmatprep.mubr.bf16.mxu0 %v6953
        %7450 = vmatmul.mubr.bf16.gmra.mrb[0].mxu0 %v6952
        %v7451 = vpop.f32.mrb[0].mxu0
        %v7452 = vadd.f32 %v7039, %v7451
        %v7453 = vpop.f32.mrb[0].mxu0
        %v7454 = vpop.f32.mrb[0].mxu0
        %v7455 = vadd.f32 %v7039, %v7454
        %v7456 = vpop.f32.mrb[0].mxu0
        %7457 = vmatprep.mubr.bf16.mxu0 %v6958
        %7458 = vmatmul.mubr.bf16.gmra.mrb[0].mxu0 %v6957
        %v7459 = vpop.f32.mrb[0].mxu0
        %v7460 = vadd.f32 %v7039, %v7459
        %v7461 = vpop.f32.mrb[0].mxu0
        %v7462 = vpop.f32.mrb[0].mxu0
        %v7463 = vadd.f32 %v7039, %v7462
        %v7464 = vpop.f32.mrb[0].mxu0
        %7465 = vdwg.mxu0
        %7466 = vmatprep.subr.bf16.mxu0 0
        %7467 = vmatpush1.bf16.msra.mxu0 %v7201
        %7468 = vmatprep.subr.bf16.mxu0 0
        %7469 = vmatpush1.bf16.msra.mxu0 %v7202
        %7470 = vmatprep.subr.bf16.mxu0 0
        %7471 = vmatpush1.bf16.msra.mxu0 %v7203
        %7472 = vmatprep.subr.bf16.mxu0 0
        %7473 = vmatpush1.bf16.msra.mxu0 %v7204
        %7474 = vmatprep.subr.bf16.mxu0 0
        %7475 = vmatpush1.bf16.msra.mxu0 %v7205
        %7476 = vmatprep.subr.bf16.mxu0 0
        %7477 = vmatpush1.bf16.msra.mxu0 %v7206
        %7478 = vmatprep.subr.bf16.mxu0 0
        %7479 = vmatpush1.bf16.msra.mxu0 %v7207
        %7480 = vmatprep.subr.bf16.mxu0 0
        %7481 = vmatpush1.bf16.msra.mxu0 %v7208
        %7482 = vmatprep.subr.bf16.mxu0 0
        %7483 = vmatpush1.bf16.msra.mxu0 %v7209
        %7484 = vmatprep.subr.bf16.mxu0 0
        %7485 = vmatpush1.bf16.msra.mxu0 %v7210
        %7486 = vmatprep.subr.bf16.mxu0 0
        %7487 = vmatpush1.bf16.msra.mxu0 %v7211
        %7488 = vmatprep.subr.bf16.mxu0 0
        %7489 = vmatpush1.bf16.msra.mxu0 %v7212
        %7490 = vmatprep.subr.bf16.mxu0 0
        %7491 = vmatpush1.bf16.msra.mxu0 %v7213
        %7492 = vmatprep.subr.bf16.mxu0 0
        %7493 = vmatpush1.bf16.msra.mxu0 %v7214
        %7494 = vmatprep.subr.bf16.mxu0 0
        %7495 = vmatpush1.bf16.msra.mxu0 %v7215
        %7496 = vmatprep.subr.bf16.mxu0 0
        %7497 = vmatpush1.bf16.msra.mxu0 %v7216
        %7498 = vmatprep.mubr.bf16.mxu0 %v6885
        %7499 = vmatmul.mubr.bf16.gmra.mrb[0].mxu0 %v6884
        %v7500 = vpop.f32.mrb[0].mxu0
        %v7501 = vadd.f32 %v7340, %v7500
        %v7502 = vpop.f32.mrb[0].mxu0
        %v7503 = vpop.f32.mrb[0].mxu0
        %v7504 = vadd.f32 %v7343, %v7503
        %v7505 = vpop.f32.mrb[0].mxu0
        %7506 = vmatprep.mubr.bf16.mxu0 %v6890
        %7507 = vmatmul.mubr.bf16.gmra.mrb[0].mxu0 %v6889
        %v7508 = vpop.f32.mrb[0].mxu0
        %v7509 = vadd.f32 %v7348, %v7508
        %v7510 = vpop.f32.mrb[0].mxu0
        %v7511 = vpop.f32.mrb[0].mxu0
        %v7512 = vadd.f32 %v7351, %v7511
        %v7513 = vpop.f32.mrb[0].mxu0
        %7514 = vmatprep.mubr.bf16.mxu0 %v6895
        %7515 = vmatmul.mubr.bf16.gmra.mrb[0].mxu0 %v6894
        %v7516 = vpop.f32.mrb[0].mxu0
        %v7517 = vadd.f32 %v7356, %v7516
        %v7518 = vpop.f32.mrb[0].mxu0
        %v7519 = vpop.f32.mrb[0].mxu0
        %v7520 = vadd.f32 %v7359, %v7519
        %v7521 = vpop.f32.mrb[0].mxu0
        %7522 = vmatprep.mubr.bf16.mxu0 %v6900
        %7523 = vmatmul.mubr.bf16.gmra.mrb[0].mxu0 %v6899
        %v7524 = vpop.f32.mrb[0].mxu0
        %v7525 = vadd.f32 %v7364, %v7524
        %v7526 = vpop.f32.mrb[0].mxu0
        %v7527 = vpop.f32.mrb[0].mxu0
        %v7528 = vadd.f32 %v7367, %v7527
        %v7529 = vpop.f32.mrb[0].mxu0
        %7530 = vmatprep.mubr.bf16.mxu0 %v6905
        %7531 = vmatmul.mubr.bf16.gmra.mrb[0].mxu0 %v6904
        %v7532 = vpop.f32.mrb[0].mxu0
        %v7533 = vadd.f32 %v7372, %v7532
        %v7534 = vpop.f32.mrb[0].mxu0
        %v7535 = vpop.f32.mrb[0].mxu0
        %v7536 = vadd.f32 %v7375, %v7535
        %v7537 = vpop.f32.mrb[0].mxu0
        %7538 = vmatprep.mubr.bf16.mxu0 %v6910
        %7539 = vmatmul.mubr.bf16.gmra.mrb[0].mxu0 %v6909
        %v7540 = vpop.f32.mrb[0].mxu0
        %v7541 = vadd.f32 %v7380, %v7540
        %v7542 = vpop.f32.mrb[0].mxu0
        %v7543 = vpop.f32.mrb[0].mxu0
        %v7544 = vadd.f32 %v7383, %v7543
        %v7545 = vpop.f32.mrb[0].mxu0
        %7546 = vmatprep.mubr.bf16.mxu0 %v6915
        %7547 = vmatmul.mubr.bf16.gmra.mrb[0].mxu0 %v6914
        %v7548 = vpop.f32.mrb[0].mxu0
        %v7549 = vadd.f32 %v7388, %v7548
        %v7550 = vpop.f32.mrb[0].mxu0
        %v7551 = vpop.f32.mrb[0].mxu0
        %v7552 = vadd.f32 %v7391, %v7551
        %v7553 = vpop.f32.mrb[0].mxu0
        %7554 = vmatprep.mubr.bf16.mxu0 %v6920
        %7555 = vmatmul.mubr.bf16.gmra.mrb[0].mxu0 %v6919
        %v7556 = vpop.f32.mrb[0].mxu0
        %v7557 = vadd.f32 %v7396, %v7556
        %v7558 = vpop.f32.mrb[0].mxu0
        %v7559 = vpop.f32.mrb[0].mxu0
        %v7560 = vadd.f32 %v7399, %v7559
        %v7561 = vpop.f32.mrb[0].mxu0
        %7562 = vmatprep.mubr.bf16.mxu0 %v6925
        %7563 = vmatmul.mubr.bf16.gmra.mrb[0].mxu0 %v6924
        %v7564 = vpop.f32.mrb[0].mxu0
        %v7565 = vadd.f32 %v7404, %v7564
        %v7566 = vpop.f32.mrb[0].mxu0
        %v7567 = vpop.f32.mrb[0].mxu0
        %v7568 = vadd.f32 %v7407, %v7567
        %v7569 = vpop.f32.mrb[0].mxu0
        %7570 = vmatprep.mubr.bf16.mxu0 %v6930
        %7571 = vmatmul.mubr.bf16.gmra.mrb[0].mxu0 %v6929
        %v7572 = vpop.f32.mrb[0].mxu0
        %v7573 = vadd.f32 %v7412, %v7572
        %v7574 = vpop.f32.mrb[0].mxu0
        %v7575 = vpop.f32.mrb[0].mxu0
        %v7576 = vadd.f32 %v7415, %v7575
        %v7577 = vpop.f32.mrb[0].mxu0
        %7578 = vmatprep.mubr.bf16.mxu0 %v6935
        %7579 = vmatmul.mubr.bf16.gmra.mrb[0].mxu0 %v6934
        %v7580 = vpop.f32.mrb[0].mxu0
        %v7581 = vadd.f32 %v7420, %v7580
        %v7582 = vpop.f32.mrb[0].mxu0
        %v7583 = vpop.f32.mrb[0].mxu0
        %v7584 = vadd.f32 %v7423, %v7583
        %v7585 = vpop.f32.mrb[0].mxu0
        %7586 = vmatprep.mubr.bf16.mxu0 %v6940
        %7587 = vmatmul.mubr.bf16.gmra.mrb[0].mxu0 %v6939
        %v7588 = vpop.f32.mrb[0].mxu0
        %v7589 = vadd.f32 %v7428, %v7588
        %v7590 = vpop.f32.mrb[0].mxu0
        %v7591 = vpop.f32.mrb[0].mxu0
        %v7592 = vadd.f32 %v7431, %v7591
        %v7593 = vpop.f32.mrb[0].mxu0
        %7594 = vmatprep.mubr.bf16.mxu0 %v6945
        %7595 = vmatmul.mubr.bf16.gmra.mrb[0].mxu0 %v6944
        %v7596 = vpop.f32.mrb[0].mxu0
        %v7597 = vadd.f32 %v7436, %v7596
        %v7598 = vpop.f32.mrb[0].mxu0
        %v7599 = vpop.f32.mrb[0].mxu0
        %v7600 = vadd.f32 %v7439, %v7599
        %v7601 = vpop.f32.mrb[0].mxu0
        %7602 = vmatprep.mubr.bf16.mxu0 %v6950
        %7603 = vmatmul.mubr.bf16.gmra.mrb[0].mxu0 %v6949
        %v7604 = vpop.f32.mrb[0].mxu0
        %v7605 = vadd.f32 %v7444, %v7604
        %v7606 = vpop.f32.mrb[0].mxu0
        %v7607 = vpop.f32.mrb[0].mxu0
        %v7608 = vadd.f32 %v7447, %v7607
        %v7609 = vpop.f32.mrb[0].mxu0
        %7610 = vmatprep.mubr.bf16.mxu0 %v6955
        %7611 = vmatmul.mubr.bf16.gmra.mrb[0].mxu0 %v6954
        %v7612 = vpop.f32.mrb[0].mxu0
        %v7613 = vadd.f32 %v7452, %v7612
        %v7614 = vpop.f32.mrb[0].mxu0
        %v7615 = vpop.f32.mrb[0].mxu0
        %v7616 = vadd.f32 %v7455, %v7615
        %v7617 = vpop.f32.mrb[0].mxu0
        %7618 = vmatprep.mubr.bf16.mxu0 %v6960
        %7619 = vmatmul.mubr.bf16.gmra.mrb[0].mxu0 %v6959
        %v7620 = vpop.f32.mrb[0].mxu0
        %v7621 = vadd.f32 %v7460, %v7620
        %v7622 = vpop.f32.mrb[0].mxu0
        %v7623 = vpop.f32.mrb[0].mxu0
        %v7624 = vadd.f32 %v7463, %v7623
        %v7625 = vpop.f32.mrb[0].mxu0
        %7626 = vdwg.mxu0
        %7627 = vmatprep.subr.bf16.mxu0 0
        %7628 = vmatpush1.bf16.msra.mxu0 %v7217
        %7629 = vmatprep.subr.bf16.mxu0 0
        %7630 = vmatpush1.bf16.msra.mxu0 %v7218
        %7631 = vmatprep.subr.bf16.mxu0 0
        %7632 = vmatpush1.bf16.msra.mxu0 %v7219
        %7633 = vmatprep.subr.bf16.mxu0 0
        %7634 = vmatpush1.bf16.msra.mxu0 %v7220
        %7635 = vmatprep.subr.bf16.mxu0 0
        %7636 = vmatpush1.bf16.msra.mxu0 0
        %7637 = vmatprep.subr.bf16.mxu0 0
        %7638 = vmatpush1.bf16.msra.mxu0 0
        %7639 = vmatprep.subr.bf16.mxu0 0
        %7640 = vmatpush1.bf16.msra.mxu0 0
        %7641 = vmatprep.subr.bf16.mxu0 0
        %7642 = vmatpush1.bf16.msra.mxu0 0
        %7643 = vmatprep.subr.bf16.mxu0 0
        %7644 = vmatpush1.bf16.msra.mxu0 0
        %7645 = vmatprep.subr.bf16.mxu0 0
        %7646 = vmatpush1.bf16.msra.mxu0 0
        %7647 = vmatprep.subr.bf16.mxu0 0
        %7648 = vmatpush1.bf16.msra.mxu0 0
        %7649 = vmatprep.subr.bf16.mxu0 0
        %7650 = vmatpush1.bf16.msra.mxu0 0
        %7651 = vmatprep.subr.bf16.mxu0 0
        %7652 = vmatpush1.bf16.msra.mxu0 0
        %7653 = vmatprep.subr.bf16.mxu0 0
        %7654 = vmatpush1.bf16.msra.mxu0 0
        %7655 = vmatprep.subr.bf16.mxu0 0
        %7656 = vmatpush1.bf16.msra.mxu0 0
        %7657 = vmatprep.subr.bf16.mxu0 0
        %7658 = vmatpush1.bf16.msra.mxu0 0
        %7659 = vmatprep.mubr.bf16.mxu0 0
        %7660 = vmatmul.mubr.bf16.gmra.mrb[0].mxu0 %v7258
        %v7661 = vpop.f32.mrb[0].mxu0
        %v7662 = vadd.f32 %v7501, %v7661
        %v7663 = vpop.f32.mrb[0].mxu0
        %v7664 = vpop.f32.mrb[0].mxu0
        %v7665 = vadd.f32 %v7504, %v7664
        %v7666 = vpop.f32.mrb[0].mxu0
        %7667 = vmatprep.mubr.bf16.mxu0 0
        %7668 = vmatmul.mubr.bf16.gmra.mrb[0].mxu0 %v7261
        %v7669 = vpop.f32.mrb[0].mxu0
        %v7670 = vadd.f32 %v7509, %v7669
        %v7671 = vpop.f32.mrb[0].mxu0
        %v7672 = vpop.f32.mrb[0].mxu0
        %v7673 = vadd.f32 %v7512, %v7672
        %v7674 = vpop.f32.mrb[0].mxu0
        %7675 = vmatprep.mubr.bf16.mxu0 0
        %7676 = vmatmul.mubr.bf16.gmra.mrb[0].mxu0 %v7264
        %v7677 = vpop.f32.mrb[0].mxu0
        %v7678 = vadd.f32 %v7517, %v7677
        %v7679 = vpop.f32.mrb[0].mxu0
        %v7680 = vpop.f32.mrb[0].mxu0
        %v7681 = vadd.f32 %v7520, %v7680
        %v7682 = vpop.f32.mrb[0].mxu0
        %7683 = vmatprep.mubr.bf16.mxu0 0
        %7684 = vmatmul.mubr.bf16.gmra.mrb[0].mxu0 %v7267
        %v7685 = vpop.f32.mrb[0].mxu0
        %v7686 = vadd.f32 %v7525, %v7685
        %v7687 = vpop.f32.mrb[0].mxu0
        %v7688 = vpop.f32.mrb[0].mxu0
        %v7689 = vadd.f32 %v7528, %v7688
        %v7690 = vpop.f32.mrb[0].mxu0
        %7691 = vmatprep.mubr.bf16.mxu0 0
        %7692 = vmatmul.mubr.bf16.gmra.mrb[0].mxu0 %v7270
        %v7693 = vpop.f32.mrb[0].mxu0
        %v7694 = vadd.f32 %v7533, %v7693
        %v7695 = vpop.f32.mrb[0].mxu0
        %v7696 = vpop.f32.mrb[0].mxu0
        %v7697 = vadd.f32 %v7536, %v7696
        %v7698 = vpop.f32.mrb[0].mxu0
        %7699 = vmatprep.mubr.bf16.mxu0 0
        %7700 = vmatmul.mubr.bf16.gmra.mrb[0].mxu0 %v7273
        %v7701 = vpop.f32.mrb[0].mxu0
        %v7702 = vadd.f32 %v7541, %v7701
        %v7703 = vpop.f32.mrb[0].mxu0
        %v7704 = vpop.f32.mrb[0].mxu0
        %v7705 = vadd.f32 %v7544, %v7704
        %v7706 = vpop.f32.mrb[0].mxu0
        %7707 = vmatprep.mubr.bf16.mxu0 0
        %7708 = vmatmul.mubr.bf16.gmra.mrb[0].mxu0 %v7276
        %v7709 = vpop.f32.mrb[0].mxu0
        %v7710 = vadd.f32 %v7549, %v7709
        %v7711 = vpop.f32.mrb[0].mxu0
        %v7712 = vpop.f32.mrb[0].mxu0
        %v7713 = vadd.f32 %v7552, %v7712
        %v7714 = vpop.f32.mrb[0].mxu0
        %7715 = vmatprep.mubr.bf16.mxu0 0
        %7716 = vmatmul.mubr.bf16.gmra.mrb[0].mxu0 %v7279
        %v7717 = vpop.f32.mrb[0].mxu0
        %v7718 = vadd.f32 %v7557, %v7717
        %v7719 = vpop.f32.mrb[0].mxu0
        %v7720 = vpop.f32.mrb[0].mxu0
        %v7721 = vadd.f32 %v7560, %v7720
        %v7722 = vpop.f32.mrb[0].mxu0
        %7723 = vmatprep.mubr.bf16.mxu0 0
        %7724 = vmatmul.mubr.bf16.gmra.mrb[0].mxu0 %v7282
        %v7725 = vpop.f32.mrb[0].mxu0
        %v7726 = vadd.f32 %v7565, %v7725
        %v7727 = vpop.f32.mrb[0].mxu0
        %v7728 = vpop.f32.mrb[0].mxu0
        %v7729 = vadd.f32 %v7568, %v7728
        %v7730 = vpop.f32.mrb[0].mxu0
        %7731 = vmatprep.mubr.bf16.mxu0 0
        %7732 = vmatmul.mubr.bf16.gmra.mrb[0].mxu0 %v7285
        %v7733 = vpop.f32.mrb[0].mxu0
        %v7734 = vadd.f32 %v7573, %v7733
        %v7735 = vpop.f32.mrb[0].mxu0
        %v7736 = vpop.f32.mrb[0].mxu0
        %v7737 = vadd.f32 %v7576, %v7736
        %v7738 = vpop.f32.mrb[0].mxu0
        %7739 = vmatprep.mubr.bf16.mxu0 0
        %7740 = vmatmul.mubr.bf16.gmra.mrb[0].mxu0 %v7288
        %v7741 = vpop.f32.mrb[0].mxu0
        %v7742 = vadd.f32 %v7581, %v7741
        %v7743 = vpop.f32.mrb[0].mxu0
        %v7744 = vpop.f32.mrb[0].mxu0
        %v7745 = vadd.f32 %v7584, %v7744
        %v7746 = vpop.f32.mrb[0].mxu0
        %7747 = vmatprep.mubr.bf16.mxu0 0
        %7748 = vmatmul.mubr.bf16.gmra.mrb[0].mxu0 %v7291
        %v7749 = vpop.f32.mrb[0].mxu0
        %v7750 = vadd.f32 %v7589, %v7749
        %v7751 = vpop.f32.mrb[0].mxu0
        %v7752 = vpop.f32.mrb[0].mxu0
        %v7753 = vadd.f32 %v7592, %v7752
        %v7754 = vpop.f32.mrb[0].mxu0
        %7755 = vmatprep.mubr.bf16.mxu0 0
        %7756 = vmatmul.mubr.bf16.gmra.mrb[0].mxu0 %v7294
        %v7757 = vpop.f32.mrb[0].mxu0
        %v7758 = vadd.f32 %v7597, %v7757
        %v7759 = vpop.f32.mrb[0].mxu0
        %v7760 = vpop.f32.mrb[0].mxu0
        %v7761 = vadd.f32 %v7600, %v7760
        %v7762 = vpop.f32.mrb[0].mxu0
        %7763 = vmatprep.mubr.bf16.mxu0 0
        %7764 = vmatmul.mubr.bf16.gmra.mrb[0].mxu0 %v7297
        %v7765 = vpop.f32.mrb[0].mxu0
        %v7766 = vadd.f32 %v7605, %v7765
        %v7767 = vpop.f32.mrb[0].mxu0
        %v7768 = vpop.f32.mrb[0].mxu0
        %v7769 = vadd.f32 %v7608, %v7768
        %v7770 = vpop.f32.mrb[0].mxu0
        %7771 = vmatprep.mubr.bf16.mxu0 0
        %7772 = vmatmul.mubr.bf16.gmra.mrb[0].mxu0 %v7300
        %v7773 = vpop.f32.mrb[0].mxu0
        %v7774 = vadd.f32 %v7613, %v7773
        %v7775 = vpop.f32.mrb[0].mxu0
        %v7776 = vpop.f32.mrb[0].mxu0
        %v7777 = vadd.f32 %v7616, %v7776
        %v7778 = vpop.f32.mrb[0].mxu0
        %7779 = vmatprep.mubr.bf16.mxu0 0
        %7780 = vmatmul.mubr.bf16.gmra.mrb[0].mxu0 %v7303
        %v7781 = vpop.f32.mrb[0].mxu0
        %v7782 = vadd.f32 %v7621, %v7781
        %v7783 = vpop.f32.mrb[0].mxu0
        %v7784 = vpop.f32.mrb[0].mxu0
        %v7785 = vadd.f32 %v7624, %v7784
        %v7786 = vpop.f32.mrb[0].mxu0
        %7787 = vdwg.mxu0
        %v7788 = vtanh.pop %v7662
        %v7789 = vtanh.pop %v7665
        %v7790 = vtanh.pop %v7670
        %v7791 = vtanh.pop %v7673
        %v7792 = vtanh.pop %v7678
        %v7793 = vtanh.pop %v7681
        %v7794 = vtanh.pop %v7686
        %v7795 = vtanh.pop %v7689
        %v7796 = vtanh.pop %v7694
        %v7797 = vtanh.pop %v7697
        %v7798 = vtanh.pop %v7702
        %v7799 = vtanh.pop %v7705
        %v7800 = vtanh.pop %v7710
        %v7801 = vtanh.pop %v7713
        %v7802 = vtanh.pop %v7718
        %v7803 = vtanh.pop %v7721
        %v7804 = vtanh.pop %v7726
        %v7805 = vtanh.pop %v7729
        %v7806 = vtanh.pop %v7734
        %v7807 = vtanh.pop %v7737
        %v7808 = vtanh.pop %v7742
        %v7809 = vtanh.pop %v7745
        %v7810 = vtanh.pop %v7750
        %v7811 = vtanh.pop %v7753
        %v7812 = vtanh.pop %v7758
        %v7813 = vtanh.pop %v7761
        %v7814 = vtanh.pop %v7766
        %v7815 = vtanh.pop %v7769
        %v7816 = vtanh.pop %v7774
        %v7817 = vtanh.pop %v7777
        %v7818 = vtanh.pop %v7782
        %v7819 = vtanh.pop %v7785
        %s7820 = scalar_lea.vmem [#allocation4], 24
        %7821 = vst.msk [vmem:[%s7820 + $0x1] sm:$0xff] %vm5576, %v7788
        %7822 = vst.msk [vmem:[%s7820 + $0x9] sm:$0xff] %vm5576, %v7789
        %7823 = vst.msk [vmem:[%s7820 + $0x19] sm:$0xff] %vm5576, %v7790
        %7824 = vst.msk [vmem:[%s7820 + $0x21] sm:$0xff] %vm5576, %v7791
        %7825 = vst.msk [vmem:[%s7820 + $0x31] sm:$0xff] %vm5576, %v7792
        %7826 = vst.msk [vmem:[%s7820 + $0x39] sm:$0xff] %vm5576, %v7793
        %7827 = vst.msk [vmem:[%s7820 + $0x49] sm:$0xff] %vm5576, %v7794
        %7828 = vst.msk [vmem:[%s7820 + $0x51] sm:$0xff] %vm5576, %v7795
        %7829 = vst.msk [vmem:[%s7820 + $0x61] sm:$0xff] %vm5576, %v7796
        %7830 = vst.msk [vmem:[%s7820 + $0x69] sm:$0xff] %vm5576, %v7797
        %7831 = vst.msk [vmem:[%s7820 + $0x79] sm:$0xff] %vm5576, %v7798
        %7832 = vst.msk [vmem:[%s7820 + $0x81] sm:$0xff] %vm5576, %v7799
        %7833 = vst.msk [vmem:[%s7820 + $0x91] sm:$0xff] %vm5576, %v7800
        %7834 = vst.msk [vmem:[%s7820 + $0x99] sm:$0xff] %vm5576, %v7801
        %7835 = vst.msk [vmem:[%s7820 + $0xa9] sm:$0xff] %vm5576, %v7802
        %7836 = vst.msk [vmem:[%s7820 + $0xb1] sm:$0xff] %vm5576, %v7803
        %7837 = vst.msk [vmem:[%s7820 + $0xc1] sm:$0xff] %vm5576, %v7804
        %7838 = vst.msk [vmem:[%s7820 + $0xc9] sm:$0xff] %vm5576, %v7805
        %7839 = vst.msk [vmem:[%s7820 + $0xd9] sm:$0xff] %vm5576, %v7806
        %7840 = vst.msk [vmem:[%s7820 + $0xe1] sm:$0xff] %vm5576, %v7807
        %7841 = vst.msk [vmem:[%s7820 + $0xf1] sm:$0xff] %vm5576, %v7808
        %7842 = vst.msk [vmem:[%s7820 + $0xf9] sm:$0xff] %vm5576, %v7809
        %7843 = vst.msk [vmem:[%s7820 + $0x109] sm:$0xff] %vm5576, %v7810
        %7844 = vst.msk [vmem:[%s7820 + $0x111] sm:$0xff] %vm5576, %v7811
        %7845 = vst.msk [vmem:[%s7820 + $0x121] sm:$0xff] %vm5576, %v7812
        %7846 = vst.msk [vmem:[%s7820 + $0x129] sm:$0xff] %vm5576, %v7813
        %7847 = vst.msk [vmem:[%s7820 + $0x139] sm:$0xff] %vm5576, %v7814
        %7848 = vst.msk [vmem:[%s7820 + $0x141] sm:$0xff] %vm5576, %v7815
        %7849 = vst.msk [vmem:[%s7820 + $0x151] sm:$0xff] %vm5576, %v7816
        %7850 = vst.msk [vmem:[%s7820 + $0x159] sm:$0xff] %vm5576, %v7817
        %7851 = vst.msk [vmem:[%s7820 + $0x169] sm:$0xff] %vm5576, %v7818
        %7852 = vst.msk [vmem:[%s7820 + $0x171] sm:$0xff] %vm5576, %v7819
        %v7853 = vld [vmem:[#allocation4] sm:$0xff]
        %v7854 = vld [vmem:[#allocation4 + $0x8] sm:$0xff]
        %v7855 = vld [vmem:[#allocation4 + $0x18] sm:$0xff]
        %v7856 = vld [vmem:[#allocation4 + $0x20] sm:$0xff]
        %v7857 = vld [vmem:[#allocation4 + $0x30] sm:$0xff]
        %v7858 = vld [vmem:[#allocation4 + $0x38] sm:$0xff]
        %v7859 = vld [vmem:[#allocation4 + $0x48] sm:$0xff]
        %v7860 = vld [vmem:[#allocation4 + $0x50] sm:$0xff]
        %v7861 = vld [vmem:[#allocation4 + $0x60] sm:$0xff]
        %v7862 = vld [vmem:[#allocation4 + $0x68] sm:$0xff]
        %v7863 = vld [vmem:[#allocation4 + $0x78] sm:$0xff]
        %v7864 = vld [vmem:[#allocation4 + $0x80] sm:$0xff]
        %v7865 = vld [vmem:[#allocation4 + $0x90] sm:$0xff]
        %v7866 = vld [vmem:[#allocation4 + $0x98] sm:$0xff]
        %v7867 = vld [vmem:[#allocation4 + $0xa8] sm:$0xff]
        %v7868 = vld [vmem:[#allocation4 + $0xb0] sm:$0xff]
        %v7869 = vld [vmem:[#allocation4 + $0xc0] sm:$0xff]
        %v7870 = vld [vmem:[#allocation4 + $0xc8] sm:$0xff]
        %v7871 = vld [vmem:[#allocation4 + $0xd8] sm:$0xff]
        %v7872 = vld [vmem:[#allocation4 + $0xe0] sm:$0xff]
        %v7873 = vld [vmem:[#allocation4 + $0xf0] sm:$0xff]
        %v7874 = vld [vmem:[#allocation4 + $0xf8] sm:$0xff]
        %v7875 = vld [vmem:[#allocation4 + $0x108] sm:$0xff]
        %v7876 = vld [vmem:[#allocation4 + $0x110] sm:$0xff]
        %v7877 = vld [vmem:[#allocation4 + $0x120] sm:$0xff]
        %v7878 = vld [vmem:[#allocation4 + $0x128] sm:$0xff]
        %v7879 = vld [vmem:[#allocation4 + $0x138] sm:$0xff]
        %v7880 = vld [vmem:[#allocation4 + $0x140] sm:$0xff]
        %v7881 = vld [vmem:[#allocation4 + $0x150] sm:$0xff]
        %v7882 = vld [vmem:[#allocation4 + $0x158] sm:$0xff]
        %v7883 = vld [vmem:[#allocation4 + $0x168] sm:$0xff]
        %v7884 = vld [vmem:[#allocation4 + $0x170] sm:$0xff]
        %7885 = vst.msk [vmem:[#allocation7] sm:$0xff] %vm5576, %v7853
        %7886 = vst.msk [vmem:[#allocation7 + $0x18] sm:$0xff] %vm5576, %v7854
        %7887 = vst.msk [vmem:[#allocation7 + $0x30] sm:$0xff] %vm5576, %v7855
        %7888 = vst.msk [vmem:[#allocation7 + $0x48] sm:$0xff] %vm5576, %v7856
        %7889 = vst.msk [vmem:[#allocation7 + $0x60] sm:$0xff] %vm5576, %v7857
        %7890 = vst.msk [vmem:[#allocation7 + $0x78] sm:$0xff] %vm5576, %v7858
        %7891 = vst.msk [vmem:[#allocation7 + $0x90] sm:$0xff] %vm5576, %v7859
        %7892 = vst.msk [vmem:[#allocation7 + $0xa8] sm:$0xff] %vm5576, %v7860
        %7893 = vst.msk [vmem:[#allocation7 + $0xc0] sm:$0xff] %vm5576, %v7861
        %7894 = vst.msk [vmem:[#allocation7 + $0xd8] sm:$0xff] %vm5576, %v7862
        %7895 = vst.msk [vmem:[#allocation7 + $0xf0] sm:$0xff] %vm5576, %v7863
        %7896 = vst.msk [vmem:[#allocation7 + $0x108] sm:$0xff] %vm5576, %v7864
        %7897 = vst.msk [vmem:[#allocation7 + $0x120] sm:$0xff] %vm5576, %v7865
        %7898 = vst.msk [vmem:[#allocation7 + $0x138] sm:$0xff] %vm5576, %v7866
        %7899 = vst.msk [vmem:[#allocation7 + $0x150] sm:$0xff] %vm5576, %v7867
        %7900 = vst.msk [vmem:[#allocation7 + $0x168] sm:$0xff] %vm5576, %v7868
        %7901 = vst.msk [vmem:[#allocation7 + $0x180] sm:$0xff] %vm5576, %v7869
        %7902 = vst.msk [vmem:[#allocation7 + $0x198] sm:$0xff] %vm5576, %v7870
        %7903 = vst.msk [vmem:[#allocation7 + $0x1b0] sm:$0xff] %vm5576, %v7871
        %7904 = vst.msk [vmem:[#allocation7 + $0x1c8] sm:$0xff] %vm5576, %v7872
        %7905 = vst.msk [vmem:[#allocation7 + $0x1e0] sm:$0xff] %vm5576, %v7873
        %7906 = vst.msk [vmem:[#allocation7 + $0x1f8] sm:$0xff] %vm5576, %v7874
        %7907 = vst.msk [vmem:[#allocation7 + $0x210] sm:$0xff] %vm5576, %v7875
        %7908 = vst.msk [vmem:[#allocation7 + $0x228] sm:$0xff] %vm5576, %v7876
        %7909 = vst.msk [vmem:[#allocation7 + $0x240] sm:$0xff] %vm5576, %v7877
        %7910 = vst.msk [vmem:[#allocation7 + $0x258] sm:$0xff] %vm5576, %v7878
        %7911 = vst.msk [vmem:[#allocation7 + $0x270] sm:$0xff] %vm5576, %v7879
        %7912 = vst.msk [vmem:[#allocation7 + $0x288] sm:$0xff] %vm5576, %v7880
        %7913 = vst.msk [vmem:[#allocation7 + $0x2a0] sm:$0xff] %vm5576, %v7881
        %7914 = vst.msk [vmem:[#allocation7 + $0x2b8] sm:$0xff] %vm5576, %v7882
        %7915 = vst.msk [vmem:[#allocation7 + $0x2d0] sm:$0xff] %vm5576, %v7883
        %7916 = vst.msk [vmem:[#allocation7 + $0x2e8] sm:$0xff] %vm5576, %v7884
        %v7917 = vld [vmem:[#allocation4 + $0x1] sm:$0xff]
        %v7918 = vld [vmem:[#allocation4 + $0x9] sm:$0xff]
        %v7919 = vld [vmem:[#allocation4 + $0x19] sm:$0xff]
        %v7920 = vld [vmem:[#allocation4 + $0x21] sm:$0xff]
        %v7921 = vld [vmem:[#allocation4 + $0x31] sm:$0xff]
        %v7922 = vld [vmem:[#allocation4 + $0x39] sm:$0xff]
        %v7923 = vld [vmem:[#allocation4 + $0x49] sm:$0xff]
        %v7924 = vld [vmem:[#allocation4 + $0x51] sm:$0xff]
        %v7925 = vld [vmem:[#allocation4 + $0x61] sm:$0xff]
        %v7926 = vld [vmem:[#allocation4 + $0x69] sm:$0xff]
        %v7927 = vld [vmem:[#allocation4 + $0x79] sm:$0xff]
        %v7928 = vld [vmem:[#allocation4 + $0x81] sm:$0xff]
        %v7929 = vld [vmem:[#allocation4 + $0x91] sm:$0xff]
        %v7930 = vld [vmem:[#allocation4 + $0x99] sm:$0xff]
        %v7931 = vld [vmem:[#allocation4 + $0xa9] sm:$0xff]
        %v7932 = vld [vmem:[#allocation4 + $0xb1] sm:$0xff]
        %v7933 = vld [vmem:[#allocation4 + $0xc1] sm:$0xff]
        %v7934 = vld [vmem:[#allocation4 + $0xc9] sm:$0xff]
        %v7935 = vld [vmem:[#allocation4 + $0xd9] sm:$0xff]
        %v7936 = vld [vmem:[#allocation4 + $0xe1] sm:$0xff]
        %v7937 = vld [vmem:[#allocation4 + $0xf1] sm:$0xff]
        %v7938 = vld [vmem:[#allocation4 + $0xf9] sm:$0xff]
        %v7939 = vld [vmem:[#allocation4 + $0x109] sm:$0xff]
        %v7940 = vld [vmem:[#allocation4 + $0x111] sm:$0xff]
        %v7941 = vld [vmem:[#allocation4 + $0x121] sm:$0xff]
        %v7942 = vld [vmem:[#allocation4 + $0x129] sm:$0xff]
        %v7943 = vld [vmem:[#allocation4 + $0x139] sm:$0xff]
        %v7944 = vld [vmem:[#allocation4 + $0x141] sm:$0xff]
        %v7945 = vld [vmem:[#allocation4 + $0x151] sm:$0xff]
        %v7946 = vld [vmem:[#allocation4 + $0x159] sm:$0xff]
        %v7947 = vld [vmem:[#allocation4 + $0x169] sm:$0xff]
        %v7948 = vld [vmem:[#allocation4 + $0x171] sm:$0xff]
        %7981 = vrot.lane.b32.xlu0 %v7917, 32
        %v7982 = vpop.permute.xlu0 %7981
        %7983 = vrot.lane.b32.xlu0 %v7918, 32
        %v7984 = vpop.permute.xlu0 %7983
        %7985 = vrot.lane.b32.xlu0 %v7919, 32
        %v7986 = vpop.permute.xlu0 %7985
        %7987 = vrot.lane.b32.xlu0 %v7920, 32
        %v7988 = vpop.permute.xlu0 %7987
        %7989 = vrot.lane.b32.xlu0 %v7921, 32
        %v7990 = vpop.permute.xlu0 %7989
        %7991 = vrot.lane.b32.xlu0 %v7922, 32
        %v7992 = vpop.permute.xlu0 %7991
        %7993 = vrot.lane.b32.xlu0 %v7923, 32
        %v7994 = vpop.permute.xlu0 %7993
        %7995 = vrot.lane.b32.xlu0 %v7924, 32
        %v7996 = vpop.permute.xlu0 %7995
        %7997 = vrot.lane.b32.xlu0 %v7925, 32
        %v7998 = vpop.permute.xlu0 %7997
        %7999 = vrot.lane.b32.xlu0 %v7926, 32
        %v8000 = vpop.permute.xlu0 %7999
        %8001 = vrot.lane.b32.xlu0 %v7927, 32
        %v8002 = vpop.permute.xlu0 %8001
        %8003 = vrot.lane.b32.xlu0 %v7928, 32
        %v8004 = vpop.permute.xlu0 %8003
        %8005 = vrot.lane.b32.xlu0 %v7929, 32
        %v8006 = vpop.permute.xlu0 %8005
        %8007 = vrot.lane.b32.xlu0 %v7930, 32
        %v8008 = vpop.permute.xlu0 %8007
        %8009 = vrot.lane.b32.xlu0 %v7931, 32
        %v8010 = vpop.permute.xlu0 %8009
        %8011 = vrot.lane.b32.xlu0 %v7932, 32
        %v8012 = vpop.permute.xlu0 %8011
        %8013 = vrot.lane.b32.xlu0 %v7933, 32
        %v8014 = vpop.permute.xlu0 %8013
        %8015 = vrot.lane.b32.xlu0 %v7934, 32
        %v8016 = vpop.permute.xlu0 %8015
        %8017 = vrot.lane.b32.xlu0 %v7935, 32
        %v8018 = vpop.permute.xlu0 %8017
        %8019 = vrot.lane.b32.xlu0 %v7936, 32
        %v8020 = vpop.permute.xlu0 %8019
        %8021 = vrot.lane.b32.xlu0 %v7937, 32
        %v8022 = vpop.permute.xlu0 %8021
        %8023 = vrot.lane.b32.xlu0 %v7938, 32
        %v8024 = vpop.permute.xlu0 %8023
        %8025 = vrot.lane.b32.xlu0 %v7939, 32
        %v8026 = vpop.permute.xlu0 %8025
        %8027 = vrot.lane.b32.xlu0 %v7940, 32
        %v8028 = vpop.permute.xlu0 %8027
        %8029 = vrot.lane.b32.xlu0 %v7941, 32
        %v8030 = vpop.permute.xlu0 %8029
        %8031 = vrot.lane.b32.xlu0 %v7942, 32
        %v8032 = vpop.permute.xlu0 %8031
        %8033 = vrot.lane.b32.xlu0 %v7943, 32
        %v8034 = vpop.permute.xlu0 %8033
        %8035 = vrot.lane.b32.xlu0 %v7944, 32
        %v8036 = vpop.permute.xlu0 %8035
        %8037 = vrot.lane.b32.xlu0 %v7945, 32
        %v8038 = vpop.permute.xlu0 %8037
        %8039 = vrot.lane.b32.xlu0 %v7946, 32
        %v8040 = vpop.permute.xlu0 %8039
        %8041 = vrot.lane.b32.xlu0 %v7947, 32
        %v8042 = vpop.permute.xlu0 %8041
        %8043 = vrot.lane.b32.xlu0 %v7948, 32
        %v8044 = vpop.permute.xlu0 %8043
        %vm8077 = vcmask 523520
        %8078 = vst.msk [vmem:[#allocation7] sm:$0xff] %vm8077, %v7982
        %8079 = vst.msk [vmem:[#allocation7 + $0x18] sm:$0xff] %vm8077, %v7984
        %8080 = vst.msk [vmem:[#allocation7 + $0x30] sm:$0xff] %vm8077, %v7986
        %8081 = vst.msk [vmem:[#allocation7 + $0x48] sm:$0xff] %vm8077, %v7988
        %8082 = vst.msk [vmem:[#allocation7 + $0x60] sm:$0xff] %vm8077, %v7990
        %8083 = vst.msk [vmem:[#allocation7 + $0x78] sm:$0xff] %vm8077, %v7992
        %8084 = vst.msk [vmem:[#allocation7 + $0x90] sm:$0xff] %vm8077, %v7994
        %8085 = vst.msk [vmem:[#allocation7 + $0xa8] sm:$0xff] %vm8077, %v7996
        %8086 = vst.msk [vmem:[#allocation7 + $0xc0] sm:$0xff] %vm8077, %v7998
        %8087 = vst.msk [vmem:[#allocation7 + $0xd8] sm:$0xff] %vm8077, %v8000
        %8088 = vst.msk [vmem:[#allocation7 + $0xf0] sm:$0xff] %vm8077, %v8002
        %8089 = vst.msk [vmem:[#allocation7 + $0x108] sm:$0xff] %vm8077, %v8004
        %8090 = vst.msk [vmem:[#allocation7 + $0x120] sm:$0xff] %vm8077, %v8006
        %8091 = vst.msk [vmem:[#allocation7 + $0x138] sm:$0xff] %vm8077, %v8008
        %8092 = vst.msk [vmem:[#allocation7 + $0x150] sm:$0xff] %vm8077, %v8010
        %8093 = vst.msk [vmem:[#allocation7 + $0x168] sm:$0xff] %vm8077, %v8012
        %8094 = vst.msk [vmem:[#allocation7 + $0x180] sm:$0xff] %vm8077, %v8014
        %8095 = vst.msk [vmem:[#allocation7 + $0x198] sm:$0xff] %vm8077, %v8016
        %8096 = vst.msk [vmem:[#allocation7 + $0x1b0] sm:$0xff] %vm8077, %v8018
        %8097 = vst.msk [vmem:[#allocation7 + $0x1c8] sm:$0xff] %vm8077, %v8020
        %8098 = vst.msk [vmem:[#allocation7 + $0x1e0] sm:$0xff] %vm8077, %v8022
        %8099 = vst.msk [vmem:[#allocation7 + $0x1f8] sm:$0xff] %vm8077, %v8024
        %8100 = vst.msk [vmem:[#allocation7 + $0x210] sm:$0xff] %vm8077, %v8026
        %8101 = vst.msk [vmem:[#allocation7 + $0x228] sm:$0xff] %vm8077, %v8028
        %8102 = vst.msk [vmem:[#allocation7 + $0x240] sm:$0xff] %vm8077, %v8030
        %8103 = vst.msk [vmem:[#allocation7 + $0x258] sm:$0xff] %vm8077, %v8032
        %8104 = vst.msk [vmem:[#allocation7 + $0x270] sm:$0xff] %vm8077, %v8034
        %8105 = vst.msk [vmem:[#allocation7 + $0x288] sm:$0xff] %vm8077, %v8036
        %8106 = vst.msk [vmem:[#allocation7 + $0x2a0] sm:$0xff] %vm8077, %v8038
        %8107 = vst.msk [vmem:[#allocation7 + $0x2b8] sm:$0xff] %vm8077, %v8040
        %8108 = vst.msk [vmem:[#allocation7 + $0x2d0] sm:$0xff] %vm8077, %v8042
        %8109 = vst.msk [vmem:[#allocation7 + $0x2e8] sm:$0xff] %vm8077, %v8044
        %v8110 = vld [vmem:[#allocation4 + $0x2] sm:$0xff]
        %v8111 = vld [vmem:[#allocation4 + $0xa] sm:$0xff]
        %v8112 = vld [vmem:[#allocation4 + $0x1a] sm:$0xff]
        %v8113 = vld [vmem:[#allocation4 + $0x22] sm:$0xff]
        %v8114 = vld [vmem:[#allocation4 + $0x32] sm:$0xff]
        %v8115 = vld [vmem:[#allocation4 + $0x3a] sm:$0xff]
        %v8116 = vld [vmem:[#allocation4 + $0x4a] sm:$0xff]
        %v8117 = vld [vmem:[#allocation4 + $0x52] sm:$0xff]
        %v8118 = vld [vmem:[#allocation4 + $0x62] sm:$0xff]
        %v8119 = vld [vmem:[#allocation4 + $0x6a] sm:$0xff]
        %v8120 = vld [vmem:[#allocation4 + $0x7a] sm:$0xff]
        %v8121 = vld [vmem:[#allocation4 + $0x82] sm:$0xff]
        %v8122 = vld [vmem:[#allocation4 + $0x92] sm:$0xff]
        %v8123 = vld [vmem:[#allocation4 + $0x9a] sm:$0xff]
        %v8124 = vld [vmem:[#allocation4 + $0xaa] sm:$0xff]
        %v8125 = vld [vmem:[#allocation4 + $0xb2] sm:$0xff]
        %v8126 = vld [vmem:[#allocation4 + $0xc2] sm:$0xff]
        %v8127 = vld [vmem:[#allocation4 + $0xca] sm:$0xff]
        %v8128 = vld [vmem:[#allocation4 + $0xda] sm:$0xff]
        %v8129 = vld [vmem:[#allocation4 + $0xe2] sm:$0xff]
        %v8130 = vld [vmem:[#allocation4 + $0xf2] sm:$0xff]
        %v8131 = vld [vmem:[#allocation4 + $0xfa] sm:$0xff]
        %v8132 = vld [vmem:[#allocation4 + $0x10a] sm:$0xff]
        %v8133 = vld [vmem:[#allocation4 + $0x112] sm:$0xff]
        %v8134 = vld [vmem:[#allocation4 + $0x122] sm:$0xff]
        %v8135 = vld [vmem:[#allocation4 + $0x12a] sm:$0xff]
        %v8136 = vld [vmem:[#allocation4 + $0x13a] sm:$0xff]
        %v8137 = vld [vmem:[#allocation4 + $0x142] sm:$0xff]
        %v8138 = vld [vmem:[#allocation4 + $0x152] sm:$0xff]
        %v8139 = vld [vmem:[#allocation4 + $0x15a] sm:$0xff]
        %v8140 = vld [vmem:[#allocation4 + $0x16a] sm:$0xff]
        %v8141 = vld [vmem:[#allocation4 + $0x172] sm:$0xff]
        %8174 = vrot.lane.b32.xlu0 %v8110, 64
        %v8175 = vpop.permute.xlu0 %8174
        %8176 = vrot.lane.b32.xlu0 %v8111, 64
        %v8177 = vpop.permute.xlu0 %8176
        %8178 = vrot.lane.b32.xlu0 %v8112, 64
        %v8179 = vpop.permute.xlu0 %8178
        %8180 = vrot.lane.b32.xlu0 %v8113, 64
        %v8181 = vpop.permute.xlu0 %8180
        %8182 = vrot.lane.b32.xlu0 %v8114, 64
        %v8183 = vpop.permute.xlu0 %8182
        %8184 = vrot.lane.b32.xlu0 %v8115, 64
        %v8185 = vpop.permute.xlu0 %8184
        %8186 = vrot.lane.b32.xlu0 %v8116, 64
        %v8187 = vpop.permute.xlu0 %8186
        %8188 = vrot.lane.b32.xlu0 %v8117, 64
        %v8189 = vpop.permute.xlu0 %8188
        %8190 = vrot.lane.b32.xlu0 %v8118, 64
        %v8191 = vpop.permute.xlu0 %8190
        %8192 = vrot.lane.b32.xlu0 %v8119, 64
        %v8193 = vpop.permute.xlu0 %8192
        %8194 = vrot.lane.b32.xlu0 %v8120, 64
        %v8195 = vpop.permute.xlu0 %8194
        %8196 = vrot.lane.b32.xlu0 %v8121, 64
        %v8197 = vpop.permute.xlu0 %8196
        %8198 = vrot.lane.b32.xlu0 %v8122, 64
        %v8199 = vpop.permute.xlu0 %8198
        %8200 = vrot.lane.b32.xlu0 %v8123, 64
        %v8201 = vpop.permute.xlu0 %8200
        %8202 = vrot.lane.b32.xlu0 %v8124, 64
        %v8203 = vpop.permute.xlu0 %8202
        %8204 = vrot.lane.b32.xlu0 %v8125, 64
        %v8205 = vpop.permute.xlu0 %8204
        %8206 = vrot.lane.b32.xlu0 %v8126, 64
        %v8207 = vpop.permute.xlu0 %8206
        %8208 = vrot.lane.b32.xlu0 %v8127, 64
        %v8209 = vpop.permute.xlu0 %8208
        %8210 = vrot.lane.b32.xlu0 %v8128, 64
        %v8211 = vpop.permute.xlu0 %8210
        %8212 = vrot.lane.b32.xlu0 %v8129, 64
        %v8213 = vpop.permute.xlu0 %8212
        %8214 = vrot.lane.b32.xlu0 %v8130, 64
        %v8215 = vpop.permute.xlu0 %8214
        %8216 = vrot.lane.b32.xlu0 %v8131, 64
        %v8217 = vpop.permute.xlu0 %8216
        %8218 = vrot.lane.b32.xlu0 %v8132, 64
        %v8219 = vpop.permute.xlu0 %8218
        %8220 = vrot.lane.b32.xlu0 %v8133, 64
        %v8221 = vpop.permute.xlu0 %8220
        %8222 = vrot.lane.b32.xlu0 %v8134, 64
        %v8223 = vpop.permute.xlu0 %8222
        %8224 = vrot.lane.b32.xlu0 %v8135, 64
        %v8225 = vpop.permute.xlu0 %8224
        %8226 = vrot.lane.b32.xlu0 %v8136, 64
        %v8227 = vpop.permute.xlu0 %8226
        %8228 = vrot.lane.b32.xlu0 %v8137, 64
        %v8229 = vpop.permute.xlu0 %8228
        %8230 = vrot.lane.b32.xlu0 %v8138, 64
        %v8231 = vpop.permute.xlu0 %8230
        %8232 = vrot.lane.b32.xlu0 %v8139, 64
        %v8233 = vpop.permute.xlu0 %8232
        %8234 = vrot.lane.b32.xlu0 %v8140, 64
        %v8235 = vpop.permute.xlu0 %8234
        %8236 = vrot.lane.b32.xlu0 %v8141, 64
        %v8237 = vpop.permute.xlu0 %8236
        %vm8270 = vcmask 785920
        %8271 = vst.msk [vmem:[#allocation7] sm:$0xff] %vm8270, %v8175
        %8272 = vst.msk [vmem:[#allocation7 + $0x18] sm:$0xff] %vm8270, %v8177
        %8273 = vst.msk [vmem:[#allocation7 + $0x30] sm:$0xff] %vm8270, %v8179
        %8274 = vst.msk [vmem:[#allocation7 + $0x48] sm:$0xff] %vm8270, %v8181
        %8275 = vst.msk [vmem:[#allocation7 + $0x60] sm:$0xff] %vm8270, %v8183
        %8276 = vst.msk [vmem:[#allocation7 + $0x78] sm:$0xff] %vm8270, %v8185
        %8277 = vst.msk [vmem:[#allocation7 + $0x90] sm:$0xff] %vm8270, %v8187
        %8278 = vst.msk [vmem:[#allocation7 + $0xa8] sm:$0xff] %vm8270, %v8189
        %8279 = vst.msk [vmem:[#allocation7 + $0xc0] sm:$0xff] %vm8270, %v8191
        %8280 = vst.msk [vmem:[#allocation7 + $0xd8] sm:$0xff] %vm8270, %v8193
        %8281 = vst.msk [vmem:[#allocation7 + $0xf0] sm:$0xff] %vm8270, %v8195
        %8282 = vst.msk [vmem:[#allocation7 + $0x108] sm:$0xff] %vm8270, %v8197
        %8283 = vst.msk [vmem:[#allocation7 + $0x120] sm:$0xff] %vm8270, %v8199
        %8284 = vst.msk [vmem:[#allocation7 + $0x138] sm:$0xff] %vm8270, %v8201
        %8285 = vst.msk [vmem:[#allocation7 + $0x150] sm:$0xff] %vm8270, %v8203
        %8286 = vst.msk [vmem:[#allocation7 + $0x168] sm:$0xff] %vm8270, %v8205
        %8287 = vst.msk [vmem:[#allocation7 + $0x180] sm:$0xff] %vm8270, %v8207
        %8288 = vst.msk [vmem:[#allocation7 + $0x198] sm:$0xff] %vm8270, %v8209
        %8289 = vst.msk [vmem:[#allocation7 + $0x1b0] sm:$0xff] %vm8270, %v8211
        %8290 = vst.msk [vmem:[#allocation7 + $0x1c8] sm:$0xff] %vm8270, %v8213
        %8291 = vst.msk [vmem:[#allocation7 + $0x1e0] sm:$0xff] %vm8270, %v8215
        %8292 = vst.msk [vmem:[#allocation7 + $0x1f8] sm:$0xff] %vm8270, %v8217
        %8293 = vst.msk [vmem:[#allocation7 + $0x210] sm:$0xff] %vm8270, %v8219
        %8294 = vst.msk [vmem:[#allocation7 + $0x228] sm:$0xff] %vm8270, %v8221
        %8295 = vst.msk [vmem:[#allocation7 + $0x240] sm:$0xff] %vm8270, %v8223
        %8296 = vst.msk [vmem:[#allocation7 + $0x258] sm:$0xff] %vm8270, %v8225
        %8297 = vst.msk [vmem:[#allocation7 + $0x270] sm:$0xff] %vm8270, %v8227
        %8298 = vst.msk [vmem:[#allocation7 + $0x288] sm:$0xff] %vm8270, %v8229
        %8299 = vst.msk [vmem:[#allocation7 + $0x2a0] sm:$0xff] %vm8270, %v8231
        %8300 = vst.msk [vmem:[#allocation7 + $0x2b8] sm:$0xff] %vm8270, %v8233
        %8301 = vst.msk [vmem:[#allocation7 + $0x2d0] sm:$0xff] %vm8270, %v8235
        %8302 = vst.msk [vmem:[#allocation7 + $0x2e8] sm:$0xff] %vm8270, %v8237
        %v8303 = vld [vmem:[%s7820] sm:$0xff]
        %v8304 = vld [vmem:[%s7820 + $0x8] sm:$0xff]
        %v8305 = vld [vmem:[%s7820 + $0x18] sm:$0xff]
        %v8306 = vld [vmem:[%s7820 + $0x20] sm:$0xff]
        %v8307 = vld [vmem:[%s7820 + $0x30] sm:$0xff]
        %v8308 = vld [vmem:[%s7820 + $0x38] sm:$0xff]
        %v8309 = vld [vmem:[%s7820 + $0x48] sm:$0xff]
        %v8310 = vld [vmem:[%s7820 + $0x50] sm:$0xff]
        %v8311 = vld [vmem:[%s7820 + $0x60] sm:$0xff]
        %v8312 = vld [vmem:[%s7820 + $0x68] sm:$0xff]
        %v8313 = vld [vmem:[%s7820 + $0x78] sm:$0xff]
        %v8314 = vld [vmem:[%s7820 + $0x80] sm:$0xff]
        %v8315 = vld [vmem:[%s7820 + $0x90] sm:$0xff]
        %v8316 = vld [vmem:[%s7820 + $0x98] sm:$0xff]
        %v8317 = vld [vmem:[%s7820 + $0xa8] sm:$0xff]
        %v8318 = vld [vmem:[%s7820 + $0xb0] sm:$0xff]
        %v8319 = vld [vmem:[%s7820 + $0xc0] sm:$0xff]
        %v8320 = vld [vmem:[%s7820 + $0xc8] sm:$0xff]
        %v8321 = vld [vmem:[%s7820 + $0xd8] sm:$0xff]
        %v8322 = vld [vmem:[%s7820 + $0xe0] sm:$0xff]
        %v8323 = vld [vmem:[%s7820 + $0xf0] sm:$0xff]
        %v8324 = vld [vmem:[%s7820 + $0xf8] sm:$0xff]
        %v8325 = vld [vmem:[%s7820 + $0x108] sm:$0xff]
        %v8326 = vld [vmem:[%s7820 + $0x110] sm:$0xff]
        %v8327 = vld [vmem:[%s7820 + $0x120] sm:$0xff]
        %v8328 = vld [vmem:[%s7820 + $0x128] sm:$0xff]
        %v8329 = vld [vmem:[%s7820 + $0x138] sm:$0xff]
        %v8330 = vld [vmem:[%s7820 + $0x140] sm:$0xff]
        %v8331 = vld [vmem:[%s7820 + $0x150] sm:$0xff]
        %v8332 = vld [vmem:[%s7820 + $0x158] sm:$0xff]
        %v8333 = vld [vmem:[%s7820 + $0x168] sm:$0xff]
        %v8334 = vld [vmem:[%s7820 + $0x170] sm:$0xff]
        %8367 = vrot.lane.b32.xlu0 %v8303, 96
        %v8368 = vpop.permute.xlu0 %8367
        %8369 = vrot.lane.b32.xlu0 %v8304, 96
        %v8370 = vpop.permute.xlu0 %8369
        %8371 = vrot.lane.b32.xlu0 %v8305, 96
        %v8372 = vpop.permute.xlu0 %8371
        %8373 = vrot.lane.b32.xlu0 %v8306, 96
        %v8374 = vpop.permute.xlu0 %8373
        %8375 = vrot.lane.b32.xlu0 %v8307, 96
        %v8376 = vpop.permute.xlu0 %8375
        %8377 = vrot.lane.b32.xlu0 %v8308, 96
        %v8378 = vpop.permute.xlu0 %8377
        %8379 = vrot.lane.b32.xlu0 %v8309, 96
        %v8380 = vpop.permute.xlu0 %8379
        %8381 = vrot.lane.b32.xlu0 %v8310, 96
        %v8382 = vpop.permute.xlu0 %8381
        %8383 = vrot.lane.b32.xlu0 %v8311, 96
        %v8384 = vpop.permute.xlu0 %8383
        %8385 = vrot.lane.b32.xlu0 %v8312, 96
        %v8386 = vpop.permute.xlu0 %8385
        %8387 = vrot.lane.b32.xlu0 %v8313, 96
        %v8388 = vpop.permute.xlu0 %8387
        %8389 = vrot.lane.b32.xlu0 %v8314, 96
        %v8390 = vpop.permute.xlu0 %8389
        %8391 = vrot.lane.b32.xlu0 %v8315, 96
        %v8392 = vpop.permute.xlu0 %8391
        %8393 = vrot.lane.b32.xlu0 %v8316, 96
        %v8394 = vpop.permute.xlu0 %8393
        %8395 = vrot.lane.b32.xlu0 %v8317, 96
        %v8396 = vpop.permute.xlu0 %8395
        %8397 = vrot.lane.b32.xlu0 %v8318, 96
        %v8398 = vpop.permute.xlu0 %8397
        %8399 = vrot.lane.b32.xlu0 %v8319, 96
        %v8400 = vpop.permute.xlu0 %8399
        %8401 = vrot.lane.b32.xlu0 %v8320, 96
        %v8402 = vpop.permute.xlu0 %8401
        %8403 = vrot.lane.b32.xlu0 %v8321, 96
        %v8404 = vpop.permute.xlu0 %8403
        %8405 = vrot.lane.b32.xlu0 %v8322, 96
        %v8406 = vpop.permute.xlu0 %8405
        %8407 = vrot.lane.b32.xlu0 %v8323, 96
        %v8408 = vpop.permute.xlu0 %8407
        %8409 = vrot.lane.b32.xlu0 %v8324, 96
        %v8410 = vpop.permute.xlu0 %8409
        %8411 = vrot.lane.b32.xlu0 %v8325, 96
        %v8412 = vpop.permute.xlu0 %8411
        %8413 = vrot.lane.b32.xlu0 %v8326, 96
        %v8414 = vpop.permute.xlu0 %8413
        %8415 = vrot.lane.b32.xlu0 %v8327, 96
        %v8416 = vpop.permute.xlu0 %8415
        %8417 = vrot.lane.b32.xlu0 %v8328, 96
        %v8418 = vpop.permute.xlu0 %8417
        %8419 = vrot.lane.b32.xlu0 %v8329, 96
        %v8420 = vpop.permute.xlu0 %8419
        %8421 = vrot.lane.b32.xlu0 %v8330, 96
        %v8422 = vpop.permute.xlu0 %8421
        %8423 = vrot.lane.b32.xlu0 %v8331, 96
        %v8424 = vpop.permute.xlu0 %8423
        %8425 = vrot.lane.b32.xlu0 %v8332, 96
        %v8426 = vpop.permute.xlu0 %8425
        %8427 = vrot.lane.b32.xlu0 %v8333, 96
        %v8428 = vpop.permute.xlu0 %8427
        %8429 = vrot.lane.b32.xlu0 %v8334, 96
        %v8430 = vpop.permute.xlu0 %8429
        %vm8463 = vcmask 1048320
        %8464 = vst.msk [vmem:[#allocation7] sm:$0xff] %vm8463, %v8368
        %8465 = vst.msk [vmem:[#allocation7 + $0x18] sm:$0xff] %vm8463, %v8370
        %8466 = vst.msk [vmem:[#allocation7 + $0x30] sm:$0xff] %vm8463, %v8372
        %8467 = vst.msk [vmem:[#allocation7 + $0x48] sm:$0xff] %vm8463, %v8374
        %8468 = vst.msk [vmem:[#allocation7 + $0x60] sm:$0xff] %vm8463, %v8376
        %8469 = vst.msk [vmem:[#allocation7 + $0x78] sm:$0xff] %vm8463, %v8378
        %8470 = vst.msk [vmem:[#allocation7 + $0x90] sm:$0xff] %vm8463, %v8380
        %8471 = vst.msk [vmem:[#allocation7 + $0xa8] sm:$0xff] %vm8463, %v8382
        %8472 = vst.msk [vmem:[#allocation7 + $0xc0] sm:$0xff] %vm8463, %v8384
        %8473 = vst.msk [vmem:[#allocation7 + $0xd8] sm:$0xff] %vm8463, %v8386
        %8474 = vst.msk [vmem:[#allocation7 + $0xf0] sm:$0xff] %vm8463, %v8388
        %8475 = vst.msk [vmem:[#allocation7 + $0x108] sm:$0xff] %vm8463, %v8390
        %8476 = vst.msk [vmem:[#allocation7 + $0x120] sm:$0xff] %vm8463, %v8392
        %8477 = vst.msk [vmem:[#allocation7 + $0x138] sm:$0xff] %vm8463, %v8394
        %8478 = vst.msk [vmem:[#allocation7 + $0x150] sm:$0xff] %vm8463, %v8396
        %8479 = vst.msk [vmem:[#allocation7 + $0x168] sm:$0xff] %vm8463, %v8398
        %8480 = vst.msk [vmem:[#allocation7 + $0x180] sm:$0xff] %vm8463, %v8400
        %8481 = vst.msk [vmem:[#allocation7 + $0x198] sm:$0xff] %vm8463, %v8402
        %8482 = vst.msk [vmem:[#allocation7 + $0x1b0] sm:$0xff] %vm8463, %v8404
        %8483 = vst.msk [vmem:[#allocation7 + $0x1c8] sm:$0xff] %vm8463, %v8406
        %8484 = vst.msk [vmem:[#allocation7 + $0x1e0] sm:$0xff] %vm8463, %v8408
        %8485 = vst.msk [vmem:[#allocation7 + $0x1f8] sm:$0xff] %vm8463, %v8410
        %8486 = vst.msk [vmem:[#allocation7 + $0x210] sm:$0xff] %vm8463, %v8412
        %8487 = vst.msk [vmem:[#allocation7 + $0x228] sm:$0xff] %vm8463, %v8414
        %8488 = vst.msk [vmem:[#allocation7 + $0x240] sm:$0xff] %vm8463, %v8416
        %8489 = vst.msk [vmem:[#allocation7 + $0x258] sm:$0xff] %vm8463, %v8418
        %8490 = vst.msk [vmem:[#allocation7 + $0x270] sm:$0xff] %vm8463, %v8420
        %8491 = vst.msk [vmem:[#allocation7 + $0x288] sm:$0xff] %vm8463, %v8422
        %8492 = vst.msk [vmem:[#allocation7 + $0x2a0] sm:$0xff] %vm8463, %v8424
        %8493 = vst.msk [vmem:[#allocation7 + $0x2b8] sm:$0xff] %vm8463, %v8426
        %8494 = vst.msk [vmem:[#allocation7 + $0x2d0] sm:$0xff] %vm8463, %v8428
        %8495 = vst.msk [vmem:[#allocation7 + $0x2e8] sm:$0xff] %vm8463, %v8430
        %v8496 = vld [vmem:[%s7820 + $0x1] sm:$0xff]
        %v8497 = vld [vmem:[%s7820 + $0x9] sm:$0xff]
        %v8498 = vld [vmem:[%s7820 + $0x19] sm:$0xff]
        %v8499 = vld [vmem:[%s7820 + $0x21] sm:$0xff]
        %v8500 = vld [vmem:[%s7820 + $0x31] sm:$0xff]
        %v8501 = vld [vmem:[%s7820 + $0x39] sm:$0xff]
        %v8502 = vld [vmem:[%s7820 + $0x49] sm:$0xff]
        %v8503 = vld [vmem:[%s7820 + $0x51] sm:$0xff]
        %v8504 = vld [vmem:[%s7820 + $0x61] sm:$0xff]
        %v8505 = vld [vmem:[%s7820 + $0x69] sm:$0xff]
        %v8506 = vld [vmem:[%s7820 + $0x79] sm:$0xff]
        %v8507 = vld [vmem:[%s7820 + $0x81] sm:$0xff]
        %v8508 = vld [vmem:[%s7820 + $0x91] sm:$0xff]
        %v8509 = vld [vmem:[%s7820 + $0x99] sm:$0xff]
        %v8510 = vld [vmem:[%s7820 + $0xa9] sm:$0xff]
        %v8511 = vld [vmem:[%s7820 + $0xb1] sm:$0xff]
        %v8512 = vld [vmem:[%s7820 + $0xc1] sm:$0xff]
        %v8513 = vld [vmem:[%s7820 + $0xc9] sm:$0xff]
        %v8514 = vld [vmem:[%s7820 + $0xd9] sm:$0xff]
        %v8515 = vld [vmem:[%s7820 + $0xe1] sm:$0xff]
        %v8516 = vld [vmem:[%s7820 + $0xf1] sm:$0xff]
        %v8517 = vld [vmem:[%s7820 + $0xf9] sm:$0xff]
        %v8518 = vld [vmem:[%s7820 + $0x109] sm:$0xff]
        %v8519 = vld [vmem:[%s7820 + $0x111] sm:$0xff]
        %v8520 = vld [vmem:[%s7820 + $0x121] sm:$0xff]
        %v8521 = vld [vmem:[%s7820 + $0x129] sm:$0xff]
        %v8522 = vld [vmem:[%s7820 + $0x139] sm:$0xff]
        %v8523 = vld [vmem:[%s7820 + $0x141] sm:$0xff]
        %v8524 = vld [vmem:[%s7820 + $0x151] sm:$0xff]
        %v8525 = vld [vmem:[%s7820 + $0x159] sm:$0xff]
        %v8526 = vld [vmem:[%s7820 + $0x169] sm:$0xff]
        %v8527 = vld [vmem:[%s7820 + $0x171] sm:$0xff]
        %8528 = vst.msk [vmem:[#allocation7 + $0x8] sm:$0xff] %vm5576, %v8496
        %8529 = vst.msk [vmem:[#allocation7 + $0x20] sm:$0xff] %vm5576, %v8497
        %8530 = vst.msk [vmem:[#allocation7 + $0x38] sm:$0xff] %vm5576, %v8498
        %8531 = vst.msk [vmem:[#allocation7 + $0x50] sm:$0xff] %vm5576, %v8499
        %8532 = vst.msk [vmem:[#allocation7 + $0x68] sm:$0xff] %vm5576, %v8500
        %8533 = vst.msk [vmem:[#allocation7 + $0x80] sm:$0xff] %vm5576, %v8501
        %8534 = vst.msk [vmem:[#allocation7 + $0x98] sm:$0xff] %vm5576, %v8502
        %8535 = vst.msk [vmem:[#allocation7 + $0xb0] sm:$0xff] %vm5576, %v8503
        %8536 = vst.msk [vmem:[#allocation7 + $0xc8] sm:$0xff] %vm5576, %v8504
        %8537 = vst.msk [vmem:[#allocation7 + $0xe0] sm:$0xff] %vm5576, %v8505
        %8538 = vst.msk [vmem:[#allocation7 + $0xf8] sm:$0xff] %vm5576, %v8506
        %8539 = vst.msk [vmem:[#allocation7 + $0x110] sm:$0xff] %vm5576, %v8507
        %8540 = vst.msk [vmem:[#allocation7 + $0x128] sm:$0xff] %vm5576, %v8508
        %8541 = vst.msk [vmem:[#allocation7 + $0x140] sm:$0xff] %vm5576, %v8509
        %8542 = vst.msk [vmem:[#allocation7 + $0x158] sm:$0xff] %vm5576, %v8510
        %8543 = vst.msk [vmem:[#allocation7 + $0x170] sm:$0xff] %vm5576, %v8511
        %8544 = vst.msk [vmem:[#allocation7 + $0x188] sm:$0xff] %vm5576, %v8512
        %8545 = vst.msk [vmem:[#allocation7 + $0x1a0] sm:$0xff] %vm5576, %v8513
        %8546 = vst.msk [vmem:[#allocation7 + $0x1b8] sm:$0xff] %vm5576, %v8514
        %8547 = vst.msk [vmem:[#allocation7 + $0x1d0] sm:$0xff] %vm5576, %v8515
        %8548 = vst.msk [vmem:[#allocation7 + $0x1e8] sm:$0xff] %vm5576, %v8516
        %8549 = vst.msk [vmem:[#allocation7 + $0x200] sm:$0xff] %vm5576, %v8517
        %8550 = vst.msk [vmem:[#allocation7 + $0x218] sm:$0xff] %vm5576, %v8518
        %8551 = vst.msk [vmem:[#allocation7 + $0x230] sm:$0xff] %vm5576, %v8519
        %8552 = vst.msk [vmem:[#allocation7 + $0x248] sm:$0xff] %vm5576, %v8520
        %8553 = vst.msk [vmem:[#allocation7 + $0x260] sm:$0xff] %vm5576, %v8521
        %8554 = vst.msk [vmem:[#allocation7 + $0x278] sm:$0xff] %vm5576, %v8522
        %8555 = vst.msk [vmem:[#allocation7 + $0x290] sm:$0xff] %vm5576, %v8523
        %8556 = vst.msk [vmem:[#allocation7 + $0x2a8] sm:$0xff] %vm5576, %v8524
        %8557 = vst.msk [vmem:[#allocation7 + $0x2c0] sm:$0xff] %vm5576, %v8525
        %8558 = vst.msk [vmem:[#allocation7 + $0x2d8] sm:$0xff] %vm5576, %v8526
        %8559 = vst.msk [vmem:[#allocation7 + $0x2f0] sm:$0xff] %vm5576, %v8527
        %v8560 = vld [vmem:[%s7820 + $0x2] sm:$0xff]
        %v8561 = vld [vmem:[%s7820 + $0xa] sm:$0xff]
        %v8562 = vld [vmem:[%s7820 + $0x1a] sm:$0xff]
        %v8563 = vld [vmem:[%s7820 + $0x22] sm:$0xff]
        %v8564 = vld [vmem:[%s7820 + $0x32] sm:$0xff]
        %v8565 = vld [vmem:[%s7820 + $0x3a] sm:$0xff]
        %v8566 = vld [vmem:[%s7820 + $0x4a] sm:$0xff]
        %v8567 = vld [vmem:[%s7820 + $0x52] sm:$0xff]
        %v8568 = vld [vmem:[%s7820 + $0x62] sm:$0xff]
        %v8569 = vld [vmem:[%s7820 + $0x6a] sm:$0xff]
        %v8570 = vld [vmem:[%s7820 + $0x7a] sm:$0xff]
        %v8571 = vld [vmem:[%s7820 + $0x82] sm:$0xff]
        %v8572 = vld [vmem:[%s7820 + $0x92] sm:$0xff]
        %v8573 = vld [vmem:[%s7820 + $0x9a] sm:$0xff]
        %v8574 = vld [vmem:[%s7820 + $0xaa] sm:$0xff]
        %v8575 = vld [vmem:[%s7820 + $0xb2] sm:$0xff]
        %v8576 = vld [vmem:[%s7820 + $0xc2] sm:$0xff]
        %v8577 = vld [vmem:[%s7820 + $0xca] sm:$0xff]
        %v8578 = vld [vmem:[%s7820 + $0xda] sm:$0xff]
        %v8579 = vld [vmem:[%s7820 + $0xe2] sm:$0xff]
        %v8580 = vld [vmem:[%s7820 + $0xf2] sm:$0xff]
        %v8581 = vld [vmem:[%s7820 + $0xfa] sm:$0xff]
        %v8582 = vld [vmem:[%s7820 + $0x10a] sm:$0xff]
        %v8583 = vld [vmem:[%s7820 + $0x112] sm:$0xff]
        %v8584 = vld [vmem:[%s7820 + $0x122] sm:$0xff]
        %v8585 = vld [vmem:[%s7820 + $0x12a] sm:$0xff]
        %v8586 = vld [vmem:[%s7820 + $0x13a] sm:$0xff]
        %v8587 = vld [vmem:[%s7820 + $0x142] sm:$0xff]
        %v8588 = vld [vmem:[%s7820 + $0x152] sm:$0xff]
        %v8589 = vld [vmem:[%s7820 + $0x15a] sm:$0xff]
        %v8590 = vld [vmem:[%s7820 + $0x16a] sm:$0xff]
        %v8591 = vld [vmem:[%s7820 + $0x172] sm:$0xff]
        %8624 = vrot.lane.b32.xlu0 %v8560, 32
        %v8625 = vpop.permute.xlu0 %8624
        %8626 = vrot.lane.b32.xlu0 %v8561, 32
        %v8627 = vpop.permute.xlu0 %8626
        %8628 = vrot.lane.b32.xlu0 %v8562, 32
        %v8629 = vpop.permute.xlu0 %8628
        %8630 = vrot.lane.b32.xlu0 %v8563, 32
        %v8631 = vpop.permute.xlu0 %8630
        %8632 = vrot.lane.b32.xlu0 %v8564, 32
        %v8633 = vpop.permute.xlu0 %8632
        %8634 = vrot.lane.b32.xlu0 %v8565, 32
        %v8635 = vpop.permute.xlu0 %8634
        %8636 = vrot.lane.b32.xlu0 %v8566, 32
        %v8637 = vpop.permute.xlu0 %8636
        %8638 = vrot.lane.b32.xlu0 %v8567, 32
        %v8639 = vpop.permute.xlu0 %8638
        %8640 = vrot.lane.b32.xlu0 %v8568, 32
        %v8641 = vpop.permute.xlu0 %8640
        %8642 = vrot.lane.b32.xlu0 %v8569, 32
        %v8643 = vpop.permute.xlu0 %8642
        %8644 = vrot.lane.b32.xlu0 %v8570, 32
        %v8645 = vpop.permute.xlu0 %8644
        %8646 = vrot.lane.b32.xlu0 %v8571, 32
        %v8647 = vpop.permute.xlu0 %8646
        %8648 = vrot.lane.b32.xlu0 %v8572, 32
        %v8649 = vpop.permute.xlu0 %8648
        %8650 = vrot.lane.b32.xlu0 %v8573, 32
        %v8651 = vpop.permute.xlu0 %8650
        %8652 = vrot.lane.b32.xlu0 %v8574, 32
        %v8653 = vpop.permute.xlu0 %8652
        %8654 = vrot.lane.b32.xlu0 %v8575, 32
        %v8655 = vpop.permute.xlu0 %8654
        %8656 = vrot.lane.b32.xlu0 %v8576, 32
        %v8657 = vpop.permute.xlu0 %8656
        %8658 = vrot.lane.b32.xlu0 %v8577, 32
        %v8659 = vpop.permute.xlu0 %8658
        %8660 = vrot.lane.b32.xlu0 %v8578, 32
        %v8661 = vpop.permute.xlu0 %8660
        %8662 = vrot.lane.b32.xlu0 %v8579, 32
        %v8663 = vpop.permute.xlu0 %8662
        %8664 = vrot.lane.b32.xlu0 %v8580, 32
        %v8665 = vpop.permute.xlu0 %8664
        %8666 = vrot.lane.b32.xlu0 %v8581, 32
        %v8667 = vpop.permute.xlu0 %8666
        %8668 = vrot.lane.b32.xlu0 %v8582, 32
        %v8669 = vpop.permute.xlu0 %8668
        %8670 = vrot.lane.b32.xlu0 %v8583, 32
        %v8671 = vpop.permute.xlu0 %8670
        %8672 = vrot.lane.b32.xlu0 %v8584, 32
        %v8673 = vpop.permute.xlu0 %8672
        %8674 = vrot.lane.b32.xlu0 %v8585, 32
        %v8675 = vpop.permute.xlu0 %8674
        %8676 = vrot.lane.b32.xlu0 %v8586, 32
        %v8677 = vpop.permute.xlu0 %8676
        %8678 = vrot.lane.b32.xlu0 %v8587, 32
        %v8679 = vpop.permute.xlu0 %8678
        %8680 = vrot.lane.b32.xlu0 %v8588, 32
        %v8681 = vpop.permute.xlu0 %8680
        %8682 = vrot.lane.b32.xlu0 %v8589, 32
        %v8683 = vpop.permute.xlu0 %8682
        %8684 = vrot.lane.b32.xlu0 %v8590, 32
        %v8685 = vpop.permute.xlu0 %8684
        %8686 = vrot.lane.b32.xlu0 %v8591, 32
        %v8687 = vpop.permute.xlu0 %8686
        %8720 = vst.msk [vmem:[#allocation7 + $0x8] sm:$0xff] %vm8077, %v8625
        %8721 = vst.msk [vmem:[#allocation7 + $0x20] sm:$0xff] %vm8077, %v8627
        %8722 = vst.msk [vmem:[#allocation7 + $0x38] sm:$0xff] %vm8077, %v8629
        %8723 = vst.msk [vmem:[#allocation7 + $0x50] sm:$0xff] %vm8077, %v8631
        %8724 = vst.msk [vmem:[#allocation7 + $0x68] sm:$0xff] %vm8077, %v8633
        %8725 = vst.msk [vmem:[#allocation7 + $0x80] sm:$0xff] %vm8077, %v8635
        %8726 = vst.msk [vmem:[#allocation7 + $0x98] sm:$0xff] %vm8077, %v8637
        %8727 = vst.msk [vmem:[#allocation7 + $0xb0] sm:$0xff] %vm8077, %v8639
        %8728 = vst.msk [vmem:[#allocation7 + $0xc8] sm:$0xff] %vm8077, %v8641
        %8729 = vst.msk [vmem:[#allocation7 + $0xe0] sm:$0xff] %vm8077, %v8643
        %8730 = vst.msk [vmem:[#allocation7 + $0xf8] sm:$0xff] %vm8077, %v8645
        %8731 = vst.msk [vmem:[#allocation7 + $0x110] sm:$0xff] %vm8077, %v8647
        %8732 = vst.msk [vmem:[#allocation7 + $0x128] sm:$0xff] %vm8077, %v8649
        %8733 = vst.msk [vmem:[#allocation7 + $0x140] sm:$0xff] %vm8077, %v8651
        %8734 = vst.msk [vmem:[#allocation7 + $0x158] sm:$0xff] %vm8077, %v8653
        %8735 = vst.msk [vmem:[#allocation7 + $0x170] sm:$0xff] %vm8077, %v8655
        %8736 = vst.msk [vmem:[#allocation7 + $0x188] sm:$0xff] %vm8077, %v8657
        %8737 = vst.msk [vmem:[#allocation7 + $0x1a0] sm:$0xff] %vm8077, %v8659
        %8738 = vst.msk [vmem:[#allocation7 + $0x1b8] sm:$0xff] %vm8077, %v8661
        %8739 = vst.msk [vmem:[#allocation7 + $0x1d0] sm:$0xff] %vm8077, %v8663
        %8740 = vst.msk [vmem:[#allocation7 + $0x1e8] sm:$0xff] %vm8077, %v8665
        %8741 = vst.msk [vmem:[#allocation7 + $0x200] sm:$0xff] %vm8077, %v8667
        %8742 = vst.msk [vmem:[#allocation7 + $0x218] sm:$0xff] %vm8077, %v8669
        %8743 = vst.msk [vmem:[#allocation7 + $0x230] sm:$0xff] %vm8077, %v8671
        %8744 = vst.msk [vmem:[#allocation7 + $0x248] sm:$0xff] %vm8077, %v8673
        %8745 = vst.msk [vmem:[#allocation7 + $0x260] sm:$0xff] %vm8077, %v8675
        %8746 = vst.msk [vmem:[#allocation7 + $0x278] sm:$0xff] %vm8077, %v8677
        %8747 = vst.msk [vmem:[#allocation7 + $0x290] sm:$0xff] %vm8077, %v8679
        %8748 = vst.msk [vmem:[#allocation7 + $0x2a8] sm:$0xff] %vm8077, %v8681
        %8749 = vst.msk [vmem:[#allocation7 + $0x2c0] sm:$0xff] %vm8077, %v8683
        %8750 = vst.msk [vmem:[#allocation7 + $0x2d8] sm:$0xff] %vm8077, %v8685
        %8751 = vst.msk [vmem:[#allocation7 + $0x2f0] sm:$0xff] %vm8077, %v8687
        %s8752 = scalar_lea.vmem [#allocation4], 48
        %v8753 = vld [vmem:[%s8752] sm:$0xff]
        %v8754 = vld [vmem:[%s8752 + $0x8] sm:$0xff]
        %v8755 = vld [vmem:[%s8752 + $0x18] sm:$0xff]
        %v8756 = vld [vmem:[%s8752 + $0x20] sm:$0xff]
        %v8757 = vld [vmem:[%s8752 + $0x30] sm:$0xff]
        %v8758 = vld [vmem:[%s8752 + $0x38] sm:$0xff]
        %v8759 = vld [vmem:[%s8752 + $0x48] sm:$0xff]
        %v8760 = vld [vmem:[%s8752 + $0x50] sm:$0xff]
        %v8761 = vld [vmem:[%s8752 + $0x60] sm:$0xff]
        %v8762 = vld [vmem:[%s8752 + $0x68] sm:$0xff]
        %v8763 = vld [vmem:[%s8752 + $0x78] sm:$0xff]
        %v8764 = vld [vmem:[%s8752 + $0x80] sm:$0xff]
        %v8765 = vld [vmem:[%s8752 + $0x90] sm:$0xff]
        %v8766 = vld [vmem:[%s8752 + $0x98] sm:$0xff]
        %v8767 = vld [vmem:[%s8752 + $0xa8] sm:$0xff]
        %v8768 = vld [vmem:[%s8752 + $0xb0] sm:$0xff]
        %v8769 = vld [vmem:[%s8752 + $0xc0] sm:$0xff]
        %v8770 = vld [vmem:[%s8752 + $0xc8] sm:$0xff]
        %v8771 = vld [vmem:[%s8752 + $0xd8] sm:$0xff]
        %v8772 = vld [vmem:[%s8752 + $0xe0] sm:$0xff]
        %v8773 = vld [vmem:[%s8752 + $0xf0] sm:$0xff]
        %v8774 = vld [vmem:[%s8752 + $0xf8] sm:$0xff]
        %v8775 = vld [vmem:[%s8752 + $0x108] sm:$0xff]
        %v8776 = vld [vmem:[%s8752 + $0x110] sm:$0xff]
        %v8777 = vld [vmem:[%s8752 + $0x120] sm:$0xff]
        %v8778 = vld [vmem:[%s8752 + $0x128] sm:$0xff]
        %v8779 = vld [vmem:[%s8752 + $0x138] sm:$0xff]
        %v8780 = vld [vmem:[%s8752 + $0x140] sm:$0xff]
        %v8781 = vld [vmem:[%s8752 + $0x150] sm:$0xff]
        %v8782 = vld [vmem:[%s8752 + $0x158] sm:$0xff]
        %v8783 = vld [vmem:[%s8752 + $0x168] sm:$0xff]
        %v8784 = vld [vmem:[%s8752 + $0x170] sm:$0xff]
        %8817 = vrot.lane.b32.xlu0 %v8753, 64
        %v8818 = vpop.permute.xlu0 %8817
        %8819 = vrot.lane.b32.xlu0 %v8754, 64
        %v8820 = vpop.permute.xlu0 %8819
        %8821 = vrot.lane.b32.xlu0 %v8755, 64
        %v8822 = vpop.permute.xlu0 %8821
        %8823 = vrot.lane.b32.xlu0 %v8756, 64
        %v8824 = vpop.permute.xlu0 %8823
        %8825 = vrot.lane.b32.xlu0 %v8757, 64
        %v8826 = vpop.permute.xlu0 %8825
        %8827 = vrot.lane.b32.xlu0 %v8758, 64
        %v8828 = vpop.permute.xlu0 %8827
        %8829 = vrot.lane.b32.xlu0 %v8759, 64
        %v8830 = vpop.permute.xlu0 %8829
        %8831 = vrot.lane.b32.xlu0 %v8760, 64
        %v8832 = vpop.permute.xlu0 %8831
        %8833 = vrot.lane.b32.xlu0 %v8761, 64
        %v8834 = vpop.permute.xlu0 %8833
        %8835 = vrot.lane.b32.xlu0 %v8762, 64
        %v8836 = vpop.permute.xlu0 %8835
        %8837 = vrot.lane.b32.xlu0 %v8763, 64
        %v8838 = vpop.permute.xlu0 %8837
        %8839 = vrot.lane.b32.xlu0 %v8764, 64
        %v8840 = vpop.permute.xlu0 %8839
        %8841 = vrot.lane.b32.xlu0 %v8765, 64
        %v8842 = vpop.permute.xlu0 %8841
        %8843 = vrot.lane.b32.xlu0 %v8766, 64
        %v8844 = vpop.permute.xlu0 %8843
        %8845 = vrot.lane.b32.xlu0 %v8767, 64
        %v8846 = vpop.permute.xlu0 %8845
        %8847 = vrot.lane.b32.xlu0 %v8768, 64
        %v8848 = vpop.permute.xlu0 %8847
        %8849 = vrot.lane.b32.xlu0 %v8769, 64
        %v8850 = vpop.permute.xlu0 %8849
        %8851 = vrot.lane.b32.xlu0 %v8770, 64
        %v8852 = vpop.permute.xlu0 %8851
        %8853 = vrot.lane.b32.xlu0 %v8771, 64
        %v8854 = vpop.permute.xlu0 %8853
        %8855 = vrot.lane.b32.xlu0 %v8772, 64
        %v8856 = vpop.permute.xlu0 %8855
        %8857 = vrot.lane.b32.xlu0 %v8773, 64
        %v8858 = vpop.permute.xlu0 %8857
        %8859 = vrot.lane.b32.xlu0 %v8774, 64
        %v8860 = vpop.permute.xlu0 %8859
        %8861 = vrot.lane.b32.xlu0 %v8775, 64
        %v8862 = vpop.permute.xlu0 %8861
        %8863 = vrot.lane.b32.xlu0 %v8776, 64
        %v8864 = vpop.permute.xlu0 %8863
        %8865 = vrot.lane.b32.xlu0 %v8777, 64
        %v8866 = vpop.permute.xlu0 %8865
        %8867 = vrot.lane.b32.xlu0 %v8778, 64
        %v8868 = vpop.permute.xlu0 %8867
        %8869 = vrot.lane.b32.xlu0 %v8779, 64
        %v8870 = vpop.permute.xlu0 %8869
        %8871 = vrot.lane.b32.xlu0 %v8780, 64
        %v8872 = vpop.permute.xlu0 %8871
        %8873 = vrot.lane.b32.xlu0 %v8781, 64
        %v8874 = vpop.permute.xlu0 %8873
        %8875 = vrot.lane.b32.xlu0 %v8782, 64
        %v8876 = vpop.permute.xlu0 %8875
        %8877 = vrot.lane.b32.xlu0 %v8783, 64
        %v8878 = vpop.permute.xlu0 %8877
        %8879 = vrot.lane.b32.xlu0 %v8784, 64
        %v8880 = vpop.permute.xlu0 %8879
        %8913 = vst.msk [vmem:[#allocation7 + $0x8] sm:$0xff] %vm8270, %v8818
        %8914 = vst.msk [vmem:[#allocation7 + $0x20] sm:$0xff] %vm8270, %v8820
        %8915 = vst.msk [vmem:[#allocation7 + $0x38] sm:$0xff] %vm8270, %v8822
        %8916 = vst.msk [vmem:[#allocation7 + $0x50] sm:$0xff] %vm8270, %v8824
        %8917 = vst.msk [vmem:[#allocation7 + $0x68] sm:$0xff] %vm8270, %v8826
        %8918 = vst.msk [vmem:[#allocation7 + $0x80] sm:$0xff] %vm8270, %v8828
        %8919 = vst.msk [vmem:[#allocation7 + $0x98] sm:$0xff] %vm8270, %v8830
        %8920 = vst.msk [vmem:[#allocation7 + $0xb0] sm:$0xff] %vm8270, %v8832
        %8921 = vst.msk [vmem:[#allocation7 + $0xc8] sm:$0xff] %vm8270, %v8834
        %8922 = vst.msk [vmem:[#allocation7 + $0xe0] sm:$0xff] %vm8270, %v8836
        %8923 = vst.msk [vmem:[#allocation7 + $0xf8] sm:$0xff] %vm8270, %v8838
        %8924 = vst.msk [vmem:[#allocation7 + $0x110] sm:$0xff] %vm8270, %v8840
        %8925 = vst.msk [vmem:[#allocation7 + $0x128] sm:$0xff] %vm8270, %v8842
        %8926 = vst.msk [vmem:[#allocation7 + $0x140] sm:$0xff] %vm8270, %v8844
        %8927 = vst.msk [vmem:[#allocation7 + $0x158] sm:$0xff] %vm8270, %v8846
        %8928 = vst.msk [vmem:[#allocation7 + $0x170] sm:$0xff] %vm8270, %v8848
        %8929 = vst.msk [vmem:[#allocation7 + $0x188] sm:$0xff] %vm8270, %v8850
        %8930 = vst.msk [vmem:[#allocation7 + $0x1a0] sm:$0xff] %vm8270, %v8852
        %8931 = vst.msk [vmem:[#allocation7 + $0x1b8] sm:$0xff] %vm8270, %v8854
        %8932 = vst.msk [vmem:[#allocation7 + $0x1d0] sm:$0xff] %vm8270, %v8856
        %8933 = vst.msk [vmem:[#allocation7 + $0x1e8] sm:$0xff] %vm8270, %v8858
        %8934 = vst.msk [vmem:[#allocation7 + $0x200] sm:$0xff] %vm8270, %v8860
        %8935 = vst.msk [vmem:[#allocation7 + $0x218] sm:$0xff] %vm8270, %v8862
        %8936 = vst.msk [vmem:[#allocation7 + $0x230] sm:$0xff] %vm8270, %v8864
        %8937 = vst.msk [vmem:[#allocation7 + $0x248] sm:$0xff] %vm8270, %v8866
        %8938 = vst.msk [vmem:[#allocation7 + $0x260] sm:$0xff] %vm8270, %v8868
        %8939 = vst.msk [vmem:[#allocation7 + $0x278] sm:$0xff] %vm8270, %v8870
        %8940 = vst.msk [vmem:[#allocation7 + $0x290] sm:$0xff] %vm8270, %v8872
        %8941 = vst.msk [vmem:[#allocation7 + $0x2a8] sm:$0xff] %vm8270, %v8874
        %8942 = vst.msk [vmem:[#allocation7 + $0x2c0] sm:$0xff] %vm8270, %v8876
        %8943 = vst.msk [vmem:[#allocation7 + $0x2d8] sm:$0xff] %vm8270, %v8878
        %8944 = vst.msk [vmem:[#allocation7 + $0x2f0] sm:$0xff] %vm8270, %v8880
        %v8945 = vld [vmem:[%s8752 + $0x1] sm:$0xff]
        %v8946 = vld [vmem:[%s8752 + $0x9] sm:$0xff]
        %v8947 = vld [vmem:[%s8752 + $0x19] sm:$0xff]
        %v8948 = vld [vmem:[%s8752 + $0x21] sm:$0xff]
        %v8949 = vld [vmem:[%s8752 + $0x31] sm:$0xff]
        %v8950 = vld [vmem:[%s8752 + $0x39] sm:$0xff]
        %v8951 = vld [vmem:[%s8752 + $0x49] sm:$0xff]
        %v8952 = vld [vmem:[%s8752 + $0x51] sm:$0xff]
        %v8953 = vld [vmem:[%s8752 + $0x61] sm:$0xff]
        %v8954 = vld [vmem:[%s8752 + $0x69] sm:$0xff]
        %v8955 = vld [vmem:[%s8752 + $0x79] sm:$0xff]
        %v8956 = vld [vmem:[%s8752 + $0x81] sm:$0xff]
        %v8957 = vld [vmem:[%s8752 + $0x91] sm:$0xff]
        %v8958 = vld [vmem:[%s8752 + $0x99] sm:$0xff]
        %v8959 = vld [vmem:[%s8752 + $0xa9] sm:$0xff]
        %v8960 = vld [vmem:[%s8752 + $0xb1] sm:$0xff]
        %v8961 = vld [vmem:[%s8752 + $0xc1] sm:$0xff]
        %v8962 = vld [vmem:[%s8752 + $0xc9] sm:$0xff]
        %v8963 = vld [vmem:[%s8752 + $0xd9] sm:$0xff]
        %v8964 = vld [vmem:[%s8752 + $0xe1] sm:$0xff]
        %v8965 = vld [vmem:[%s8752 + $0xf1] sm:$0xff]
        %v8966 = vld [vmem:[%s8752 + $0xf9] sm:$0xff]
        %v8967 = vld [vmem:[%s8752 + $0x109] sm:$0xff]
        %v8968 = vld [vmem:[%s8752 + $0x111] sm:$0xff]
        %v8969 = vld [vmem:[%s8752 + $0x121] sm:$0xff]
        %v8970 = vld [vmem:[%s8752 + $0x129] sm:$0xff]
        %v8971 = vld [vmem:[%s8752 + $0x139] sm:$0xff]
        %v8972 = vld [vmem:[%s8752 + $0x141] sm:$0xff]
        %v8973 = vld [vmem:[%s8752 + $0x151] sm:$0xff]
        %v8974 = vld [vmem:[%s8752 + $0x159] sm:$0xff]
        %v8975 = vld [vmem:[%s8752 + $0x169] sm:$0xff]
        %v8976 = vld [vmem:[%s8752 + $0x171] sm:$0xff]
        %9009 = vrot.lane.b32.xlu0 %v8945, 96
        %v9010 = vpop.permute.xlu0 %9009
        %9011 = vrot.lane.b32.xlu0 %v8946, 96
        %v9012 = vpop.permute.xlu0 %9011
        %9013 = vrot.lane.b32.xlu0 %v8947, 96
        %v9014 = vpop.permute.xlu0 %9013
        %9015 = vrot.lane.b32.xlu0 %v8948, 96
        %v9016 = vpop.permute.xlu0 %9015
        %9017 = vrot.lane.b32.xlu0 %v8949, 96
        %v9018 = vpop.permute.xlu0 %9017
        %9019 = vrot.lane.b32.xlu0 %v8950, 96
        %v9020 = vpop.permute.xlu0 %9019
        %9021 = vrot.lane.b32.xlu0 %v8951, 96
        %v9022 = vpop.permute.xlu0 %9021
        %9023 = vrot.lane.b32.xlu0 %v8952, 96
        %v9024 = vpop.permute.xlu0 %9023
        %9025 = vrot.lane.b32.xlu0 %v8953, 96
        %v9026 = vpop.permute.xlu0 %9025
        %9027 = vrot.lane.b32.xlu0 %v8954, 96
        %v9028 = vpop.permute.xlu0 %9027
        %9029 = vrot.lane.b32.xlu0 %v8955, 96
        %v9030 = vpop.permute.xlu0 %9029
        %9031 = vrot.lane.b32.xlu0 %v8956, 96
        %v9032 = vpop.permute.xlu0 %9031
        %9033 = vrot.lane.b32.xlu0 %v8957, 96
        %v9034 = vpop.permute.xlu0 %9033
        %9035 = vrot.lane.b32.xlu0 %v8958, 96
        %v9036 = vpop.permute.xlu0 %9035
        %9037 = vrot.lane.b32.xlu0 %v8959, 96
        %v9038 = vpop.permute.xlu0 %9037
        %9039 = vrot.lane.b32.xlu0 %v8960, 96
        %v9040 = vpop.permute.xlu0 %9039
        %9041 = vrot.lane.b32.xlu0 %v8961, 96
        %v9042 = vpop.permute.xlu0 %9041
        %9043 = vrot.lane.b32.xlu0 %v8962, 96
        %v9044 = vpop.permute.xlu0 %9043
        %9045 = vrot.lane.b32.xlu0 %v8963, 96
        %v9046 = vpop.permute.xlu0 %9045
        %9047 = vrot.lane.b32.xlu0 %v8964, 96
        %v9048 = vpop.permute.xlu0 %9047
        %9049 = vrot.lane.b32.xlu0 %v8965, 96
        %v9050 = vpop.permute.xlu0 %9049
        %9051 = vrot.lane.b32.xlu0 %v8966, 96
        %v9052 = vpop.permute.xlu0 %9051
        %9053 = vrot.lane.b32.xlu0 %v8967, 96
        %v9054 = vpop.permute.xlu0 %9053
        %9055 = vrot.lane.b32.xlu0 %v8968, 96
        %v9056 = vpop.permute.xlu0 %9055
        %9057 = vrot.lane.b32.xlu0 %v8969, 96
        %v9058 = vpop.permute.xlu0 %9057
        %9059 = vrot.lane.b32.xlu0 %v8970, 96
        %v9060 = vpop.permute.xlu0 %9059
        %9061 = vrot.lane.b32.xlu0 %v8971, 96
        %v9062 = vpop.permute.xlu0 %9061
        %9063 = vrot.lane.b32.xlu0 %v8972, 96
        %v9064 = vpop.permute.xlu0 %9063
        %9065 = vrot.lane.b32.xlu0 %v8973, 96
        %v9066 = vpop.permute.xlu0 %9065
        %9067 = vrot.lane.b32.xlu0 %v8974, 96
        %v9068 = vpop.permute.xlu0 %9067
        %9069 = vrot.lane.b32.xlu0 %v8975, 96
        %v9070 = vpop.permute.xlu0 %9069
        %9071 = vrot.lane.b32.xlu0 %v8976, 96
        %v9072 = vpop.permute.xlu0 %9071
        %9105 = vst.msk [vmem:[#allocation7 + $0x8] sm:$0xff] %vm8463, %v9010
        %9106 = vst.msk [vmem:[#allocation7 + $0x20] sm:$0xff] %vm8463, %v9012
        %9107 = vst.msk [vmem:[#allocation7 + $0x38] sm:$0xff] %vm8463, %v9014
        %9108 = vst.msk [vmem:[#allocation7 + $0x50] sm:$0xff] %vm8463, %v9016
        %9109 = vst.msk [vmem:[#allocation7 + $0x68] sm:$0xff] %vm8463, %v9018
        %9110 = vst.msk [vmem:[#allocation7 + $0x80] sm:$0xff] %vm8463, %v9020
        %9111 = vst.msk [vmem:[#allocation7 + $0x98] sm:$0xff] %vm8463, %v9022
        %9112 = vst.msk [vmem:[#allocation7 + $0xb0] sm:$0xff] %vm8463, %v9024
        %9113 = vst.msk [vmem:[#allocation7 + $0xc8] sm:$0xff] %vm8463, %v9026
        %9114 = vst.msk [vmem:[#allocation7 + $0xe0] sm:$0xff] %vm8463, %v9028
        %9115 = vst.msk [vmem:[#allocation7 + $0xf8] sm:$0xff] %vm8463, %v9030
        %9116 = vst.msk [vmem:[#allocation7 + $0x110] sm:$0xff] %vm8463, %v9032
        %9117 = vst.msk [vmem:[#allocation7 + $0x128] sm:$0xff] %vm8463, %v9034
        %9118 = vst.msk [vmem:[#allocation7 + $0x140] sm:$0xff] %vm8463, %v9036
        %9119 = vst.msk [vmem:[#allocation7 + $0x158] sm:$0xff] %vm8463, %v9038
        %9120 = vst.msk [vmem:[#allocation7 + $0x170] sm:$0xff] %vm8463, %v9040
        %9121 = vst.msk [vmem:[#allocation7 + $0x188] sm:$0xff] %vm8463, %v9042
        %9122 = vst.msk [vmem:[#allocation7 + $0x1a0] sm:$0xff] %vm8463, %v9044
        %9123 = vst.msk [vmem:[#allocation7 + $0x1b8] sm:$0xff] %vm8463, %v9046
        %9124 = vst.msk [vmem:[#allocation7 + $0x1d0] sm:$0xff] %vm8463, %v9048
        %9125 = vst.msk [vmem:[#allocation7 + $0x1e8] sm:$0xff] %vm8463, %v9050
        %9126 = vst.msk [vmem:[#allocation7 + $0x200] sm:$0xff] %vm8463, %v9052
        %9127 = vst.msk [vmem:[#allocation7 + $0x218] sm:$0xff] %vm8463, %v9054
        %9128 = vst.msk [vmem:[#allocation7 + $0x230] sm:$0xff] %vm8463, %v9056
        %9129 = vst.msk [vmem:[#allocation7 + $0x248] sm:$0xff] %vm8463, %v9058
        %9130 = vst.msk [vmem:[#allocation7 + $0x260] sm:$0xff] %vm8463, %v9060
        %9131 = vst.msk [vmem:[#allocation7 + $0x278] sm:$0xff] %vm8463, %v9062
        %9132 = vst.msk [vmem:[#allocation7 + $0x290] sm:$0xff] %vm8463, %v9064
        %9133 = vst.msk [vmem:[#allocation7 + $0x2a8] sm:$0xff] %vm8463, %v9066
        %9134 = vst.msk [vmem:[#allocation7 + $0x2c0] sm:$0xff] %vm8463, %v9068
        %9135 = vst.msk [vmem:[#allocation7 + $0x2d8] sm:$0xff] %vm8463, %v9070
        %9136 = vst.msk [vmem:[#allocation7 + $0x2f0] sm:$0xff] %vm8463, %v9072
        %v9137 = vld [vmem:[%s8752 + $0x2] sm:$0xff]
        %v9138 = vld [vmem:[%s8752 + $0xa] sm:$0xff]
        %v9139 = vld [vmem:[%s8752 + $0x1a] sm:$0xff]
        %v9140 = vld [vmem:[%s8752 + $0x22] sm:$0xff]
        %v9141 = vld [vmem:[%s8752 + $0x32] sm:$0xff]
        %v9142 = vld [vmem:[%s8752 + $0x3a] sm:$0xff]
        %v9143 = vld [vmem:[%s8752 + $0x4a] sm:$0xff]
        %v9144 = vld [vmem:[%s8752 + $0x52] sm:$0xff]
        %v9145 = vld [vmem:[%s8752 + $0x62] sm:$0xff]
        %v9146 = vld [vmem:[%s8752 + $0x6a] sm:$0xff]
        %v9147 = vld [vmem:[%s8752 + $0x7a] sm:$0xff]
        %v9148 = vld [vmem:[%s8752 + $0x82] sm:$0xff]
        %v9149 = vld [vmem:[%s8752 + $0x92] sm:$0xff]
        %v9150 = vld [vmem:[%s8752 + $0x9a] sm:$0xff]
        %v9151 = vld [vmem:[%s8752 + $0xaa] sm:$0xff]
        %v9152 = vld [vmem:[%s8752 + $0xb2] sm:$0xff]
        %v9153 = vld [vmem:[%s8752 + $0xc2] sm:$0xff]
        %v9154 = vld [vmem:[%s8752 + $0xca] sm:$0xff]
        %v9155 = vld [vmem:[%s8752 + $0xda] sm:$0xff]
        %v9156 = vld [vmem:[%s8752 + $0xe2] sm:$0xff]
        %v9157 = vld [vmem:[%s8752 + $0xf2] sm:$0xff]
        %v9158 = vld [vmem:[%s8752 + $0xfa] sm:$0xff]
        %v9159 = vld [vmem:[%s8752 + $0x10a] sm:$0xff]
        %v9160 = vld [vmem:[%s8752 + $0x112] sm:$0xff]
        %v9161 = vld [vmem:[%s8752 + $0x122] sm:$0xff]
        %v9162 = vld [vmem:[%s8752 + $0x12a] sm:$0xff]
        %v9163 = vld [vmem:[%s8752 + $0x13a] sm:$0xff]
        %v9164 = vld [vmem:[%s8752 + $0x142] sm:$0xff]
        %v9165 = vld [vmem:[%s8752 + $0x152] sm:$0xff]
        %v9166 = vld [vmem:[%s8752 + $0x15a] sm:$0xff]
        %v9167 = vld [vmem:[%s8752 + $0x16a] sm:$0xff]
        %v9168 = vld [vmem:[%s8752 + $0x172] sm:$0xff]
        %9169 = vst.msk [vmem:[#allocation7 + $0x10] sm:$0xff] %vm5576, %v9137
        %9170 = vst.msk [vmem:[#allocation7 + $0x28] sm:$0xff] %vm5576, %v9138
        %9171 = vst.msk [vmem:[#allocation7 + $0x40] sm:$0xff] %vm5576, %v9139
        %9172 = vst.msk [vmem:[#allocation7 + $0x58] sm:$0xff] %vm5576, %v9140
        %9173 = vst.msk [vmem:[#allocation7 + $0x70] sm:$0xff] %vm5576, %v9141
        %9174 = vst.msk [vmem:[#allocation7 + $0x88] sm:$0xff] %vm5576, %v9142
        %9175 = vst.msk [vmem:[#allocation7 + $0xa0] sm:$0xff] %vm5576, %v9143
        %9176 = vst.msk [vmem:[#allocation7 + $0xb8] sm:$0xff] %vm5576, %v9144
        %9177 = vst.msk [vmem:[#allocation7 + $0xd0] sm:$0xff] %vm5576, %v9145
        %9178 = vst.msk [vmem:[#allocation7 + $0xe8] sm:$0xff] %vm5576, %v9146
        %9179 = vst.msk [vmem:[#allocation7 + $0x100] sm:$0xff] %vm5576, %v9147
        %9180 = vst.msk [vmem:[#allocation7 + $0x118] sm:$0xff] %vm5576, %v9148
        %9181 = vst.msk [vmem:[#allocation7 + $0x130] sm:$0xff] %vm5576, %v9149
        %9182 = vst.msk [vmem:[#allocation7 + $0x148] sm:$0xff] %vm5576, %v9150
        %9183 = vst.msk [vmem:[#allocation7 + $0x160] sm:$0xff] %vm5576, %v9151
        %9184 = vst.msk [vmem:[#allocation7 + $0x178] sm:$0xff] %vm5576, %v9152
        %9185 = vst.msk [vmem:[#allocation7 + $0x190] sm:$0xff] %vm5576, %v9153
        %9186 = vst.msk [vmem:[#allocation7 + $0x1a8] sm:$0xff] %vm5576, %v9154
        %9187 = vst.msk [vmem:[#allocation7 + $0x1c0] sm:$0xff] %vm5576, %v9155
        %9188 = vst.msk [vmem:[#allocation7 + $0x1d8] sm:$0xff] %vm5576, %v9156
        %9189 = vst.msk [vmem:[#allocation7 + $0x1f0] sm:$0xff] %vm5576, %v9157
        %9190 = vst.msk [vmem:[#allocation7 + $0x208] sm:$0xff] %vm5576, %v9158
        %9191 = vst.msk [vmem:[#allocation7 + $0x220] sm:$0xff] %vm5576, %v9159
        %9192 = vst.msk [vmem:[#allocation7 + $0x238] sm:$0xff] %vm5576, %v9160
        %9193 = vst.msk [vmem:[#allocation7 + $0x250] sm:$0xff] %vm5576, %v9161
        %9194 = vst.msk [vmem:[#allocation7 + $0x268] sm:$0xff] %vm5576, %v9162
        %9195 = vst.msk [vmem:[#allocation7 + $0x280] sm:$0xff] %vm5576, %v9163
        %9196 = vst.msk [vmem:[#allocation7 + $0x298] sm:$0xff] %vm5576, %v9164
        %9197 = vst.msk [vmem:[#allocation7 + $0x2b0] sm:$0xff] %vm5576, %v9165
        %9198 = vst.msk [vmem:[#allocation7 + $0x2c8] sm:$0xff] %vm5576, %v9166
        %9199 = vst.msk [vmem:[#allocation7 + $0x2e0] sm:$0xff] %vm5576, %v9167
        %9200 = vst.msk [vmem:[#allocation7 + $0x2f8] sm:$0xff] %vm5576, %v9168
        %v9201 = vld [vmem:[#allocation7] sm:$0xff]
        %v9202 = vld [vmem:[#allocation7 + $0x8] sm:$0xff]
        %v9203 = vld [vmem:[#allocation7 + $0x10] sm:$0xff]
        %v9204 = vld [vmem:[#allocation7 + $0x18] sm:$0xff]
        %v9205 = vld [vmem:[#allocation7 + $0x20] sm:$0xff]
        %v9206 = vld [vmem:[#allocation7 + $0x28] sm:$0xff]
        %v9207 = vld [vmem:[#allocation7 + $0x30] sm:$0xff]
        %v9208 = vld [vmem:[#allocation7 + $0x38] sm:$0xff]
        %v9209 = vld [vmem:[#allocation7 + $0x40] sm:$0xff]
        %v9210 = vld [vmem:[#allocation7 + $0x48] sm:$0xff]
        %v9211 = vld [vmem:[#allocation7 + $0x50] sm:$0xff]
        %v9212 = vld [vmem:[#allocation7 + $0x58] sm:$0xff]
        %v9213 = vld [vmem:[#allocation7 + $0x60] sm:$0xff]
        %v9214 = vld [vmem:[#allocation7 + $0x68] sm:$0xff]
        %v9215 = vld [vmem:[#allocation7 + $0x70] sm:$0xff]
        %v9216 = vld [vmem:[#allocation7 + $0x78] sm:$0xff]
        %v9217 = vld [vmem:[#allocation7 + $0x80] sm:$0xff]
        %v9218 = vld [vmem:[#allocation7 + $0x88] sm:$0xff]
        %v9219 = vld [vmem:[#allocation7 + $0x90] sm:$0xff]
        %v9220 = vld [vmem:[#allocation7 + $0x98] sm:$0xff]
        %v9221 = vld [vmem:[#allocation7 + $0xa0] sm:$0xff]
        %v9222 = vld [vmem:[#allocation7 + $0xa8] sm:$0xff]
        %v9223 = vld [vmem:[#allocation7 + $0xb0] sm:$0xff]
        %v9224 = vld [vmem:[#allocation7 + $0xb8] sm:$0xff]
        %v9225 = vld [vmem:[#allocation7 + $0xc0] sm:$0xff]
        %v9226 = vld [vmem:[#allocation7 + $0xc8] sm:$0xff]
        %v9227 = vld [vmem:[#allocation7 + $0xd0] sm:$0xff]
        %v9228 = vld [vmem:[#allocation7 + $0xd8] sm:$0xff]
        %v9229 = vld [vmem:[#allocation7 + $0xe0] sm:$0xff]
        %v9230 = vld [vmem:[#allocation7 + $0xe8] sm:$0xff]
        %v9231 = vld [vmem:[#allocation7 + $0xf0] sm:$0xff]
        %v9232 = vld [vmem:[#allocation7 + $0xf8] sm:$0xff]
        %v9233 = vld [vmem:[#allocation7 + $0x100] sm:$0xff]
        %v9234 = vld [vmem:[#allocation7 + $0x108] sm:$0xff]
        %v9235 = vld [vmem:[#allocation7 + $0x110] sm:$0xff]
        %v9236 = vld [vmem:[#allocation7 + $0x118] sm:$0xff]
        %v9237 = vld [vmem:[#allocation7 + $0x120] sm:$0xff]
        %v9238 = vld [vmem:[#allocation7 + $0x128] sm:$0xff]
        %v9239 = vld [vmem:[#allocation7 + $0x130] sm:$0xff]
        %v9240 = vld [vmem:[#allocation7 + $0x138] sm:$0xff]
        %v9241 = vld [vmem:[#allocation7 + $0x140] sm:$0xff]
        %v9242 = vld [vmem:[#allocation7 + $0x148] sm:$0xff]
        %v9243 = vld [vmem:[#allocation7 + $0x150] sm:$0xff]
        %v9244 = vld [vmem:[#allocation7 + $0x158] sm:$0xff]
        %v9245 = vld [vmem:[#allocation7 + $0x160] sm:$0xff]
        %v9246 = vld [vmem:[#allocation7 + $0x168] sm:$0xff]
        %v9247 = vld [vmem:[#allocation7 + $0x170] sm:$0xff]
        %v9248 = vld [vmem:[#allocation7 + $0x178] sm:$0xff]
        %v9249 = vld [vmem:[#allocation7 + $0x180] sm:$0xff]
        %v9250 = vld [vmem:[#allocation7 + $0x188] sm:$0xff]
        %v9251 = vld [vmem:[#allocation7 + $0x190] sm:$0xff]
        %v9252 = vld [vmem:[#allocation7 + $0x198] sm:$0xff]
        %v9253 = vld [vmem:[#allocation7 + $0x1a0] sm:$0xff]
        %v9254 = vld [vmem:[#allocation7 + $0x1a8] sm:$0xff]
        %v9255 = vld [vmem:[#allocation7 + $0x1b0] sm:$0xff]
        %v9256 = vld [vmem:[#allocation7 + $0x1b8] sm:$0xff]
        %v9257 = vld [vmem:[#allocation7 + $0x1c0] sm:$0xff]
        %v9258 = vld [vmem:[#allocation7 + $0x1c8] sm:$0xff]
        %v9259 = vld [vmem:[#allocation7 + $0x1d0] sm:$0xff]
        %v9260 = vld [vmem:[#allocation7 + $0x1d8] sm:$0xff]
        %v9261 = vld [vmem:[#allocation7 + $0x1e0] sm:$0xff]
        %v9262 = vld [vmem:[#allocation7 + $0x1e8] sm:$0xff]
        %v9263 = vld [vmem:[#allocation7 + $0x1f0] sm:$0xff]
        %v9264 = vld [vmem:[#allocation7 + $0x1f8] sm:$0xff]
        %v9265 = vld [vmem:[#allocation7 + $0x200] sm:$0xff]
        %v9266 = vld [vmem:[#allocation7 + $0x208] sm:$0xff]
        %v9267 = vld [vmem:[#allocation7 + $0x210] sm:$0xff]
        %v9268 = vld [vmem:[#allocation7 + $0x218] sm:$0xff]
        %v9269 = vld [vmem:[#allocation7 + $0x220] sm:$0xff]
        %v9270 = vld [vmem:[#allocation7 + $0x228] sm:$0xff]
        %v9271 = vld [vmem:[#allocation7 + $0x230] sm:$0xff]
        %v9272 = vld [vmem:[#allocation7 + $0x238] sm:$0xff]
        %v9273 = vld [vmem:[#allocation7 + $0x240] sm:$0xff]
        %v9274 = vld [vmem:[#allocation7 + $0x248] sm:$0xff]
        %v9275 = vld [vmem:[#allocation7 + $0x250] sm:$0xff]
        %v9276 = vld [vmem:[#allocation7 + $0x258] sm:$0xff]
        %v9277 = vld [vmem:[#allocation7 + $0x260] sm:$0xff]
        %v9278 = vld [vmem:[#allocation7 + $0x268] sm:$0xff]
        %v9279 = vld [vmem:[#allocation7 + $0x270] sm:$0xff]
        %v9280 = vld [vmem:[#allocation7 + $0x278] sm:$0xff]
        %v9281 = vld [vmem:[#allocation7 + $0x280] sm:$0xff]
        %v9282 = vld [vmem:[#allocation7 + $0x288] sm:$0xff]
        %v9283 = vld [vmem:[#allocation7 + $0x290] sm:$0xff]
        %v9284 = vld [vmem:[#allocation7 + $0x298] sm:$0xff]
        %v9285 = vld [vmem:[#allocation7 + $0x2a0] sm:$0xff]
        %v9286 = vld [vmem:[#allocation7 + $0x2a8] sm:$0xff]
        %v9287 = vld [vmem:[#allocation7 + $0x2b0] sm:$0xff]
        %v9288 = vld [vmem:[#allocation7 + $0x2b8] sm:$0xff]
        %v9289 = vld [vmem:[#allocation7 + $0x2c0] sm:$0xff]
        %v9290 = vld [vmem:[#allocation7 + $0x2c8] sm:$0xff]
        %v9291 = vld [vmem:[#allocation7 + $0x2d0] sm:$0xff]
        %v9292 = vld [vmem:[#allocation7 + $0x2d8] sm:$0xff]
        %v9293 = vld [vmem:[#allocation7 + $0x2e0] sm:$0xff]
        %v9294 = vld [vmem:[#allocation7 + $0x2e8] sm:$0xff]
        %v9295 = vld [vmem:[#allocation7 + $0x2f0] sm:$0xff]
        %v9296 = vld [vmem:[#allocation7 + $0x2f8] sm:$0xff]
        %v9297 = vpack.c.bf16 %v9204, %v9201
        %v9298 = vpack.c.bf16 %v9205, %v9202
        %v9299 = vpack.c.bf16 %v9206, %v9203
        %v9300 = vpack.c.bf16 %v9210, %v9207
        %v9301 = vpack.c.bf16 %v9211, %v9208
        %v9302 = vpack.c.bf16 %v9212, %v9209
        %v9303 = vpack.c.bf16 %v9216, %v9213
        %v9304 = vpack.c.bf16 %v9217, %v9214
        %v9305 = vpack.c.bf16 %v9218, %v9215
        %v9306 = vpack.c.bf16 %v9222, %v9219
        %v9307 = vpack.c.bf16 %v9223, %v9220
        %v9308 = vpack.c.bf16 %v9224, %v9221
        %v9309 = vpack.c.bf16 %v9228, %v9225
        %v9310 = vpack.c.bf16 %v9229, %v9226
        %v9311 = vpack.c.bf16 %v9230, %v9227
        %v9312 = vpack.c.bf16 %v9234, %v9231
        %v9313 = vpack.c.bf16 %v9235, %v9232
        %v9314 = vpack.c.bf16 %v9236, %v9233
        %v9315 = vpack.c.bf16 %v9240, %v9237
        %v9316 = vpack.c.bf16 %v9241, %v9238
        %v9317 = vpack.c.bf16 %v9242, %v9239
        %v9318 = vpack.c.bf16 %v9246, %v9243
        %v9319 = vpack.c.bf16 %v9247, %v9244
        %v9320 = vpack.c.bf16 %v9248, %v9245
        %v9321 = vpack.c.bf16 %v9252, %v9249
        %v9322 = vpack.c.bf16 %v9253, %v9250
        %v9323 = vpack.c.bf16 %v9254, %v9251
        %v9324 = vpack.c.bf16 %v9258, %v9255
        %v9325 = vpack.c.bf16 %v9259, %v9256
        %v9326 = vpack.c.bf16 %v9260, %v9257
        %v9327 = vpack.c.bf16 %v9264, %v9261
        %v9328 = vpack.c.bf16 %v9265, %v9262
        %v9329 = vpack.c.bf16 %v9266, %v9263
        %v9330 = vpack.c.bf16 %v9270, %v9267
        %v9331 = vpack.c.bf16 %v9271, %v9268
        %v9332 = vpack.c.bf16 %v9272, %v9269
        %v9333 = vpack.c.bf16 %v9276, %v9273
        %v9334 = vpack.c.bf16 %v9277, %v9274
        %v9335 = vpack.c.bf16 %v9278, %v9275
        %v9336 = vpack.c.bf16 %v9282, %v9279
        %v9337 = vpack.c.bf16 %v9283, %v9280
        %v9338 = vpack.c.bf16 %v9284, %v9281
        %v9339 = vpack.c.bf16 %v9288, %v9285
        %v9340 = vpack.c.bf16 %v9289, %v9286
        %v9341 = vpack.c.bf16 %v9290, %v9287
        %v9342 = vpack.c.bf16 %v9294, %v9291
        %v9343 = vpack.c.bf16 %v9295, %v9292
        %v9344 = vpack.c.bf16 %v9296, %v9293
        %v9345 = vld [vmem:[%s5] sm:$0xf]
        %v9346 = vld [vmem:[%s5 + $0x4] sm:$0xf]
        %v9347 = vld [vmem:[%s5 + $0x8] sm:$0xf]
        %v9348 = vld [vmem:[%s5 + $0xc] sm:$0xf]
        %v9349 = vld [vmem:[%s5 + $0x10] sm:$0xf]
        %v9350 = vld [vmem:[%s5 + $0x14] sm:$0xf]
        %v9351 = vld [vmem:[%s5 + $0x18] sm:$0xf]
        %v9352 = vld [vmem:[%s5 + $0x1c] sm:$0xf]
        %v9353 = vld [vmem:[%s5 + $0x20] sm:$0xf]
        %v9354 = vld [vmem:[%s5 + $0x24] sm:$0xf]
        %v9355 = vld [vmem:[%s5 + $0x28] sm:$0xf]
        %v9356 = vld [vmem:[%s5 + $0x2c] sm:$0xf]
        %v9357 = vld [vmem:[%s5 + $0x30] sm:$0xf]
        %v9358 = vld [vmem:[%s5 + $0x34] sm:$0xf]
        %v9359 = vld [vmem:[%s5 + $0x38] sm:$0xf]
        %v9360 = vld [vmem:[%s5 + $0x3c] sm:$0xf]
        %v9361 = vld [vmem:[%s5 + $0x40] sm:$0xf]
        %v9362 = vld [vmem:[%s5 + $0x44] sm:$0xf]
        %v9363 = vld [vmem:[%s5 + $0x48] sm:$0xf]
        %v9364 = vld [vmem:[%s5 + $0x4c] sm:$0xf]
        %v9365 = vld [vmem:[%s5 + $0x50] sm:$0xf]
        %v9366 = vld [vmem:[%s5 + $0x54] sm:$0xf]
        %v9367 = vld [vmem:[%s5 + $0x58] sm:$0xf]
        %v9368 = vld [vmem:[%s5 + $0x5c] sm:$0xf]
        %v9369 = vld [vmem:[%s5 + $0x60] sm:$0xf]
        %v9370 = vld [vmem:[%s5 + $0x64] sm:$0xf]
        %v9371 = vld [vmem:[%s5 + $0x68] sm:$0xf]
        %v9372 = vld [vmem:[%s5 + $0x6c] sm:$0xf]
        %v9373 = vld [vmem:[%s5 + $0x70] sm:$0xf]
        %v9374 = vld [vmem:[%s5 + $0x74] sm:$0xf]
        %v9375 = vld [vmem:[%s5 + $0x78] sm:$0xf]
        %v9376 = vld [vmem:[%s5 + $0x7c] sm:$0xf]
        %v9377 = vld [vmem:[%s5 + $0x80] sm:$0xf]
        %v9378 = vld [vmem:[%s5 + $0x84] sm:$0xf]
        %v9379 = vld [vmem:[%s5 + $0x88] sm:$0xf]
        %v9380 = vld [vmem:[%s5 + $0x8c] sm:$0xf]
        %v9381 = vld [vmem:[#allocation12] sm:$0x1]
        %v9383 = vlaneseq
        %v9384 = vshrl.u32 %v9383, 7
        %v9385 = vsub.s32 0, %v9384
        %v9386 = vrot.slane %v9381, %v9385
        %v9424 = vunpack.c.l.b16 %v9345
        %v9425 = vunpack.c.l.b16 %v9346
        %v9426 = vunpack.c.l.b16 %v9347
        %v9427 = vunpack.c.l.b16 %v9348
        %v9428 = vunpack.c.l.b16 %v9349
        %v9429 = vunpack.c.l.b16 %v9350
        %v9430 = vunpack.c.l.b16 %v9351
        %v9431 = vunpack.c.l.b16 %v9352
        %v9432 = vunpack.c.l.b16 %v9353
        %v9433 = vunpack.c.l.b16 %v9354
        %v9434 = vunpack.c.l.b16 %v9355
        %v9435 = vunpack.c.l.b16 %v9356
        %v9436 = vunpack.c.l.b16 %v9357
        %v9437 = vunpack.c.l.b16 %v9358
        %v9438 = vunpack.c.l.b16 %v9359
        %v9439 = vunpack.c.l.b16 %v9360
        %v9440 = vunpack.c.l.b16 %v9361
        %v9441 = vunpack.c.l.b16 %v9362
        %v9442 = vunpack.c.l.b16 %v9363
        %v9443 = vunpack.c.l.b16 %v9364
        %v9444 = vunpack.c.l.b16 %v9365
        %v9445 = vunpack.c.l.b16 %v9366
        %v9446 = vunpack.c.l.b16 %v9367
        %v9447 = vunpack.c.l.b16 %v9368
        %v9448 = vunpack.c.l.b16 %v9369
        %v9449 = vunpack.c.l.b16 %v9370
        %v9450 = vunpack.c.l.b16 %v9371
        %v9451 = vunpack.c.l.b16 %v9372
        %v9452 = vunpack.c.l.b16 %v9373
        %v9453 = vunpack.c.l.b16 %v9374
        %v9454 = vunpack.c.l.b16 %v9375
        %v9455 = vunpack.c.l.b16 %v9376
        %v9456 = vunpack.c.l.b16 %v9377
        %v9457 = vunpack.c.l.b16 %v9378
        %v9458 = vunpack.c.l.b16 %v9379
        %v9459 = vunpack.c.l.b16 %v9380
        %v9460 = vpack.c.b16 %v9425, %v9424
        %v9461 = vpack.c.b16 %v9427, %v9426
        %v9462 = vpack.c.b16 %v9429, %v9428
        %v9463 = vpack.c.b16 %v9431, %v9430
        %v9464 = vpack.c.b16 %v9433, %v9432
        %v9465 = vpack.c.b16 %v9435, %v9434
        %v9466 = vpack.c.b16 %v9437, %v9436
        %v9467 = vpack.c.b16 %v9439, %v9438
        %v9468 = vpack.c.b16 %v9441, %v9440
        %v9469 = vpack.c.b16 %v9443, %v9442
        %v9470 = vpack.c.b16 %v9445, %v9444
        %v9471 = vpack.c.b16 %v9447, %v9446
        %v9472 = vpack.c.b16 %v9449, %v9448
        %v9473 = vpack.c.b16 %v9451, %v9450
        %v9474 = vpack.c.b16 %v9453, %v9452
        %v9475 = vpack.c.b16 %v9455, %v9454
        %v9476 = vpack.c.b16 %v9457, %v9456
        %v9477 = vpack.c.b16 %v9459, %v9458
        %v9497 = vsel %vm5576, %v9299, 0
        %v9500 = vsel %vm5576, %v9302, 0
        %v9503 = vsel %vm5576, %v9305, 0
        %v9506 = vsel %vm5576, %v9308, 0
        %v9509 = vsel %vm5576, %v9311, 0
        %v9512 = vsel %vm5576, %v9314, 0
        %v9515 = vsel %vm5576, %v9317, 0
        %v9518 = vsel %vm5576, %v9320, 0
        %v9521 = vsel %vm5576, %v9323, 0
        %v9524 = vsel %vm5576, %v9326, 0
        %v9527 = vsel %vm5576, %v9329, 0
        %v9530 = vsel %vm5576, %v9332, 0
        %v9533 = vsel %vm5576, %v9335, 0
        %v9536 = vsel %vm5576, %v9338, 0
        %v9539 = vsel %vm5576, %v9341, 0
        %v9542 = vsel %vm5576, %v9344, 0
        %9544 = vmatprep.subr.bf16.mxu0 0
        %9545 = vmatpush1.bf16.msra.mxu0 %v9460
        %9546 = vmatprep.subr.bf16.mxu0 0
        %9547 = vmatpush1.bf16.msra.mxu0 %v9461
        %9548 = vmatprep.subr.bf16.mxu0 0
        %9549 = vmatpush1.bf16.msra.mxu0 %v9462
        %9550 = vmatprep.subr.bf16.mxu0 0
        %9551 = vmatpush1.bf16.msra.mxu0 %v9463
        %9552 = vmatprep.subr.bf16.mxu0 0
        %9553 = vmatpush1.bf16.msra.mxu0 %v9464
        %9554 = vmatprep.subr.bf16.mxu0 0
        %9555 = vmatpush1.bf16.msra.mxu0 %v9465
        %9556 = vmatprep.subr.bf16.mxu0 0
        %9557 = vmatpush1.bf16.msra.mxu0 %v9466
        %9558 = vmatprep.subr.bf16.mxu0 0
        %9559 = vmatpush1.bf16.msra.mxu0 %v9467
        %9560 = vmatprep.subr.bf16.mxu0 0
        %9561 = vmatpush1.bf16.msra.mxu0 %v9468
        %9562 = vmatprep.subr.bf16.mxu0 0
        %9563 = vmatpush1.bf16.msra.mxu0 %v9469
        %9564 = vmatprep.subr.bf16.mxu0 0
        %9565 = vmatpush1.bf16.msra.mxu0 %v9470
        %9566 = vmatprep.subr.bf16.mxu0 0
        %9567 = vmatpush1.bf16.msra.mxu0 %v9471
        %9568 = vmatprep.subr.bf16.mxu0 0
        %9569 = vmatpush1.bf16.msra.mxu0 %v9472
        %9570 = vmatprep.subr.bf16.mxu0 0
        %9571 = vmatpush1.bf16.msra.mxu0 %v9473
        %9572 = vmatprep.subr.bf16.mxu0 0
        %9573 = vmatpush1.bf16.msra.mxu0 %v9474
        %9574 = vmatprep.subr.bf16.mxu0 0
        %9575 = vmatpush1.bf16.msra.mxu0 %v9475
        %9576 = vmatprep.mubr.bf16.mxu0 %v9298
        %9577 = vmatmul.mubr.bf16.gmra.mrb[0].mxu0 %v9297
        %v9578 = vpop.f32.mrb[0].mxu0
        %v9579 = vadd.f32 %v9386, %v9578
        %v9580 = vpop.f32.mrb[0].mxu0
        %v9581 = vpop.f32.mrb[0].mxu0
        %v9582 = vadd.f32 %v9386, %v9581
        %v9583 = vpop.f32.mrb[0].mxu0
        %9584 = vmatprep.mubr.bf16.mxu0 %v9301
        %9585 = vmatmul.mubr.bf16.gmra.mrb[0].mxu0 %v9300
        %v9586 = vpop.f32.mrb[0].mxu0
        %v9587 = vadd.f32 %v9386, %v9586
        %v9588 = vpop.f32.mrb[0].mxu0
        %v9589 = vpop.f32.mrb[0].mxu0
        %v9590 = vadd.f32 %v9386, %v9589
        %v9591 = vpop.f32.mrb[0].mxu0
        %9592 = vmatprep.mubr.bf16.mxu0 %v9304
        %9593 = vmatmul.mubr.bf16.gmra.mrb[0].mxu0 %v9303
        %v9594 = vpop.f32.mrb[0].mxu0
        %v9595 = vadd.f32 %v9386, %v9594
        %v9596 = vpop.f32.mrb[0].mxu0
        %v9597 = vpop.f32.mrb[0].mxu0
        %v9598 = vadd.f32 %v9386, %v9597
        %v9599 = vpop.f32.mrb[0].mxu0
        %9600 = vmatprep.mubr.bf16.mxu0 %v9307
        %9601 = vmatmul.mubr.bf16.gmra.mrb[0].mxu0 %v9306
        %v9602 = vpop.f32.mrb[0].mxu0
        %v9603 = vadd.f32 %v9386, %v9602
        %v9604 = vpop.f32.mrb[0].mxu0
        %v9605 = vpop.f32.mrb[0].mxu0
        %v9606 = vadd.f32 %v9386, %v9605
        %v9607 = vpop.f32.mrb[0].mxu0
        %9608 = vmatprep.mubr.bf16.mxu0 %v9310
        %9609 = vmatmul.mubr.bf16.gmra.mrb[0].mxu0 %v9309
        %v9610 = vpop.f32.mrb[0].mxu0
        %v9611 = vadd.f32 %v9386, %v9610
        %v9612 = vpop.f32.mrb[0].mxu0
        %v9613 = vpop.f32.mrb[0].mxu0
        %v9614 = vadd.f32 %v9386, %v9613
        %v9615 = vpop.f32.mrb[0].mxu0
        %9616 = vmatprep.mubr.bf16.mxu0 %v9313
        %9617 = vmatmul.mubr.bf16.gmra.mrb[0].mxu0 %v9312
        %v9618 = vpop.f32.mrb[0].mxu0
        %v9619 = vadd.f32 %v9386, %v9618
        %v9620 = vpop.f32.mrb[0].mxu0
        %v9621 = vpop.f32.mrb[0].mxu0
        %v9622 = vadd.f32 %v9386, %v9621
        %v9623 = vpop.f32.mrb[0].mxu0
        %9624 = vmatprep.mubr.bf16.mxu0 %v9316
        %9625 = vmatmul.mubr.bf16.gmra.mrb[0].mxu0 %v9315
        %v9626 = vpop.f32.mrb[0].mxu0
        %v9627 = vadd.f32 %v9386, %v9626
        %v9628 = vpop.f32.mrb[0].mxu0
        %v9629 = vpop.f32.mrb[0].mxu0
        %v9630 = vadd.f32 %v9386, %v9629
        %v9631 = vpop.f32.mrb[0].mxu0
        %9632 = vmatprep.mubr.bf16.mxu0 %v9319
        %9633 = vmatmul.mubr.bf16.gmra.mrb[0].mxu0 %v9318
        %v9634 = vpop.f32.mrb[0].mxu0
        %v9635 = vadd.f32 %v9386, %v9634
        %v9636 = vpop.f32.mrb[0].mxu0
        %v9637 = vpop.f32.mrb[0].mxu0
        %v9638 = vadd.f32 %v9386, %v9637
        %v9639 = vpop.f32.mrb[0].mxu0
        %9640 = vmatprep.mubr.bf16.mxu0 %v9322
        %9641 = vmatmul.mubr.bf16.gmra.mrb[0].mxu0 %v9321
        %v9642 = vpop.f32.mrb[0].mxu0
        %v9643 = vadd.f32 %v9386, %v9642
        %v9644 = vpop.f32.mrb[0].mxu0
        %v9645 = vpop.f32.mrb[0].mxu0
        %v9646 = vadd.f32 %v9386, %v9645
        %v9647 = vpop.f32.mrb[0].mxu0
        %9648 = vmatprep.mubr.bf16.mxu0 %v9325
        %9649 = vmatmul.mubr.bf16.gmra.mrb[0].mxu0 %v9324
        %v9650 = vpop.f32.mrb[0].mxu0
        %v9651 = vadd.f32 %v9386, %v9650
        %v9652 = vpop.f32.mrb[0].mxu0
        %v9653 = vpop.f32.mrb[0].mxu0
        %v9654 = vadd.f32 %v9386, %v9653
        %v9655 = vpop.f32.mrb[0].mxu0
        %9656 = vmatprep.mubr.bf16.mxu0 %v9328
        %9657 = vmatmul.mubr.bf16.gmra.mrb[0].mxu0 %v9327
        %v9658 = vpop.f32.mrb[0].mxu0
        %v9659 = vadd.f32 %v9386, %v9658
        %v9660 = vpop.f32.mrb[0].mxu0
        %v9661 = vpop.f32.mrb[0].mxu0
        %v9662 = vadd.f32 %v9386, %v9661
        %v9663 = vpop.f32.mrb[0].mxu0
        %9664 = vmatprep.mubr.bf16.mxu0 %v9331
        %9665 = vmatmul.mubr.bf16.gmra.mrb[0].mxu0 %v9330
        %v9666 = vpop.f32.mrb[0].mxu0
        %v9667 = vadd.f32 %v9386, %v9666
        %v9668 = vpop.f32.mrb[0].mxu0
        %v9669 = vpop.f32.mrb[0].mxu0
        %v9670 = vadd.f32 %v9386, %v9669
        %v9671 = vpop.f32.mrb[0].mxu0
        %9672 = vmatprep.mubr.bf16.mxu0 %v9334
        %9673 = vmatmul.mubr.bf16.gmra.mrb[0].mxu0 %v9333
        %v9674 = vpop.f32.mrb[0].mxu0
        %v9675 = vadd.f32 %v9386, %v9674
        %v9676 = vpop.f32.mrb[0].mxu0
        %v9677 = vpop.f32.mrb[0].mxu0
        %v9678 = vadd.f32 %v9386, %v9677
        %v9679 = vpop.f32.mrb[0].mxu0
        %9680 = vmatprep.mubr.bf16.mxu0 %v9337
        %9681 = vmatmul.mubr.bf16.gmra.mrb[0].mxu0 %v9336
        %v9682 = vpop.f32.mrb[0].mxu0
        %v9683 = vadd.f32 %v9386, %v9682
        %v9684 = vpop.f32.mrb[0].mxu0
        %v9685 = vpop.f32.mrb[0].mxu0
        %v9686 = vadd.f32 %v9386, %v9685
        %v9687 = vpop.f32.mrb[0].mxu0
        %9688 = vmatprep.mubr.bf16.mxu0 %v9340
        %9689 = vmatmul.mubr.bf16.gmra.mrb[0].mxu0 %v9339
        %v9690 = vpop.f32.mrb[0].mxu0
        %v9691 = vadd.f32 %v9386, %v9690
        %v9692 = vpop.f32.mrb[0].mxu0
        %v9693 = vpop.f32.mrb[0].mxu0
        %v9694 = vadd.f32 %v9386, %v9693
        %v9695 = vpop.f32.mrb[0].mxu0
        %9696 = vmatprep.mubr.bf16.mxu0 %v9343
        %9697 = vmatmul.mubr.bf16.gmra.mrb[0].mxu0 %v9342
        %v9698 = vpop.f32.mrb[0].mxu0
        %v9699 = vadd.f32 %v9386, %v9698
        %v9700 = vpop.f32.mrb[0].mxu0
        %v9701 = vpop.f32.mrb[0].mxu0
        %v9702 = vadd.f32 %v9386, %v9701
        %v9703 = vpop.f32.mrb[0].mxu0
        %9704 = vdwg.mxu0
        %9705 = vmatprep.subr.bf16.mxu0 0
        %9706 = vmatpush1.bf16.msra.mxu0 %v9476
        %9707 = vmatprep.subr.bf16.mxu0 0
        %9708 = vmatpush1.bf16.msra.mxu0 %v9477
        %9709 = vmatprep.subr.bf16.mxu0 0
        %9710 = vmatpush1.bf16.msra.mxu0 0
        %9711 = vmatprep.subr.bf16.mxu0 0
        %9712 = vmatpush1.bf16.msra.mxu0 0
        %9713 = vmatprep.subr.bf16.mxu0 0
        %9714 = vmatpush1.bf16.msra.mxu0 0
        %9715 = vmatprep.subr.bf16.mxu0 0
        %9716 = vmatpush1.bf16.msra.mxu0 0
        %9717 = vmatprep.subr.bf16.mxu0 0
        %9718 = vmatpush1.bf16.msra.mxu0 0
        %9719 = vmatprep.subr.bf16.mxu0 0
        %9720 = vmatpush1.bf16.msra.mxu0 0
        %9721 = vmatprep.subr.bf16.mxu0 0
        %9722 = vmatpush1.bf16.msra.mxu0 0
        %9723 = vmatprep.subr.bf16.mxu0 0
        %9724 = vmatpush1.bf16.msra.mxu0 0
        %9725 = vmatprep.subr.bf16.mxu0 0
        %9726 = vmatpush1.bf16.msra.mxu0 0
        %9727 = vmatprep.subr.bf16.mxu0 0
        %9728 = vmatpush1.bf16.msra.mxu0 0
        %9729 = vmatprep.subr.bf16.mxu0 0
        %9730 = vmatpush1.bf16.msra.mxu0 0
        %9731 = vmatprep.subr.bf16.mxu0 0
        %9732 = vmatpush1.bf16.msra.mxu0 0
        %9733 = vmatprep.subr.bf16.mxu0 0
        %9734 = vmatpush1.bf16.msra.mxu0 0
        %9735 = vmatprep.subr.bf16.mxu0 0
        %9736 = vmatpush1.bf16.msra.mxu0 0
        %9737 = vmatprep.mubr.bf16.mxu0 0
        %9738 = vmatmul.mubr.bf16.gmra.mrb[0].mxu0 %v9497
        %v9739 = vpop.f32.mrb[0].mxu0
        %v9740 = vadd.f32 %v9579, %v9739
        %v9741 = vpop.f32.mrb[0].mxu0
        %v9742 = vpop.f32.mrb[0].mxu0
        %v9743 = vadd.f32 %v9582, %v9742
        %v9744 = vpop.f32.mrb[0].mxu0
        %9745 = vmatprep.mubr.bf16.mxu0 0
        %9746 = vmatmul.mubr.bf16.gmra.mrb[0].mxu0 %v9500
        %v9747 = vpop.f32.mrb[0].mxu0
        %v9748 = vadd.f32 %v9587, %v9747
        %v9749 = vpop.f32.mrb[0].mxu0
        %v9750 = vpop.f32.mrb[0].mxu0
        %v9751 = vadd.f32 %v9590, %v9750
        %v9752 = vpop.f32.mrb[0].mxu0
        %9753 = vmatprep.mubr.bf16.mxu0 0
        %9754 = vmatmul.mubr.bf16.gmra.mrb[0].mxu0 %v9503
        %v9755 = vpop.f32.mrb[0].mxu0
        %v9756 = vadd.f32 %v9595, %v9755
        %v9757 = vpop.f32.mrb[0].mxu0
        %v9758 = vpop.f32.mrb[0].mxu0
        %v9759 = vadd.f32 %v9598, %v9758
        %v9760 = vpop.f32.mrb[0].mxu0
        %9761 = vmatprep.mubr.bf16.mxu0 0
        %9762 = vmatmul.mubr.bf16.gmra.mrb[0].mxu0 %v9506
        %v9763 = vpop.f32.mrb[0].mxu0
        %v9764 = vadd.f32 %v9603, %v9763
        %v9765 = vpop.f32.mrb[0].mxu0
        %v9766 = vpop.f32.mrb[0].mxu0
        %v9767 = vadd.f32 %v9606, %v9766
        %v9768 = vpop.f32.mrb[0].mxu0
        %9769 = vmatprep.mubr.bf16.mxu0 0
        %9770 = vmatmul.mubr.bf16.gmra.mrb[0].mxu0 %v9509
        %v9771 = vpop.f32.mrb[0].mxu0
        %v9772 = vadd.f32 %v9611, %v9771
        %v9773 = vpop.f32.mrb[0].mxu0
        %v9774 = vpop.f32.mrb[0].mxu0
        %v9775 = vadd.f32 %v9614, %v9774
        %v9776 = vpop.f32.mrb[0].mxu0
        %9777 = vmatprep.mubr.bf16.mxu0 0
        %9778 = vmatmul.mubr.bf16.gmra.mrb[0].mxu0 %v9512
        %v9779 = vpop.f32.mrb[0].mxu0
        %v9780 = vadd.f32 %v9619, %v9779
        %v9781 = vpop.f32.mrb[0].mxu0
        %v9782 = vpop.f32.mrb[0].mxu0
        %v9783 = vadd.f32 %v9622, %v9782
        %v9784 = vpop.f32.mrb[0].mxu0
        %9785 = vmatprep.mubr.bf16.mxu0 0
        %9786 = vmatmul.mubr.bf16.gmra.mrb[0].mxu0 %v9515
        %v9787 = vpop.f32.mrb[0].mxu0
        %v9788 = vadd.f32 %v9627, %v9787
        %v9789 = vpop.f32.mrb[0].mxu0
        %v9790 = vpop.f32.mrb[0].mxu0
        %v9791 = vadd.f32 %v9630, %v9790
        %v9792 = vpop.f32.mrb[0].mxu0
        %9793 = vmatprep.mubr.bf16.mxu0 0
        %9794 = vmatmul.mubr.bf16.gmra.mrb[0].mxu0 %v9518
        %v9795 = vpop.f32.mrb[0].mxu0
        %v9796 = vadd.f32 %v9635, %v9795
        %v9797 = vpop.f32.mrb[0].mxu0
        %v9798 = vpop.f32.mrb[0].mxu0
        %v9799 = vadd.f32 %v9638, %v9798
        %v9800 = vpop.f32.mrb[0].mxu0
        %9801 = vmatprep.mubr.bf16.mxu0 0
        %9802 = vmatmul.mubr.bf16.gmra.mrb[0].mxu0 %v9521
        %v9803 = vpop.f32.mrb[0].mxu0
        %v9804 = vadd.f32 %v9643, %v9803
        %v9805 = vpop.f32.mrb[0].mxu0
        %v9806 = vpop.f32.mrb[0].mxu0
        %v9807 = vadd.f32 %v9646, %v9806
        %v9808 = vpop.f32.mrb[0].mxu0
        %9809 = vmatprep.mubr.bf16.mxu0 0
        %9810 = vmatmul.mubr.bf16.gmra.mrb[0].mxu0 %v9524
        %v9811 = vpop.f32.mrb[0].mxu0
        %v9812 = vadd.f32 %v9651, %v9811
        %v9813 = vpop.f32.mrb[0].mxu0
        %v9814 = vpop.f32.mrb[0].mxu0
        %v9815 = vadd.f32 %v9654, %v9814
        %v9816 = vpop.f32.mrb[0].mxu0
        %9817 = vmatprep.mubr.bf16.mxu0 0
        %9818 = vmatmul.mubr.bf16.gmra.mrb[0].mxu0 %v9527
        %v9819 = vpop.f32.mrb[0].mxu0
        %v9820 = vadd.f32 %v9659, %v9819
        %v9821 = vpop.f32.mrb[0].mxu0
        %v9822 = vpop.f32.mrb[0].mxu0
        %v9823 = vadd.f32 %v9662, %v9822
        %v9824 = vpop.f32.mrb[0].mxu0
        %9825 = vmatprep.mubr.bf16.mxu0 0
        %9826 = vmatmul.mubr.bf16.gmra.mrb[0].mxu0 %v9530
        %v9827 = vpop.f32.mrb[0].mxu0
        %v9828 = vadd.f32 %v9667, %v9827
        %v9829 = vpop.f32.mrb[0].mxu0
        %v9830 = vpop.f32.mrb[0].mxu0
        %v9831 = vadd.f32 %v9670, %v9830
        %v9832 = vpop.f32.mrb[0].mxu0
        %9833 = vmatprep.mubr.bf16.mxu0 0
        %9834 = vmatmul.mubr.bf16.gmra.mrb[0].mxu0 %v9533
        %v9835 = vpop.f32.mrb[0].mxu0
        %v9836 = vadd.f32 %v9675, %v9835
        %v9837 = vpop.f32.mrb[0].mxu0
        %v9838 = vpop.f32.mrb[0].mxu0
        %v9839 = vadd.f32 %v9678, %v9838
        %v9840 = vpop.f32.mrb[0].mxu0
        %9841 = vmatprep.mubr.bf16.mxu0 0
        %9842 = vmatmul.mubr.bf16.gmra.mrb[0].mxu0 %v9536
        %v9843 = vpop.f32.mrb[0].mxu0
        %v9844 = vadd.f32 %v9683, %v9843
        %v9845 = vpop.f32.mrb[0].mxu0
        %v9846 = vpop.f32.mrb[0].mxu0
        %v9847 = vadd.f32 %v9686, %v9846
        %v9848 = vpop.f32.mrb[0].mxu0
        %9849 = vmatprep.mubr.bf16.mxu0 0
        %9850 = vmatmul.mubr.bf16.gmra.mrb[0].mxu0 %v9539
        %v9851 = vpop.f32.mrb[0].mxu0
        %v9852 = vadd.f32 %v9691, %v9851
        %v9853 = vpop.f32.mrb[0].mxu0
        %v9854 = vpop.f32.mrb[0].mxu0
        %v9855 = vadd.f32 %v9694, %v9854
        %v9856 = vpop.f32.mrb[0].mxu0
        %9857 = vmatprep.mubr.bf16.mxu0 0
        %9858 = vmatmul.mubr.bf16.gmra.mrb[0].mxu0 %v9542
        %v9859 = vpop.f32.mrb[0].mxu0
        %v9860 = vadd.f32 %v9699, %v9859
        %v9861 = vpop.f32.mrb[0].mxu0
        %v9862 = vpop.f32.mrb[0].mxu0
        %v9863 = vadd.f32 %v9702, %v9862
        %v9864 = vpop.f32.mrb[0].mxu0
        %9865 = vdwg.mxu0
        %v9866 = vtanh.pop %v9740
        %v9867 = vtanh.pop %v9743
        %v9868 = vtanh.pop %v9748
        %v9869 = vtanh.pop %v9751
        %v9870 = vtanh.pop %v9756
        %v9871 = vtanh.pop %v9759
        %v9872 = vtanh.pop %v9764
        %v9873 = vtanh.pop %v9767
        %v9874 = vtanh.pop %v9772
        %v9875 = vtanh.pop %v9775
        %v9876 = vtanh.pop %v9780
        %v9877 = vtanh.pop %v9783
        %v9878 = vtanh.pop %v9788
        %v9879 = vtanh.pop %v9791
        %v9880 = vtanh.pop %v9796
        %v9881 = vtanh.pop %v9799
        %v9882 = vtanh.pop %v9804
        %v9883 = vtanh.pop %v9807
        %v9884 = vtanh.pop %v9812
        %v9885 = vtanh.pop %v9815
        %v9886 = vtanh.pop %v9820
        %v9887 = vtanh.pop %v9823
        %v9888 = vtanh.pop %v9828
        %v9889 = vtanh.pop %v9831
        %v9890 = vtanh.pop %v9836
        %v9891 = vtanh.pop %v9839
        %v9892 = vtanh.pop %v9844
        %v9893 = vtanh.pop %v9847
        %v9894 = vtanh.pop %v9852
        %v9895 = vtanh.pop %v9855
        %v9896 = vtanh.pop %v9860
        %v9897 = vtanh.pop %v9863
        %vm9898 = vcmask 97280
        %9899 = vst.msk [vmem:[%s316] sm:$0xff] %vm9898, %v9866
        %9900 = vst.msk [vmem:[%s316 + $0x8] sm:$0xff] %vm9898, %v9867
        %9901 = vst.msk [vmem:[%s316 + $0x10] sm:$0xff] %vm9898, %v9868
        %9902 = vst.msk [vmem:[%s316 + $0x18] sm:$0xff] %vm9898, %v9869
        %9903 = vst.msk [vmem:[%s316 + $0x20] sm:$0xff] %vm9898, %v9870
        %9904 = vst.msk [vmem:[%s316 + $0x28] sm:$0xff] %vm9898, %v9871
        %9905 = vst.msk [vmem:[%s316 + $0x30] sm:$0xff] %vm9898, %v9872
        %9906 = vst.msk [vmem:[%s316 + $0x38] sm:$0xff] %vm9898, %v9873
        %9907 = vst.msk [vmem:[%s316 + $0x40] sm:$0xff] %vm9898, %v9874
        %9908 = vst.msk [vmem:[%s316 + $0x48] sm:$0xff] %vm9898, %v9875
        %9909 = vst.msk [vmem:[%s316 + $0x50] sm:$0xff] %vm9898, %v9876
        %9910 = vst.msk [vmem:[%s316 + $0x58] sm:$0xff] %vm9898, %v9877
        %9911 = vst.msk [vmem:[%s316 + $0x60] sm:$0xff] %vm9898, %v9878
        %9912 = vst.msk [vmem:[%s316 + $0x68] sm:$0xff] %vm9898, %v9879
        %9913 = vst.msk [vmem:[%s316 + $0x70] sm:$0xff] %vm9898, %v9880
        %9914 = vst.msk [vmem:[%s316 + $0x78] sm:$0xff] %vm9898, %v9881
        %9915 = vst.msk [vmem:[%s316 + $0x80] sm:$0xff] %vm9898, %v9882
        %9916 = vst.msk [vmem:[%s316 + $0x88] sm:$0xff] %vm9898, %v9883
        %9917 = vst.msk [vmem:[%s316 + $0x90] sm:$0xff] %vm9898, %v9884
        %9918 = vst.msk [vmem:[%s316 + $0x98] sm:$0xff] %vm9898, %v9885
        %9919 = vst.msk [vmem:[%s316 + $0xa0] sm:$0xff] %vm9898, %v9886
        %9920 = vst.msk [vmem:[%s316 + $0xa8] sm:$0xff] %vm9898, %v9887
        %9921 = vst.msk [vmem:[%s316 + $0xb0] sm:$0xff] %vm9898, %v9888
        %9922 = vst.msk [vmem:[%s316 + $0xb8] sm:$0xff] %vm9898, %v9889
        %9923 = vst.msk [vmem:[%s316 + $0xc0] sm:$0xff] %vm9898, %v9890
        %9924 = vst.msk [vmem:[%s316 + $0xc8] sm:$0xff] %vm9898, %v9891
        %9925 = vst.msk [vmem:[%s316 + $0xd0] sm:$0xff] %vm9898, %v9892
        %9926 = vst.msk [vmem:[%s316 + $0xd8] sm:$0xff] %vm9898, %v9893
        %9927 = vst.msk [vmem:[%s316 + $0xe0] sm:$0xff] %vm9898, %v9894
        %9928 = vst.msk [vmem:[%s316 + $0xe8] sm:$0xff] %vm9898, %v9895
        %9929 = vst.msk [vmem:[%s316 + $0xf0] sm:$0xff] %vm9898, %v9896
        %9930 = vst.msk [vmem:[%s316 + $0xf8] sm:$0xff] %vm9898, %v9897
        %p9931 = scmp.lt.s32.totalorder %s20, 1
        %s9932 = scalar_select %p9931, %s20, 1
        %s9933 = smul.addr %s9932, 32
        %s9934 = smul.addr %s9933, 8
        %s9935 = scalar_lea.vmem %s7, %s9934
        // Predicated region
        $region61: #{pixel_shuffle_model.1} parent=47 // pred_check
          %p9936 = pneg %p190
        $region62: #{pixel_shuffle_model.1} parent=47 // pred_check_branch
          %9938 = sbr.rel (%p9936) target = $region64
        $region63: #{pixel_shuffle_model.1} parent=47 // pred_region
          _
        $region64: #{pixel_shuffle_model.1} parent=47 // pred_fallthru
          _
      $region48: #{pixel_shuffle_model.1} parent=5 // pred_fallthru
        _
      %p9939 = scmp.le.s32.totalorder 2, %s15
      // Predicated region
      $region65: #{pixel_shuffle_model.1} parent=5 // pred_check
        %p9940 = pneg %p9939
      $region66: #{pixel_shuffle_model.1} parent=5 // pred_check_branch
        %9942 = sbr.rel (%p9940) target = $region68
      $region67: #{pixel_shuffle_model.1} parent=5 // pred_region
        %s9943 = ssub.s32 %s15, 2
        // Predicated region
        $region69: #{pixel_shuffle_model.1} parent=67 // pred_check
          %p9944 = pneg %p196
        $region70: #{pixel_shuffle_model.1} parent=67 // pred_check_branch
          %9946 = sbr.rel (%p9944) target = $region72
        $region71: #{pixel_shuffle_model.1} parent=67 // pred_region
          %p9947 = scmp.lt.s32.totalorder %s21, 1
          %s9948 = scalar_select %p9947, %s21, 1
          %s9949 = smul.addr %s9948, 32
          %s9950 = smul.addr %s9949, 8
          %s9951 = scalar_lea.vmem %s7, %s9950
        $region72: #{pixel_shuffle_model.1} parent=67 // pred_fallthru
          _
      $region68: #{pixel_shuffle_model.1} parent=5 // pred_fallthru
        _
    $region6: #{pixel_shuffle_model.1} parent=1 // loop_footer
      %s19 = sadd.s32 1, %s15
    $region7: #{pixel_shuffle_model.1} parent=1 // loop_footer_branch
      %14 = sbr.rel target = $region3
    $region8: #{pixel_shuffle_model.1} parent=1 // loop_exit
      _
    %9952 = vsyncpa [#allocation9], 1
    %s9953 = scalar_lea.sflag [#allocation9], 1
    %9954 = vsyncpa %s9953, 1
    %9955 = vsyncpa [#allocation11], 1

</llo_original>
